<compile_context>
chip_gen: v6e
topology: v6e:2x2x1
jax: 0.10.0
libtpu: 0.0.40
codegen_flags: <defaults>
</compile_context>

<pallas_src>
import functools

import jax
import jax.numpy as jnp
from jax.experimental import pallas as pl
from jax.experimental.pallas import tpu as pltpu

LANE = 128


def _vmem_budgets():
    """Generation-aware scoped-VMEM limit and per-call working-set budget."""
    cap = 64 * 1024 * 1024  # conservative default = v7x per-core VMEM
    try:
        info = pltpu.get_tpu_info()
        for name in ("vmem_capacity_bytes", "vmem_size_bytes", "vmem_bytes"):
            v = getattr(info, name, None)
            if v:
                cap = int(v)
                break
    except Exception:
        pass
    return int(cap * 0.6), int(cap * 0.3)


_VMEM_LIMIT, _TILE_BUDGET = _vmem_budgets()


def _round_up(x, m):
    return (x + m - 1) // m * m


def _pick_row_tile(m, row_bytes, fixed_bytes):
    """Row tile for the 1x1-conv matmuls.

    Prefers (in order): largest candidate that divides M exactly AND leaves
    >=2 grid steps; largest that divides M; largest <= M; smallest fitting.
    `row_bytes` uses the true in/out dtypes; `fixed_bytes` covers the
    double-buffered weights / scale / bias.
    """
    cands = (1024, 512, 256, 128)
    fits = [tm for tm in cands if 2 * tm * row_bytes + fixed_bytes <= _TILE_BUDGET]
    if not fits:
        return 128
    for tm in fits:
        if m % tm == 0 and m // tm >= 2:
            return tm
    for tm in fits:
        if m % tm == 0:
            return tm
    for tm in fits:
        if tm <= m:
            return tm
    return fits[-1]


def _pick_strip_rows(H, W, cb, in_bytes, out_bytes, other_steps):
    """H-strip height for the depthwise 5x5 kernel (4-row halo per strip)."""
    def fits(th):
        need = (2 * (th + 4) * (W + 4) * cb * in_bytes     # double-buffered input strips
                + 2 * th * W * cb * out_bytes              # double-buffered output strips
                + 2 * 25 * cb * 4 + 4 * cb * 4)            # taps + scale/bias
        return need <= _TILE_BUDGET

    divs = [d for d in range(min(H, 64), 0, -1) if H % d == 0 and fits(d)]
    if divs:
        if other_steps < 2:                 # make sure the grid has >=2 steps
            for d in divs:
                if H // d >= 2:
                    return d, H
        return divs[0], H
    for th in (64, 32, 16, 8):              # pad H as a last resort
        if fits(th):
            return th, _round_up(H, th)
    return min(H, 8), _round_up(H, 8)


# ---------------------------------------------------------------------------
# In-kernel activations
# ---------------------------------------------------------------------------
def _mish(x):
    # mish(x) = x * tanh(softplus(x)) = x * ((1+e^x)^2 - 1) / ((1+e^x)^2 + 1)
    # -> one EUP exp + one approx reciprocal instead of exp + log1p + tanh.
    e = jnp.exp(jnp.minimum(x, 20.0))         # clamp: for x>20, mish(x) ~= x
    n = (1.0 + e) * (1.0 + e)
    return x * (n - 1.0) * pl.reciprocal(n + 1.0, approx=True)


def _apply_act(y, act):
    if act == "mish":
        return _mish(y)
    if act == "relu":
        return jnp.maximum(y, 0.0)
    return y


# ---------------------------------------------------------------------------
# Kernel 1: fused matmul (1x1 conv) + per-channel affine (folded BN) + act
#           (the f32->bf16 cast of the network input happens inside the kernel)
# ---------------------------------------------------------------------------
def _matmul_affine_act_kernel(x_ref, w_ref, s_ref, b_ref, o_ref, *, act):
    xb = x_ref[...].astype(jnp.bfloat16)
    y = jnp.dot(xb, w_ref[...], preferred_element_type=jnp.float32)
    y = y * s_ref[...] + b_ref[...]
    o_ref[...] = _apply_act(y, act).astype(o_ref.dtype)


def matmul_affine_act(x2d, w, scale, bias, act, out_dtype):
    M, cin = x2d.shape
    cout = w.shape[1]
    row_bytes = cin * x2d.dtype.itemsize + cout * jnp.dtype(out_dtype).itemsize
    fixed = 2 * cin * cout * w.dtype.itemsize + 4 * cout * 4
    tm = _pick_row_tile(M, row_bytes, fixed)
    Mp = _round_up(M, tm)
    xin = jnp.pad(x2d, ((0, Mp - M), (0, 0))) if Mp != M else x2d
    kern = functools.partial(_matmul_affine_act_kernel, act=act)
    out = pl.pallas_call(
        kern,
        out_shape=jax.ShapeDtypeStruct((Mp, cout), out_dtype),
        grid=(Mp // tm,),
        in_specs=[
            pl.BlockSpec((tm, cin), lambda i: (i, 0)),     # cin = full array dim
            pl.BlockSpec((cin, cout), lambda i: (0, 0)),
            pl.BlockSpec((1, cout), lambda i: (0, 0)),
            pl.BlockSpec((1, cout), lambda i: (0, 0)),
        ],
        out_specs=pl.BlockSpec((tm, cout), lambda i: (i, 0)),
        compiler_params=pltpu.CompilerParams(
            dimension_semantics=("parallel",),
            vmem_limit_bytes=_VMEM_LIMIT),
    )(xin, w, scale, bias)
    return out[:M] if Mp != M else out


# ---------------------------------------------------------------------------
# Kernel 2: fused concat + 1x1 conv (shuf) + act, as two accumulating matmuls
#           (avoids materializing cat([x1, x2]) in HBM); bf16 writeback
# ---------------------------------------------------------------------------
def _dual_matmul_act_kernel(a_ref, b_ref, wa_ref, wb_ref, o_ref, *, act):
    y = jnp.dot(a_ref[...], wa_ref[...], preferred_element_type=jnp.float32)
    y = y + jnp.dot(b_ref[...], wb_ref[...], preferred_element_type=jnp.float32)
    o_ref[...] = _apply_act(y, act).astype(o_ref.dtype)


def dual_matmul_act(a2d, b2d, wa, wb, act, out_dtype):
    M, ca = a2d.shape
    cb = b2d.shape[1]
    cout = wa.shape[1]
    row_bytes = (ca * a2d.dtype.itemsize + cb * b2d.dtype.itemsize
                 + cout * jnp.dtype(out_dtype).itemsize)
    fixed = 2 * (ca + cb) * cout * wa.dtype.itemsize
    tm = _pick_row_tile(M, row_bytes, fixed)
    Mp = _round_up(M, tm)
    if Mp != M:
        a2d = jnp.pad(a2d, ((0, Mp - M), (0, 0)))
        b2d = jnp.pad(b2d, ((0, Mp - M), (0, 0)))
    kern = functools.partial(_dual_matmul_act_kernel, act=act)
    out = pl.pallas_call(
        kern,
        out_shape=jax.ShapeDtypeStruct((Mp, cout), out_dtype),
        grid=(Mp // tm,),
        in_specs=[
            pl.BlockSpec((tm, ca), lambda i: (i, 0)),
            pl.BlockSpec((tm, cb), lambda i: (i, 0)),
            pl.BlockSpec((ca, cout), lambda i: (0, 0)),
            pl.BlockSpec((cb, cout), lambda i: (0, 0)),
        ],
        out_specs=pl.BlockSpec((tm, cout), lambda i: (i, 0)),
        compiler_params=pltpu.CompilerParams(
            dimension_semantics=("parallel",),
            vmem_limit_bytes=_VMEM_LIMIT),
    )(a2d, b2d, wa, wb)
    return out[:M] if Mp != M else out


# ---------------------------------------------------------------------------
# Kernel 3: depthwise 5x5 conv + folded BN + Mish (VPU),
#           grid over (batch x H-strips, C/128); bf16 in / bf16 out, f32 acc.
# ---------------------------------------------------------------------------
def _dw5x5_affine_act_kernel(x_ref, w_ref, s_ref, b_ref, o_ref, *, act, TH, W):
    wv = w_ref[...]                                   # (5, 5, cb) f32
    # TODO(synk): if the bundle dump shows realigned VMEM copies for the five
    # dx-shifted sublane slices, switch the dx shifts to pltpu.roll (XLU slot).
    acc0 = x_ref[:, 0:TH, 0:W, :] * wv[0, 0]          # bf16 load, f32 product
    acc1 = x_ref[:, 0:TH, 1:1 + W, :] * wv[0, 1]      # 2 accumulators for ILP
    for t in range(2, 25):
        dy, dx = divmod(t, 5)
        tap = x_ref[:, dy:dy + TH, dx:dx + W, :] * wv[dy, dx]
        if t % 2 == 0:
            acc0 = acc0 + tap
        else:
            acc1 = acc1 + tap
    y = (acc0 + acc1) * s_ref[...] + b_ref[...]
    o_ref[...] = _apply_act(y, act).astype(o_ref.dtype)


def dwconv5x5_affine_act(x_nhwc, w, scale, bias, act, out_dtype):
    # x_nhwc: (N, H, W, Cp) bf16; w: (5, 5, Cp) f32; scale/bias: (1, Cp) f32
    N, H, W, Cp = x_nhwc.shape
    cb = LANE
    other_steps = N * (Cp // cb)
    th, Hp = _pick_strip_rows(H, W, cb,
                              in_bytes=x_nhwc.dtype.itemsize,
                              out_bytes=jnp.dtype(out_dtype).itemsize,
                              other_steps=other_steps)
    S = Hp // th
    # Halo pad; when striping, the overlapping (th+4)-row strips are built in
    # the same XLA fusion as the pad (one pass, ~(1+4/th)x input volume).
    xp = jnp.pad(x_nhwc, ((0, 0), (2, 2 + Hp - H), (2, 2), (0, 0)))
    if S > 1:
        xs = jnp.stack([xp[:, i * th:i * th + th + 4] for i in range(S)], axis=1)
        xs = xs.reshape(N * S, th + 4, W + 4, Cp)
    else:
        xs = xp

    kern = functools.partial(_dw5x5_affine_act_kernel, act=act, TH=th, W=W)
    out = pl.pallas_call(
        kern,
        out_shape=jax.ShapeDtypeStruct((N * S, th, W, Cp), out_dtype),
        grid=(N * S, Cp // cb),
        in_specs=[
            pl.BlockSpec((1, th + 4, W + 4, cb), lambda ns, c: (ns, 0, 0, c)),
            pl.BlockSpec((5, 5, cb), lambda ns, c: (0, 0, c)),
            pl.BlockSpec((1, cb), lambda ns, c: (0, c)),
            pl.BlockSpec((1, cb), lambda ns, c: (0, c)),
        ],
        out_specs=pl.BlockSpec((1, th, W, cb), lambda ns, c: (ns, 0, 0, c)),
        compiler_params=pltpu.CompilerParams(
            dimension_semantics=("parallel", "parallel"),
            vmem_limit_bytes=_VMEM_LIMIT),
    )(xs, w, scale, bias)
    out = out.reshape(N, Hp, W, Cp)
    return out[:, :H] if Hp != H else out


# ---------------------------------------------------------------------------
# Parameter prep: PyTorch layouts -> folded-BN, lane-padded, bf16 weights
# ---------------------------------------------------------------------------
def _fold_bn(p, eps=1e-5):
    s = p["gamma"] / jnp.sqrt(p["var"] + eps)
    return s, p["beta"] - p["mean"] * s


def prepare_params(raw):
    c1, c2, c_ = raw["c1"], raw["c2"], raw["c_"]
    cp, c2p = _round_up(c_, LANE), _round_up(c2, LANE)

    # cv1: (c_, c1, 1, 1) -> (c1, cp) bf16 matmul weight + folded BN affine
    # (input channel dim left unpadded; the input block uses the full-dim rule)
    w1 = raw["cv1"]["w"].reshape(c_, c1).T
    w1 = jnp.pad(w1, ((0, 0), (0, cp - c_))).astype(jnp.bfloat16)
    s1, b1 = _fold_bn(raw["cv1"])
    s1 = jnp.pad(s1, (0, cp - c_)).reshape(1, cp)
    b1 = jnp.pad(b1, (0, cp - c_)).reshape(1, cp)

    # cv2 depthwise: (c_, 1, 5, 5) -> (5, 5, cp) f32 + folded BN affine
    wd = jnp.transpose(raw["cv2"]["w"].reshape(c_, 5, 5), (1, 2, 0))
    wd = jnp.pad(wd, ((0, 0), (0, 0), (0, cp - c_)))
    s2, b2 = _fold_bn(raw["cv2"])
    s2 = jnp.pad(s2, (0, cp - c_)).reshape(1, cp)
    b2 = jnp.pad(b2, (0, cp - c_)).reshape(1, cp)

    # shuf: (c2, 2c_, 1, 1) split into halves acting on x1 and dw(x1);
    # the channel concat is folded into the dual-matmul kernel.
    ws = raw["shuf"]["w"].reshape(c2, 2 * c_)
    wa = jnp.pad(ws[:, :c_].T, ((0, cp - c_), (0, c2p - c2))).astype(jnp.bfloat16)
    wb = jnp.pad(ws[:, c_:].T, ((0, cp - c_), (0, c2p - c2))).astype(jnp.bfloat16)

    return {"c1": c1, "c2": c2, "c_": c_, "cp": cp, "c2p": c2p,
            "w1": w1, "s1": s1, "b1": b1,
            "wdw": wd, "s2": s2, "b2": b2, "wa": wa, "wb": wb}


# ---------------------------------------------------------------------------
# GSConvns forward (NCHW in / NCHW out)
# ---------------------------------------------------------------------------
def gsconvns_forward(x_nchw, pp):
    N, c1, H, W = x_nchw.shape
    cp, c2p, c2 = pp["cp"], pp["c2p"], pp["c2"]
    M = N * H * W

    # NOTE: entry/exit transposes exist only because the module contract is
    # NCHW; when stacking GSConv blocks keep the whole net NHWC and drop them.
    x2d = jnp.transpose(x_nchw, (0, 2, 3, 1)).reshape(M, c1)

    # cv1: 1x1 conv + BN + Mish  (MXU; f32 input cast to bf16 inside kernel)
    x1 = matmul_affine_act(x2d, pp["w1"], pp["s1"], pp["b1"],
                           act="mish", out_dtype=jnp.bfloat16)

    # cv2: depthwise 5x5 + BN + Mish  (VPU; bf16 in, f32 accumulate, bf16 out)
    x2 = dwconv5x5_affine_act(x1.reshape(N, H, W, cp),
                              pp["wdw"], pp["s2"], pp["b2"],
                              act="mish", out_dtype=jnp.bfloat16)

    # concat + shuf 1x1 (bias-free, no BN) + ReLU, fused into one kernel
    y = dual_matmul_act(x1, x2.reshape(M, cp), pp["wa"], pp["wb"],
                        act="relu", out_dtype=jnp.bfloat16)
    y = y.reshape(N, H, W, c2p)[..., :c2]
    return jnp.transpose(y, (0, 3, 1, 2)).astype(jnp.float32)   # NHWC -> NCHW


# ---------------------------------------------------------------------------
# Deterministic init (PyTorch layouts) + pure-JAX reference for validation
# ---------------------------------------------------------------------------
def init_gsconvns(key, c1, c2):
    c_ = c2 // 2
    k1, k2, k3 = jax.random.split(key, 3)

    def conv_bn(k, cin, cout, ks, groups=1):
        ka, kb, kc, kd, ke = jax.random.split(k, 5)
        return {"w": 0.2 * jax.random.normal(ka, (cout, cin // groups, ks, ks), jnp.float32),
                "gamma": 1.0 + 0.1 * jax.random.normal(kb, (cout,), jnp.float32),
                "beta": 0.1 * jax.random.normal(kc, (cout,), jnp.float32),
                "mean": 0.1 * jax.random.normal(kd, (cout,), jnp.float32),
                "var": 1.0 + 0.1 * jnp.abs(jax.random.normal(ke, (cout,), jnp.float32))}

    return {"cv1": conv_bn(k1, c1, c_, 1),
            "cv2": conv_bn(k2, c_, c_, 5, groups=c_),
            "shuf": {"w": 0.2 * jax.random.normal(k3, (c2, 2 * c_, 1, 1), jnp.float32)},
            "c1": c1, "c2": c2, "c_": c_}


def gsconvns_reference(x_nchw, raw):
    eps = 1e-5
    c1, c2, c_ = raw["c1"], raw["c2"], raw["c_"]
    N, _, H, W = x_nchw.shape
    mish = lambda v: v * jnp.tanh(jax.nn.softplus(v))

    x = jnp.transpose(x_nchw, (0, 2, 3, 1))
    w1 = raw["cv1"]["w"].reshape(c_, c1)
    s1 = raw["cv1"]["gamma"] / jnp.sqrt(raw["cv1"]["var"] + eps)
    b1 = raw["cv1"]["beta"] - raw["cv1"]["mean"] * s1
    x1 = mish(jnp.einsum("nhwc,oc->nhwo", x, w1) * s1 + b1)

    wd = raw["cv2"]["w"].reshape(c_, 5, 5)
    xp = jnp.pad(x1, ((0, 0), (2, 2), (2, 2), (0, 0)))
    acc = jnp.zeros_like(x1)
    for dy in range(5):
        for dx in range(5):
            acc = acc + xp[:, dy:dy + H, dx:dx + W, :] * wd[:, dy, dx]
    s2 = raw["cv2"]["gamma"] / jnp.sqrt(raw["cv2"]["var"] + eps)
    b2 = raw["cv2"]["beta"] - raw["cv2"]["mean"] * s2
    x2 = mish(acc * s2 + b2)

    ws = raw["shuf"]["w"].reshape(c2, 2 * c_)
    xc = jnp.concatenate([x1, x2], axis=-1)
    out = jnp.maximum(jnp.einsum("nhwc,oc->nhwo", xc, ws), 0.0)
    return jnp.transpose(out, (0, 3, 1, 2))


# ---------------------------------------------------------------------------
if __name__ == "__main__":
    key = jax.random.PRNGKey(0)
    kx, kp = jax.random.split(key)

    N, c1, c2, H, W = 2, 8, 8, 16, 16
    x = jax.random.normal(kx, (N, c1, H, W), jnp.float32)
    raw = init_gsconvns(kp, c1, c2)
    pp = prepare_params(raw)

    fwd = jax.jit(lambda inp: gsconvns_forward(inp, pp))
    out = jax.block_until_ready(fwd(x))

    assert out.shape == (N, c2, H, W), out.shape
    assert bool(jnp.all(jnp.isfinite(out)))

    ref = gsconvns_reference(x, raw)
    rel_err = float(jnp.max(jnp.abs(out - ref)) / (jnp.max(jnp.abs(ref)) + 1e-6))
    assert rel_err < 5e-2, rel_err
    print("KERNEL_OK")
</pallas_src>

<mosaic_0001>
module attributes {stable_mosaic.version = 11 : i64} {
  func.func @_matmul_affine_act_kernel(%arg0: i32, %arg1: memref<256x8xf32, #tpu.memory_space<vmem>>, %arg2: memref<8x128xbf16, #tpu.memory_space<vmem>>, %arg3: memref<1x128xf32, #tpu.memory_space<vmem>>, %arg4: memref<1x128xf32, #tpu.memory_space<vmem>>, %arg5: memref<256x128xbf16, #tpu.memory_space<vmem>>) attributes {dimension_semantics = [#tpu.dimension_semantics<parallel>], iteration_bounds = array<i64: 2>, scalar_prefetch = 0 : i64, scratch_operands = 0 : i64, tpu.core_type = #tpu.core_type<tc>, window_params = [{transform_indices = @transform_0, window_bounds = array<i64: 256, 8>}, {pipeline_mode = #tpu.pipeline_mode<synchronous>, transform_indices = @transform_1, window_bounds = array<i64: 8, 128>}, {pipeline_mode = #tpu.pipeline_mode<synchronous>, transform_indices = @transform_2, window_bounds = array<i64: 1, 128>}, {pipeline_mode = #tpu.pipeline_mode<synchronous>, transform_indices = @transform_3, window_bounds = array<i64: 1, 128>}, {transform_indices = @transform_4, window_bounds = array<i64: 256, 128>}]} {
    %c0 = arith.constant 0 : index
    %c0_0 = arith.constant 0 : index
    %0 = vector.load %arg1[%c0, %c0_0] : memref<256x8xf32, #tpu.memory_space<vmem>>, vector<256x8xf32>
    %1 = arith.truncf %0 : vector<256x8xf32> to vector<256x8xbf16>
    %c0_1 = arith.constant 0 : index
    %c0_2 = arith.constant 0 : index
    %2 = vector.load %arg2[%c0_1, %c0_2] : memref<8x128xbf16, #tpu.memory_space<vmem>>, vector<8x128xbf16>
    %cst = arith.constant dense<0.000000e+00> : vector<256x128xf32>
    %3 = tpu.matmul %1, %2, %cst {dimension_numbers = #tpu.dot_dimension_numbers<[1], [0], [0], [1], [0, 0, 1, 1], [], []>} : vector<256x8xbf16>, vector<8x128xbf16>, vector<256x128xf32> -> vector<256x128xf32>
    %c0_3 = arith.constant 0 : index
    %c0_4 = arith.constant 0 : index
    %4 = vector.load %arg3[%c0_3, %c0_4] : memref<1x128xf32, #tpu.memory_space<vmem>>, vector<1x128xf32>
    %5 = vector.broadcast %4 : vector<1x128xf32> to vector<256x128xf32>
    %6 = arith.mulf %3, %5 : vector<256x128xf32>
    %c0_5 = arith.constant 0 : index
    %c0_6 = arith.constant 0 : index
    %7 = vector.load %arg4[%c0_5, %c0_6] : memref<1x128xf32, #tpu.memory_space<vmem>>, vector<1x128xf32>
    %8 = vector.broadcast %7 : vector<1x128xf32> to vector<256x128xf32>
    %9 = arith.addf %6, %8 : vector<256x128xf32>
    %cst_7 = arith.constant 2.000000e+01 : f32
    %10 = vector.broadcast %cst_7 : f32 to vector<256x128xf32>
    %11 = arith.minimumf %9, %10 : vector<256x128xf32>
    %12 = math.exp %11 : vector<256x128xf32>
    %cst_8 = arith.constant 1.000000e+00 : f32
    %13 = vector.broadcast %cst_8 : f32 to vector<256x128xf32>
    %14 = arith.addf %13, %12 : vector<256x128xf32>
    %cst_9 = arith.constant 1.000000e+00 : f32
    %15 = vector.broadcast %cst_9 : f32 to vector<256x128xf32>
    %16 = arith.addf %15, %12 : vector<256x128xf32>
    %17 = arith.mulf %14, %16 : vector<256x128xf32>
    %cst_10 = arith.constant 1.000000e+00 : f32
    %18 = vector.broadcast %cst_10 : f32 to vector<256x128xf32>
    %19 = arith.subf %17, %18 : vector<256x128xf32>
    %20 = arith.mulf %9, %19 : vector<256x128xf32>
    %cst_11 = arith.constant 1.000000e+00 : f32
    %21 = vector.broadcast %cst_11 : f32 to vector<256x128xf32>
    %22 = arith.addf %17, %21 : vector<256x128xf32>
    %23 = tpu.reciprocal %22 {approx = true} : vector<256x128xf32> -> vector<256x128xf32>
    %24 = arith.mulf %20, %23 : vector<256x128xf32>
    %25 = arith.truncf %24 : vector<256x128xf32> to vector<256x128xbf16>
    %c0_12 = arith.constant 0 : index
    %c0_13 = arith.constant 0 : index
    %26 = vector.load %arg5[%c0_12, %c0_13] : memref<256x128xbf16, #tpu.memory_space<vmem>>, vector<256x128xbf16>
    tpu.vector_store %arg5[%c0_12, %c0_13], %25 {strides = array<i32>} : memref<256x128xbf16, #tpu.memory_space<vmem>>, vector<256x128xbf16>,
    return
  }
  func.func @transform_0(%arg0: i32) -> (i32, i32) {
    %c0_i32 = arith.constant 0 : i32
    %c0_i32_0 = arith.constant 0 : i32
    return %arg0, %c0_i32 : i32, i32
  }
  func.func @transform_1(%arg0: i32) -> (i32, i32) {
    %c0_i32 = arith.constant 0 : i32
    %c0_i32_0 = arith.constant 0 : i32
    %c0_i32_1 = arith.constant 0 : i32
    return %c0_i32, %c0_i32_0 : i32, i32
  }
  func.func @transform_2(%arg0: i32) -> (i32, i32) {
    %c0_i32 = arith.constant 0 : i32
    %c0_i32_0 = arith.constant 0 : i32
    %c0_i32_1 = arith.constant 0 : i32
    return %c0_i32, %c0_i32_0 : i32, i32
  }
  func.func @transform_3(%arg0: i32) -> (i32, i32) {
    %c0_i32 = arith.constant 0 : i32
    %c0_i32_0 = arith.constant 0 : i32
    %c0_i32_1 = arith.constant 0 : i32
    return %c0_i32, %c0_i32_0 : i32, i32
  }
  func.func @transform_4(%arg0: i32) -> (i32, i32) {
    %c0_i32 = arith.constant 0 : i32
    %c0_i32_0 = arith.constant 0 : i32
    return %arg0, %c0_i32 : i32, i32
  }
}

module attributes {stable_mosaic.version = 11 : i64} {
  func.func @_dw5x5_affine_act_kernel(%arg0: i32, %arg1: i32, %arg2: memref<1x20x20x128xbf16, #tpu.memory_space<vmem>>, %arg3: memref<5x5x128xf32, #tpu.memory_space<vmem>>, %arg4: memref<1x128xf32, #tpu.memory_space<vmem>>, %arg5: memref<1x128xf32, #tpu.memory_space<vmem>>, %arg6: memref<1x16x16x128xbf16, #tpu.memory_space<vmem>>) attributes {dimension_semantics = [#tpu.dimension_semantics<parallel>, #tpu.dimension_semantics<parallel>], iteration_bounds = array<i64: 2, 1>, scalar_prefetch = 0 : i64, scratch_operands = 0 : i64, tpu.core_type = #tpu.core_type<tc>, window_params = [{transform_indices = @transform_0, window_bounds = array<i64: 1, 20, 20, 128>}, {transform_indices = @transform_1, window_bounds = array<i64: 5, 5, 128>}, {transform_indices = @transform_2, window_bounds = array<i64: 1, 128>}, {transform_indices = @transform_3, window_bounds = array<i64: 1, 128>}, {transform_indices = @transform_4, window_bounds = array<i64: 1, 16, 16, 128>}]} {
    %c0 = arith.constant 0 : index
    %c0_0 = arith.constant 0 : index
    %c0_1 = arith.constant 0 : index
    %0 = vector.load %arg3[%c0, %c0_0, %c0_1] : memref<5x5x128xf32, #tpu.memory_space<vmem>>, vector<5x5x128xf32>
    %c0_2 = arith.constant 0 : index
    %c0_3 = arith.constant 0 : index
    %c0_4 = arith.constant 0 : index
    %c0_5 = arith.constant 0 : index
    %1 = vector.load %arg2[%c0_2, %c0_3, %c0_4, %c0_5] : memref<1x20x20x128xbf16, #tpu.memory_space<vmem>>, vector<1x16x16x128xbf16>
    %2 = vector.extract_strided_slice %0 {offsets = [0, 0, 0], sizes = [1, 1, 128], strides = [1, 1, 1]} : vector<5x5x128xf32> to vector<1x1x128xf32>
    %3 = vector.shape_cast %2 : vector<1x1x128xf32> to vector<128xf32>
    %4 = arith.extf %1 : vector<1x16x16x128xbf16> to vector<1x16x16x128xf32>
    %5 = vector.shape_cast %3 : vector<128xf32> to vector<1x1x1x128xf32>
    %6 = vector.broadcast %5 : vector<1x1x1x128xf32> to vector<1x16x16x128xf32>
    %7 = arith.mulf %4, %6 : vector<1x16x16x128xf32>
    %c0_6 = arith.constant 0 : index
    %c0_7 = arith.constant 0 : index
    %c1 = arith.constant 1 : index
    %c0_8 = arith.constant 0 : index
    %8 = vector.load %arg2[%c0_6, %c0_7, %c1, %c0_8] : memref<1x20x20x128xbf16, #tpu.memory_space<vmem>>, vector<1x16x16x128xbf16>
    %9 = vector.extract_strided_slice %0 {offsets = [0, 1, 0], sizes = [1, 1, 128], strides = [1, 1, 1]} : vector<5x5x128xf32> to vector<1x1x128xf32>
    %10 = vector.shape_cast %9 : vector<1x1x128xf32> to vector<128xf32>
    %11 = arith.extf %8 : vector<1x16x16x128xbf16> to vector<1x16x16x128xf32>
    %12 = vector.shape_cast %10 : vector<128xf32> to vector<1x1x1x128xf32>
    %13 = vector.broadcast %12 : vector<1x1x1x128xf32> to vector<1x16x16x128xf32>
    %14 = arith.mulf %11, %13 : vector<1x16x16x128xf32>
    %c0_9 = arith.constant 0 : index
    %c0_10 = arith.constant 0 : index
    %c2 = arith.constant 2 : index
    %c0_11 = arith.constant 0 : index
    %15 = vector.load %arg2[%c0_9, %c0_10, %c2, %c0_11] : memref<1x20x20x128xbf16, #tpu.memory_space<vmem>>, vector<1x16x16x128xbf16>
    %16 = vector.extract_strided_slice %0 {offsets = [0, 2, 0], sizes = [1, 1, 128], strides = [1, 1, 1]} : vector<5x5x128xf32> to vector<1x1x128xf32>
    %17 = vector.shape_cast %16 : vector<1x1x128xf32> to vector<128xf32>
    %18 = arith.extf %15 : vector<1x16x16x128xbf16> to vector<1x16x16x128xf32>
    %19 = vector.shape_cast %17 : vector<128xf32> to vector<1x1x1x128xf32>
    %20 = vector.broadcast %19 : vector<1x1x1x128xf32> to vector<1x16x16x128xf32>
    %21 = arith.mulf %18, %20 : vector<1x16x16x128xf32>
    %22 = arith.addf %7, %21 : vector<1x16x16x128xf32>
    %c0_12 = arith.constant 0 : index
    %c0_13 = arith.constant 0 : index
    %c3 = arith.constant 3 : index
    %c0_14 = arith.constant 0 : index
    %23 = vector.load %arg2[%c0_12, %c0_13, %c3, %c0_14] : memref<1x20x20x128xbf16, #tpu.memory_space<vmem>>, vector<1x16x16x128xbf16>
    %24 = vector.extract_strided_slice %0 {offsets = [0, 3, 0], sizes = [1, 1, 128], strides = [1, 1, 1]} : vector<5x5x128xf32> to vector<1x1x128xf32>
    %25 = vector.shape_cast %24 : vector<1x1x128xf32> to vector<128xf32>
    %26 = arith.extf %23 : vector<1x16x16x128xbf16> to vector<1x16x16x128xf32>
    %27 = vector.shape_cast %25 : vector<128xf32> to vector<1x1x1x128xf32>
    %28 = vector.broadcast %27 : vector<1x1x1x128xf32> to vector<1x16x16x128xf32>
    %29 = arith.mulf %26, %28 : vector<1x16x16x128xf32>
    %30 = arith.addf %14, %29 : vector<1x16x16x128xf32>
    %c0_15 = arith.constant 0 : index
    %c0_16 = arith.constant 0 : index
    %c4 = arith.constant 4 : index
    %c0_17 = arith.constant 0 : index
    %31 = vector.load %arg2[%c0_15, %c0_16, %c4, %c0_17] : memref<1x20x20x128xbf16, #tpu.memory_space<vmem>>, vector<1x16x16x128xbf16>
    %32 = vector.extract_strided_slice %0 {offsets = [0, 4, 0], sizes = [1, 1, 128], strides = [1, 1, 1]} : vector<5x5x128xf32> to vector<1x1x128xf32>
    %33 = vector.shape_cast %32 : vector<1x1x128xf32> to vector<128xf32>
    %34 = arith.extf %31 : vector<1x16x16x128xbf16> to vector<1x16x16x128xf32>
    %35 = vector.shape_cast %33 : vector<128xf32> to vector<1x1x1x128xf32>
    %36 = vector.broadcast %35 : vector<1x1x1x128xf32> to vector<1x16x16x128xf32>
    %37 = arith.mulf %34, %36 : vector<1x16x16x128xf32>
    %38 = arith.addf %22, %37 : vector<1x16x16x128xf32>
    %c0_18 = arith.constant 0 : index
    %c1_19 = arith.constant 1 : index
    %c0_20 = arith.constant 0 : index
    %c0_21 = arith.constant 0 : index
    %39 = vector.load %arg2[%c0_18, %c1_19, %c0_20, %c0_21] : memref<1x20x20x128xbf16, #tpu.memory_space<vmem>>, vector<1x16x16x128xbf16>
    %40 = vector.extract_strided_slice %0 {offsets = [1, 0, 0], sizes = [1, 1, 128], strides = [1, 1, 1]} : vector<5x5x128xf32> to vector<1x1x128xf32>
    %41 = vector.shape_cast %40 : vector<1x1x128xf32> to vector<128xf32>
    %42 = arith.extf %39 : vector<1x16x16x128xbf16> to vector<1x16x16x128xf32>
    %43 = vector.shape_cast %41 : vector<128xf32> to vector<1x1x1x128xf32>
    %44 = vector.broadcast %43 : vector<1x1x1x128xf32> to vector<1x16x16x128xf32>
    %45 = arith.mulf %42, %44 : vector<1x16x16x128xf32>
    %46 = arith.addf %30, %45 : vector<1x16x16x128xf32>
    %c0_22 = arith.constant 0 : index
    %c1_23 = arith.constant 1 : index
    %c1_24 = arith.constant 1 : index
    %c0_25 = arith.constant 0 : index
    %47 = vector.load %arg2[%c0_22, %c1_23, %c1_24, %c0_25] : memref<1x20x20x128xbf16, #tpu.memory_space<vmem>>, vector<1x16x16x128xbf16>
    %48 = vector.extract_strided_slice %0 {offsets = [1, 1, 0], sizes = [1, 1, 128], strides = [1, 1, 1]} : vector<5x5x128xf32> to vector<1x1x128xf32>
    %49 = vector.shape_cast %48 : vector<1x1x128xf32> to vector<128xf32>
    %50 = arith.extf %47 : vector<1x16x16x128xbf16> to vector<1x16x16x128xf32>
    %51 = vector.shape_cast %49 : vector<128xf32> to vector<1x1x1x128xf32>
    %52 = vector.broadcast %51 : vector<1x1x1x128xf32> to vector<1x16x16x128xf32>
    %53 = arith.mulf %50, %52 : vector<1x16x16x128xf32>
    %54 = arith.addf %38, %53 : vector<1x16x16x128xf32>
    %c0_26 = arith.constant 0 : index
    %c1_27 = arith.constant 1 : index
    %c2_28 = arith.constant 2 : index
    %c0_29 = arith.constant 0 : index
    %55 = vector.load %arg2[%c0_26, %c1_27, %c2_28, %c0_29] : memref<1x20x20x128xbf16, #tpu.memory_space<vmem>>, vector<1x16x16x128xbf16>
    %56 = vector.extract_strided_slice %0 {offsets = [1, 2, 0], sizes = [1, 1, 128], strides = [1, 1, 1]} : vector<5x5x128xf32> to vector<1x1x128xf32>
    %57 = vector.shape_cast %56 : vector<1x1x128xf32> to vector<128xf32>
    %58 = arith.extf %55 : vector<1x16x16x128xbf16> to vector<1x16x16x128xf32>
    %59 = vector.shape_cast %57 : vector<128xf32> to vector<1x1x1x128xf32>
    %60 = vector.broadcast %59 : vector<1x1x1x128xf32> to vector<1x16x16x128xf32>
    %61 = arith.mulf %58, %60 : vector<1x16x16x128xf32>
    %62 = arith.addf %46, %61 : vector<1x16x16x128xf32>
    %c0_30 = arith.constant 0 : index
    %c1_31 = arith.constant 1 : index
    %c3_32 = arith.constant 3 : index
    %c0_33 = arith.constant 0 : index
    %63 = vector.load %arg2[%c0_30, %c1_31, %c3_32, %c0_33] : memref<1x20x20x128xbf16, #tpu.memory_space<vmem>>, vector<1x16x16x128xbf16>
    %64 = vector.extract_strided_slice %0 {offsets = [1, 3, 0], sizes = [1, 1, 128], strides = [1, 1, 1]} : vector<5x5x128xf32> to vector<1x1x128xf32>
    %65 = vector.shape_cast %64 : vector<1x1x128xf32> to vector<128xf32>
    %66 = arith.extf %63 : vector<1x16x16x128xbf16> to vector<1x16x16x128xf32>
    %67 = vector.shape_cast %65 : vector<128xf32> to vector<1x1x1x128xf32>
    %68 = vector.broadcast %67 : vector<1x1x1x128xf32> to vector<1x16x16x128xf32>
    %69 = arith.mulf %66, %68 : vector<1x16x16x128xf32>
    %70 = arith.addf %54, %69 : vector<1x16x16x128xf32>
    %c0_34 = arith.constant 0 : index
    %c1_35 = arith.constant 1 : index
    %c4_36 = arith.constant 4 : index
    %c0_37 = arith.constant 0 : index
    %71 = vector.load %arg2[%c0_34, %c1_35, %c4_36, %c0_37] : memref<1x20x20x128xbf16, #tpu.memory_space<vmem>>, vector<1x16x16x128xbf16>
    %72 = vector.extract_strided_slice %0 {offsets = [1, 4, 0], sizes = [1, 1, 128], strides = [1, 1, 1]} : vector<5x5x128xf32> to vector<1x1x128xf32>
    %73 = vector.shape_cast %72 : vector<1x1x128xf32> to vector<128xf32>
    %74 = arith.extf %71 : vector<1x16x16x128xbf16> to vector<1x16x16x128xf32>
    %75 = vector.shape_cast %73 : vector<128xf32> to vector<1x1x1x128xf32>
    %76 = vector.broadcast %75 : vector<1x1x1x128xf32> to vector<1x16x16x128xf32>
    %77 = arith.mulf %74, %76 : vector<1x16x16x128xf32>
    %78 = arith.addf %62, %77 : vector<1x16x16x128xf32>
    %c0_38 = arith.constant 0 : index
    %c2_39 = arith.constant 2 : index
    %c0_40 = arith.constant 0 : index
    %c0_41 = arith.constant 0 : index
    %79 = vector.load %arg2[%c0_38, %c2_39, %c0_40, %c0_41] : memref<1x20x20x128xbf16, #tpu.memory_space<vmem>>, vector<1x16x16x128xbf16>
    %80 = vector.extract_strided_slice %0 {offsets = [2, 0, 0], sizes = [1, 1, 128], strides = [1, 1, 1]} : vector<5x5x128xf32> to vector<1x1x128xf32>
    %81 = vector.shape_cast %80 : vector<1x1x128xf32> to vector<128xf32>
    %82 = arith.extf %79 : vector<1x16x16x128xbf16> to vector<1x16x16x128xf32>
    %83 = vector.shape_cast %81 : vector<128xf32> to vector<1x1x1x128xf32>
    %84 = vector.broadcast %83 : vector<1x1x1x128xf32> to vector<1x16x16x128xf32>
    %85 = arith.mulf %82, %84 : vector<1x16x16x128xf32>
    %86 = arith.addf %70, %85 : vector<1x16x16x128xf32>
    %c0_42 = arith.constant 0 : index
    %c2_43 = arith.constant 2 : index
    %c1_44 = arith.constant 1 : index
    %c0_45 = arith.constant 0 : index
    %87 = vector.load %arg2[%c0_42, %c2_43, %c1_44, %c0_45] : memref<1x20x20x128xbf16, #tpu.memory_space<vmem>>, vector<1x16x16x128xbf16>
    %88 = vector.extract_strided_slice %0 {offsets = [2, 1, 0], sizes = [1, 1, 128], strides = [1, 1, 1]} : vector<5x5x128xf32> to vector<1x1x128xf32>
    %89 = vector.shape_cast %88 : vector<1x1x128xf32> to vector<128xf32>
    %90 = arith.extf %87 : vector<1x16x16x128xbf16> to vector<1x16x16x128xf32>
    %91 = vector.shape_cast %89 : vector<128xf32> to vector<1x1x1x128xf32>
    %92 = vector.broadcast %91 : vector<1x1x1x128xf32> to vector<1x16x16x128xf32>
    %93 = arith.mulf %90, %92 : vector<1x16x16x128xf32>
    %94 = arith.addf %78, %93 : vector<1x16x16x128xf32>
    %c0_46 = arith.constant 0 : index
    %c2_47 = arith.constant 2 : index
    %c2_48 = arith.constant 2 : index
    %c0_49 = arith.constant 0 : index
    %95 = vector.load %arg2[%c0_46, %c2_47, %c2_48, %c0_49] : memref<1x20x20x128xbf16, #tpu.memory_space<vmem>>, vector<1x16x16x128xbf16>
    %96 = vector.extract_strided_slice %0 {offsets = [2, 2, 0], sizes = [1, 1, 128], strides = [1, 1, 1]} : vector<5x5x128xf32> to vector<1x1x128xf32>
    %97 = vector.shape_cast %96 : vector<1x1x128xf32> to vector<128xf32>
    %98 = arith.extf %95 : vector<1x16x16x128xbf16> to vector<1x16x16x128xf32>
    %99 = vector.shape_cast %97 : vector<128xf32> to vector<1x1x1x128xf32>
    %100 = vector.broadcast %99 : vector<1x1x1x128xf32> to vector<1x16x16x128xf32>
    %101 = arith.mulf %98, %100 : vector<1x16x16x128xf32>
    %102 = arith.addf %86, %101 : vector<1x16x16x128xf32>
    %c0_50 = arith.constant 0 : index
    %c2_51 = arith.constant 2 : index
    %c3_52 = arith.constant 3 : index
    %c0_53 = arith.constant 0 : index
    %103 = vector.load %arg2[%c0_50, %c2_51, %c3_52, %c0_53] : memref<1x20x20x128xbf16, #tpu.memory_space<vmem>>, vector<1x16x16x128xbf16>
    %104 = vector.extract_strided_slice %0 {offsets = [2, 3, 0], sizes = [1, 1, 128], strides = [1, 1, 1]} : vector<5x5x128xf32> to vector<1x1x128xf32>
    %105 = vector.shape_cast %104 : vector<1x1x128xf32> to vector<128xf32>
    %106 = arith.extf %103 : vector<1x16x16x128xbf16> to vector<1x16x16x128xf32>
    %107 = vector.shape_cast %105 : vector<128xf32> to vector<1x1x1x128xf32>
    %108 = vector.broadcast %107 : vector<1x1x1x128xf32> to vector<1x16x16x128xf32>
    %109 = arith.mulf %106, %108 : vector<1x16x16x128xf32>
    %110 = arith.addf %94, %109 : vector<1x16x16x128xf32>
    %c0_54 = arith.constant 0 : index
    %c2_55 = arith.constant 2 : index
    %c4_56 = arith.constant 4 : index
    %c0_57 = arith.constant 0 : index
    %111 = vector.load %arg2[%c0_54, %c2_55, %c4_56, %c0_57] : memref<1x20x20x128xbf16, #tpu.memory_space<vmem>>, vector<1x16x16x128xbf16>
    %112 = vector.extract_strided_slice %0 {offsets = [2, 4, 0], sizes = [1, 1, 128], strides = [1, 1, 1]} : vector<5x5x128xf32> to vector<1x1x128xf32>
    %113 = vector.shape_cast %112 : vector<1x1x128xf32> to vector<128xf32>
    %114 = arith.extf %111 : vector<1x16x16x128xbf16> to vector<1x16x16x128xf32>
    %115 = vector.shape_cast %113 : vector<128xf32> to vector<1x1x1x128xf32>
    %116 = vector.broadcast %115 : vector<1x1x1x128xf32> to vector<1x16x16x128xf32>
    %117 = arith.mulf %114, %116 : vector<1x16x16x128xf32>
    %118 = arith.addf %102, %117 : vector<1x16x16x128xf32>
    %c0_58 = arith.constant 0 : index
    %c3_59 = arith.constant 3 : index
    %c0_60 = arith.constant 0 : index
    %c0_61 = arith.constant 0 : index
    %119 = vector.load %arg2[%c0_58, %c3_59, %c0_60, %c0_61] : memref<1x20x20x128xbf16, #tpu.memory_space<vmem>>, vector<1x16x16x128xbf16>
    %120 = vector.extract_strided_slice %0 {offsets = [3, 0, 0], sizes = [1, 1, 128], strides = [1, 1, 1]} : vector<5x5x128xf32> to vector<1x1x128xf32>
    %121 = vector.shape_cast %120 : vector<1x1x128xf32> to vector<128xf32>
    %122 = arith.extf %119 : vector<1x16x16x128xbf16> to vector<1x16x16x128xf32>
    %123 = vector.shape_cast %121 : vector<128xf32> to vector<1x1x1x128xf32>
    %124 = vector.broadcast %123 : vector<1x1x1x128xf32> to vector<1x16x16x128xf32>
    %125 = arith.mulf %122, %124 : vector<1x16x16x128xf32>
    %126 = arith.addf %110, %125 : vector<1x16x16x128xf32>
    %c0_62 = arith.constant 0 : index
    %c3_63 = arith.constant 3 : index
    %c1_64 = arith.constant 1 : index
    %c0_65 = arith.constant 0 : index
    %127 = vector.load %arg2[%c0_62, %c3_63, %c1_64, %c0_65] : memref<1x20x20x128xbf16, #tpu.memory_space<vmem>>, vector<1x16x16x128xbf16>
    %128 = vector.extract_strided_slice %0 {offsets = [3, 1, 0], sizes = [1, 1, 128], strides = [1, 1, 1]} : vector<5x5x128xf32> to vector<1x1x128xf32>
    %129 = vector.shape_cast %128 : vector<1x1x128xf32> to vector<128xf32>
    %130 = arith.extf %127 : vector<1x16x16x128xbf16> to vector<1x16x16x128xf32>
    %131 = vector.shape_cast %129 : vector<128xf32> to vector<1x1x1x128xf32>
    %132 = vector.broadcast %131 : vector<1x1x1x128xf32> to vector<1x16x16x128xf32>
    %133 = arith.mulf %130, %132 : vector<1x16x16x128xf32>
    %134 = arith.addf %118, %133 : vector<1x16x16x128xf32>
    %c0_66 = arith.constant 0 : index
    %c3_67 = arith.constant 3 : index
    %c2_68 = arith.constant 2 : index
    %c0_69 = arith.constant 0 : index
    %135 = vector.load %arg2[%c0_66, %c3_67, %c2_68, %c0_69] : memref<1x20x20x128xbf16, #tpu.memory_space<vmem>>, vector<1x16x16x128xbf16>
    %136 = vector.extract_strided_slice %0 {offsets = [3, 2, 0], sizes = [1, 1, 128], strides = [1, 1, 1]} : vector<5x5x128xf32> to vector<1x1x128xf32>
    %137 = vector.shape_cast %136 : vector<1x1x128xf32> to vector<128xf32>
    %138 = arith.extf %135 : vector<1x16x16x128xbf16> to vector<1x16x16x128xf32>
    %139 = vector.shape_cast %137 : vector<128xf32> to vector<1x1x1x128xf32>
    %140 = vector.broadcast %139 : vector<1x1x1x128xf32> to vector<1x16x16x128xf32>
    %141 = arith.mulf %138, %140 : vector<1x16x16x128xf32>
    %142 = arith.addf %126, %141 : vector<1x16x16x128xf32>
    %c0_70 = arith.constant 0 : index
    %c3_71 = arith.constant 3 : index
    %c3_72 = arith.constant 3 : index
    %c0_73 = arith.constant 0 : index
    %143 = vector.load %arg2[%c0_70, %c3_71, %c3_72, %c0_73] : memref<1x20x20x128xbf16, #tpu.memory_space<vmem>>, vector<1x16x16x128xbf16>
    %144 = vector.extract_strided_slice %0 {offsets = [3, 3, 0], sizes = [1, 1, 128], strides = [1, 1, 1]} : vector<5x5x128xf32> to vector<1x1x128xf32>
    %145 = vector.shape_cast %144 : vector<1x1x128xf32> to vector<128xf32>
    %146 = arith.extf %143 : vector<1x16x16x128xbf16> to vector<1x16x16x128xf32>
    %147 = vector.shape_cast %145 : vector<128xf32> to vector<1x1x1x128xf32>
    %148 = vector.broadcast %147 : vector<1x1x1x128xf32> to vector<1x16x16x128xf32>
    %149 = arith.mulf %146, %148 : vector<1x16x16x128xf32>
    %150 = arith.addf %134, %149 : vector<1x16x16x128xf32>
    %c0_74 = arith.constant 0 : index
    %c3_75 = arith.constant 3 : index
    %c4_76 = arith.constant 4 : index
    %c0_77 = arith.constant 0 : index
    %151 = vector.load %arg2[%c0_74, %c3_75, %c4_76, %c0_77] : memref<1x20x20x128xbf16, #tpu.memory_space<vmem>>, vector<1x16x16x128xbf16>
    %152 = vector.extract_strided_slice %0 {offsets = [3, 4, 0], sizes = [1, 1, 128], strides = [1, 1, 1]} : vector<5x5x128xf32> to vector<1x1x128xf32>
    %153 = vector.shape_cast %152 : vector<1x1x128xf32> to vector<128xf32>
    %154 = arith.extf %151 : vector<1x16x16x128xbf16> to vector<1x16x16x128xf32>
    %155 = vector.shape_cast %153 : vector<128xf32> to vector<1x1x1x128xf32>
    %156 = vector.broadcast %155 : vector<1x1x1x128xf32> to vector<1x16x16x128xf32>
    %157 = arith.mulf %154, %156 : vector<1x16x16x128xf32>
    %158 = arith.addf %142, %157 : vector<1x16x16x128xf32>
    %c0_78 = arith.constant 0 : index
    %c4_79 = arith.constant 4 : index
    %c0_80 = arith.constant 0 : index
    %c0_81 = arith.constant 0 : index
    %159 = vector.load %arg2[%c0_78, %c4_79, %c0_80, %c0_81] : memref<1x20x20x128xbf16, #tpu.memory_space<vmem>>, vector<1x16x16x128xbf16>
    %160 = vector.extract_strided_slice %0 {offsets = [4, 0, 0], sizes = [1, 1, 128], strides = [1, 1, 1]} : vector<5x5x128xf32> to vector<1x1x128xf32>
    %161 = vector.shape_cast %160 : vector<1x1x128xf32> to vector<128xf32>
    %162 = arith.extf %159 : vector<1x16x16x128xbf16> to vector<1x16x16x128xf32>
    %163 = vector.shape_cast %161 : vector<128xf32> to vector<1x1x1x128xf32>
    %164 = vector.broadcast %163 : vector<1x1x1x128xf32> to vector<1x16x16x128xf32>
    %165 = arith.mulf %162, %164 : vector<1x16x16x128xf32>
    %166 = arith.addf %150, %165 : vector<1x16x16x128xf32>
    %c0_82 = arith.constant 0 : index
    %c4_83 = arith.constant 4 : index
    %c1_84 = arith.constant 1 : index
    %c0_85 = arith.constant 0 : index
    %167 = vector.load %arg2[%c0_82, %c4_83, %c1_84, %c0_85] : memref<1x20x20x128xbf16, #tpu.memory_space<vmem>>, vector<1x16x16x128xbf16>
    %168 = vector.extract_strided_slice %0 {offsets = [4, 1, 0], sizes = [1, 1, 128], strides = [1, 1, 1]} : vector<5x5x128xf32> to vector<1x1x128xf32>
    %169 = vector.shape_cast %168 : vector<1x1x128xf32> to vector<128xf32>
    %170 = arith.extf %167 : vector<1x16x16x128xbf16> to vector<1x16x16x128xf32>
    %171 = vector.shape_cast %169 : vector<128xf32> to vector<1x1x1x128xf32>
    %172 = vector.broadcast %171 : vector<1x1x1x128xf32> to vector<1x16x16x128xf32>
    %173 = arith.mulf %170, %172 : vector<1x16x16x128xf32>
    %174 = arith.addf %158, %173 : vector<1x16x16x128xf32>
    %c0_86 = arith.constant 0 : index
    %c4_87 = arith.constant 4 : index
    %c2_88 = arith.constant 2 : index
    %c0_89 = arith.constant 0 : index
    %175 = vector.load %arg2[%c0_86, %c4_87, %c2_88, %c0_89] : memref<1x20x20x128xbf16, #tpu.memory_space<vmem>>, vector<1x16x16x128xbf16>
    %176 = vector.extract_strided_slice %0 {offsets = [4, 2, 0], sizes = [1, 1, 128], strides = [1, 1, 1]} : vector<5x5x128xf32> to vector<1x1x128xf32>
    %177 = vector.shape_cast %176 : vector<1x1x128xf32> to vector<128xf32>
    %178 = arith.extf %175 : vector<1x16x16x128xbf16> to vector<1x16x16x128xf32>
    %179 = vector.shape_cast %177 : vector<128xf32> to vector<1x1x1x128xf32>
    %180 = vector.broadcast %179 : vector<1x1x1x128xf32> to vector<1x16x16x128xf32>
    %181 = arith.mulf %178, %180 : vector<1x16x16x128xf32>
    %182 = arith.addf %166, %181 : vector<1x16x16x128xf32>
    %c0_90 = arith.constant 0 : index
    %c4_91 = arith.constant 4 : index
    %c3_92 = arith.constant 3 : index
    %c0_93 = arith.constant 0 : index
    %183 = vector.load %arg2[%c0_90, %c4_91, %c3_92, %c0_93] : memref<1x20x20x128xbf16, #tpu.memory_space<vmem>>, vector<1x16x16x128xbf16>
    %184 = vector.extract_strided_slice %0 {offsets = [4, 3, 0], sizes = [1, 1, 128], strides = [1, 1, 1]} : vector<5x5x128xf32> to vector<1x1x128xf32>
    %185 = vector.shape_cast %184 : vector<1x1x128xf32> to vector<128xf32>
    %186 = arith.extf %183 : vector<1x16x16x128xbf16> to vector<1x16x16x128xf32>
    %187 = vector.shape_cast %185 : vector<128xf32> to vector<1x1x1x128xf32>
    %188 = vector.broadcast %187 : vector<1x1x1x128xf32> to vector<1x16x16x128xf32>
    %189 = arith.mulf %186, %188 : vector<1x16x16x128xf32>
    %190 = arith.addf %174, %189 : vector<1x16x16x128xf32>
    %c0_94 = arith.constant 0 : index
    %c4_95 = arith.constant 4 : index
    %c4_96 = arith.constant 4 : index
    %c0_97 = arith.constant 0 : index
    %191 = vector.load %arg2[%c0_94, %c4_95, %c4_96, %c0_97] : memref<1x20x20x128xbf16, #tpu.memory_space<vmem>>, vector<1x16x16x128xbf16>
    %192 = vector.extract_strided_slice %0 {offsets = [4, 4, 0], sizes = [1, 1, 128], strides = [1, 1, 1]} : vector<5x5x128xf32> to vector<1x1x128xf32>
    %193 = vector.shape_cast %192 : vector<1x1x128xf32> to vector<128xf32>
    %194 = arith.extf %191 : vector<1x16x16x128xbf16> to vector<1x16x16x128xf32>
    %195 = vector.shape_cast %193 : vector<128xf32> to vector<1x1x1x128xf32>
    %196 = vector.broadcast %195 : vector<1x1x1x128xf32> to vector<1x16x16x128xf32>
    %197 = arith.mulf %194, %196 : vector<1x16x16x128xf32>
    %198 = arith.addf %182, %197 : vector<1x16x16x128xf32>
    %199 = arith.addf %198, %190 : vector<1x16x16x128xf32>
    %c0_98 = arith.constant 0 : index
    %c0_99 = arith.constant 0 : index
    %200 = vector.load %arg4[%c0_98, %c0_99] : memref<1x128xf32, #tpu.memory_space<vmem>>, vector<1x128xf32>
    %201 = vector.shape_cast %200 : vector<1x128xf32> to vector<1x1x1x128xf32>
    %202 = vector.broadcast %201 : vector<1x1x1x128xf32> to vector<1x16x16x128xf32>
    %203 = arith.mulf %199, %202 : vector<1x16x16x128xf32>
    %c0_100 = arith.constant 0 : index
    %c0_101 = arith.constant 0 : index
    %204 = vector.load %arg5[%c0_100, %c0_101] : memref<1x128xf32, #tpu.memory_space<vmem>>, vector<1x128xf32>
    %205 = vector.shape_cast %204 : vector<1x128xf32> to vector<1x1x1x128xf32>
    %206 = vector.broadcast %205 : vector<1x1x1x128xf32> to vector<1x16x16x128xf32>
    %207 = arith.addf %203, %206 : vector<1x16x16x128xf32>
    %cst = arith.constant 2.000000e+01 : f32
    %208 = vector.broadcast %cst : f32 to vector<1x16x16x128xf32>
    %209 = arith.minimumf %207, %208 : vector<1x16x16x128xf32>
    %210 = math.exp %209 : vector<1x16x16x128xf32>
    %cst_102 = arith.constant 1.000000e+00 : f32
    %211 = vector.broadcast %cst_102 : f32 to vector<1x16x16x128xf32>
    %212 = arith.addf %211, %210 : vector<1x16x16x128xf32>
    %cst_103 = arith.constant 1.000000e+00 : f32
    %213 = vector.broadcast %cst_103 : f32 to vector<1x16x16x128xf32>
    %214 = arith.addf %213, %210 : vector<1x16x16x128xf32>
    %215 = arith.mulf %212, %214 : vector<1x16x16x128xf32>
    %cst_104 = arith.constant 1.000000e+00 : f32
    %216 = vector.broadcast %cst_104 : f32 to vector<1x16x16x128xf32>
    %217 = arith.subf %215, %216 : vector<1x16x16x128xf32>
    %218 = arith.mulf %207, %217 : vector<1x16x16x128xf32>
    %cst_105 = arith.constant 1.000000e+00 : f32
    %219 = vector.broadcast %cst_105 : f32 to vector<1x16x16x128xf32>
    %220 = arith.addf %215, %219 : vector<1x16x16x128xf32>
    %221 = tpu.reciprocal %220 {approx = true} : vector<1x16x16x128xf32> -> vector<1x16x16x128xf32>
    %222 = arith.mulf %218, %221 : vector<1x16x16x128xf32>
    %223 = arith.truncf %222 : vector<1x16x16x128xf32> to vector<1x16x16x128xbf16>
    %c0_106 = arith.constant 0 : index
    %c0_107 = arith.constant 0 : index
    %c0_108 = arith.constant 0 : index
    %c0_109 = arith.constant 0 : index
    %224 = vector.load %arg6[%c0_106, %c0_107, %c0_108, %c0_109] : memref<1x16x16x128xbf16, #tpu.memory_space<vmem>>, vector<1x16x16x128xbf16>
    tpu.vector_store %arg6[%c0_106, %c0_107, %c0_108, %c0_109], %223 {strides = array<i32>} : memref<1x16x16x128xbf16, #tpu.memory_space<vmem>>, vector<1x16x16x128xbf16>,
    return
  }
  func.func @transform_0(%arg0: i32, %arg1: i32) -> (i32, i32, i32, i32) {
    %c0_i32 = arith.constant 0 : i32
    %c0_i32_0 = arith.constant 0 : i32
    %c0_i32_1 = arith.constant 0 : i32
    return %arg0, %c0_i32, %c0_i32_0, %arg1 : i32, i32, i32, i32
  }
  func.func @transform_1(%arg0: i32, %arg1: i32) -> (i32, i32, i32) {
    %c0_i32 = arith.constant 0 : i32
    %c0_i32_0 = arith.constant 0 : i32
    %c0_i32_1 = arith.constant 0 : i32
    return %c0_i32, %c0_i32_0, %arg1 : i32, i32, i32
  }
  func.func @transform_2(%arg0: i32, %arg1: i32) -> (i32, i32) {
    %c0_i32 = arith.constant 0 : i32
    %c0_i32_0 = arith.constant 0 : i32
    return %c0_i32, %arg1 : i32, i32
  }
  func.func @transform_3(%arg0: i32, %arg1: i32) -> (i32, i32) {
    %c0_i32 = arith.constant 0 : i32
    %c0_i32_0 = arith.constant 0 : i32
    return %c0_i32, %arg1 : i32, i32
  }
  func.func @transform_4(%arg0: i32, %arg1: i32) -> (i32, i32, i32, i32) {
    %c0_i32 = arith.constant 0 : i32
    %c0_i32_0 = arith.constant 0 : i32
    %c0_i32_1 = arith.constant 0 : i32
    return %arg0, %c0_i32, %c0_i32_0, %arg1 : i32, i32, i32, i32
  }
}

module attributes {stable_mosaic.version = 11 : i64} {
  func.func @_dual_matmul_act_kernel(%arg0: i32, %arg1: memref<256x128xbf16, #tpu.memory_space<vmem>>, %arg2: memref<256x128xbf16, #tpu.memory_space<vmem>>, %arg3: memref<128x128xbf16, #tpu.memory_space<vmem>>, %arg4: memref<128x128xbf16, #tpu.memory_space<vmem>>, %arg5: memref<256x128xbf16, #tpu.memory_space<vmem>>) attributes {dimension_semantics = [#tpu.dimension_semantics<parallel>], iteration_bounds = array<i64: 2>, scalar_prefetch = 0 : i64, scratch_operands = 0 : i64, tpu.core_type = #tpu.core_type<tc>, window_params = [{transform_indices = @transform_0, window_bounds = array<i64: 256, 128>}, {transform_indices = @transform_1, window_bounds = array<i64: 256, 128>}, {pipeline_mode = #tpu.pipeline_mode<synchronous>, transform_indices = @transform_2, window_bounds = array<i64: 128, 128>}, {pipeline_mode = #tpu.pipeline_mode<synchronous>, transform_indices = @transform_3, window_bounds = array<i64: 128, 128>}, {transform_indices = @transform_4, window_bounds = array<i64: 256, 128>}]} {
    %c0 = arith.constant 0 : index
    %c0_0 = arith.constant 0 : index
    %0 = vector.load %arg1[%c0, %c0_0] : memref<256x128xbf16, #tpu.memory_space<vmem>>, vector<256x128xbf16>
    %c0_1 = arith.constant 0 : index
    %c0_2 = arith.constant 0 : index
    %1 = vector.load %arg3[%c0_1, %c0_2] : memref<128x128xbf16, #tpu.memory_space<vmem>>, vector<128x128xbf16>
    %cst = arith.constant dense<0.000000e+00> : vector<256x128xf32>
    %2 = tpu.matmul %0, %1, %cst {dimension_numbers = #tpu.dot_dimension_numbers<[1], [0], [0], [1], [0, 0, 1, 1], [], []>} : vector<256x128xbf16>, vector<128x128xbf16>, vector<256x128xf32> -> vector<256x128xf32>
    %c0_3 = arith.constant 0 : index
    %c0_4 = arith.constant 0 : index
    %3 = vector.load %arg2[%c0_3, %c0_4] : memref<256x128xbf16, #tpu.memory_space<vmem>>, vector<256x128xbf16>
    %c0_5 = arith.constant 0 : index
    %c0_6 = arith.constant 0 : index
    %4 = vector.load %arg4[%c0_5, %c0_6] : memref<128x128xbf16, #tpu.memory_space<vmem>>, vector<128x128xbf16>
    %cst_7 = arith.constant dense<0.000000e+00> : vector<256x128xf32>
    %5 = tpu.matmul %3, %4, %cst_7 {dimension_numbers = #tpu.dot_dimension_numbers<[1], [0], [0], [1], [0, 0, 1, 1], [], []>} : vector<256x128xbf16>, vector<128x128xbf16>, vector<256x128xf32> -> vector<256x128xf32>
    %6 = arith.addf %2, %5 : vector<256x128xf32>
    %cst_8 = arith.constant 0.000000e+00 : f32
    %7 = vector.broadcast %cst_8 : f32 to vector<256x128xf32>
    %8 = arith.maximumf %6, %7 : vector<256x128xf32>
    %9 = arith.truncf %8 : vector<256x128xf32> to vector<256x128xbf16>
    %c0_9 = arith.constant 0 : index
    %c0_10 = arith.constant 0 : index
    %10 = vector.load %arg5[%c0_9, %c0_10] : memref<256x128xbf16, #tpu.memory_space<vmem>>, vector<256x128xbf16>
    tpu.vector_store %arg5[%c0_9, %c0_10], %9 {strides = array<i32>} : memref<256x128xbf16, #tpu.memory_space<vmem>>, vector<256x128xbf16>,
    return
  }
  func.func @transform_0(%arg0: i32) -> (i32, i32) {
    %c0_i32 = arith.constant 0 : i32
    %c0_i32_0 = arith.constant 0 : i32
    return %arg0, %c0_i32 : i32, i32
  }
  func.func @transform_1(%arg0: i32) -> (i32, i32) {
    %c0_i32 = arith.constant 0 : i32
    %c0_i32_0 = arith.constant 0 : i32
    return %arg0, %c0_i32 : i32, i32
  }
  func.func @transform_2(%arg0: i32) -> (i32, i32) {
    %c0_i32 = arith.constant 0 : i32
    %c0_i32_0 = arith.constant 0 : i32
    %c0_i32_1 = arith.constant 0 : i32
    return %c0_i32, %c0_i32_0 : i32, i32
  }
  func.func @transform_3(%arg0: i32) -> (i32, i32) {
    %c0_i32 = arith.constant 0 : i32
    %c0_i32_0 = arith.constant 0 : i32
    %c0_i32_1 = arith.constant 0 : i32
    return %c0_i32, %c0_i32_0 : i32, i32
  }
  func.func @transform_4(%arg0: i32) -> (i32, i32) {
    %c0_i32 = arith.constant 0 : i32
    %c0_i32_0 = arith.constant 0 : i32
    return %arg0, %c0_i32 : i32, i32
  }
}

</mosaic_0001>

<llo_original>
// kernel: _lambda_.3
$region0: #{_lambda_.3}
  #allocation0 [shape = 'u32[]', space=smem, size = 0x4, offset = 0x4, fixed_abs, tag = 'smem constant byte address 0x4 - core index']
  #allocation1 [shape = 'u32[144,128]{1,0:T(1,128)}', space=vmem, size = 0x12000, scoped, tag = 'internal scratch']
  %s0 = inlined_call_operand.vmem [shape: f32[512,8], index: 0, kind: input, shape index: {}]
  %s1 = inlined_call_operand.vmem [shape: bf16[8,128], index: 1, kind: input, shape index: {}]
  %s2 = inlined_call_operand.vmem [shape: f32[1,128], index: 2, kind: input, shape index: {}]
  %s3 = inlined_call_operand.vmem [shape: f32[1,128], index: 3, kind: input, shape index: {}]
  %s4 = inlined_call_operand.vmem [shape: bf16[512,128], index: 4, kind: output, shape index: {}]
  %s5 = sld [smem:[#allocation0]]
  $region49: #{_lambda_.3} parent=0
    _
  %s7 = ssub.s32 1, %s5
  %s8 = scalar_select 0, %s7, %s5
  loop: start=0, step=1, limit=4
  $region2: #{_lambda_.3} parent=0 // loop_pre_header
    _
  $region3: #{_lambda_.3} parent=0 // loop_header
    %s10 = sphi 0, %s14
    %p11 = scmp.ge.s32.totalorder %s10, 4
    %s20 = sphi 0, %s22
    %s23 = sphi 0, %s20
    %s24 = sphi 0, %s23
    %s40 = sphi 0, %s24
    %s44 = sphi 0, %s44
    %s46 = sphi 0, %s44
    %s47 = sphi 0, %s46
    %s61 = sphi 0, %s47
    %s65 = sphi 0, %s65
    %s67 = sphi 0, %s65
    %s68 = sphi 0, %s67
    %s82 = sphi 0, %s68
    %s86 = sphi 0, %s86
    %s88 = sphi 0, %s86
    %s89 = sphi 0, %s88
    %s103 = sphi 0, %s89
    %s109 = sphi 0, %s111
    %s112 = sphi 0, %s109
    %s113 = sphi 0, %s112
    %s129 = sphi 0, %s113
  $region4: #{_lambda_.3} parent=0 // loop_header_branch
    %13 = sbr.rel (%p11) target = $region8
  $region5: #{_lambda_.3} parent=0 // loop_body
    %s15 = ssub.s32 %s10, 1
    %s16 = ssub.s32 %s10, 2
    %s17 = sadd.s32 %s10, 1
    %s18 = ssub.s32 %s10, %s17
    %p19 = scmp.eq.s32.totalorder %s18, 0
    %s21 = sadd.s32 %s20, 1
    %s22 = scalar_select %p19, %s20, %s21
    %p25 = pneg %p19
    %p26 = scmp.eq.s32.totalorder %s10, 1
    %p27 = por %p25, %p26
    %p28 = scmp.ne.s32.totalorder %s20, %s23
    %p29 = scmp.eq.s32.totalorder %s10, 0
    %p30 = por %p28, %p29
    %p31 = scmp.ne.s32.totalorder %s20, %s23
    %p32 = scmp.eq.s32.totalorder %s15, 1
    %p33 = por %p31, %p32
    %p34 = scmp.ne.s32.totalorder %s23, %s24
    %p35 = scmp.eq.s32.totalorder %s15, 0
    %p36 = por %p34, %p35
    %p37 = scmp.ne.s32.totalorder %s23, %s24
    %p38 = scmp.eq.s32.totalorder %s16, 1
    %p39 = por %p37, %p38
    %p41 = scmp.ne.s32.totalorder %s24, %s40
    %p42 = scmp.eq.s32.totalorder %s16, 0
    %p43 = por %p41, %p42
    %s45 = sadd.s32 %s44, 1
    %p48 = scmp.eq.s32.totalorder %s10, 1
    %p49 = scmp.ne.s32.totalorder %s44, %s46
    %p50 = scmp.eq.s32.totalorder %s10, 0
    %p51 = por %p49, %p50
    %p52 = scmp.ne.s32.totalorder %s44, %s46
    %p53 = scmp.eq.s32.totalorder %s15, 1
    %p54 = por %p52, %p53
    %p55 = scmp.ne.s32.totalorder %s46, %s47
    %p56 = scmp.eq.s32.totalorder %s15, 0
    %p57 = por %p55, %p56
    %p58 = scmp.ne.s32.totalorder %s46, %s47
    %p59 = scmp.eq.s32.totalorder %s16, 1
    %p60 = por %p58, %p59
    %p62 = scmp.ne.s32.totalorder %s47, %s61
    %p63 = scmp.eq.s32.totalorder %s16, 0
    %p64 = por %p62, %p63
    %s66 = sadd.s32 %s65, 1
    %p69 = scmp.eq.s32.totalorder %s10, 1
    %p70 = scmp.ne.s32.totalorder %s65, %s67
    %p71 = scmp.eq.s32.totalorder %s10, 0
    %p72 = por %p70, %p71
    %p73 = scmp.ne.s32.totalorder %s65, %s67
    %p74 = scmp.eq.s32.totalorder %s15, 1
    %p75 = por %p73, %p74
    %p76 = scmp.ne.s32.totalorder %s67, %s68
    %p77 = scmp.eq.s32.totalorder %s15, 0
    %p78 = por %p76, %p77
    %p79 = scmp.ne.s32.totalorder %s67, %s68
    %p80 = scmp.eq.s32.totalorder %s16, 1
    %p81 = por %p79, %p80
    %p83 = scmp.ne.s32.totalorder %s68, %s82
    %p84 = scmp.eq.s32.totalorder %s16, 0
    %p85 = por %p83, %p84
    %s87 = sadd.s32 %s86, 1
    %p90 = scmp.eq.s32.totalorder %s10, 1
    %p91 = scmp.ne.s32.totalorder %s86, %s88
    %p92 = scmp.eq.s32.totalorder %s10, 0
    %p93 = por %p91, %p92
    %p94 = scmp.ne.s32.totalorder %s86, %s88
    %p95 = scmp.eq.s32.totalorder %s15, 1
    %p96 = por %p94, %p95
    %p97 = scmp.ne.s32.totalorder %s88, %s89
    %p98 = scmp.eq.s32.totalorder %s15, 0
    %p99 = por %p97, %p98
    %p100 = scmp.ne.s32.totalorder %s88, %s89
    %p101 = scmp.eq.s32.totalorder %s16, 1
    %p102 = por %p100, %p101
    %p104 = scmp.ne.s32.totalorder %s89, %s103
    %p105 = scmp.eq.s32.totalorder %s16, 0
    %p106 = por %p104, %p105
    %s107 = ssub.s32 %s10, %s17
    %p108 = scmp.eq.s32.totalorder %s107, 0
    %s110 = sadd.s32 %s109, 1
    %s111 = scalar_select %p108, %s109, %s110
    %p114 = pneg %p108
    %p115 = scmp.eq.s32.totalorder %s10, 1
    %p116 = por %p114, %p115
    %p117 = scmp.ne.s32.totalorder %s109, %s112
    %p118 = scmp.eq.s32.totalorder %s10, 0
    %p119 = por %p117, %p118
    %p120 = scmp.ne.s32.totalorder %s109, %s112
    %p121 = scmp.eq.s32.totalorder %s15, 1
    %p122 = por %p120, %p121
    %p123 = scmp.ne.s32.totalorder %s112, %s113
    %p124 = scmp.eq.s32.totalorder %s15, 0
    %p125 = por %p123, %p124
    %p126 = scmp.ne.s32.totalorder %s112, %s113
    %p127 = scmp.eq.s32.totalorder %s16, 1
    %p128 = por %p126, %p127
    %p130 = scmp.ne.s32.totalorder %s113, %s129
    %p131 = scmp.eq.s32.totalorder %s16, 0
    %p132 = por %p130, %p131
    %p133 = scmp.le.s32.totalorder 1, %s10
    %p134 = scmp.lt.s32.totalorder %s10, 3
    %p135 = pnand %p133, %p134
    %p136 = pneg %p135
    // Predicated region
    $region9: #{_lambda_.3} parent=5 // pred_check
      _
    $region10: #{_lambda_.3} parent=5 // pred_check_branch
      %138 = sbr.rel (%p135) target = $region12
    $region11: #{_lambda_.3} parent=5 // pred_region
      %s139 = ssub.s32 %s10, 1
      // Predicated region
      $region13: #{_lambda_.3} parent=11 // pred_check
        %p140 = pneg %p57
      $region14: #{_lambda_.3} parent=11 // pred_check_branch
        %142 = sbr.rel (%p140) target = $region16
      $region15: #{_lambda_.3} parent=11 // pred_region
        _
      $region16: #{_lambda_.3} parent=11 // pred_fallthru
        _
      // Predicated region
      $region17: #{_lambda_.3} parent=11 // pred_check
        %p143 = pneg %p78
      $region18: #{_lambda_.3} parent=11 // pred_check_branch
        %145 = sbr.rel (%p143) target = $region20
      $region19: #{_lambda_.3} parent=11 // pred_region
        _
      $region20: #{_lambda_.3} parent=11 // pred_fallthru
        _
      // Predicated region
      $region21: #{_lambda_.3} parent=11 // pred_check
        %p146 = pneg %p99
      $region22: #{_lambda_.3} parent=11 // pred_check_branch
        %148 = sbr.rel (%p146) target = $region24
      $region23: #{_lambda_.3} parent=11 // pred_region
        _
      $region24: #{_lambda_.3} parent=11 // pred_fallthru
        _
    $region12: #{_lambda_.3} parent=5 // pred_fallthru
      _
    %p149 = scmp.lt.s32.totalorder %s10, 2
    // Predicated region
    $region25: #{_lambda_.3} parent=5 // pred_check
      %p150 = pneg %p149
    $region26: #{_lambda_.3} parent=5 // pred_check_branch
      %152 = sbr.rel (%p150) target = $region28
    $region27: #{_lambda_.3} parent=5 // pred_region
      // Predicated region
      $region29: #{_lambda_.3} parent=27 // pred_check
        %p153 = pneg %p30
      $region30: #{_lambda_.3} parent=27 // pred_check_branch
        %155 = sbr.rel (%p153) target = $region32
      $region31: #{_lambda_.3} parent=27 // pred_region
        %s156 = smul.u32 32, %s10
        %p157 = scmp.lt.s32.totalorder %s156, 63
        %s158 = scalar_select %p157, %s156, 63
        %s159 = smul.addr %s158, 8
        %s160 = scalar_lea.vmem %s0, %s159
        %s161 = smul.u32 32, %s10
      $region32: #{_lambda_.3} parent=27 // pred_fallthru
        _
    $region28: #{_lambda_.3} parent=5 // pred_fallthru
      _
    %p162 = scmp.le.s32.totalorder 1, %s10
    %p163 = scmp.lt.s32.totalorder %s10, 3
    %p164 = pnand %p162, %p163
    %p165 = pneg %p164
    // Predicated region
    $region33: #{_lambda_.3} parent=5 // pred_check
      _
    $region34: #{_lambda_.3} parent=5 // pred_check_branch
      %167 = sbr.rel (%p164) target = $region36
    $region35: #{_lambda_.3} parent=5 // pred_region
      %s168 = ssub.s32 %s10, 1
      %s169 = smul.u32 32, %s15
      %p170 = scmp.lt.s32.totalorder %s169, 63
      %s171 = scalar_select %p170, %s169, 63
      %s172 = smul.addr %s171, 8
      %s173 = scalar_lea.vmem %s0, %s172
      %p174 = pneg %p36
      %p175 = pneg %p33
      %p176 = pneg %p57
      %p177 = pneg %p54
      %p178 = pneg %p78
      %p179 = pneg %p75
      %p180 = pneg %p99
      %p181 = pneg %p96
      %p182 = pneg %p125
      %p183 = pneg %p122
      %s184 = smul.u32 32, %s15
      %p185 = scmp.lt.s32.totalorder %s184, 63
      %s186 = scalar_select %p185, %s184, 63
      %s187 = smul.addr %s186, 4
      %s188 = scalar_lea.vmem %s4, %s187
      %s189 = smul.u32 32, %s15
      %p190 = scmp.lt.s32.totalorder %s189, 63
      %s191 = scalar_select %p190, %s189, 63
      %s192 = smul.addr %s191, 8
      %s193 = scalar_lea.vmem %s0, %s192
      %s194 = smul.u32 32, %s15
      %s195 = smul.u32 32, %s15
      %p196 = scmp.lt.s32.totalorder %s195, 63
      %s197 = scalar_select %p196, %s195, 63
      %s198 = smul.addr %s197, 4
      %s199 = scalar_lea.vmem %s4, %s198
      %s200 = smul.u32 32, %s15
      %v202 = vld [vmem:[%s193] sm:$0xff]
      %v203 = vld [vmem:[%s193 + $0x8] sm:$0xff]
      %v204 = vld [vmem:[%s193 + $0x10] sm:$0xff]
      %v205 = vld [vmem:[%s193 + $0x18] sm:$0xff]
      %v206 = vld [vmem:[%s193 + $0x20] sm:$0xff]
      %v207 = vld [vmem:[%s193 + $0x28] sm:$0xff]
      %v208 = vld [vmem:[%s193 + $0x30] sm:$0xff]
      %v209 = vld [vmem:[%s193 + $0x38] sm:$0xff]
      %v210 = vld [vmem:[%s193 + $0x40] sm:$0xff]
      %v211 = vld [vmem:[%s193 + $0x48] sm:$0xff]
      %v212 = vld [vmem:[%s193 + $0x50] sm:$0xff]
      %v213 = vld [vmem:[%s193 + $0x58] sm:$0xff]
      %v214 = vld [vmem:[%s193 + $0x60] sm:$0xff]
      %v215 = vld [vmem:[%s193 + $0x68] sm:$0xff]
      %v216 = vld [vmem:[%s193 + $0x70] sm:$0xff]
      %v217 = vld [vmem:[%s193 + $0x78] sm:$0xff]
      %v218 = vld [vmem:[%s193 + $0x80] sm:$0xff]
      %v219 = vld [vmem:[%s193 + $0x88] sm:$0xff]
      %v220 = vld [vmem:[%s193 + $0x90] sm:$0xff]
      %v221 = vld [vmem:[%s193 + $0x98] sm:$0xff]
      %v222 = vld [vmem:[%s193 + $0xa0] sm:$0xff]
      %v223 = vld [vmem:[%s193 + $0xa8] sm:$0xff]
      %v224 = vld [vmem:[%s193 + $0xb0] sm:$0xff]
      %v225 = vld [vmem:[%s193 + $0xb8] sm:$0xff]
      %v226 = vld [vmem:[%s193 + $0xc0] sm:$0xff]
      %v227 = vld [vmem:[%s193 + $0xc8] sm:$0xff]
      %v228 = vld [vmem:[%s193 + $0xd0] sm:$0xff]
      %v229 = vld [vmem:[%s193 + $0xd8] sm:$0xff]
      %v230 = vld [vmem:[%s193 + $0xe0] sm:$0xff]
      %v231 = vld [vmem:[%s193 + $0xe8] sm:$0xff]
      %v232 = vld [vmem:[%s193 + $0xf0] sm:$0xff]
      %v233 = vld [vmem:[%s193 + $0xf8] sm:$0xff]
      %v234 = vpack.c.bf16 %v203, %v202
      %v235 = vpack.c.bf16 %v205, %v204
      %v236 = vpack.c.bf16 %v207, %v206
      %v237 = vpack.c.bf16 %v209, %v208
      %v238 = vpack.c.bf16 %v211, %v210
      %v239 = vpack.c.bf16 %v213, %v212
      %v240 = vpack.c.bf16 %v215, %v214
      %v241 = vpack.c.bf16 %v217, %v216
      %v242 = vpack.c.bf16 %v219, %v218
      %v243 = vpack.c.bf16 %v221, %v220
      %v244 = vpack.c.bf16 %v223, %v222
      %v245 = vpack.c.bf16 %v225, %v224
      %v246 = vpack.c.bf16 %v227, %v226
      %v247 = vpack.c.bf16 %v229, %v228
      %v248 = vpack.c.bf16 %v231, %v230
      %v249 = vpack.c.bf16 %v233, %v232
      %v250 = vld [vmem:[%s1] sm:$0xf]
      %vm251 = vcmask 64512
      %v253 = vsel %vm251, %v234, 0
      %v256 = vsel %vm251, %v235, 0
      %v259 = vsel %vm251, %v236, 0
      %v262 = vsel %vm251, %v237, 0
      %v265 = vsel %vm251, %v238, 0
      %v268 = vsel %vm251, %v239, 0
      %v271 = vsel %vm251, %v240, 0
      %v274 = vsel %vm251, %v241, 0
      %v277 = vsel %vm251, %v242, 0
      %v280 = vsel %vm251, %v243, 0
      %v283 = vsel %vm251, %v244, 0
      %v286 = vsel %vm251, %v245, 0
      %v289 = vsel %vm251, %v246, 0
      %v292 = vsel %vm251, %v247, 0
      %v295 = vsel %vm251, %v248, 0
      %v298 = vsel %vm251, %v249, 0
      %vm300 = vcmask 1043456
      %v302 = vsel %vm300, %v250, 0
      %304 = vmatprep.subr.bf16.mxu0 0
      %305 = vmatpush1.bf16.msra.mxu0 0
      %306 = vmatprep.subr.bf16.mxu0 0
      %307 = vmatpush1.bf16.msra.mxu0 0
      %308 = vmatprep.subr.bf16.mxu0 0
      %309 = vmatpush1.bf16.msra.mxu0 0
      %310 = vmatprep.subr.bf16.mxu0 0
      %311 = vmatpush1.bf16.msra.mxu0 0
      %312 = vmatprep.subr.bf16.mxu0 0
      %313 = vmatpush1.bf16.msra.mxu0 0
      %314 = vmatprep.subr.bf16.mxu0 0
      %315 = vmatpush1.bf16.msra.mxu0 0
      %316 = vmatprep.subr.bf16.mxu0 0
      %317 = vmatpush1.bf16.msra.mxu0 0
      %318 = vmatprep.subr.bf16.mxu0 0
      %319 = vmatpush1.bf16.msra.mxu0 %v302
      %320 = vmatprep.subr.bf16.mxu0 0
      %321 = vmatpush2.bf16.msra.mxu0 0
      %322 = vmatprep.subr.bf16.mxu0 0
      %323 = vmatpush2.bf16.msra.mxu0 0
      %324 = vmatprep.subr.bf16.mxu0 0
      %325 = vmatpush2.bf16.msra.mxu0 0
      %326 = vmatprep.subr.bf16.mxu0 0
      %327 = vmatpush2.bf16.msra.mxu0 0
      %328 = vmatprep.subr.bf16.mxu0 0
      %329 = vmatpush2.bf16.msra.mxu0 0
      %330 = vmatprep.subr.bf16.mxu0 0
      %331 = vmatpush2.bf16.msra.mxu0 0
      %332 = vmatprep.subr.bf16.mxu0 0
      %333 = vmatpush2.bf16.msra.mxu0 0
      %334 = vmatprep.subr.bf16.mxu0 0
      %335 = vmatpush2.bf16.msra.mxu0 0
      %336 = vmatprep.mubr.bf16.mxu0 0
      %337 = vmatmul.mubr.bf16.gmra.mxu0 %v253
      %v338 = vpop.f32.mrf.mxu0
      %v339 = vadd.f32 0.0, %v338
      %v340 = vpop.f32.mrf.mxu0
      %v341 = vpop.f32.mrf.mxu0
      %v342 = vadd.f32 0.0, %v341
      %v343 = vpop.f32.mrf.mxu0
      %344 = vmatprep.mubr.bf16.mxu0 0
      %345 = vmatmul.mubr.bf16.gmra.mxu0 %v256
      %v346 = vpop.f32.mrf.mxu0
      %v347 = vadd.f32 0.0, %v346
      %v348 = vpop.f32.mrf.mxu0
      %v349 = vpop.f32.mrf.mxu0
      %v350 = vadd.f32 0.0, %v349
      %v351 = vpop.f32.mrf.mxu0
      %352 = vmatprep.mubr.bf16.mxu0 0
      %353 = vmatmul.mubr.bf16.gmra.mxu0 %v259
      %v354 = vpop.f32.mrf.mxu0
      %v355 = vadd.f32 0.0, %v354
      %v356 = vpop.f32.mrf.mxu0
      %v357 = vpop.f32.mrf.mxu0
      %v358 = vadd.f32 0.0, %v357
      %v359 = vpop.f32.mrf.mxu0
      %360 = vmatprep.mubr.bf16.mxu0 0
      %361 = vmatmul.mubr.bf16.gmra.mxu0 %v262
      %v362 = vpop.f32.mrf.mxu0
      %v363 = vadd.f32 0.0, %v362
      %v364 = vpop.f32.mrf.mxu0
      %v365 = vpop.f32.mrf.mxu0
      %v366 = vadd.f32 0.0, %v365
      %v367 = vpop.f32.mrf.mxu0
      %368 = vmatprep.mubr.bf16.mxu0 0
      %369 = vmatmul.mubr.bf16.gmra.mxu0 %v265
      %v370 = vpop.f32.mrf.mxu0
      %v371 = vadd.f32 0.0, %v370
      %v372 = vpop.f32.mrf.mxu0
      %v373 = vpop.f32.mrf.mxu0
      %v374 = vadd.f32 0.0, %v373
      %v375 = vpop.f32.mrf.mxu0
      %376 = vmatprep.mubr.bf16.mxu0 0
      %377 = vmatmul.mubr.bf16.gmra.mxu0 %v268
      %v378 = vpop.f32.mrf.mxu0
      %v379 = vadd.f32 0.0, %v378
      %v380 = vpop.f32.mrf.mxu0
      %v381 = vpop.f32.mrf.mxu0
      %v382 = vadd.f32 0.0, %v381
      %v383 = vpop.f32.mrf.mxu0
      %384 = vmatprep.mubr.bf16.mxu0 0
      %385 = vmatmul.mubr.bf16.gmra.mxu0 %v271
      %v386 = vpop.f32.mrf.mxu0
      %v387 = vadd.f32 0.0, %v386
      %v388 = vpop.f32.mrf.mxu0
      %v389 = vpop.f32.mrf.mxu0
      %v390 = vadd.f32 0.0, %v389
      %v391 = vpop.f32.mrf.mxu0
      %392 = vmatprep.mubr.bf16.mxu0 0
      %393 = vmatmul.mubr.bf16.gmra.mxu0 %v274
      %v394 = vpop.f32.mrf.mxu0
      %v395 = vadd.f32 0.0, %v394
      %v396 = vpop.f32.mrf.mxu0
      %v397 = vpop.f32.mrf.mxu0
      %v398 = vadd.f32 0.0, %v397
      %v399 = vpop.f32.mrf.mxu0
      %400 = vmatprep.mubr.bf16.mxu0 0
      %401 = vmatmul.mubr.bf16.gmra.mxu0 %v277
      %v402 = vpop.f32.mrf.mxu0
      %v403 = vadd.f32 0.0, %v402
      %v404 = vpop.f32.mrf.mxu0
      %v405 = vpop.f32.mrf.mxu0
      %v406 = vadd.f32 0.0, %v405
      %v407 = vpop.f32.mrf.mxu0
      %408 = vmatprep.mubr.bf16.mxu0 0
      %409 = vmatmul.mubr.bf16.gmra.mxu0 %v280
      %v410 = vpop.f32.mrf.mxu0
      %v411 = vadd.f32 0.0, %v410
      %v412 = vpop.f32.mrf.mxu0
      %v413 = vpop.f32.mrf.mxu0
      %v414 = vadd.f32 0.0, %v413
      %v415 = vpop.f32.mrf.mxu0
      %416 = vmatprep.mubr.bf16.mxu0 0
      %417 = vmatmul.mubr.bf16.gmra.mxu0 %v283
      %v418 = vpop.f32.mrf.mxu0
      %v419 = vadd.f32 0.0, %v418
      %v420 = vpop.f32.mrf.mxu0
      %v421 = vpop.f32.mrf.mxu0
      %v422 = vadd.f32 0.0, %v421
      %v423 = vpop.f32.mrf.mxu0
      %424 = vmatprep.mubr.bf16.mxu0 0
      %425 = vmatmul.mubr.bf16.gmra.mxu0 %v286
      %v426 = vpop.f32.mrf.mxu0
      %v427 = vadd.f32 0.0, %v426
      %v428 = vpop.f32.mrf.mxu0
      %v429 = vpop.f32.mrf.mxu0
      %v430 = vadd.f32 0.0, %v429
      %v431 = vpop.f32.mrf.mxu0
      %432 = vmatprep.mubr.bf16.mxu0 0
      %433 = vmatmul.mubr.bf16.gmra.mxu0 %v289
      %v434 = vpop.f32.mrf.mxu0
      %v435 = vadd.f32 0.0, %v434
      %v436 = vpop.f32.mrf.mxu0
      %v437 = vpop.f32.mrf.mxu0
      %v438 = vadd.f32 0.0, %v437
      %v439 = vpop.f32.mrf.mxu0
      %440 = vmatprep.mubr.bf16.mxu0 0
      %441 = vmatmul.mubr.bf16.gmra.mxu0 %v292
      %v442 = vpop.f32.mrf.mxu0
      %v443 = vadd.f32 0.0, %v442
      %v444 = vpop.f32.mrf.mxu0
      %v445 = vpop.f32.mrf.mxu0
      %v446 = vadd.f32 0.0, %v445
      %v447 = vpop.f32.mrf.mxu0
      %448 = vmatprep.mubr.bf16.mxu0 0
      %449 = vmatmul.mubr.bf16.gmra.mxu0 %v295
      %v450 = vpop.f32.mrf.mxu0
      %v451 = vadd.f32 0.0, %v450
      %v452 = vpop.f32.mrf.mxu0
      %v453 = vpop.f32.mrf.mxu0
      %v454 = vadd.f32 0.0, %v453
      %v455 = vpop.f32.mrf.mxu0
      %456 = vmatprep.mubr.bf16.mxu0 0
      %457 = vmatmul.mubr.bf16.gmra.mxu0 %v298
      %v458 = vpop.f32.mrf.mxu0
      %v459 = vadd.f32 0.0, %v458
      %v460 = vpop.f32.mrf.mxu0
      %v461 = vpop.f32.mrf.mxu0
      %v462 = vadd.f32 0.0, %v461
      %v463 = vpop.f32.mrf.mxu0
      %464 = vdwg.mxu0
      %v465 = vld [vmem:[%s2] sm:$0x1]
      %v467 = vlaneseq
      %v468 = vshrl.u32 %v467, 7
      %v469 = vsub.s32 0, %v468
      %v470 = vrot.slane %v465, %v469
      %v472 = vmul.f32 %v339, %v470
      %v473 = vmul.f32 %v342, %v470
      %v474 = vmul.f32 %v347, %v470
      %v475 = vmul.f32 %v350, %v470
      %v476 = vmul.f32 %v355, %v470
      %v477 = vmul.f32 %v358, %v470
      %v478 = vmul.f32 %v363, %v470
      %v479 = vmul.f32 %v366, %v470
      %v480 = vmul.f32 %v371, %v470
      %v481 = vmul.f32 %v374, %v470
      %v482 = vmul.f32 %v379, %v470
      %v483 = vmul.f32 %v382, %v470
      %v484 = vmul.f32 %v387, %v470
      %v485 = vmul.f32 %v390, %v470
      %v486 = vmul.f32 %v395, %v470
      %v487 = vmul.f32 %v398, %v470
      %v488 = vmul.f32 %v403, %v470
      %v489 = vmul.f32 %v406, %v470
      %v490 = vmul.f32 %v411, %v470
      %v491 = vmul.f32 %v414, %v470
      %v492 = vmul.f32 %v419, %v470
      %v493 = vmul.f32 %v422, %v470
      %v494 = vmul.f32 %v427, %v470
      %v495 = vmul.f32 %v430, %v470
      %v496 = vmul.f32 %v435, %v470
      %v497 = vmul.f32 %v438, %v470
      %v498 = vmul.f32 %v443, %v470
      %v499 = vmul.f32 %v446, %v470
      %v500 = vmul.f32 %v451, %v470
      %v501 = vmul.f32 %v454, %v470
      %v502 = vmul.f32 %v459, %v470
      %v503 = vmul.f32 %v462, %v470
      %v504 = vld [vmem:[%s3] sm:$0x1]
      %v506 = vlaneseq
      %v507 = vshrl.u32 %v506, 7
      %v508 = vsub.s32 0, %v507
      %v509 = vrot.slane %v504, %v508
      %v511 = vadd.f32 %v472, %v509
      %v512 = vadd.f32 %v473, %v509
      %v513 = vadd.f32 %v474, %v509
      %v514 = vadd.f32 %v475, %v509
      %v515 = vadd.f32 %v476, %v509
      %v516 = vadd.f32 %v477, %v509
      %v517 = vadd.f32 %v478, %v509
      %v518 = vadd.f32 %v479, %v509
      %v519 = vadd.f32 %v480, %v509
      %v520 = vadd.f32 %v481, %v509
      %v521 = vadd.f32 %v482, %v509
      %v522 = vadd.f32 %v483, %v509
      %v523 = vadd.f32 %v484, %v509
      %v524 = vadd.f32 %v485, %v509
      %v525 = vadd.f32 %v486, %v509
      %v526 = vadd.f32 %v487, %v509
      %v527 = vadd.f32 %v488, %v509
      %v528 = vadd.f32 %v489, %v509
      %v529 = vadd.f32 %v490, %v509
      %v530 = vadd.f32 %v491, %v509
      %v531 = vadd.f32 %v492, %v509
      %v532 = vadd.f32 %v493, %v509
      %v533 = vadd.f32 %v494, %v509
      %v534 = vadd.f32 %v495, %v509
      %v535 = vadd.f32 %v496, %v509
      %v536 = vadd.f32 %v497, %v509
      %v537 = vadd.f32 %v498, %v509
      %v538 = vadd.f32 %v499, %v509
      %v539 = vadd.f32 %v500, %v509
      %v540 = vadd.f32 %v501, %v509
      %v541 = vadd.f32 %v502, %v509
      %v542 = vadd.f32 %v503, %v509
      %v543 = vmin.f32 %v511, 20.0
      %v544 = vmin.f32 %v512, 20.0
      %v545 = vmin.f32 %v513, 20.0
      %v546 = vmin.f32 %v514, 20.0
      %v547 = vmin.f32 %v515, 20.0
      %v548 = vmin.f32 %v516, 20.0
      %v549 = vmin.f32 %v517, 20.0
      %v550 = vmin.f32 %v518, 20.0
      %v551 = vmin.f32 %v519, 20.0
      %v552 = vmin.f32 %v520, 20.0
      %v553 = vmin.f32 %v521, 20.0
      %v554 = vmin.f32 %v522, 20.0
      %v555 = vmin.f32 %v523, 20.0
      %v556 = vmin.f32 %v524, 20.0
      %v557 = vmin.f32 %v525, 20.0
      %v558 = vmin.f32 %v526, 20.0
      %v559 = vmin.f32 %v527, 20.0
      %v560 = vmin.f32 %v528, 20.0
      %v561 = vmin.f32 %v529, 20.0
      %v562 = vmin.f32 %v530, 20.0
      %v563 = vmin.f32 %v531, 20.0
      %v564 = vmin.f32 %v532, 20.0
      %v565 = vmin.f32 %v533, 20.0
      %v566 = vmin.f32 %v534, 20.0
      %v567 = vmin.f32 %v535, 20.0
      %v568 = vmin.f32 %v536, 20.0
      %v569 = vmin.f32 %v537, 20.0
      %v570 = vmin.f32 %v538, 20.0
      %v571 = vmin.f32 %v539, 20.0
      %v572 = vmin.f32 %v540, 20.0
      %v573 = vmin.f32 %v541, 20.0
      %v574 = vmin.f32 %v542, 20.0
      %v575 = vmul.f32 %v543, 1.442695
      %v576 = vpow.pop %v575
      %v577 = vmul.f32 %v544, 1.442695
      %v578 = vpow.pop %v577
      %v579 = vmul.f32 %v545, 1.442695
      %v580 = vpow.pop %v579
      %v581 = vmul.f32 %v546, 1.442695
      %v582 = vpow.pop %v581
      %v583 = vmul.f32 %v547, 1.442695
      %v584 = vpow.pop %v583
      %v585 = vmul.f32 %v548, 1.442695
      %v586 = vpow.pop %v585
      %v587 = vmul.f32 %v549, 1.442695
      %v588 = vpow.pop %v587
      %v589 = vmul.f32 %v550, 1.442695
      %v590 = vpow.pop %v589
      %v591 = vmul.f32 %v551, 1.442695
      %v592 = vpow.pop %v591
      %v593 = vmul.f32 %v552, 1.442695
      %v594 = vpow.pop %v593
      %v595 = vmul.f32 %v553, 1.442695
      %v596 = vpow.pop %v595
      %v597 = vmul.f32 %v554, 1.442695
      %v598 = vpow.pop %v597
      %v599 = vmul.f32 %v555, 1.442695
      %v600 = vpow.pop %v599
      %v601 = vmul.f32 %v556, 1.442695
      %v602 = vpow.pop %v601
      %v603 = vmul.f32 %v557, 1.442695
      %v604 = vpow.pop %v603
      %v605 = vmul.f32 %v558, 1.442695
      %v606 = vpow.pop %v605
      %v607 = vmul.f32 %v559, 1.442695
      %v608 = vpow.pop %v607
      %v609 = vmul.f32 %v560, 1.442695
      %v610 = vpow.pop %v609
      %v611 = vmul.f32 %v561, 1.442695
      %v612 = vpow.pop %v611
      %v613 = vmul.f32 %v562, 1.442695
      %v614 = vpow.pop %v613
      %v615 = vmul.f32 %v563, 1.442695
      %v616 = vpow.pop %v615
      %v617 = vmul.f32 %v564, 1.442695
      %v618 = vpow.pop %v617
      %v619 = vmul.f32 %v565, 1.442695
      %v620 = vpow.pop %v619
      %v621 = vmul.f32 %v566, 1.442695
      %v622 = vpow.pop %v621
      %v623 = vmul.f32 %v567, 1.442695
      %v624 = vpow.pop %v623
      %v625 = vmul.f32 %v568, 1.442695
      %v626 = vpow.pop %v625
      %v627 = vmul.f32 %v569, 1.442695
      %v628 = vpow.pop %v627
      %v629 = vmul.f32 %v570, 1.442695
      %v630 = vpow.pop %v629
      %v631 = vmul.f32 %v571, 1.442695
      %v632 = vpow.pop %v631
      %v633 = vmul.f32 %v572, 1.442695
      %v634 = vpow.pop %v633
      %v635 = vmul.f32 %v573, 1.442695
      %v636 = vpow.pop %v635
      %v637 = vmul.f32 %v574, 1.442695
      %v638 = vpow.pop %v637
      %v639 = vadd.f32 %v576, 1.0
      %v640 = vadd.f32 %v578, 1.0
      %v641 = vadd.f32 %v580, 1.0
      %v642 = vadd.f32 %v582, 1.0
      %v643 = vadd.f32 %v584, 1.0
      %v644 = vadd.f32 %v586, 1.0
      %v645 = vadd.f32 %v588, 1.0
      %v646 = vadd.f32 %v590, 1.0
      %v647 = vadd.f32 %v592, 1.0
      %v648 = vadd.f32 %v594, 1.0
      %v649 = vadd.f32 %v596, 1.0
      %v650 = vadd.f32 %v598, 1.0
      %v651 = vadd.f32 %v600, 1.0
      %v652 = vadd.f32 %v602, 1.0
      %v653 = vadd.f32 %v604, 1.0
      %v654 = vadd.f32 %v606, 1.0
      %v655 = vadd.f32 %v608, 1.0
      %v656 = vadd.f32 %v610, 1.0
      %v657 = vadd.f32 %v612, 1.0
      %v658 = vadd.f32 %v614, 1.0
      %v659 = vadd.f32 %v616, 1.0
      %v660 = vadd.f32 %v618, 1.0
      %v661 = vadd.f32 %v620, 1.0
      %v662 = vadd.f32 %v622, 1.0
      %v663 = vadd.f32 %v624, 1.0
      %v664 = vadd.f32 %v626, 1.0
      %v665 = vadd.f32 %v628, 1.0
      %v666 = vadd.f32 %v630, 1.0
      %v667 = vadd.f32 %v632, 1.0
      %v668 = vadd.f32 %v634, 1.0
      %v669 = vadd.f32 %v636, 1.0
      %v670 = vadd.f32 %v638, 1.0
      %v671 = vmul.f32 %v639, %v639
      %v672 = vmul.f32 %v640, %v640
      %v673 = vmul.f32 %v641, %v641
      %v674 = vmul.f32 %v642, %v642
      %v675 = vmul.f32 %v643, %v643
      %v676 = vmul.f32 %v644, %v644
      %v677 = vmul.f32 %v645, %v645
      %v678 = vmul.f32 %v646, %v646
      %v679 = vmul.f32 %v647, %v647
      %v680 = vmul.f32 %v648, %v648
      %v681 = vmul.f32 %v649, %v649
      %v682 = vmul.f32 %v650, %v650
      %v683 = vmul.f32 %v651, %v651
      %v684 = vmul.f32 %v652, %v652
      %v685 = vmul.f32 %v653, %v653
      %v686 = vmul.f32 %v654, %v654
      %v687 = vmul.f32 %v655, %v655
      %v688 = vmul.f32 %v656, %v656
      %v689 = vmul.f32 %v657, %v657
      %v690 = vmul.f32 %v658, %v658
      %v691 = vmul.f32 %v659, %v659
      %v692 = vmul.f32 %v660, %v660
      %v693 = vmul.f32 %v661, %v661
      %v694 = vmul.f32 %v662, %v662
      %v695 = vmul.f32 %v663, %v663
      %v696 = vmul.f32 %v664, %v664
      %v697 = vmul.f32 %v665, %v665
      %v698 = vmul.f32 %v666, %v666
      %v699 = vmul.f32 %v667, %v667
      %v700 = vmul.f32 %v668, %v668
      %v701 = vmul.f32 %v669, %v669
      %v702 = vmul.f32 %v670, %v670
      %v703 = vsub.f32 %v671, 1.0
      %v704 = vsub.f32 %v672, 1.0
      %v705 = vsub.f32 %v673, 1.0
      %v706 = vsub.f32 %v674, 1.0
      %v707 = vsub.f32 %v675, 1.0
      %v708 = vsub.f32 %v676, 1.0
      %v709 = vsub.f32 %v677, 1.0
      %v710 = vsub.f32 %v678, 1.0
      %v711 = vsub.f32 %v679, 1.0
      %v712 = vsub.f32 %v680, 1.0
      %v713 = vsub.f32 %v681, 1.0
      %v714 = vsub.f32 %v682, 1.0
      %v715 = vsub.f32 %v683, 1.0
      %v716 = vsub.f32 %v684, 1.0
      %v717 = vsub.f32 %v685, 1.0
      %v718 = vsub.f32 %v686, 1.0
      %v719 = vsub.f32 %v687, 1.0
      %v720 = vsub.f32 %v688, 1.0
      %v721 = vsub.f32 %v689, 1.0
      %v722 = vsub.f32 %v690, 1.0
      %v723 = vsub.f32 %v691, 1.0
      %v724 = vsub.f32 %v692, 1.0
      %v725 = vsub.f32 %v693, 1.0
      %v726 = vsub.f32 %v694, 1.0
      %v727 = vsub.f32 %v695, 1.0
      %v728 = vsub.f32 %v696, 1.0
      %v729 = vsub.f32 %v697, 1.0
      %v730 = vsub.f32 %v698, 1.0
      %v731 = vsub.f32 %v699, 1.0
      %v732 = vsub.f32 %v700, 1.0
      %v733 = vsub.f32 %v701, 1.0
      %v734 = vsub.f32 %v702, 1.0
      %v735 = vmul.f32 %v511, %v703
      %v736 = vmul.f32 %v512, %v704
      %v737 = vmul.f32 %v513, %v705
      %v738 = vmul.f32 %v514, %v706
      %v739 = vmul.f32 %v515, %v707
      %v740 = vmul.f32 %v516, %v708
      %v741 = vmul.f32 %v517, %v709
      %v742 = vmul.f32 %v518, %v710
      %v743 = vmul.f32 %v519, %v711
      %v744 = vmul.f32 %v520, %v712
      %v745 = vmul.f32 %v521, %v713
      %v746 = vmul.f32 %v522, %v714
      %v747 = vmul.f32 %v523, %v715
      %v748 = vmul.f32 %v524, %v716
      %v749 = vmul.f32 %v525, %v717
      %v750 = vmul.f32 %v526, %v718
      %v751 = vmul.f32 %v527, %v719
      %v752 = vmul.f32 %v528, %v720
      %v753 = vmul.f32 %v529, %v721
      %v754 = vmul.f32 %v530, %v722
      %v755 = vmul.f32 %v531, %v723
      %v756 = vmul.f32 %v532, %v724
      %v757 = vmul.f32 %v533, %v725
      %v758 = vmul.f32 %v534, %v726
      %v759 = vmul.f32 %v535, %v727
      %v760 = vmul.f32 %v536, %v728
      %v761 = vmul.f32 %v537, %v729
      %v762 = vmul.f32 %v538, %v730
      %v763 = vmul.f32 %v539, %v731
      %v764 = vmul.f32 %v540, %v732
      %v765 = vmul.f32 %v541, %v733
      %v766 = vmul.f32 %v542, %v734
      %v767 = vadd.f32 %v671, 1.0
      %v768 = vadd.f32 %v672, 1.0
      %v769 = vadd.f32 %v673, 1.0
      %v770 = vadd.f32 %v674, 1.0
      %v771 = vadd.f32 %v675, 1.0
      %v772 = vadd.f32 %v676, 1.0
      %v773 = vadd.f32 %v677, 1.0
      %v774 = vadd.f32 %v678, 1.0
      %v775 = vadd.f32 %v679, 1.0
      %v776 = vadd.f32 %v680, 1.0
      %v777 = vadd.f32 %v681, 1.0
      %v778 = vadd.f32 %v682, 1.0
      %v779 = vadd.f32 %v683, 1.0
      %v780 = vadd.f32 %v684, 1.0
      %v781 = vadd.f32 %v685, 1.0
      %v782 = vadd.f32 %v686, 1.0
      %v783 = vadd.f32 %v687, 1.0
      %v784 = vadd.f32 %v688, 1.0
      %v785 = vadd.f32 %v689, 1.0
      %v786 = vadd.f32 %v690, 1.0
      %v787 = vadd.f32 %v691, 1.0
      %v788 = vadd.f32 %v692, 1.0
      %v789 = vadd.f32 %v693, 1.0
      %v790 = vadd.f32 %v694, 1.0
      %v791 = vadd.f32 %v695, 1.0
      %v792 = vadd.f32 %v696, 1.0
      %v793 = vadd.f32 %v697, 1.0
      %v794 = vadd.f32 %v698, 1.0
      %v795 = vadd.f32 %v699, 1.0
      %v796 = vadd.f32 %v700, 1.0
      %v797 = vadd.f32 %v701, 1.0
      %v798 = vadd.f32 %v702, 1.0
      %v799 = vrcp.pop %v767
      %v800 = vrcp.pop %v768
      %v801 = vrcp.pop %v769
      %v802 = vrcp.pop %v770
      %v803 = vrcp.pop %v771
      %v804 = vrcp.pop %v772
      %v805 = vrcp.pop %v773
      %v806 = vrcp.pop %v774
      %v807 = vrcp.pop %v775
      %v808 = vrcp.pop %v776
      %v809 = vrcp.pop %v777
      %v810 = vrcp.pop %v778
      %v811 = vrcp.pop %v779
      %v812 = vrcp.pop %v780
      %v813 = vrcp.pop %v781
      %v814 = vrcp.pop %v782
      %v815 = vrcp.pop %v783
      %v816 = vrcp.pop %v784
      %v817 = vrcp.pop %v785
      %v818 = vrcp.pop %v786
      %v819 = vrcp.pop %v787
      %v820 = vrcp.pop %v788
      %v821 = vrcp.pop %v789
      %v822 = vrcp.pop %v790
      %v823 = vrcp.pop %v791
      %v824 = vrcp.pop %v792
      %v825 = vrcp.pop %v793
      %v826 = vrcp.pop %v794
      %v827 = vrcp.pop %v795
      %v828 = vrcp.pop %v796
      %v829 = vrcp.pop %v797
      %v830 = vrcp.pop %v798
      %v831 = vmul.f32 %v735, %v799
      %v832 = vmul.f32 %v736, %v800
      %v833 = vmul.f32 %v737, %v801
      %v834 = vmul.f32 %v738, %v802
      %v835 = vmul.f32 %v739, %v803
      %v836 = vmul.f32 %v740, %v804
      %v837 = vmul.f32 %v741, %v805
      %v838 = vmul.f32 %v742, %v806
      %v839 = vmul.f32 %v743, %v807
      %v840 = vmul.f32 %v744, %v808
      %v841 = vmul.f32 %v745, %v809
      %v842 = vmul.f32 %v746, %v810
      %v843 = vmul.f32 %v747, %v811
      %v844 = vmul.f32 %v748, %v812
      %v845 = vmul.f32 %v749, %v813
      %v846 = vmul.f32 %v750, %v814
      %v847 = vmul.f32 %v751, %v815
      %v848 = vmul.f32 %v752, %v816
      %v849 = vmul.f32 %v753, %v817
      %v850 = vmul.f32 %v754, %v818
      %v851 = vmul.f32 %v755, %v819
      %v852 = vmul.f32 %v756, %v820
      %v853 = vmul.f32 %v757, %v821
      %v854 = vmul.f32 %v758, %v822
      %v855 = vmul.f32 %v759, %v823
      %v856 = vmul.f32 %v760, %v824
      %v857 = vmul.f32 %v761, %v825
      %v858 = vmul.f32 %v762, %v826
      %v859 = vmul.f32 %v763, %v827
      %v860 = vmul.f32 %v764, %v828
      %v861 = vmul.f32 %v765, %v829
      %v862 = vmul.f32 %v766, %v830
      %v863 = vpack.c.bf16 %v832, %v831
      %v864 = vpack.c.bf16 %v834, %v833
      %v865 = vpack.c.bf16 %v836, %v835
      %v866 = vpack.c.bf16 %v838, %v837
      %v867 = vpack.c.bf16 %v840, %v839
      %v868 = vpack.c.bf16 %v842, %v841
      %v869 = vpack.c.bf16 %v844, %v843
      %v870 = vpack.c.bf16 %v846, %v845
      %v871 = vpack.c.bf16 %v848, %v847
      %v872 = vpack.c.bf16 %v850, %v849
      %v873 = vpack.c.bf16 %v852, %v851
      %v874 = vpack.c.bf16 %v854, %v853
      %v875 = vpack.c.bf16 %v856, %v855
      %v876 = vpack.c.bf16 %v858, %v857
      %v877 = vpack.c.bf16 %v860, %v859
      %v878 = vpack.c.bf16 %v862, %v861
      %v895 = vunpack.c.l.b16 %v863
      %v896 = vunpack.c.h.b16 %v863
      %v897 = vunpack.c.l.b16 %v864
      %v898 = vunpack.c.h.b16 %v864
      %v899 = vunpack.c.l.b16 %v865
      %v900 = vunpack.c.h.b16 %v865
      %v901 = vunpack.c.l.b16 %v866
      %v902 = vunpack.c.h.b16 %v866
      %v903 = vunpack.c.l.b16 %v867
      %v904 = vunpack.c.h.b16 %v867
      %v905 = vunpack.c.l.b16 %v868
      %v906 = vunpack.c.h.b16 %v868
      %v907 = vunpack.c.l.b16 %v869
      %v908 = vunpack.c.h.b16 %v869
      %v909 = vunpack.c.l.b16 %v870
      %v910 = vunpack.c.h.b16 %v870
      %v911 = vunpack.c.l.b16 %v871
      %v912 = vunpack.c.h.b16 %v871
      %v913 = vunpack.c.l.b16 %v872
      %v914 = vunpack.c.h.b16 %v872
      %v915 = vunpack.c.l.b16 %v873
      %v916 = vunpack.c.h.b16 %v873
      %v917 = vunpack.c.l.b16 %v874
      %v918 = vunpack.c.h.b16 %v874
      %v919 = vunpack.c.l.b16 %v875
      %v920 = vunpack.c.h.b16 %v875
      %v921 = vunpack.c.l.b16 %v876
      %v922 = vunpack.c.h.b16 %v876
      %v923 = vunpack.c.l.b16 %v877
      %v924 = vunpack.c.h.b16 %v877
      %v925 = vunpack.c.l.b16 %v878
      %v926 = vunpack.c.h.b16 %v878
      %v927 = vpack.c.b16 %v895, %v895
      %v928 = vpack.c.b16 %v896, %v896
      %v929 = vpack.c.b16 %v897, %v897
      %v930 = vpack.c.b16 %v898, %v898
      %v931 = vpack.c.b16 %v899, %v899
      %v932 = vpack.c.b16 %v900, %v900
      %v933 = vpack.c.b16 %v901, %v901
      %v934 = vpack.c.b16 %v902, %v902
      %v935 = vpack.c.b16 %v903, %v903
      %v936 = vpack.c.b16 %v904, %v904
      %v937 = vpack.c.b16 %v905, %v905
      %v938 = vpack.c.b16 %v906, %v906
      %v939 = vpack.c.b16 %v907, %v907
      %v940 = vpack.c.b16 %v908, %v908
      %v941 = vpack.c.b16 %v909, %v909
      %v942 = vpack.c.b16 %v910, %v910
      %v943 = vpack.c.b16 %v911, %v911
      %v944 = vpack.c.b16 %v912, %v912
      %v945 = vpack.c.b16 %v913, %v913
      %v946 = vpack.c.b16 %v914, %v914
      %v947 = vpack.c.b16 %v915, %v915
      %v948 = vpack.c.b16 %v916, %v916
      %v949 = vpack.c.b16 %v917, %v917
      %v950 = vpack.c.b16 %v918, %v918
      %v951 = vpack.c.b16 %v919, %v919
      %v952 = vpack.c.b16 %v920, %v920
      %v953 = vpack.c.b16 %v921, %v921
      %v954 = vpack.c.b16 %v922, %v922
      %v955 = vpack.c.b16 %v923, %v923
      %v956 = vpack.c.b16 %v924, %v924
      %v957 = vpack.c.b16 %v925, %v925
      %v958 = vpack.c.b16 %v926, %v926
      %991 = vst [vmem:[%s199] sm:$0xf] %v927
      %992 = vst [vmem:[%s199 + $0x4] sm:$0xf] %v928
      %993 = vst [vmem:[%s199 + $0x8] sm:$0xf] %v929
      %994 = vst [vmem:[%s199 + $0xc] sm:$0xf] %v930
      %995 = vst [vmem:[%s199 + $0x10] sm:$0xf] %v931
      %996 = vst [vmem:[%s199 + $0x14] sm:$0xf] %v932
      %997 = vst [vmem:[%s199 + $0x18] sm:$0xf] %v933
      %998 = vst [vmem:[%s199 + $0x1c] sm:$0xf] %v934
      %999 = vst [vmem:[%s199 + $0x20] sm:$0xf] %v935
      %1000 = vst [vmem:[%s199 + $0x24] sm:$0xf] %v936
      %1001 = vst [vmem:[%s199 + $0x28] sm:$0xf] %v937
      %1002 = vst [vmem:[%s199 + $0x2c] sm:$0xf] %v938
      %1003 = vst [vmem:[%s199 + $0x30] sm:$0xf] %v939
      %1004 = vst [vmem:[%s199 + $0x34] sm:$0xf] %v940
      %1005 = vst [vmem:[%s199 + $0x38] sm:$0xf] %v941
      %1006 = vst [vmem:[%s199 + $0x3c] sm:$0xf] %v942
      %1007 = vst [vmem:[%s199 + $0x40] sm:$0xf] %v943
      %1008 = vst [vmem:[%s199 + $0x44] sm:$0xf] %v944
      %1009 = vst [vmem:[%s199 + $0x48] sm:$0xf] %v945
      %1010 = vst [vmem:[%s199 + $0x4c] sm:$0xf] %v946
      %1011 = vst [vmem:[%s199 + $0x50] sm:$0xf] %v947
      %1012 = vst [vmem:[%s199 + $0x54] sm:$0xf] %v948
      %1013 = vst [vmem:[%s199 + $0x58] sm:$0xf] %v949
      %1014 = vst [vmem:[%s199 + $0x5c] sm:$0xf] %v950
      %1015 = vst [vmem:[%s199 + $0x60] sm:$0xf] %v951
      %1016 = vst [vmem:[%s199 + $0x64] sm:$0xf] %v952
      %1017 = vst [vmem:[%s199 + $0x68] sm:$0xf] %v953
      %1018 = vst [vmem:[%s199 + $0x6c] sm:$0xf] %v954
      %1019 = vst [vmem:[%s199 + $0x70] sm:$0xf] %v955
      %1020 = vst [vmem:[%s199 + $0x74] sm:$0xf] %v956
      %1021 = vst [vmem:[%s199 + $0x78] sm:$0xf] %v957
      %1022 = vst [vmem:[%s199 + $0x7c] sm:$0xf] %v958
      %s1023 = smul.u32 32, %s15
      %p1024 = scmp.lt.s32.totalorder %s1023, 63
      %s1025 = scalar_select %p1024, %s1023, 63
      %s1026 = smul.addr %s1025, 4
      %s1027 = scalar_lea.vmem %s4, %s1026
      // Predicated region
      $region37: #{_lambda_.3} parent=35 // pred_check
        %p1028 = pneg %p122
      $region38: #{_lambda_.3} parent=35 // pred_check_branch
        %1030 = sbr.rel (%p1028) target = $region40
      $region39: #{_lambda_.3} parent=35 // pred_region
        %s1031 = smul.u32 32, %s15
      $region40: #{_lambda_.3} parent=35 // pred_fallthru
        _
    $region36: #{_lambda_.3} parent=5 // pred_fallthru
      _
    %p1032 = scmp.le.s32.totalorder 2, %s10
    // Predicated region
    $region41: #{_lambda_.3} parent=5 // pred_check
      %p1033 = pneg %p1032
    $region42: #{_lambda_.3} parent=5 // pred_check_branch
      %1035 = sbr.rel (%p1033) target = $region44
    $region43: #{_lambda_.3} parent=5 // pred_region
      %s1036 = ssub.s32 %s10, 2
      // Predicated region
      $region45: #{_lambda_.3} parent=43 // pred_check
        %p1037 = pneg %p128
      $region46: #{_lambda_.3} parent=43 // pred_check_branch
        %1039 = sbr.rel (%p1037) target = $region48
      $region47: #{_lambda_.3} parent=43 // pred_region
        %s1040 = smul.u32 32, %s16
        %p1041 = scmp.lt.s32.totalorder %s1040, 63
        %s1042 = scalar_select %p1041, %s1040, 63
        %s1043 = smul.addr %s1042, 4
        %s1044 = scalar_lea.vmem %s4, %s1043
      $region48: #{_lambda_.3} parent=43 // pred_fallthru
        _
    $region44: #{_lambda_.3} parent=5 // pred_fallthru
      _
  $region6: #{_lambda_.3} parent=0 // loop_footer
    %s14 = sadd.s32 1, %s10
  $region7: #{_lambda_.3} parent=0 // loop_footer_branch
    %9 = sbr.rel target = $region3
  $region8: #{_lambda_.3} parent=0 // loop_exit
    _

// kernel: _lambda_.5
$region0: #{_lambda_.5}
  #allocation0 [shape = 'u32[]', space=smem, size = 0x4, offset = 0x4, fixed_abs, tag = 'smem constant byte address 0x4 - core index']
  #allocation1 [shape = 'u32[144,128]{1,0:T(1,128)}', space=vmem, size = 0x12000, scoped, tag = 'internal scratch']
  %s0 = inlined_call_operand.vmem [shape: bf16[512,128], index: 0, kind: input, shape index: {}]
  %s1 = inlined_call_operand.vmem [shape: bf16[512,128], index: 1, kind: input, shape index: {}]
  %s2 = inlined_call_operand.vmem [shape: bf16[128,128], index: 2, kind: input, shape index: {}]
  %s3 = inlined_call_operand.vmem [shape: bf16[128,128], index: 3, kind: input, shape index: {}]
  %s4 = inlined_call_operand.vmem [shape: bf16[512,128], index: 4, kind: output, shape index: {}]
  %s5 = sld [smem:[#allocation0]]
  $region49: #{_lambda_.5} parent=0
    _
  %s7 = ssub.s32 1, %s5
  %s8 = scalar_select 0, %s7, %s5
  loop: start=0, step=1, limit=4
  $region2: #{_lambda_.5} parent=0 // loop_pre_header
    _
  $region3: #{_lambda_.5} parent=0 // loop_header
    %s10 = sphi 0, %s14
    %p11 = scmp.ge.s32.totalorder %s10, 4
    %s20 = sphi 0, %s22
    %s23 = sphi 0, %s20
    %s24 = sphi 0, %s23
    %s40 = sphi 0, %s24
    %s46 = sphi 0, %s48
    %s49 = sphi 0, %s46
    %s50 = sphi 0, %s49
    %s66 = sphi 0, %s50
    %s70 = sphi 0, %s70
    %s72 = sphi 0, %s70
    %s73 = sphi 0, %s72
    %s87 = sphi 0, %s73
    %s91 = sphi 0, %s91
    %s93 = sphi 0, %s91
    %s94 = sphi 0, %s93
    %s108 = sphi 0, %s94
    %s114 = sphi 0, %s116
    %s117 = sphi 0, %s114
    %s118 = sphi 0, %s117
    %s134 = sphi 0, %s118
  $region4: #{_lambda_.5} parent=0 // loop_header_branch
    %13 = sbr.rel (%p11) target = $region8
  $region5: #{_lambda_.5} parent=0 // loop_body
    %s15 = ssub.s32 %s10, 1
    %s16 = ssub.s32 %s10, 2
    %s17 = sadd.s32 %s10, 1
    %s18 = ssub.s32 %s10, %s17
    %p19 = scmp.eq.s32.totalorder %s18, 0
    %s21 = sadd.s32 %s20, 1
    %s22 = scalar_select %p19, %s20, %s21
    %p25 = pneg %p19
    %p26 = scmp.eq.s32.totalorder %s10, 1
    %p27 = por %p25, %p26
    %p28 = scmp.ne.s32.totalorder %s20, %s23
    %p29 = scmp.eq.s32.totalorder %s10, 0
    %p30 = por %p28, %p29
    %p31 = scmp.ne.s32.totalorder %s20, %s23
    %p32 = scmp.eq.s32.totalorder %s15, 1
    %p33 = por %p31, %p32
    %p34 = scmp.ne.s32.totalorder %s23, %s24
    %p35 = scmp.eq.s32.totalorder %s15, 0
    %p36 = por %p34, %p35
    %p37 = scmp.ne.s32.totalorder %s23, %s24
    %p38 = scmp.eq.s32.totalorder %s16, 1
    %p39 = por %p37, %p38
    %p41 = scmp.ne.s32.totalorder %s24, %s40
    %p42 = scmp.eq.s32.totalorder %s16, 0
    %p43 = por %p41, %p42
    %s44 = ssub.s32 %s10, %s17
    %p45 = scmp.eq.s32.totalorder %s44, 0
    %s47 = sadd.s32 %s46, 1
    %s48 = scalar_select %p45, %s46, %s47
    %p51 = pneg %p45
    %p52 = scmp.eq.s32.totalorder %s10, 1
    %p53 = por %p51, %p52
    %p54 = scmp.ne.s32.totalorder %s46, %s49
    %p55 = scmp.eq.s32.totalorder %s10, 0
    %p56 = por %p54, %p55
    %p57 = scmp.ne.s32.totalorder %s46, %s49
    %p58 = scmp.eq.s32.totalorder %s15, 1
    %p59 = por %p57, %p58
    %p60 = scmp.ne.s32.totalorder %s49, %s50
    %p61 = scmp.eq.s32.totalorder %s15, 0
    %p62 = por %p60, %p61
    %p63 = scmp.ne.s32.totalorder %s49, %s50
    %p64 = scmp.eq.s32.totalorder %s16, 1
    %p65 = por %p63, %p64
    %p67 = scmp.ne.s32.totalorder %s50, %s66
    %p68 = scmp.eq.s32.totalorder %s16, 0
    %p69 = por %p67, %p68
    %s71 = sadd.s32 %s70, 1
    %p74 = scmp.eq.s32.totalorder %s10, 1
    %p75 = scmp.ne.s32.totalorder %s70, %s72
    %p76 = scmp.eq.s32.totalorder %s10, 0
    %p77 = por %p75, %p76
    %p78 = scmp.ne.s32.totalorder %s70, %s72
    %p79 = scmp.eq.s32.totalorder %s15, 1
    %p80 = por %p78, %p79
    %p81 = scmp.ne.s32.totalorder %s72, %s73
    %p82 = scmp.eq.s32.totalorder %s15, 0
    %p83 = por %p81, %p82
    %p84 = scmp.ne.s32.totalorder %s72, %s73
    %p85 = scmp.eq.s32.totalorder %s16, 1
    %p86 = por %p84, %p85
    %p88 = scmp.ne.s32.totalorder %s73, %s87
    %p89 = scmp.eq.s32.totalorder %s16, 0
    %p90 = por %p88, %p89
    %s92 = sadd.s32 %s91, 1
    %p95 = scmp.eq.s32.totalorder %s10, 1
    %p96 = scmp.ne.s32.totalorder %s91, %s93
    %p97 = scmp.eq.s32.totalorder %s10, 0
    %p98 = por %p96, %p97
    %p99 = scmp.ne.s32.totalorder %s91, %s93
    %p100 = scmp.eq.s32.totalorder %s15, 1
    %p101 = por %p99, %p100
    %p102 = scmp.ne.s32.totalorder %s93, %s94
    %p103 = scmp.eq.s32.totalorder %s15, 0
    %p104 = por %p102, %p103
    %p105 = scmp.ne.s32.totalorder %s93, %s94
    %p106 = scmp.eq.s32.totalorder %s16, 1
    %p107 = por %p105, %p106
    %p109 = scmp.ne.s32.totalorder %s94, %s108
    %p110 = scmp.eq.s32.totalorder %s16, 0
    %p111 = por %p109, %p110
    %s112 = ssub.s32 %s10, %s17
    %p113 = scmp.eq.s32.totalorder %s112, 0
    %s115 = sadd.s32 %s114, 1
    %s116 = scalar_select %p113, %s114, %s115
    %p119 = pneg %p113
    %p120 = scmp.eq.s32.totalorder %s10, 1
    %p121 = por %p119, %p120
    %p122 = scmp.ne.s32.totalorder %s114, %s117
    %p123 = scmp.eq.s32.totalorder %s10, 0
    %p124 = por %p122, %p123
    %p125 = scmp.ne.s32.totalorder %s114, %s117
    %p126 = scmp.eq.s32.totalorder %s15, 1
    %p127 = por %p125, %p126
    %p128 = scmp.ne.s32.totalorder %s117, %s118
    %p129 = scmp.eq.s32.totalorder %s15, 0
    %p130 = por %p128, %p129
    %p131 = scmp.ne.s32.totalorder %s117, %s118
    %p132 = scmp.eq.s32.totalorder %s16, 1
    %p133 = por %p131, %p132
    %p135 = scmp.ne.s32.totalorder %s118, %s134
    %p136 = scmp.eq.s32.totalorder %s16, 0
    %p137 = por %p135, %p136
    %p138 = scmp.le.s32.totalorder 1, %s10
    %p139 = scmp.lt.s32.totalorder %s10, 3
    %p140 = pnand %p138, %p139
    %p141 = pneg %p140
    // Predicated region
    $region9: #{_lambda_.5} parent=5 // pred_check
      _
    $region10: #{_lambda_.5} parent=5 // pred_check_branch
      %143 = sbr.rel (%p140) target = $region12
    $region11: #{_lambda_.5} parent=5 // pred_region
      %s144 = ssub.s32 %s10, 1
      // Predicated region
      $region13: #{_lambda_.5} parent=11 // pred_check
        %p145 = pneg %p83
      $region14: #{_lambda_.5} parent=11 // pred_check_branch
        %147 = sbr.rel (%p145) target = $region16
      $region15: #{_lambda_.5} parent=11 // pred_region
        _
      $region16: #{_lambda_.5} parent=11 // pred_fallthru
        _
      // Predicated region
      $region17: #{_lambda_.5} parent=11 // pred_check
        %p148 = pneg %p104
      $region18: #{_lambda_.5} parent=11 // pred_check_branch
        %150 = sbr.rel (%p148) target = $region20
      $region19: #{_lambda_.5} parent=11 // pred_region
        _
      $region20: #{_lambda_.5} parent=11 // pred_fallthru
        _
    $region12: #{_lambda_.5} parent=5 // pred_fallthru
      _
    %p151 = scmp.lt.s32.totalorder %s10, 2
    // Predicated region
    $region21: #{_lambda_.5} parent=5 // pred_check
      %p152 = pneg %p151
    $region22: #{_lambda_.5} parent=5 // pred_check_branch
      %154 = sbr.rel (%p152) target = $region24
    $region23: #{_lambda_.5} parent=5 // pred_region
      // Predicated region
      $region25: #{_lambda_.5} parent=23 // pred_check
        %p155 = pneg %p30
      $region26: #{_lambda_.5} parent=23 // pred_check_branch
        %157 = sbr.rel (%p155) target = $region28
      $region27: #{_lambda_.5} parent=23 // pred_region
        %s158 = smul.u32 32, %s10
        %p159 = scmp.lt.s32.totalorder %s158, 63
        %s160 = scalar_select %p159, %s158, 63
        %s161 = smul.addr %s160, 4
        %s162 = scalar_lea.vmem %s0, %s161
        %s163 = smul.u32 32, %s10
      $region28: #{_lambda_.5} parent=23 // pred_fallthru
        _
      // Predicated region
      $region29: #{_lambda_.5} parent=23 // pred_check
        %p164 = pneg %p56
      $region30: #{_lambda_.5} parent=23 // pred_check_branch
        %166 = sbr.rel (%p164) target = $region32
      $region31: #{_lambda_.5} parent=23 // pred_region
        %s167 = smul.u32 32, %s10
        %p168 = scmp.lt.s32.totalorder %s167, 63
        %s169 = scalar_select %p168, %s167, 63
        %s170 = smul.addr %s169, 4
        %s171 = scalar_lea.vmem %s1, %s170
        %s172 = smul.u32 32, %s10
      $region32: #{_lambda_.5} parent=23 // pred_fallthru
        _
    $region24: #{_lambda_.5} parent=5 // pred_fallthru
      _
    %p173 = scmp.le.s32.totalorder 1, %s10
    %p174 = scmp.lt.s32.totalorder %s10, 3
    %p175 = pnand %p173, %p174
    %p176 = pneg %p175
    // Predicated region
    $region33: #{_lambda_.5} parent=5 // pred_check
      _
    $region34: #{_lambda_.5} parent=5 // pred_check_branch
      %178 = sbr.rel (%p175) target = $region36
    $region35: #{_lambda_.5} parent=5 // pred_region
      %s179 = ssub.s32 %s10, 1
      %s180 = smul.u32 32, %s15
      %p181 = scmp.lt.s32.totalorder %s180, 63
      %s182 = scalar_select %p181, %s180, 63
      %s183 = smul.addr %s182, 4
      %s184 = scalar_lea.vmem %s0, %s183
      %p185 = pneg %p36
      %p186 = pneg %p33
      %s187 = smul.u32 32, %s15
      %p188 = scmp.lt.s32.totalorder %s187, 63
      %s189 = scalar_select %p188, %s187, 63
      %s190 = smul.addr %s189, 4
      %s191 = scalar_lea.vmem %s1, %s190
      %p192 = pneg %p62
      %p193 = pneg %p59
      %p194 = pneg %p83
      %p195 = pneg %p80
      %p196 = pneg %p104
      %p197 = pneg %p101
      %p198 = pneg %p130
      %p199 = pneg %p127
      %s200 = smul.u32 32, %s15
      %p201 = scmp.lt.s32.totalorder %s200, 63
      %s202 = scalar_select %p201, %s200, 63
      %s203 = smul.addr %s202, 4
      %s204 = scalar_lea.vmem %s4, %s203
      %s205 = smul.u32 32, %s15
      %p206 = scmp.lt.s32.totalorder %s205, 63
      %s207 = scalar_select %p206, %s205, 63
      %s208 = smul.addr %s207, 4
      %s209 = scalar_lea.vmem %s0, %s208
      %s210 = smul.u32 32, %s15
      %s211 = smul.u32 32, %s15
      %p212 = scmp.lt.s32.totalorder %s211, 63
      %s213 = scalar_select %p212, %s211, 63
      %s214 = smul.addr %s213, 4
      %s215 = scalar_lea.vmem %s1, %s214
      %s216 = smul.u32 32, %s15
      %s217 = smul.u32 32, %s15
      %p218 = scmp.lt.s32.totalorder %s217, 63
      %s219 = scalar_select %p218, %s217, 63
      %s220 = smul.addr %s219, 4
      %s221 = scalar_lea.vmem %s4, %s220
      %s222 = smul.u32 32, %s15
      %v224 = vld [vmem:[%s209] sm:$0xf]
      %v225 = vld [vmem:[%s209 + $0x4] sm:$0xf]
      %v226 = vld [vmem:[%s209 + $0x8] sm:$0xf]
      %v227 = vld [vmem:[%s209 + $0xc] sm:$0xf]
      %v228 = vld [vmem:[%s209 + $0x10] sm:$0xf]
      %v229 = vld [vmem:[%s209 + $0x14] sm:$0xf]
      %v230 = vld [vmem:[%s209 + $0x18] sm:$0xf]
      %v231 = vld [vmem:[%s209 + $0x1c] sm:$0xf]
      %v232 = vld [vmem:[%s209 + $0x20] sm:$0xf]
      %v233 = vld [vmem:[%s209 + $0x24] sm:$0xf]
      %v234 = vld [vmem:[%s209 + $0x28] sm:$0xf]
      %v235 = vld [vmem:[%s209 + $0x2c] sm:$0xf]
      %v236 = vld [vmem:[%s209 + $0x30] sm:$0xf]
      %v237 = vld [vmem:[%s209 + $0x34] sm:$0xf]
      %v238 = vld [vmem:[%s209 + $0x38] sm:$0xf]
      %v239 = vld [vmem:[%s209 + $0x3c] sm:$0xf]
      %v240 = vld [vmem:[%s209 + $0x40] sm:$0xf]
      %v241 = vld [vmem:[%s209 + $0x44] sm:$0xf]
      %v242 = vld [vmem:[%s209 + $0x48] sm:$0xf]
      %v243 = vld [vmem:[%s209 + $0x4c] sm:$0xf]
      %v244 = vld [vmem:[%s209 + $0x50] sm:$0xf]
      %v245 = vld [vmem:[%s209 + $0x54] sm:$0xf]
      %v246 = vld [vmem:[%s209 + $0x58] sm:$0xf]
      %v247 = vld [vmem:[%s209 + $0x5c] sm:$0xf]
      %v248 = vld [vmem:[%s209 + $0x60] sm:$0xf]
      %v249 = vld [vmem:[%s209 + $0x64] sm:$0xf]
      %v250 = vld [vmem:[%s209 + $0x68] sm:$0xf]
      %v251 = vld [vmem:[%s209 + $0x6c] sm:$0xf]
      %v252 = vld [vmem:[%s209 + $0x70] sm:$0xf]
      %v253 = vld [vmem:[%s209 + $0x74] sm:$0xf]
      %v254 = vld [vmem:[%s209 + $0x78] sm:$0xf]
      %v255 = vld [vmem:[%s209 + $0x7c] sm:$0xf]
      %v256 = vld [vmem:[%s2] sm:$0xf]
      %v257 = vld [vmem:[%s2 + $0x4] sm:$0xf]
      %v258 = vld [vmem:[%s2 + $0x8] sm:$0xf]
      %v259 = vld [vmem:[%s2 + $0xc] sm:$0xf]
      %v260 = vld [vmem:[%s2 + $0x10] sm:$0xf]
      %v261 = vld [vmem:[%s2 + $0x14] sm:$0xf]
      %v262 = vld [vmem:[%s2 + $0x18] sm:$0xf]
      %v263 = vld [vmem:[%s2 + $0x1c] sm:$0xf]
      %v264 = vld [vmem:[%s2 + $0x20] sm:$0xf]
      %v265 = vld [vmem:[%s2 + $0x24] sm:$0xf]
      %v266 = vld [vmem:[%s2 + $0x28] sm:$0xf]
      %v267 = vld [vmem:[%s2 + $0x2c] sm:$0xf]
      %v268 = vld [vmem:[%s2 + $0x30] sm:$0xf]
      %v269 = vld [vmem:[%s2 + $0x34] sm:$0xf]
      %v270 = vld [vmem:[%s2 + $0x38] sm:$0xf]
      %v271 = vld [vmem:[%s2 + $0x3c] sm:$0xf]
      %v272 = vld [vmem:[%s215] sm:$0xf]
      %v273 = vld [vmem:[%s215 + $0x4] sm:$0xf]
      %v274 = vld [vmem:[%s215 + $0x8] sm:$0xf]
      %v275 = vld [vmem:[%s215 + $0xc] sm:$0xf]
      %v276 = vld [vmem:[%s215 + $0x10] sm:$0xf]
      %v277 = vld [vmem:[%s215 + $0x14] sm:$0xf]
      %v278 = vld [vmem:[%s215 + $0x18] sm:$0xf]
      %v279 = vld [vmem:[%s215 + $0x1c] sm:$0xf]
      %v280 = vld [vmem:[%s215 + $0x20] sm:$0xf]
      %v281 = vld [vmem:[%s215 + $0x24] sm:$0xf]
      %v282 = vld [vmem:[%s215 + $0x28] sm:$0xf]
      %v283 = vld [vmem:[%s215 + $0x2c] sm:$0xf]
      %v284 = vld [vmem:[%s215 + $0x30] sm:$0xf]
      %v285 = vld [vmem:[%s215 + $0x34] sm:$0xf]
      %v286 = vld [vmem:[%s215 + $0x38] sm:$0xf]
      %v287 = vld [vmem:[%s215 + $0x3c] sm:$0xf]
      %v288 = vld [vmem:[%s215 + $0x40] sm:$0xf]
      %v289 = vld [vmem:[%s215 + $0x44] sm:$0xf]
      %v290 = vld [vmem:[%s215 + $0x48] sm:$0xf]
      %v291 = vld [vmem:[%s215 + $0x4c] sm:$0xf]
      %v292 = vld [vmem:[%s215 + $0x50] sm:$0xf]
      %v293 = vld [vmem:[%s215 + $0x54] sm:$0xf]
      %v294 = vld [vmem:[%s215 + $0x58] sm:$0xf]
      %v295 = vld [vmem:[%s215 + $0x5c] sm:$0xf]
      %v296 = vld [vmem:[%s215 + $0x60] sm:$0xf]
      %v297 = vld [vmem:[%s215 + $0x64] sm:$0xf]
      %v298 = vld [vmem:[%s215 + $0x68] sm:$0xf]
      %v299 = vld [vmem:[%s215 + $0x6c] sm:$0xf]
      %v300 = vld [vmem:[%s215 + $0x70] sm:$0xf]
      %v301 = vld [vmem:[%s215 + $0x74] sm:$0xf]
      %v302 = vld [vmem:[%s215 + $0x78] sm:$0xf]
      %v303 = vld [vmem:[%s215 + $0x7c] sm:$0xf]
      %v304 = vld [vmem:[%s3] sm:$0xf]
      %v305 = vld [vmem:[%s3 + $0x4] sm:$0xf]
      %v306 = vld [vmem:[%s3 + $0x8] sm:$0xf]
      %v307 = vld [vmem:[%s3 + $0xc] sm:$0xf]
      %v308 = vld [vmem:[%s3 + $0x10] sm:$0xf]
      %v309 = vld [vmem:[%s3 + $0x14] sm:$0xf]
      %v310 = vld [vmem:[%s3 + $0x18] sm:$0xf]
      %v311 = vld [vmem:[%s3 + $0x1c] sm:$0xf]
      %v312 = vld [vmem:[%s3 + $0x20] sm:$0xf]
      %v313 = vld [vmem:[%s3 + $0x24] sm:$0xf]
      %v314 = vld [vmem:[%s3 + $0x28] sm:$0xf]
      %v315 = vld [vmem:[%s3 + $0x2c] sm:$0xf]
      %v316 = vld [vmem:[%s3 + $0x30] sm:$0xf]
      %v317 = vld [vmem:[%s3 + $0x34] sm:$0xf]
      %v318 = vld [vmem:[%s3 + $0x38] sm:$0xf]
      %v319 = vld [vmem:[%s3 + $0x3c] sm:$0xf]
      %v352 = vunpack.c.l.b16 %v272
      %v353 = vunpack.c.l.b16 %v273
      %v354 = vunpack.c.l.b16 %v274
      %v355 = vunpack.c.l.b16 %v275
      %v356 = vunpack.c.l.b16 %v276
      %v357 = vunpack.c.l.b16 %v277
      %v358 = vunpack.c.l.b16 %v278
      %v359 = vunpack.c.l.b16 %v279
      %v360 = vunpack.c.l.b16 %v280
      %v361 = vunpack.c.l.b16 %v281
      %v362 = vunpack.c.l.b16 %v282
      %v363 = vunpack.c.l.b16 %v283
      %v364 = vunpack.c.l.b16 %v284
      %v365 = vunpack.c.l.b16 %v285
      %v366 = vunpack.c.l.b16 %v286
      %v367 = vunpack.c.l.b16 %v287
      %v368 = vunpack.c.l.b16 %v288
      %v369 = vunpack.c.l.b16 %v289
      %v370 = vunpack.c.l.b16 %v290
      %v371 = vunpack.c.l.b16 %v291
      %v372 = vunpack.c.l.b16 %v292
      %v373 = vunpack.c.l.b16 %v293
      %v374 = vunpack.c.l.b16 %v294
      %v375 = vunpack.c.l.b16 %v295
      %v376 = vunpack.c.l.b16 %v296
      %v377 = vunpack.c.l.b16 %v297
      %v378 = vunpack.c.l.b16 %v298
      %v379 = vunpack.c.l.b16 %v299
      %v380 = vunpack.c.l.b16 %v300
      %v381 = vunpack.c.l.b16 %v301
      %v382 = vunpack.c.l.b16 %v302
      %v383 = vunpack.c.l.b16 %v303
      %v384 = vpack.c.b16 %v353, %v352
      %v385 = vpack.c.b16 %v355, %v354
      %v386 = vpack.c.b16 %v357, %v356
      %v387 = vpack.c.b16 %v359, %v358
      %v388 = vpack.c.b16 %v361, %v360
      %v389 = vpack.c.b16 %v363, %v362
      %v390 = vpack.c.b16 %v365, %v364
      %v391 = vpack.c.b16 %v367, %v366
      %v392 = vpack.c.b16 %v369, %v368
      %v393 = vpack.c.b16 %v371, %v370
      %v394 = vpack.c.b16 %v373, %v372
      %v395 = vpack.c.b16 %v375, %v374
      %v396 = vpack.c.b16 %v377, %v376
      %v397 = vpack.c.b16 %v379, %v378
      %v398 = vpack.c.b16 %v381, %v380
      %v399 = vpack.c.b16 %v383, %v382
      %v432 = vunpack.c.l.b16 %v304
      %v433 = vunpack.c.l.b16 %v305
      %v434 = vunpack.c.l.b16 %v306
      %v435 = vunpack.c.l.b16 %v307
      %v436 = vunpack.c.l.b16 %v308
      %v437 = vunpack.c.l.b16 %v309
      %v438 = vunpack.c.l.b16 %v310
      %v439 = vunpack.c.l.b16 %v311
      %v440 = vunpack.c.l.b16 %v312
      %v441 = vunpack.c.l.b16 %v313
      %v442 = vunpack.c.l.b16 %v314
      %v443 = vunpack.c.l.b16 %v315
      %v444 = vunpack.c.l.b16 %v316
      %v445 = vunpack.c.l.b16 %v317
      %v446 = vunpack.c.l.b16 %v318
      %v447 = vunpack.c.l.b16 %v319
      %v448 = vpack.c.b16 %v433, %v432
      %v449 = vpack.c.b16 %v435, %v434
      %v450 = vpack.c.b16 %v437, %v436
      %v451 = vpack.c.b16 %v439, %v438
      %v452 = vpack.c.b16 %v441, %v440
      %v453 = vpack.c.b16 %v443, %v442
      %v454 = vpack.c.b16 %v445, %v444
      %v455 = vpack.c.b16 %v447, %v446
      %464 = vmatprep.subr.bf16.mxu0 0
      %465 = vmatpush1.bf16.msra.mxu0 %v455
      %466 = vmatprep.subr.bf16.mxu0 0
      %467 = vmatpush1.bf16.msra.mxu0 %v454
      %468 = vmatprep.subr.bf16.mxu0 0
      %469 = vmatpush1.bf16.msra.mxu0 %v453
      %470 = vmatprep.subr.bf16.mxu0 0
      %471 = vmatpush1.bf16.msra.mxu0 %v452
      %472 = vmatprep.subr.bf16.mxu0 0
      %473 = vmatpush1.bf16.msra.mxu0 %v451
      %474 = vmatprep.subr.bf16.mxu0 0
      %475 = vmatpush1.bf16.msra.mxu0 %v450
      %476 = vmatprep.subr.bf16.mxu0 0
      %477 = vmatpush1.bf16.msra.mxu0 %v449
      %478 = vmatprep.subr.bf16.mxu0 0
      %479 = vmatpush1.bf16.msra.mxu0 %v448
      %480 = vmatprep.subr.bf16.mxu0 0
      %481 = vmatpush2.bf16.msra.mxu0 0
      %482 = vmatprep.subr.bf16.mxu0 0
      %483 = vmatpush2.bf16.msra.mxu0 0
      %484 = vmatprep.subr.bf16.mxu0 0
      %485 = vmatpush2.bf16.msra.mxu0 0
      %486 = vmatprep.subr.bf16.mxu0 0
      %487 = vmatpush2.bf16.msra.mxu0 0
      %488 = vmatprep.subr.bf16.mxu0 0
      %489 = vmatpush2.bf16.msra.mxu0 0
      %490 = vmatprep.subr.bf16.mxu0 0
      %491 = vmatpush2.bf16.msra.mxu0 0
      %492 = vmatprep.subr.bf16.mxu0 0
      %493 = vmatpush2.bf16.msra.mxu0 0
      %494 = vmatprep.subr.bf16.mxu0 0
      %495 = vmatpush2.bf16.msra.mxu0 0
      %496 = vmatprep.mubr.bf16.mxu0 0
      %497 = vmatmul.mubr.bf16.gmra.mxu0 %v384
      %v498 = vpop.f32.mrf.mxu0
      %v499 = vadd.f32 0.0, %v498
      %v500 = vpop.f32.mrf.mxu0
      %v501 = vpop.f32.mrf.mxu0
      %v502 = vadd.f32 0.0, %v501
      %v503 = vpop.f32.mrf.mxu0
      %504 = vmatprep.mubr.bf16.mxu0 0
      %505 = vmatmul.mubr.bf16.gmra.mxu0 %v385
      %v506 = vpop.f32.mrf.mxu0
      %v507 = vadd.f32 0.0, %v506
      %v508 = vpop.f32.mrf.mxu0
      %v509 = vpop.f32.mrf.mxu0
      %v510 = vadd.f32 0.0, %v509
      %v511 = vpop.f32.mrf.mxu0
      %512 = vmatprep.mubr.bf16.mxu0 0
      %513 = vmatmul.mubr.bf16.gmra.mxu0 %v386
      %v514 = vpop.f32.mrf.mxu0
      %v515 = vadd.f32 0.0, %v514
      %v516 = vpop.f32.mrf.mxu0
      %v517 = vpop.f32.mrf.mxu0
      %v518 = vadd.f32 0.0, %v517
      %v519 = vpop.f32.mrf.mxu0
      %520 = vmatprep.mubr.bf16.mxu0 0
      %521 = vmatmul.mubr.bf16.gmra.mxu0 %v387
      %v522 = vpop.f32.mrf.mxu0
      %v523 = vadd.f32 0.0, %v522
      %v524 = vpop.f32.mrf.mxu0
      %v525 = vpop.f32.mrf.mxu0
      %v526 = vadd.f32 0.0, %v525
      %v527 = vpop.f32.mrf.mxu0
      %528 = vmatprep.mubr.bf16.mxu0 0
      %529 = vmatmul.mubr.bf16.gmra.mxu0 %v388
      %v530 = vpop.f32.mrf.mxu0
      %v531 = vadd.f32 0.0, %v530
      %v532 = vpop.f32.mrf.mxu0
      %v533 = vpop.f32.mrf.mxu0
      %v534 = vadd.f32 0.0, %v533
      %v535 = vpop.f32.mrf.mxu0
      %536 = vmatprep.mubr.bf16.mxu0 0
      %537 = vmatmul.mubr.bf16.gmra.mxu0 %v389
      %v538 = vpop.f32.mrf.mxu0
      %v539 = vadd.f32 0.0, %v538
      %v540 = vpop.f32.mrf.mxu0
      %v541 = vpop.f32.mrf.mxu0
      %v542 = vadd.f32 0.0, %v541
      %v543 = vpop.f32.mrf.mxu0
      %544 = vmatprep.mubr.bf16.mxu0 0
      %545 = vmatmul.mubr.bf16.gmra.mxu0 %v390
      %v546 = vpop.f32.mrf.mxu0
      %v547 = vadd.f32 0.0, %v546
      %v548 = vpop.f32.mrf.mxu0
      %v549 = vpop.f32.mrf.mxu0
      %v550 = vadd.f32 0.0, %v549
      %v551 = vpop.f32.mrf.mxu0
      %552 = vmatprep.mubr.bf16.mxu0 0
      %553 = vmatmul.mubr.bf16.gmra.mxu0 %v391
      %v554 = vpop.f32.mrf.mxu0
      %v555 = vadd.f32 0.0, %v554
      %v556 = vpop.f32.mrf.mxu0
      %v557 = vpop.f32.mrf.mxu0
      %v558 = vadd.f32 0.0, %v557
      %v559 = vpop.f32.mrf.mxu0
      %560 = vmatprep.mubr.bf16.mxu0 0
      %561 = vmatmul.mubr.bf16.gmra.mxu0 %v392
      %v562 = vpop.f32.mrf.mxu0
      %v563 = vadd.f32 0.0, %v562
      %v564 = vpop.f32.mrf.mxu0
      %v565 = vpop.f32.mrf.mxu0
      %v566 = vadd.f32 0.0, %v565
      %v567 = vpop.f32.mrf.mxu0
      %568 = vmatprep.mubr.bf16.mxu0 0
      %569 = vmatmul.mubr.bf16.gmra.mxu0 %v393
      %v570 = vpop.f32.mrf.mxu0
      %v571 = vadd.f32 0.0, %v570
      %v572 = vpop.f32.mrf.mxu0
      %v573 = vpop.f32.mrf.mxu0
      %v574 = vadd.f32 0.0, %v573
      %v575 = vpop.f32.mrf.mxu0
      %576 = vmatprep.mubr.bf16.mxu0 0
      %577 = vmatmul.mubr.bf16.gmra.mxu0 %v394
      %v578 = vpop.f32.mrf.mxu0
      %v579 = vadd.f32 0.0, %v578
      %v580 = vpop.f32.mrf.mxu0
      %v581 = vpop.f32.mrf.mxu0
      %v582 = vadd.f32 0.0, %v581
      %v583 = vpop.f32.mrf.mxu0
      %584 = vmatprep.mubr.bf16.mxu0 0
      %585 = vmatmul.mubr.bf16.gmra.mxu0 %v395
      %v586 = vpop.f32.mrf.mxu0
      %v587 = vadd.f32 0.0, %v586
      %v588 = vpop.f32.mrf.mxu0
      %v589 = vpop.f32.mrf.mxu0
      %v590 = vadd.f32 0.0, %v589
      %v591 = vpop.f32.mrf.mxu0
      %592 = vmatprep.mubr.bf16.mxu0 0
      %593 = vmatmul.mubr.bf16.gmra.mxu0 %v396
      %v594 = vpop.f32.mrf.mxu0
      %v595 = vadd.f32 0.0, %v594
      %v596 = vpop.f32.mrf.mxu0
      %v597 = vpop.f32.mrf.mxu0
      %v598 = vadd.f32 0.0, %v597
      %v599 = vpop.f32.mrf.mxu0
      %600 = vmatprep.mubr.bf16.mxu0 0
      %601 = vmatmul.mubr.bf16.gmra.mxu0 %v397
      %v602 = vpop.f32.mrf.mxu0
      %v603 = vadd.f32 0.0, %v602
      %v604 = vpop.f32.mrf.mxu0
      %v605 = vpop.f32.mrf.mxu0
      %v606 = vadd.f32 0.0, %v605
      %v607 = vpop.f32.mrf.mxu0
      %608 = vmatprep.mubr.bf16.mxu0 0
      %609 = vmatmul.mubr.bf16.gmra.mxu0 %v398
      %v610 = vpop.f32.mrf.mxu0
      %v611 = vadd.f32 0.0, %v610
      %v612 = vpop.f32.mrf.mxu0
      %v613 = vpop.f32.mrf.mxu0
      %v614 = vadd.f32 0.0, %v613
      %v615 = vpop.f32.mrf.mxu0
      %616 = vmatprep.mubr.bf16.mxu0 0
      %617 = vmatmul.mubr.bf16.gmra.mxu0 %v399
      %v618 = vpop.f32.mrf.mxu0
      %v619 = vadd.f32 0.0, %v618
      %v620 = vpop.f32.mrf.mxu0
      %v621 = vpop.f32.mrf.mxu0
      %v622 = vadd.f32 0.0, %v621
      %v623 = vpop.f32.mrf.mxu0
      %624 = vdwg.mxu0
      %v657 = vunpack.c.l.b16 %v224
      %v658 = vunpack.c.l.b16 %v225
      %v659 = vunpack.c.l.b16 %v226
      %v660 = vunpack.c.l.b16 %v227
      %v661 = vunpack.c.l.b16 %v228
      %v662 = vunpack.c.l.b16 %v229
      %v663 = vunpack.c.l.b16 %v230
      %v664 = vunpack.c.l.b16 %v231
      %v665 = vunpack.c.l.b16 %v232
      %v666 = vunpack.c.l.b16 %v233
      %v667 = vunpack.c.l.b16 %v234
      %v668 = vunpack.c.l.b16 %v235
      %v669 = vunpack.c.l.b16 %v236
      %v670 = vunpack.c.l.b16 %v237
      %v671 = vunpack.c.l.b16 %v238
      %v672 = vunpack.c.l.b16 %v239
      %v673 = vunpack.c.l.b16 %v240
      %v674 = vunpack.c.l.b16 %v241
      %v675 = vunpack.c.l.b16 %v242
      %v676 = vunpack.c.l.b16 %v243
      %v677 = vunpack.c.l.b16 %v244
      %v678 = vunpack.c.l.b16 %v245
      %v679 = vunpack.c.l.b16 %v246
      %v680 = vunpack.c.l.b16 %v247
      %v681 = vunpack.c.l.b16 %v248
      %v682 = vunpack.c.l.b16 %v249
      %v683 = vunpack.c.l.b16 %v250
      %v684 = vunpack.c.l.b16 %v251
      %v685 = vunpack.c.l.b16 %v252
      %v686 = vunpack.c.l.b16 %v253
      %v687 = vunpack.c.l.b16 %v254
      %v688 = vunpack.c.l.b16 %v255
      %v689 = vpack.c.b16 %v658, %v657
      %v690 = vpack.c.b16 %v660, %v659
      %v691 = vpack.c.b16 %v662, %v661
      %v692 = vpack.c.b16 %v664, %v663
      %v693 = vpack.c.b16 %v666, %v665
      %v694 = vpack.c.b16 %v668, %v667
      %v695 = vpack.c.b16 %v670, %v669
      %v696 = vpack.c.b16 %v672, %v671
      %v697 = vpack.c.b16 %v674, %v673
      %v698 = vpack.c.b16 %v676, %v675
      %v699 = vpack.c.b16 %v678, %v677
      %v700 = vpack.c.b16 %v680, %v679
      %v701 = vpack.c.b16 %v682, %v681
      %v702 = vpack.c.b16 %v684, %v683
      %v703 = vpack.c.b16 %v686, %v685
      %v704 = vpack.c.b16 %v688, %v687
      %v737 = vunpack.c.l.b16 %v256
      %v738 = vunpack.c.l.b16 %v257
      %v739 = vunpack.c.l.b16 %v258
      %v740 = vunpack.c.l.b16 %v259
      %v741 = vunpack.c.l.b16 %v260
      %v742 = vunpack.c.l.b16 %v261
      %v743 = vunpack.c.l.b16 %v262
      %v744 = vunpack.c.l.b16 %v263
      %v745 = vunpack.c.l.b16 %v264
      %v746 = vunpack.c.l.b16 %v265
      %v747 = vunpack.c.l.b16 %v266
      %v748 = vunpack.c.l.b16 %v267
      %v749 = vunpack.c.l.b16 %v268
      %v750 = vunpack.c.l.b16 %v269
      %v751 = vunpack.c.l.b16 %v270
      %v752 = vunpack.c.l.b16 %v271
      %v753 = vpack.c.b16 %v738, %v737
      %v754 = vpack.c.b16 %v740, %v739
      %v755 = vpack.c.b16 %v742, %v741
      %v756 = vpack.c.b16 %v744, %v743
      %v757 = vpack.c.b16 %v746, %v745
      %v758 = vpack.c.b16 %v748, %v747
      %v759 = vpack.c.b16 %v750, %v749
      %v760 = vpack.c.b16 %v752, %v751
      %769 = vmatprep.subr.bf16.mxu0 0
      %770 = vmatpush1.bf16.msra.mxu0 %v760
      %771 = vmatprep.subr.bf16.mxu0 0
      %772 = vmatpush1.bf16.msra.mxu0 %v759
      %773 = vmatprep.subr.bf16.mxu0 0
      %774 = vmatpush1.bf16.msra.mxu0 %v758
      %775 = vmatprep.subr.bf16.mxu0 0
      %776 = vmatpush1.bf16.msra.mxu0 %v757
      %777 = vmatprep.subr.bf16.mxu0 0
      %778 = vmatpush1.bf16.msra.mxu0 %v756
      %779 = vmatprep.subr.bf16.mxu0 0
      %780 = vmatpush1.bf16.msra.mxu0 %v755
      %781 = vmatprep.subr.bf16.mxu0 0
      %782 = vmatpush1.bf16.msra.mxu0 %v754
      %783 = vmatprep.subr.bf16.mxu0 0
      %784 = vmatpush1.bf16.msra.mxu0 %v753
      %785 = vmatprep.subr.bf16.mxu0 0
      %786 = vmatpush2.bf16.msra.mxu0 0
      %787 = vmatprep.subr.bf16.mxu0 0
      %788 = vmatpush2.bf16.msra.mxu0 0
      %789 = vmatprep.subr.bf16.mxu0 0
      %790 = vmatpush2.bf16.msra.mxu0 0
      %791 = vmatprep.subr.bf16.mxu0 0
      %792 = vmatpush2.bf16.msra.mxu0 0
      %793 = vmatprep.subr.bf16.mxu0 0
      %794 = vmatpush2.bf16.msra.mxu0 0
      %795 = vmatprep.subr.bf16.mxu0 0
      %796 = vmatpush2.bf16.msra.mxu0 0
      %797 = vmatprep.subr.bf16.mxu0 0
      %798 = vmatpush2.bf16.msra.mxu0 0
      %799 = vmatprep.subr.bf16.mxu0 0
      %800 = vmatpush2.bf16.msra.mxu0 0
      %801 = vmatprep.mubr.bf16.mxu0 0
      %802 = vmatmul.mubr.bf16.gmra.mxu0 %v689
      %v803 = vpop.f32.mrf.mxu0
      %v804 = vadd.f32 %v499, %v803
      %v805 = vpop.f32.mrf.mxu0
      %v806 = vpop.f32.mrf.mxu0
      %v807 = vadd.f32 %v502, %v806
      %v808 = vpop.f32.mrf.mxu0
      %809 = vmatprep.mubr.bf16.mxu0 0
      %810 = vmatmul.mubr.bf16.gmra.mxu0 %v690
      %v811 = vpop.f32.mrf.mxu0
      %v812 = vadd.f32 %v507, %v811
      %v813 = vpop.f32.mrf.mxu0
      %v814 = vpop.f32.mrf.mxu0
      %v815 = vadd.f32 %v510, %v814
      %v816 = vpop.f32.mrf.mxu0
      %817 = vmatprep.mubr.bf16.mxu0 0
      %818 = vmatmul.mubr.bf16.gmra.mxu0 %v691
      %v819 = vpop.f32.mrf.mxu0
      %v820 = vadd.f32 %v515, %v819
      %v821 = vpop.f32.mrf.mxu0
      %v822 = vpop.f32.mrf.mxu0
      %v823 = vadd.f32 %v518, %v822
      %v824 = vpop.f32.mrf.mxu0
      %825 = vmatprep.mubr.bf16.mxu0 0
      %826 = vmatmul.mubr.bf16.gmra.mxu0 %v692
      %v827 = vpop.f32.mrf.mxu0
      %v828 = vadd.f32 %v523, %v827
      %v829 = vpop.f32.mrf.mxu0
      %v830 = vpop.f32.mrf.mxu0
      %v831 = vadd.f32 %v526, %v830
      %v832 = vpop.f32.mrf.mxu0
      %833 = vmatprep.mubr.bf16.mxu0 0
      %834 = vmatmul.mubr.bf16.gmra.mxu0 %v693
      %v835 = vpop.f32.mrf.mxu0
      %v836 = vadd.f32 %v531, %v835
      %v837 = vpop.f32.mrf.mxu0
      %v838 = vpop.f32.mrf.mxu0
      %v839 = vadd.f32 %v534, %v838
      %v840 = vpop.f32.mrf.mxu0
      %841 = vmatprep.mubr.bf16.mxu0 0
      %842 = vmatmul.mubr.bf16.gmra.mxu0 %v694
      %v843 = vpop.f32.mrf.mxu0
      %v844 = vadd.f32 %v539, %v843
      %v845 = vpop.f32.mrf.mxu0
      %v846 = vpop.f32.mrf.mxu0
      %v847 = vadd.f32 %v542, %v846
      %v848 = vpop.f32.mrf.mxu0
      %849 = vmatprep.mubr.bf16.mxu0 0
      %850 = vmatmul.mubr.bf16.gmra.mxu0 %v695
      %v851 = vpop.f32.mrf.mxu0
      %v852 = vadd.f32 %v547, %v851
      %v853 = vpop.f32.mrf.mxu0
      %v854 = vpop.f32.mrf.mxu0
      %v855 = vadd.f32 %v550, %v854
      %v856 = vpop.f32.mrf.mxu0
      %857 = vmatprep.mubr.bf16.mxu0 0
      %858 = vmatmul.mubr.bf16.gmra.mxu0 %v696
      %v859 = vpop.f32.mrf.mxu0
      %v860 = vadd.f32 %v555, %v859
      %v861 = vpop.f32.mrf.mxu0
      %v862 = vpop.f32.mrf.mxu0
      %v863 = vadd.f32 %v558, %v862
      %v864 = vpop.f32.mrf.mxu0
      %865 = vmatprep.mubr.bf16.mxu0 0
      %866 = vmatmul.mubr.bf16.gmra.mxu0 %v697
      %v867 = vpop.f32.mrf.mxu0
      %v868 = vadd.f32 %v563, %v867
      %v869 = vpop.f32.mrf.mxu0
      %v870 = vpop.f32.mrf.mxu0
      %v871 = vadd.f32 %v566, %v870
      %v872 = vpop.f32.mrf.mxu0
      %873 = vmatprep.mubr.bf16.mxu0 0
      %874 = vmatmul.mubr.bf16.gmra.mxu0 %v698
      %v875 = vpop.f32.mrf.mxu0
      %v876 = vadd.f32 %v571, %v875
      %v877 = vpop.f32.mrf.mxu0
      %v878 = vpop.f32.mrf.mxu0
      %v879 = vadd.f32 %v574, %v878
      %v880 = vpop.f32.mrf.mxu0
      %881 = vmatprep.mubr.bf16.mxu0 0
      %882 = vmatmul.mubr.bf16.gmra.mxu0 %v699
      %v883 = vpop.f32.mrf.mxu0
      %v884 = vadd.f32 %v579, %v883
      %v885 = vpop.f32.mrf.mxu0
      %v886 = vpop.f32.mrf.mxu0
      %v887 = vadd.f32 %v582, %v886
      %v888 = vpop.f32.mrf.mxu0
      %889 = vmatprep.mubr.bf16.mxu0 0
      %890 = vmatmul.mubr.bf16.gmra.mxu0 %v700
      %v891 = vpop.f32.mrf.mxu0
      %v892 = vadd.f32 %v587, %v891
      %v893 = vpop.f32.mrf.mxu0
      %v894 = vpop.f32.mrf.mxu0
      %v895 = vadd.f32 %v590, %v894
      %v896 = vpop.f32.mrf.mxu0
      %897 = vmatprep.mubr.bf16.mxu0 0
      %898 = vmatmul.mubr.bf16.gmra.mxu0 %v701
      %v899 = vpop.f32.mrf.mxu0
      %v900 = vadd.f32 %v595, %v899
      %v901 = vpop.f32.mrf.mxu0
      %v902 = vpop.f32.mrf.mxu0
      %v903 = vadd.f32 %v598, %v902
      %v904 = vpop.f32.mrf.mxu0
      %905 = vmatprep.mubr.bf16.mxu0 0
      %906 = vmatmul.mubr.bf16.gmra.mxu0 %v702
      %v907 = vpop.f32.mrf.mxu0
      %v908 = vadd.f32 %v603, %v907
      %v909 = vpop.f32.mrf.mxu0
      %v910 = vpop.f32.mrf.mxu0
      %v911 = vadd.f32 %v606, %v910
      %v912 = vpop.f32.mrf.mxu0
      %913 = vmatprep.mubr.bf16.mxu0 0
      %914 = vmatmul.mubr.bf16.gmra.mxu0 %v703
      %v915 = vpop.f32.mrf.mxu0
      %v916 = vadd.f32 %v611, %v915
      %v917 = vpop.f32.mrf.mxu0
      %v918 = vpop.f32.mrf.mxu0
      %v919 = vadd.f32 %v614, %v918
      %v920 = vpop.f32.mrf.mxu0
      %921 = vmatprep.mubr.bf16.mxu0 0
      %922 = vmatmul.mubr.bf16.gmra.mxu0 %v704
      %v923 = vpop.f32.mrf.mxu0
      %v924 = vadd.f32 %v619, %v923
      %v925 = vpop.f32.mrf.mxu0
      %v926 = vpop.f32.mrf.mxu0
      %v927 = vadd.f32 %v622, %v926
      %v928 = vpop.f32.mrf.mxu0
      %929 = vdwg.mxu0
      %v930 = vmax.f32 %v804, 0.0
      %v931 = vmax.f32 %v807, 0.0
      %v932 = vmax.f32 %v812, 0.0
      %v933 = vmax.f32 %v815, 0.0
      %v934 = vmax.f32 %v820, 0.0
      %v935 = vmax.f32 %v823, 0.0
      %v936 = vmax.f32 %v828, 0.0
      %v937 = vmax.f32 %v831, 0.0
      %v938 = vmax.f32 %v836, 0.0
      %v939 = vmax.f32 %v839, 0.0
      %v940 = vmax.f32 %v844, 0.0
      %v941 = vmax.f32 %v847, 0.0
      %v942 = vmax.f32 %v852, 0.0
      %v943 = vmax.f32 %v855, 0.0
      %v944 = vmax.f32 %v860, 0.0
      %v945 = vmax.f32 %v863, 0.0
      %v946 = vmax.f32 %v868, 0.0
      %v947 = vmax.f32 %v871, 0.0
      %v948 = vmax.f32 %v876, 0.0
      %v949 = vmax.f32 %v879, 0.0
      %v950 = vmax.f32 %v884, 0.0
      %v951 = vmax.f32 %v887, 0.0
      %v952 = vmax.f32 %v892, 0.0
      %v953 = vmax.f32 %v895, 0.0
      %v954 = vmax.f32 %v900, 0.0
      %v955 = vmax.f32 %v903, 0.0
      %v956 = vmax.f32 %v908, 0.0
      %v957 = vmax.f32 %v911, 0.0
      %v958 = vmax.f32 %v916, 0.0
      %v959 = vmax.f32 %v919, 0.0
      %v960 = vmax.f32 %v924, 0.0
      %v961 = vmax.f32 %v927, 0.0
      %v962 = vpack.c.bf16 %v931, %v930
      %v963 = vpack.c.bf16 %v933, %v932
      %v964 = vpack.c.bf16 %v935, %v934
      %v965 = vpack.c.bf16 %v937, %v936
      %v966 = vpack.c.bf16 %v939, %v938
      %v967 = vpack.c.bf16 %v941, %v940
      %v968 = vpack.c.bf16 %v943, %v942
      %v969 = vpack.c.bf16 %v945, %v944
      %v970 = vpack.c.bf16 %v947, %v946
      %v971 = vpack.c.bf16 %v949, %v948
      %v972 = vpack.c.bf16 %v951, %v950
      %v973 = vpack.c.bf16 %v953, %v952
      %v974 = vpack.c.bf16 %v955, %v954
      %v975 = vpack.c.bf16 %v957, %v956
      %v976 = vpack.c.bf16 %v959, %v958
      %v977 = vpack.c.bf16 %v961, %v960
      %v994 = vunpack.c.l.b16 %v962
      %v995 = vunpack.c.h.b16 %v962
      %v996 = vunpack.c.l.b16 %v963
      %v997 = vunpack.c.h.b16 %v963
      %v998 = vunpack.c.l.b16 %v964
      %v999 = vunpack.c.h.b16 %v964
      %v1000 = vunpack.c.l.b16 %v965
      %v1001 = vunpack.c.h.b16 %v965
      %v1002 = vunpack.c.l.b16 %v966
      %v1003 = vunpack.c.h.b16 %v966
      %v1004 = vunpack.c.l.b16 %v967
      %v1005 = vunpack.c.h.b16 %v967
      %v1006 = vunpack.c.l.b16 %v968
      %v1007 = vunpack.c.h.b16 %v968
      %v1008 = vunpack.c.l.b16 %v969
      %v1009 = vunpack.c.h.b16 %v969
      %v1010 = vunpack.c.l.b16 %v970
      %v1011 = vunpack.c.h.b16 %v970
      %v1012 = vunpack.c.l.b16 %v971
      %v1013 = vunpack.c.h.b16 %v971
      %v1014 = vunpack.c.l.b16 %v972
      %v1015 = vunpack.c.h.b16 %v972
      %v1016 = vunpack.c.l.b16 %v973
      %v1017 = vunpack.c.h.b16 %v973
      %v1018 = vunpack.c.l.b16 %v974
      %v1019 = vunpack.c.h.b16 %v974
      %v1020 = vunpack.c.l.b16 %v975
      %v1021 = vunpack.c.h.b16 %v975
      %v1022 = vunpack.c.l.b16 %v976
      %v1023 = vunpack.c.h.b16 %v976
      %v1024 = vunpack.c.l.b16 %v977
      %v1025 = vunpack.c.h.b16 %v977
      %v1026 = vpack.c.b16 %v994, %v994
      %v1027 = vpack.c.b16 %v995, %v995
      %v1028 = vpack.c.b16 %v996, %v996
      %v1029 = vpack.c.b16 %v997, %v997
      %v1030 = vpack.c.b16 %v998, %v998
      %v1031 = vpack.c.b16 %v999, %v999
      %v1032 = vpack.c.b16 %v1000, %v1000
      %v1033 = vpack.c.b16 %v1001, %v1001
      %v1034 = vpack.c.b16 %v1002, %v1002
      %v1035 = vpack.c.b16 %v1003, %v1003
      %v1036 = vpack.c.b16 %v1004, %v1004
      %v1037 = vpack.c.b16 %v1005, %v1005
      %v1038 = vpack.c.b16 %v1006, %v1006
      %v1039 = vpack.c.b16 %v1007, %v1007
      %v1040 = vpack.c.b16 %v1008, %v1008
      %v1041 = vpack.c.b16 %v1009, %v1009
      %v1042 = vpack.c.b16 %v1010, %v1010
      %v1043 = vpack.c.b16 %v1011, %v1011
      %v1044 = vpack.c.b16 %v1012, %v1012
      %v1045 = vpack.c.b16 %v1013, %v1013
      %v1046 = vpack.c.b16 %v1014, %v1014
      %v1047 = vpack.c.b16 %v1015, %v1015
      %v1048 = vpack.c.b16 %v1016, %v1016
      %v1049 = vpack.c.b16 %v1017, %v1017
      %v1050 = vpack.c.b16 %v1018, %v1018
      %v1051 = vpack.c.b16 %v1019, %v1019
      %v1052 = vpack.c.b16 %v1020, %v1020
      %v1053 = vpack.c.b16 %v1021, %v1021
      %v1054 = vpack.c.b16 %v1022, %v1022
      %v1055 = vpack.c.b16 %v1023, %v1023
      %v1056 = vpack.c.b16 %v1024, %v1024
      %v1057 = vpack.c.b16 %v1025, %v1025
      %1090 = vst [vmem:[%s221] sm:$0xf] %v1026
      %1091 = vst [vmem:[%s221 + $0x4] sm:$0xf] %v1027
      %1092 = vst [vmem:[%s221 + $0x8] sm:$0xf] %v1028
      %1093 = vst [vmem:[%s221 + $0xc] sm:$0xf] %v1029
      %1094 = vst [vmem:[%s221 + $0x10] sm:$0xf] %v1030
      %1095 = vst [vmem:[%s221 + $0x14] sm:$0xf] %v1031
      %1096 = vst [vmem:[%s221 + $0x18] sm:$0xf] %v1032
      %1097 = vst [vmem:[%s221 + $0x1c] sm:$0xf] %v1033
      %1098 = vst [vmem:[%s221 + $0x20] sm:$0xf] %v1034
      %1099 = vst [vmem:[%s221 + $0x24] sm:$0xf] %v1035
      %1100 = vst [vmem:[%s221 + $0x28] sm:$0xf] %v1036
      %1101 = vst [vmem:[%s221 + $0x2c] sm:$0xf] %v1037
      %1102 = vst [vmem:[%s221 + $0x30] sm:$0xf] %v1038
      %1103 = vst [vmem:[%s221 + $0x34] sm:$0xf] %v1039
      %1104 = vst [vmem:[%s221 + $0x38] sm:$0xf] %v1040
      %1105 = vst [vmem:[%s221 + $0x3c] sm:$0xf] %v1041
      %1106 = vst [vmem:[%s221 + $0x40] sm:$0xf] %v1042
      %1107 = vst [vmem:[%s221 + $0x44] sm:$0xf] %v1043
      %1108 = vst [vmem:[%s221 + $0x48] sm:$0xf] %v1044
      %1109 = vst [vmem:[%s221 + $0x4c] sm:$0xf] %v1045
      %1110 = vst [vmem:[%s221 + $0x50] sm:$0xf] %v1046
      %1111 = vst [vmem:[%s221 + $0x54] sm:$0xf] %v1047
      %1112 = vst [vmem:[%s221 + $0x58] sm:$0xf] %v1048
      %1113 = vst [vmem:[%s221 + $0x5c] sm:$0xf] %v1049
      %1114 = vst [vmem:[%s221 + $0x60] sm:$0xf] %v1050
      %1115 = vst [vmem:[%s221 + $0x64] sm:$0xf] %v1051
      %1116 = vst [vmem:[%s221 + $0x68] sm:$0xf] %v1052
      %1117 = vst [vmem:[%s221 + $0x6c] sm:$0xf] %v1053
      %1118 = vst [vmem:[%s221 + $0x70] sm:$0xf] %v1054
      %1119 = vst [vmem:[%s221 + $0x74] sm:$0xf] %v1055
      %1120 = vst [vmem:[%s221 + $0x78] sm:$0xf] %v1056
      %1121 = vst [vmem:[%s221 + $0x7c] sm:$0xf] %v1057
      %s1122 = smul.u32 32, %s15
      %p1123 = scmp.lt.s32.totalorder %s1122, 63
      %s1124 = scalar_select %p1123, %s1122, 63
      %s1125 = smul.addr %s1124, 4
      %s1126 = scalar_lea.vmem %s4, %s1125
      // Predicated region
      $region37: #{_lambda_.5} parent=35 // pred_check
        %p1127 = pneg %p127
      $region38: #{_lambda_.5} parent=35 // pred_check_branch
        %1129 = sbr.rel (%p1127) target = $region40
      $region39: #{_lambda_.5} parent=35 // pred_region
        %s1130 = smul.u32 32, %s15
      $region40: #{_lambda_.5} parent=35 // pred_fallthru
        _
    $region36: #{_lambda_.5} parent=5 // pred_fallthru
      _
    %p1131 = scmp.le.s32.totalorder 2, %s10
    // Predicated region
    $region41: #{_lambda_.5} parent=5 // pred_check
      %p1132 = pneg %p1131
    $region42: #{_lambda_.5} parent=5 // pred_check_branch
      %1134 = sbr.rel (%p1132) target = $region44
    $region43: #{_lambda_.5} parent=5 // pred_region
      %s1135 = ssub.s32 %s10, 2
      // Predicated region
      $region45: #{_lambda_.5} parent=43 // pred_check
        %p1136 = pneg %p133
      $region46: #{_lambda_.5} parent=43 // pred_check_branch
        %1138 = sbr.rel (%p1136) target = $region48
      $region47: #{_lambda_.5} parent=43 // pred_region
        %s1139 = smul.u32 32, %s16
        %p1140 = scmp.lt.s32.totalorder %s1139, 63
        %s1141 = scalar_select %p1140, %s1139, 63
        %s1142 = smul.addr %s1141, 4
        %s1143 = scalar_lea.vmem %s4, %s1142
      $region48: #{_lambda_.5} parent=43 // pred_fallthru
        _
    $region44: #{_lambda_.5} parent=5 // pred_fallthru
      _
  $region6: #{_lambda_.5} parent=0 // loop_footer
    %s14 = sadd.s32 1, %s10
  $region7: #{_lambda_.5} parent=0 // loop_footer_branch
    %9 = sbr.rel target = $region3
  $region8: #{_lambda_.5} parent=0 // loop_exit
    _

// kernel: _lambda_.4
$region0: #{_lambda_.4}
  #allocation0 [shape = 'u32[]', space=smem, size = 0x4, offset = 0x4, fixed_abs, tag = 'smem constant byte address 0x4 - core index']
  #allocation1 [shape = 'u32[144,128]{1,0:T(1,128)}', space=vmem, size = 0x12000, scoped, tag = 'internal scratch']
  %s0 = inlined_call_operand.vmem [shape: bf16[2,20,20,128], index: 0, kind: input, shape index: {}]
  %s1 = inlined_call_operand.vmem [shape: f32[5,5,128], index: 1, kind: input, shape index: {}]
  %s2 = inlined_call_operand.vmem [shape: f32[1,128], index: 2, kind: input, shape index: {}]
  %s3 = inlined_call_operand.vmem [shape: f32[1,128], index: 3, kind: input, shape index: {}]
  %s4 = inlined_call_operand.vmem [shape: bf16[2,16,16,128], index: 4, kind: output, shape index: {}]
  %s5 = sld [smem:[#allocation0]]
  $region49: #{_lambda_.4} parent=0
    _
  %s7 = ssub.s32 1, %s5
  %s8 = scalar_select 0, %s7, %s5
  loop: start=0, step=1, limit=4
  $region2: #{_lambda_.4} parent=0 // loop_pre_header
    _
  $region3: #{_lambda_.4} parent=0 // loop_header
    %s10 = sphi 0, %s14
    %p11 = scmp.ge.s32.totalorder %s10, 4
    %s17 = sphi 0, %s29
    %s18 = sphi 0, %s25
    %s19 = sphi 0, %s17
    %s20 = sphi 0, %s18
    %s21 = sphi 0, %s19
    %s22 = sphi 0, %s20
    %s34 = sphi 0, %s36
    %s37 = sphi 0, %s34
    %s38 = sphi 0, %s37
    %s54 = sphi 0, %s38
    %s60 = sphi 0, %s62
    %s63 = sphi 0, %s60
    %s64 = sphi 0, %s63
    %s80 = sphi 0, %s64
    %s86 = sphi 0, %s88
    %s89 = sphi 0, %s86
    %s90 = sphi 0, %s89
    %s106 = sphi 0, %s90
    %s112 = sphi 0, %s114
    %s115 = sphi 0, %s112
    %s116 = sphi 0, %s115
    %s132 = sphi 0, %s116
    %s140 = sphi 0, %s142
    %s143 = sphi 0, %s140
    %s144 = sphi 0, %s143
    %s160 = sphi 0, %s144
  $region4: #{_lambda_.4} parent=0 // loop_header_branch
    %13 = sbr.rel (%p11) target = $region8
  $region5: #{_lambda_.4} parent=0 // loop_body
    %s15 = ssub.s32 %s10, 1
    %s16 = ssub.s32 %s10, 2
    %s23 = sadd.s32 1, %s18
    %p24 = scmp.ge.s32.totalorder %s23, 1
    %s25 = scalar_select %p24, 0, %s23
    %s26 = sadd.s32 1, %s17
    %s27 = scalar_select %p24, %s26, %s17
    %p28 = scmp.ge.s32.totalorder %s27, 2
    %s29 = scalar_select %p28, 0, %s27
    %s30 = ssub.s32 %s17, %s29
    %s31 = ssub.s32 %s18, %s25
    %s32 = sor.u32 %s30, %s31
    %p33 = scmp.eq.s32.totalorder %s32, 0
    %s35 = sadd.s32 %s34, 1
    %s36 = scalar_select %p33, %s34, %s35
    %p39 = pneg %p33
    %p40 = scmp.eq.s32.totalorder %s10, 1
    %p41 = por %p39, %p40
    %p42 = scmp.ne.s32.totalorder %s34, %s37
    %p43 = scmp.eq.s32.totalorder %s10, 0
    %p44 = por %p42, %p43
    %p45 = scmp.ne.s32.totalorder %s34, %s37
    %p46 = scmp.eq.s32.totalorder %s15, 1
    %p47 = por %p45, %p46
    %p48 = scmp.ne.s32.totalorder %s37, %s38
    %p49 = scmp.eq.s32.totalorder %s15, 0
    %p50 = por %p48, %p49
    %p51 = scmp.ne.s32.totalorder %s37, %s38
    %p52 = scmp.eq.s32.totalorder %s16, 1
    %p53 = por %p51, %p52
    %p55 = scmp.ne.s32.totalorder %s38, %s54
    %p56 = scmp.eq.s32.totalorder %s16, 0
    %p57 = por %p55, %p56
    %s58 = ssub.s32 %s18, %s25
    %p59 = scmp.eq.s32.totalorder %s58, 0
    %s61 = sadd.s32 %s60, 1
    %s62 = scalar_select %p59, %s60, %s61
    %p65 = pneg %p59
    %p66 = scmp.eq.s32.totalorder %s10, 1
    %p67 = por %p65, %p66
    %p68 = scmp.ne.s32.totalorder %s60, %s63
    %p69 = scmp.eq.s32.totalorder %s10, 0
    %p70 = por %p68, %p69
    %p71 = scmp.ne.s32.totalorder %s60, %s63
    %p72 = scmp.eq.s32.totalorder %s15, 1
    %p73 = por %p71, %p72
    %p74 = scmp.ne.s32.totalorder %s63, %s64
    %p75 = scmp.eq.s32.totalorder %s15, 0
    %p76 = por %p74, %p75
    %p77 = scmp.ne.s32.totalorder %s63, %s64
    %p78 = scmp.eq.s32.totalorder %s16, 1
    %p79 = por %p77, %p78
    %p81 = scmp.ne.s32.totalorder %s64, %s80
    %p82 = scmp.eq.s32.totalorder %s16, 0
    %p83 = por %p81, %p82
    %s84 = ssub.s32 %s18, %s25
    %p85 = scmp.eq.s32.totalorder %s84, 0
    %s87 = sadd.s32 %s86, 1
    %s88 = scalar_select %p85, %s86, %s87
    %p91 = pneg %p85
    %p92 = scmp.eq.s32.totalorder %s10, 1
    %p93 = por %p91, %p92
    %p94 = scmp.ne.s32.totalorder %s86, %s89
    %p95 = scmp.eq.s32.totalorder %s10, 0
    %p96 = por %p94, %p95
    %p97 = scmp.ne.s32.totalorder %s86, %s89
    %p98 = scmp.eq.s32.totalorder %s15, 1
    %p99 = por %p97, %p98
    %p100 = scmp.ne.s32.totalorder %s89, %s90
    %p101 = scmp.eq.s32.totalorder %s15, 0
    %p102 = por %p100, %p101
    %p103 = scmp.ne.s32.totalorder %s89, %s90
    %p104 = scmp.eq.s32.totalorder %s16, 1
    %p105 = por %p103, %p104
    %p107 = scmp.ne.s32.totalorder %s90, %s106
    %p108 = scmp.eq.s32.totalorder %s16, 0
    %p109 = por %p107, %p108
    %s110 = ssub.s32 %s18, %s25
    %p111 = scmp.eq.s32.totalorder %s110, 0
    %s113 = sadd.s32 %s112, 1
    %s114 = scalar_select %p111, %s112, %s113
    %p117 = pneg %p111
    %p118 = scmp.eq.s32.totalorder %s10, 1
    %p119 = por %p117, %p118
    %p120 = scmp.ne.s32.totalorder %s112, %s115
    %p121 = scmp.eq.s32.totalorder %s10, 0
    %p122 = por %p120, %p121
    %p123 = scmp.ne.s32.totalorder %s112, %s115
    %p124 = scmp.eq.s32.totalorder %s15, 1
    %p125 = por %p123, %p124
    %p126 = scmp.ne.s32.totalorder %s115, %s116
    %p127 = scmp.eq.s32.totalorder %s15, 0
    %p128 = por %p126, %p127
    %p129 = scmp.ne.s32.totalorder %s115, %s116
    %p130 = scmp.eq.s32.totalorder %s16, 1
    %p131 = por %p129, %p130
    %p133 = scmp.ne.s32.totalorder %s116, %s132
    %p134 = scmp.eq.s32.totalorder %s16, 0
    %p135 = por %p133, %p134
    %s136 = ssub.s32 %s17, %s29
    %s137 = ssub.s32 %s18, %s25
    %s138 = sor.u32 %s136, %s137
    %p139 = scmp.eq.s32.totalorder %s138, 0
    %s141 = sadd.s32 %s140, 1
    %s142 = scalar_select %p139, %s140, %s141
    %p145 = pneg %p139
    %p146 = scmp.eq.s32.totalorder %s10, 1
    %p147 = por %p145, %p146
    %p148 = scmp.ne.s32.totalorder %s140, %s143
    %p149 = scmp.eq.s32.totalorder %s10, 0
    %p150 = por %p148, %p149
    %p151 = scmp.ne.s32.totalorder %s140, %s143
    %p152 = scmp.eq.s32.totalorder %s15, 1
    %p153 = por %p151, %p152
    %p154 = scmp.ne.s32.totalorder %s143, %s144
    %p155 = scmp.eq.s32.totalorder %s15, 0
    %p156 = por %p154, %p155
    %p157 = scmp.ne.s32.totalorder %s143, %s144
    %p158 = scmp.eq.s32.totalorder %s16, 1
    %p159 = por %p157, %p158
    %p161 = scmp.ne.s32.totalorder %s144, %s160
    %p162 = scmp.eq.s32.totalorder %s16, 0
    %p163 = por %p161, %p162
    %p164 = scmp.le.s32.totalorder 1, %s10
    %p165 = scmp.lt.s32.totalorder %s10, 3
    %p166 = pnand %p164, %p165
    %p167 = pneg %p166
    // Predicated region
    $region9: #{_lambda_.4} parent=5 // pred_check
      _
    $region10: #{_lambda_.4} parent=5 // pred_check_branch
      %169 = sbr.rel (%p166) target = $region12
    $region11: #{_lambda_.4} parent=5 // pred_region
      %s170 = ssub.s32 %s10, 1
      // Predicated region
      $region13: #{_lambda_.4} parent=11 // pred_check
        %p171 = pneg %p76
      $region14: #{_lambda_.4} parent=11 // pred_check_branch
        %173 = sbr.rel (%p171) target = $region16
      $region15: #{_lambda_.4} parent=11 // pred_region
        %p174 = scmp.lt.s32.totalorder %s20, 0
        %s175 = scalar_select %p174, %s20, 0
        %s176 = smul.addr %s175, 8
        %s177 = scalar_lea.vmem %s1, %s176
      $region16: #{_lambda_.4} parent=11 // pred_fallthru
        _
      // Predicated region
      $region17: #{_lambda_.4} parent=11 // pred_check
        %p178 = pneg %p102
      $region18: #{_lambda_.4} parent=11 // pred_check_branch
        %180 = sbr.rel (%p178) target = $region20
      $region19: #{_lambda_.4} parent=11 // pred_region
        %p181 = scmp.lt.s32.totalorder %s20, 0
        %s182 = scalar_select %p181, %s20, 0
        %s183 = scalar_lea.vmem %s2, %s182
      $region20: #{_lambda_.4} parent=11 // pred_fallthru
        _
      // Predicated region
      $region21: #{_lambda_.4} parent=11 // pred_check
        %p184 = pneg %p128
      $region22: #{_lambda_.4} parent=11 // pred_check_branch
        %186 = sbr.rel (%p184) target = $region24
      $region23: #{_lambda_.4} parent=11 // pred_region
        %p187 = scmp.lt.s32.totalorder %s20, 0
        %s188 = scalar_select %p187, %s20, 0
        %s189 = scalar_lea.vmem %s3, %s188
      $region24: #{_lambda_.4} parent=11 // pred_fallthru
        _
    $region12: #{_lambda_.4} parent=5 // pred_fallthru
      _
    %p190 = scmp.lt.s32.totalorder %s10, 2
    // Predicated region
    $region25: #{_lambda_.4} parent=5 // pred_check
      %p191 = pneg %p190
    $region26: #{_lambda_.4} parent=5 // pred_check_branch
      %193 = sbr.rel (%p191) target = $region28
    $region27: #{_lambda_.4} parent=5 // pred_region
      // Predicated region
      $region29: #{_lambda_.4} parent=27 // pred_check
        %p194 = pneg %p44
      $region30: #{_lambda_.4} parent=27 // pred_check_branch
        %196 = sbr.rel (%p194) target = $region32
      $region31: #{_lambda_.4} parent=27 // pred_region
        %p197 = scmp.lt.s32.totalorder %s17, 1
        %s198 = scalar_select %p197, %s17, 1
        %p199 = scmp.lt.s32.totalorder %s18, 0
        %s200 = scalar_select %p199, %s18, 0
        %s201 = smul.addr %s198, 60
        %s202 = sadd.s32 %s200, %s201
        %s203 = smul.addr %s202, 4
        %s204 = scalar_lea.vmem %s0, %s203
      $region32: #{_lambda_.4} parent=27 // pred_fallthru
        _
    $region28: #{_lambda_.4} parent=5 // pred_fallthru
      _
    %p205 = scmp.le.s32.totalorder 1, %s10
    %p206 = scmp.lt.s32.totalorder %s10, 3
    %p207 = pnand %p205, %p206
    %p208 = pneg %p207
    // Predicated region
    $region33: #{_lambda_.4} parent=5 // pred_check
      _
    $region34: #{_lambda_.4} parent=5 // pred_check_branch
      %210 = sbr.rel (%p207) target = $region36
    $region35: #{_lambda_.4} parent=5 // pred_region
      %s211 = ssub.s32 %s10, 1
      %p212 = scmp.lt.s32.totalorder %s19, 1
      %s213 = scalar_select %p212, %s19, 1
      %p214 = scmp.lt.s32.totalorder %s20, 0
      %s215 = scalar_select %p214, %s20, 0
      %s216 = smul.addr %s213, 60
      %s217 = sadd.s32 %s215, %s216
      %s218 = smul.addr %s217, 4
      %s219 = scalar_lea.vmem %s0, %s218
      %p220 = pneg %p50
      %p221 = pneg %p47
      %p222 = scmp.lt.s32.totalorder %s20, 0
      %s223 = scalar_select %p222, %s20, 0
      %s224 = smul.addr %s223, 8
      %s225 = scalar_lea.vmem %s1, %s224
      %p226 = pneg %p76
      %p227 = pneg %p73
      %p228 = scmp.lt.s32.totalorder %s20, 0
      %s229 = scalar_select %p228, %s20, 0
      %s230 = scalar_lea.vmem %s2, %s229
      %p231 = pneg %p102
      %p232 = pneg %p99
      %p233 = scmp.lt.s32.totalorder %s20, 0
      %s234 = scalar_select %p233, %s20, 0
      %s235 = scalar_lea.vmem %s3, %s234
      %p236 = pneg %p128
      %p237 = pneg %p125
      %p238 = pneg %p156
      %p239 = pneg %p153
      %p240 = scmp.lt.s32.totalorder %s19, 1
      %s241 = scalar_select %p240, %s19, 1
      %p242 = scmp.lt.s32.totalorder %s20, 0
      %s243 = scalar_select %p242, %s20, 0
      %s244 = smul.addr %s241, 32
      %s245 = sadd.s32 %s243, %s244
      %s246 = smul.addr %s245, 4
      %s247 = scalar_lea.vmem %s4, %s246
      %p248 = scmp.lt.s32.totalorder %s19, 1
      %s249 = scalar_select %p248, %s19, 1
      %p250 = scmp.lt.s32.totalorder %s20, 0
      %s251 = scalar_select %p250, %s20, 0
      %s252 = smul.addr %s249, 60
      %s253 = sadd.s32 %s251, %s252
      %s254 = smul.addr %s253, 4
      %s255 = scalar_lea.vmem %s0, %s254
      %p256 = scmp.lt.s32.totalorder %s20, 0
      %s257 = scalar_select %p256, %s20, 0
      %s258 = smul.addr %s257, 8
      %s259 = scalar_lea.vmem %s1, %s258
      %p260 = scmp.lt.s32.totalorder %s20, 0
      %s261 = scalar_select %p260, %s20, 0
      %s262 = scalar_lea.vmem %s2, %s261
      %p263 = scmp.lt.s32.totalorder %s20, 0
      %s264 = scalar_select %p263, %s20, 0
      %s265 = scalar_lea.vmem %s3, %s264
      %p266 = scmp.lt.s32.totalorder %s19, 1
      %s267 = scalar_select %p266, %s19, 1
      %p268 = scmp.lt.s32.totalorder %s20, 0
      %s269 = scalar_select %p268, %s20, 0
      %s270 = smul.addr %s267, 32
      %s271 = sadd.s32 %s269, %s270
      %s272 = smul.addr %s271, 4
      %s273 = scalar_lea.vmem %s4, %s272
      %v274 = vld [vmem:[%s259] sm:$0x1f]
      %v275 = vld [vmem:[%s259 + $0x8] sm:$0x1f]
      %v276 = vld [vmem:[%s259 + $0x10] sm:$0x1f]
      %v277 = vld [vmem:[%s259 + $0x18] sm:$0x1f]
      %v278 = vld [vmem:[%s259 + $0x20] sm:$0x1f]
      %v279 = vld [vmem:[%s255] sm:$0xf]
      %v280 = vld [vmem:[%s255 + $0x4] sm:$0xf]
      %v281 = vld [vmem:[%s255 + $0xc] sm:$0xf]
      %v282 = vld [vmem:[%s255 + $0x10] sm:$0xf]
      %v283 = vld [vmem:[%s255 + $0x18] sm:$0xf]
      %v284 = vld [vmem:[%s255 + $0x1c] sm:$0xf]
      %v285 = vld [vmem:[%s255 + $0x24] sm:$0xf]
      %v286 = vld [vmem:[%s255 + $0x28] sm:$0xf]
      %v287 = vld [vmem:[%s255 + $0x30] sm:$0xf]
      %v288 = vld [vmem:[%s255 + $0x34] sm:$0xf]
      %v289 = vld [vmem:[%s255 + $0x3c] sm:$0xf]
      %v290 = vld [vmem:[%s255 + $0x40] sm:$0xf]
      %v291 = vld [vmem:[%s255 + $0x48] sm:$0xf]
      %v292 = vld [vmem:[%s255 + $0x4c] sm:$0xf]
      %v293 = vld [vmem:[%s255 + $0x54] sm:$0xf]
      %v294 = vld [vmem:[%s255 + $0x58] sm:$0xf]
      %v295 = vld [vmem:[%s255 + $0x60] sm:$0xf]
      %v296 = vld [vmem:[%s255 + $0x64] sm:$0xf]
      %v297 = vld [vmem:[%s255 + $0x6c] sm:$0xf]
      %v298 = vld [vmem:[%s255 + $0x70] sm:$0xf]
      %v299 = vld [vmem:[%s255 + $0x78] sm:$0xf]
      %v300 = vld [vmem:[%s255 + $0x7c] sm:$0xf]
      %v301 = vld [vmem:[%s255 + $0x84] sm:$0xf]
      %v302 = vld [vmem:[%s255 + $0x88] sm:$0xf]
      %v303 = vld [vmem:[%s255 + $0x90] sm:$0xf]
      %v304 = vld [vmem:[%s255 + $0x94] sm:$0xf]
      %v305 = vld [vmem:[%s255 + $0x9c] sm:$0xf]
      %v306 = vld [vmem:[%s255 + $0xa0] sm:$0xf]
      %v307 = vld [vmem:[%s255 + $0xa8] sm:$0xf]
      %v308 = vld [vmem:[%s255 + $0xac] sm:$0xf]
      %v309 = vld [vmem:[%s255 + $0xb4] sm:$0xf]
      %v310 = vld [vmem:[%s255 + $0xb8] sm:$0xf]
      %v311 = vunpack.c.l.bf16 %v279
      %v312 = vunpack.c.l.bf16 %v280
      %v313 = vunpack.c.l.bf16 %v281
      %v314 = vunpack.c.l.bf16 %v282
      %v315 = vunpack.c.l.bf16 %v283
      %v316 = vunpack.c.l.bf16 %v284
      %v317 = vunpack.c.l.bf16 %v285
      %v318 = vunpack.c.l.bf16 %v286
      %v319 = vunpack.c.l.bf16 %v287
      %v320 = vunpack.c.l.bf16 %v288
      %v321 = vunpack.c.l.bf16 %v289
      %v322 = vunpack.c.l.bf16 %v290
      %v323 = vunpack.c.l.bf16 %v291
      %v324 = vunpack.c.l.bf16 %v292
      %v325 = vunpack.c.l.bf16 %v293
      %v326 = vunpack.c.l.bf16 %v294
      %v327 = vunpack.c.l.bf16 %v295
      %v328 = vunpack.c.l.bf16 %v296
      %v329 = vunpack.c.l.bf16 %v297
      %v330 = vunpack.c.l.bf16 %v298
      %v331 = vunpack.c.l.bf16 %v299
      %v332 = vunpack.c.l.bf16 %v300
      %v333 = vunpack.c.l.bf16 %v301
      %v334 = vunpack.c.l.bf16 %v302
      %v335 = vunpack.c.l.bf16 %v303
      %v336 = vunpack.c.l.bf16 %v304
      %v337 = vunpack.c.l.bf16 %v305
      %v338 = vunpack.c.l.bf16 %v306
      %v339 = vunpack.c.l.bf16 %v307
      %v340 = vunpack.c.l.bf16 %v308
      %v341 = vunpack.c.l.bf16 %v309
      %v342 = vunpack.c.l.bf16 %v310
      %v343 = vlaneseq
      %v344 = vshrl.u32 %v343, 7
      %v345 = vsub.s32 0, %v344
      %v346 = vrot.slane %v274, %v345
      %v347 = vmul.f32 %v311, %v346
      %v348 = vmul.f32 %v312, %v346
      %v349 = vmul.f32 %v313, %v346
      %v350 = vmul.f32 %v314, %v346
      %v351 = vmul.f32 %v315, %v346
      %v352 = vmul.f32 %v316, %v346
      %v353 = vmul.f32 %v317, %v346
      %v354 = vmul.f32 %v318, %v346
      %v355 = vmul.f32 %v319, %v346
      %v356 = vmul.f32 %v320, %v346
      %v357 = vmul.f32 %v321, %v346
      %v358 = vmul.f32 %v322, %v346
      %v359 = vmul.f32 %v323, %v346
      %v360 = vmul.f32 %v324, %v346
      %v361 = vmul.f32 %v325, %v346
      %v362 = vmul.f32 %v326, %v346
      %v363 = vmul.f32 %v327, %v346
      %v364 = vmul.f32 %v328, %v346
      %v365 = vmul.f32 %v329, %v346
      %v366 = vmul.f32 %v330, %v346
      %v367 = vmul.f32 %v331, %v346
      %v368 = vmul.f32 %v332, %v346
      %v369 = vmul.f32 %v333, %v346
      %v370 = vmul.f32 %v334, %v346
      %v371 = vmul.f32 %v335, %v346
      %v372 = vmul.f32 %v336, %v346
      %v373 = vmul.f32 %v337, %v346
      %v374 = vmul.f32 %v338, %v346
      %v375 = vmul.f32 %v339, %v346
      %v376 = vmul.f32 %v340, %v346
      %v377 = vmul.f32 %v341, %v346
      %v378 = vmul.f32 %v342, %v346
      %v379 = vld [vmem:[%s255 + $0x8] sm:$0x1]
      %v380 = vld [vmem:[%s255 + $0x14] sm:$0x1]
      %v381 = vld [vmem:[%s255 + $0x20] sm:$0x1]
      %v382 = vld [vmem:[%s255 + $0x2c] sm:$0x1]
      %v383 = vld [vmem:[%s255 + $0x38] sm:$0x1]
      %v384 = vld [vmem:[%s255 + $0x44] sm:$0x1]
      %v385 = vld [vmem:[%s255 + $0x50] sm:$0x1]
      %v386 = vld [vmem:[%s255 + $0x5c] sm:$0x1]
      %v387 = vld [vmem:[%s255 + $0x68] sm:$0x1]
      %v388 = vld [vmem:[%s255 + $0x74] sm:$0x1]
      %v389 = vld [vmem:[%s255 + $0x80] sm:$0x1]
      %v390 = vld [vmem:[%s255 + $0x8c] sm:$0x1]
      %v391 = vld [vmem:[%s255 + $0x98] sm:$0x1]
      %v392 = vld [vmem:[%s255 + $0xa4] sm:$0x1]
      %v393 = vld [vmem:[%s255 + $0xb0] sm:$0x1]
      %v394 = vld [vmem:[%s255 + $0xbc] sm:$0x1]
      %v395 = vunpack.c.l.bf16 %v379
      %v396 = vunpack.c.l.bf16 %v380
      %v397 = vunpack.c.l.bf16 %v381
      %v398 = vunpack.c.l.bf16 %v382
      %v399 = vunpack.c.l.bf16 %v383
      %v400 = vunpack.c.l.bf16 %v384
      %v401 = vunpack.c.l.bf16 %v385
      %v402 = vunpack.c.l.bf16 %v386
      %v403 = vunpack.c.l.bf16 %v387
      %v404 = vunpack.c.l.bf16 %v388
      %v405 = vunpack.c.l.bf16 %v389
      %v406 = vunpack.c.l.bf16 %v390
      %v407 = vunpack.c.l.bf16 %v391
      %v408 = vunpack.c.l.bf16 %v392
      %v409 = vunpack.c.l.bf16 %v393
      %v410 = vunpack.c.l.bf16 %v394
      %v411 = vlaneseq
      %v412 = vshrl.u32 %v411, 7
      %v413 = vsub.s32 1, %v412
      %v414 = vrot.slane %v274, %v413
      %v415 = vmul.f32 %v311, %v414
      %v416 = vmul.f32 %v312, %v414
      %v417 = vmul.f32 %v395, %v414
      %v418 = vmul.f32 %v313, %v414
      %v419 = vmul.f32 %v314, %v414
      %v420 = vmul.f32 %v396, %v414
      %v421 = vmul.f32 %v315, %v414
      %v422 = vmul.f32 %v316, %v414
      %v423 = vmul.f32 %v397, %v414
      %v424 = vmul.f32 %v317, %v414
      %v425 = vmul.f32 %v318, %v414
      %v426 = vmul.f32 %v398, %v414
      %v427 = vmul.f32 %v319, %v414
      %v428 = vmul.f32 %v320, %v414
      %v429 = vmul.f32 %v399, %v414
      %v430 = vmul.f32 %v321, %v414
      %v431 = vmul.f32 %v322, %v414
      %v432 = vmul.f32 %v400, %v414
      %v433 = vmul.f32 %v323, %v414
      %v434 = vmul.f32 %v324, %v414
      %v435 = vmul.f32 %v401, %v414
      %v436 = vmul.f32 %v325, %v414
      %v437 = vmul.f32 %v326, %v414
      %v438 = vmul.f32 %v402, %v414
      %v439 = vmul.f32 %v327, %v414
      %v440 = vmul.f32 %v328, %v414
      %v441 = vmul.f32 %v403, %v414
      %v442 = vmul.f32 %v329, %v414
      %v443 = vmul.f32 %v330, %v414
      %v444 = vmul.f32 %v404, %v414
      %v445 = vmul.f32 %v331, %v414
      %v446 = vmul.f32 %v332, %v414
      %v447 = vmul.f32 %v405, %v414
      %v448 = vmul.f32 %v333, %v414
      %v449 = vmul.f32 %v334, %v414
      %v450 = vmul.f32 %v406, %v414
      %v451 = vmul.f32 %v335, %v414
      %v452 = vmul.f32 %v336, %v414
      %v453 = vmul.f32 %v407, %v414
      %v454 = vmul.f32 %v337, %v414
      %v455 = vmul.f32 %v338, %v414
      %v456 = vmul.f32 %v408, %v414
      %v457 = vmul.f32 %v339, %v414
      %v458 = vmul.f32 %v340, %v414
      %v459 = vmul.f32 %v409, %v414
      %v460 = vmul.f32 %v341, %v414
      %v461 = vmul.f32 %v342, %v414
      %v462 = vmul.f32 %v410, %v414
      %v463 = vld [vmem:[%s255] sm:$0xe]
      %v464 = vld [vmem:[%s255 + $0xc] sm:$0xe]
      %v465 = vld [vmem:[%s255 + $0x18] sm:$0xe]
      %v466 = vld [vmem:[%s255 + $0x24] sm:$0xe]
      %v467 = vld [vmem:[%s255 + $0x30] sm:$0xe]
      %v468 = vld [vmem:[%s255 + $0x3c] sm:$0xe]
      %v469 = vld [vmem:[%s255 + $0x48] sm:$0xe]
      %v470 = vld [vmem:[%s255 + $0x54] sm:$0xe]
      %v471 = vld [vmem:[%s255 + $0x60] sm:$0xe]
      %v472 = vld [vmem:[%s255 + $0x6c] sm:$0xe]
      %v473 = vld [vmem:[%s255 + $0x78] sm:$0xe]
      %v474 = vld [vmem:[%s255 + $0x84] sm:$0xe]
      %v475 = vld [vmem:[%s255 + $0x90] sm:$0xe]
      %v476 = vld [vmem:[%s255 + $0x9c] sm:$0xe]
      %v477 = vld [vmem:[%s255 + $0xa8] sm:$0xe]
      %v478 = vld [vmem:[%s255 + $0xb4] sm:$0xe]
      %v479 = vunpack.c.l.bf16 %v463
      %v480 = vunpack.c.l.bf16 %v464
      %v481 = vunpack.c.l.bf16 %v465
      %v482 = vunpack.c.l.bf16 %v466
      %v483 = vunpack.c.l.bf16 %v467
      %v484 = vunpack.c.l.bf16 %v468
      %v485 = vunpack.c.l.bf16 %v469
      %v486 = vunpack.c.l.bf16 %v470
      %v487 = vunpack.c.l.bf16 %v471
      %v488 = vunpack.c.l.bf16 %v472
      %v489 = vunpack.c.l.bf16 %v473
      %v490 = vunpack.c.l.bf16 %v474
      %v491 = vunpack.c.l.bf16 %v475
      %v492 = vunpack.c.l.bf16 %v476
      %v493 = vunpack.c.l.bf16 %v477
      %v494 = vunpack.c.l.bf16 %v478
      %v495 = vlaneseq
      %v496 = vshrl.u32 %v495, 7
      %v497 = vsub.s32 2, %v496
      %v498 = vrot.slane %v274, %v497
      %v499 = vmul.f32 %v479, %v498
      %v500 = vmul.f32 %v312, %v498
      %v501 = vmul.f32 %v395, %v498
      %v502 = vmul.f32 %v480, %v498
      %v503 = vmul.f32 %v314, %v498
      %v504 = vmul.f32 %v396, %v498
      %v505 = vmul.f32 %v481, %v498
      %v506 = vmul.f32 %v316, %v498
      %v507 = vmul.f32 %v397, %v498
      %v508 = vmul.f32 %v482, %v498
      %v509 = vmul.f32 %v318, %v498
      %v510 = vmul.f32 %v398, %v498
      %v511 = vmul.f32 %v483, %v498
      %v512 = vmul.f32 %v320, %v498
      %v513 = vmul.f32 %v399, %v498
      %v514 = vmul.f32 %v484, %v498
      %v515 = vmul.f32 %v322, %v498
      %v516 = vmul.f32 %v400, %v498
      %v517 = vmul.f32 %v485, %v498
      %v518 = vmul.f32 %v324, %v498
      %v519 = vmul.f32 %v401, %v498
      %v520 = vmul.f32 %v486, %v498
      %v521 = vmul.f32 %v326, %v498
      %v522 = vmul.f32 %v402, %v498
      %v523 = vmul.f32 %v487, %v498
      %v524 = vmul.f32 %v328, %v498
      %v525 = vmul.f32 %v403, %v498
      %v526 = vmul.f32 %v488, %v498
      %v527 = vmul.f32 %v330, %v498
      %v528 = vmul.f32 %v404, %v498
      %v529 = vmul.f32 %v489, %v498
      %v530 = vmul.f32 %v332, %v498
      %v531 = vmul.f32 %v405, %v498
      %v532 = vmul.f32 %v490, %v498
      %v533 = vmul.f32 %v334, %v498
      %v534 = vmul.f32 %v406, %v498
      %v535 = vmul.f32 %v491, %v498
      %v536 = vmul.f32 %v336, %v498
      %v537 = vmul.f32 %v407, %v498
      %v538 = vmul.f32 %v492, %v498
      %v539 = vmul.f32 %v338, %v498
      %v540 = vmul.f32 %v408, %v498
      %v541 = vmul.f32 %v493, %v498
      %v542 = vmul.f32 %v340, %v498
      %v543 = vmul.f32 %v409, %v498
      %v544 = vmul.f32 %v494, %v498
      %v545 = vmul.f32 %v342, %v498
      %v546 = vmul.f32 %v410, %v498
      %vm595 = vcmask 1045504
      %v596 = vrot.slane %v499, 2
      %v597 = vrot.slane %v500, 2
      %v598 = vsel %vm595, %v596, %v597
      %v599 = vrot.slane %v501, 2
      %v600 = vsel %vm595, %v597, %v599
      %v601 = vrot.slane %v502, 2
      %v602 = vrot.slane %v503, 2
      %v603 = vsel %vm595, %v601, %v602
      %v604 = vrot.slane %v504, 2
      %v605 = vsel %vm595, %v602, %v604
      %v606 = vrot.slane %v505, 2
      %v607 = vrot.slane %v506, 2
      %v608 = vsel %vm595, %v606, %v607
      %v609 = vrot.slane %v507, 2
      %v610 = vsel %vm595, %v607, %v609
      %v611 = vrot.slane %v508, 2
      %v612 = vrot.slane %v509, 2
      %v613 = vsel %vm595, %v611, %v612
      %v614 = vrot.slane %v510, 2
      %v615 = vsel %vm595, %v612, %v614
      %v616 = vrot.slane %v511, 2
      %v617 = vrot.slane %v512, 2
      %v618 = vsel %vm595, %v616, %v617
      %v619 = vrot.slane %v513, 2
      %v620 = vsel %vm595, %v617, %v619
      %v621 = vrot.slane %v514, 2
      %v622 = vrot.slane %v515, 2
      %v623 = vsel %vm595, %v621, %v622
      %v624 = vrot.slane %v516, 2
      %v625 = vsel %vm595, %v622, %v624
      %v626 = vrot.slane %v517, 2
      %v627 = vrot.slane %v518, 2
      %v628 = vsel %vm595, %v626, %v627
      %v629 = vrot.slane %v519, 2
      %v630 = vsel %vm595, %v627, %v629
      %v631 = vrot.slane %v520, 2
      %v632 = vrot.slane %v521, 2
      %v633 = vsel %vm595, %v631, %v632
      %v634 = vrot.slane %v522, 2
      %v635 = vsel %vm595, %v632, %v634
      %v636 = vrot.slane %v523, 2
      %v637 = vrot.slane %v524, 2
      %v638 = vsel %vm595, %v636, %v637
      %v639 = vrot.slane %v525, 2
      %v640 = vsel %vm595, %v637, %v639
      %v641 = vrot.slane %v526, 2
      %v642 = vrot.slane %v527, 2
      %v643 = vsel %vm595, %v641, %v642
      %v644 = vrot.slane %v528, 2
      %v645 = vsel %vm595, %v642, %v644
      %v646 = vrot.slane %v529, 2
      %v647 = vrot.slane %v530, 2
      %v648 = vsel %vm595, %v646, %v647
      %v649 = vrot.slane %v531, 2
      %v650 = vsel %vm595, %v647, %v649
      %v651 = vrot.slane %v532, 2
      %v652 = vrot.slane %v533, 2
      %v653 = vsel %vm595, %v651, %v652
      %v654 = vrot.slane %v534, 2
      %v655 = vsel %vm595, %v652, %v654
      %v656 = vrot.slane %v535, 2
      %v657 = vrot.slane %v536, 2
      %v658 = vsel %vm595, %v656, %v657
      %v659 = vrot.slane %v537, 2
      %v660 = vsel %vm595, %v657, %v659
      %v661 = vrot.slane %v538, 2
      %v662 = vrot.slane %v539, 2
      %v663 = vsel %vm595, %v661, %v662
      %v664 = vrot.slane %v540, 2
      %v665 = vsel %vm595, %v662, %v664
      %v666 = vrot.slane %v541, 2
      %v667 = vrot.slane %v542, 2
      %v668 = vsel %vm595, %v666, %v667
      %v669 = vrot.slane %v543, 2
      %v670 = vsel %vm595, %v667, %v669
      %v671 = vrot.slane %v544, 2
      %v672 = vrot.slane %v545, 2
      %v673 = vsel %vm595, %v671, %v672
      %v674 = vrot.slane %v546, 2
      %v675 = vsel %vm595, %v672, %v674
      %v708 = vadd.f32 %v347, %v598
      %v709 = vadd.f32 %v348, %v600
      %v710 = vadd.f32 %v349, %v603
      %v711 = vadd.f32 %v350, %v605
      %v712 = vadd.f32 %v351, %v608
      %v713 = vadd.f32 %v352, %v610
      %v714 = vadd.f32 %v353, %v613
      %v715 = vadd.f32 %v354, %v615
      %v716 = vadd.f32 %v355, %v618
      %v717 = vadd.f32 %v356, %v620
      %v718 = vadd.f32 %v357, %v623
      %v719 = vadd.f32 %v358, %v625
      %v720 = vadd.f32 %v359, %v628
      %v721 = vadd.f32 %v360, %v630
      %v722 = vadd.f32 %v361, %v633
      %v723 = vadd.f32 %v362, %v635
      %v724 = vadd.f32 %v363, %v638
      %v725 = vadd.f32 %v364, %v640
      %v726 = vadd.f32 %v365, %v643
      %v727 = vadd.f32 %v366, %v645
      %v728 = vadd.f32 %v367, %v648
      %v729 = vadd.f32 %v368, %v650
      %v730 = vadd.f32 %v369, %v653
      %v731 = vadd.f32 %v370, %v655
      %v732 = vadd.f32 %v371, %v658
      %v733 = vadd.f32 %v372, %v660
      %v734 = vadd.f32 %v373, %v663
      %v735 = vadd.f32 %v374, %v665
      %v736 = vadd.f32 %v375, %v668
      %v737 = vadd.f32 %v376, %v670
      %v738 = vadd.f32 %v377, %v673
      %v739 = vadd.f32 %v378, %v675
      %v740 = vld [vmem:[%s255 + $0x8] sm:$0x3]
      %v741 = vld [vmem:[%s255 + $0x14] sm:$0x3]
      %v742 = vld [vmem:[%s255 + $0x20] sm:$0x3]
      %v743 = vld [vmem:[%s255 + $0x2c] sm:$0x3]
      %v744 = vld [vmem:[%s255 + $0x38] sm:$0x3]
      %v745 = vld [vmem:[%s255 + $0x44] sm:$0x3]
      %v746 = vld [vmem:[%s255 + $0x50] sm:$0x3]
      %v747 = vld [vmem:[%s255 + $0x5c] sm:$0x3]
      %v748 = vld [vmem:[%s255 + $0x68] sm:$0x3]
      %v749 = vld [vmem:[%s255 + $0x74] sm:$0x3]
      %v750 = vld [vmem:[%s255 + $0x80] sm:$0x3]
      %v751 = vld [vmem:[%s255 + $0x8c] sm:$0x3]
      %v752 = vld [vmem:[%s255 + $0x98] sm:$0x3]
      %v753 = vld [vmem:[%s255 + $0xa4] sm:$0x3]
      %v754 = vld [vmem:[%s255 + $0xb0] sm:$0x3]
      %v755 = vld [vmem:[%s255 + $0xbc] sm:$0x3]
      %v756 = vunpack.c.l.bf16 %v740
      %v757 = vunpack.c.l.bf16 %v741
      %v758 = vunpack.c.l.bf16 %v742
      %v759 = vunpack.c.l.bf16 %v743
      %v760 = vunpack.c.l.bf16 %v744
      %v761 = vunpack.c.l.bf16 %v745
      %v762 = vunpack.c.l.bf16 %v746
      %v763 = vunpack.c.l.bf16 %v747
      %v764 = vunpack.c.l.bf16 %v748
      %v765 = vunpack.c.l.bf16 %v749
      %v766 = vunpack.c.l.bf16 %v750
      %v767 = vunpack.c.l.bf16 %v751
      %v768 = vunpack.c.l.bf16 %v752
      %v769 = vunpack.c.l.bf16 %v753
      %v770 = vunpack.c.l.bf16 %v754
      %v771 = vunpack.c.l.bf16 %v755
      %v772 = vlaneseq
      %v773 = vshrl.u32 %v772, 7
      %v774 = vsub.s32 3, %v773
      %v775 = vrot.slane %v274, %v774
      %v776 = vmul.f32 %v479, %v775
      %v777 = vmul.f32 %v312, %v775
      %v778 = vmul.f32 %v756, %v775
      %v779 = vmul.f32 %v480, %v775
      %v780 = vmul.f32 %v314, %v775
      %v781 = vmul.f32 %v757, %v775
      %v782 = vmul.f32 %v481, %v775
      %v783 = vmul.f32 %v316, %v775
      %v784 = vmul.f32 %v758, %v775
      %v785 = vmul.f32 %v482, %v775
      %v786 = vmul.f32 %v318, %v775
      %v787 = vmul.f32 %v759, %v775
      %v788 = vmul.f32 %v483, %v775
      %v789 = vmul.f32 %v320, %v775
      %v790 = vmul.f32 %v760, %v775
      %v791 = vmul.f32 %v484, %v775
      %v792 = vmul.f32 %v322, %v775
      %v793 = vmul.f32 %v761, %v775
      %v794 = vmul.f32 %v485, %v775
      %v795 = vmul.f32 %v324, %v775
      %v796 = vmul.f32 %v762, %v775
      %v797 = vmul.f32 %v486, %v775
      %v798 = vmul.f32 %v326, %v775
      %v799 = vmul.f32 %v763, %v775
      %v800 = vmul.f32 %v487, %v775
      %v801 = vmul.f32 %v328, %v775
      %v802 = vmul.f32 %v764, %v775
      %v803 = vmul.f32 %v488, %v775
      %v804 = vmul.f32 %v330, %v775
      %v805 = vmul.f32 %v765, %v775
      %v806 = vmul.f32 %v489, %v775
      %v807 = vmul.f32 %v332, %v775
      %v808 = vmul.f32 %v766, %v775
      %v809 = vmul.f32 %v490, %v775
      %v810 = vmul.f32 %v334, %v775
      %v811 = vmul.f32 %v767, %v775
      %v812 = vmul.f32 %v491, %v775
      %v813 = vmul.f32 %v336, %v775
      %v814 = vmul.f32 %v768, %v775
      %v815 = vmul.f32 %v492, %v775
      %v816 = vmul.f32 %v338, %v775
      %v817 = vmul.f32 %v769, %v775
      %v818 = vmul.f32 %v493, %v775
      %v819 = vmul.f32 %v340, %v775
      %v820 = vmul.f32 %v770, %v775
      %v821 = vmul.f32 %v494, %v775
      %v822 = vmul.f32 %v342, %v775
      %v823 = vmul.f32 %v771, %v775
      %v872 = vrot.slane %v776, 2
      %v873 = vrot.slane %v777, 2
      %v874 = vsel %vm595, %v872, %v873
      %v875 = vrot.slane %v778, 2
      %v876 = vsel %vm595, %v873, %v875
      %v877 = vrot.slane %v779, 2
      %v878 = vrot.slane %v780, 2
      %v879 = vsel %vm595, %v877, %v878
      %v880 = vrot.slane %v781, 2
      %v881 = vsel %vm595, %v878, %v880
      %v882 = vrot.slane %v782, 2
      %v883 = vrot.slane %v783, 2
      %v884 = vsel %vm595, %v882, %v883
      %v885 = vrot.slane %v784, 2
      %v886 = vsel %vm595, %v883, %v885
      %v887 = vrot.slane %v785, 2
      %v888 = vrot.slane %v786, 2
      %v889 = vsel %vm595, %v887, %v888
      %v890 = vrot.slane %v787, 2
      %v891 = vsel %vm595, %v888, %v890
      %v892 = vrot.slane %v788, 2
      %v893 = vrot.slane %v789, 2
      %v894 = vsel %vm595, %v892, %v893
      %v895 = vrot.slane %v790, 2
      %v896 = vsel %vm595, %v893, %v895
      %v897 = vrot.slane %v791, 2
      %v898 = vrot.slane %v792, 2
      %v899 = vsel %vm595, %v897, %v898
      %v900 = vrot.slane %v793, 2
      %v901 = vsel %vm595, %v898, %v900
      %v902 = vrot.slane %v794, 2
      %v903 = vrot.slane %v795, 2
      %v904 = vsel %vm595, %v902, %v903
      %v905 = vrot.slane %v796, 2
      %v906 = vsel %vm595, %v903, %v905
      %v907 = vrot.slane %v797, 2
      %v908 = vrot.slane %v798, 2
      %v909 = vsel %vm595, %v907, %v908
      %v910 = vrot.slane %v799, 2
      %v911 = vsel %vm595, %v908, %v910
      %v912 = vrot.slane %v800, 2
      %v913 = vrot.slane %v801, 2
      %v914 = vsel %vm595, %v912, %v913
      %v915 = vrot.slane %v802, 2
      %v916 = vsel %vm595, %v913, %v915
      %v917 = vrot.slane %v803, 2
      %v918 = vrot.slane %v804, 2
      %v919 = vsel %vm595, %v917, %v918
      %v920 = vrot.slane %v805, 2
      %v921 = vsel %vm595, %v918, %v920
      %v922 = vrot.slane %v806, 2
      %v923 = vrot.slane %v807, 2
      %v924 = vsel %vm595, %v922, %v923
      %v925 = vrot.slane %v808, 2
      %v926 = vsel %vm595, %v923, %v925
      %v927 = vrot.slane %v809, 2
      %v928 = vrot.slane %v810, 2
      %v929 = vsel %vm595, %v927, %v928
      %v930 = vrot.slane %v811, 2
      %v931 = vsel %vm595, %v928, %v930
      %v932 = vrot.slane %v812, 2
      %v933 = vrot.slane %v813, 2
      %v934 = vsel %vm595, %v932, %v933
      %v935 = vrot.slane %v814, 2
      %v936 = vsel %vm595, %v933, %v935
      %v937 = vrot.slane %v815, 2
      %v938 = vrot.slane %v816, 2
      %v939 = vsel %vm595, %v937, %v938
      %v940 = vrot.slane %v817, 2
      %v941 = vsel %vm595, %v938, %v940
      %v942 = vrot.slane %v818, 2
      %v943 = vrot.slane %v819, 2
      %v944 = vsel %vm595, %v942, %v943
      %v945 = vrot.slane %v820, 2
      %v946 = vsel %vm595, %v943, %v945
      %v947 = vrot.slane %v821, 2
      %v948 = vrot.slane %v822, 2
      %v949 = vsel %vm595, %v947, %v948
      %v950 = vrot.slane %v823, 2
      %v951 = vsel %vm595, %v948, %v950
      %v1000 = vadd.f32 %v415, %v874
      %v1001 = vadd.f32 %v416, %v876
      %v1002 = vadd.f32 %v417, %v875
      %v1003 = vadd.f32 %v418, %v879
      %v1004 = vadd.f32 %v419, %v881
      %v1005 = vadd.f32 %v420, %v880
      %v1006 = vadd.f32 %v421, %v884
      %v1007 = vadd.f32 %v422, %v886
      %v1008 = vadd.f32 %v423, %v885
      %v1009 = vadd.f32 %v424, %v889
      %v1010 = vadd.f32 %v425, %v891
      %v1011 = vadd.f32 %v426, %v890
      %v1012 = vadd.f32 %v427, %v894
      %v1013 = vadd.f32 %v428, %v896
      %v1014 = vadd.f32 %v429, %v895
      %v1015 = vadd.f32 %v430, %v899
      %v1016 = vadd.f32 %v431, %v901
      %v1017 = vadd.f32 %v432, %v900
      %v1018 = vadd.f32 %v433, %v904
      %v1019 = vadd.f32 %v434, %v906
      %v1020 = vadd.f32 %v435, %v905
      %v1021 = vadd.f32 %v436, %v909
      %v1022 = vadd.f32 %v437, %v911
      %v1023 = vadd.f32 %v438, %v910
      %v1024 = vadd.f32 %v439, %v914
      %v1025 = vadd.f32 %v440, %v916
      %v1026 = vadd.f32 %v441, %v915
      %v1027 = vadd.f32 %v442, %v919
      %v1028 = vadd.f32 %v443, %v921
      %v1029 = vadd.f32 %v444, %v920
      %v1030 = vadd.f32 %v445, %v924
      %v1031 = vadd.f32 %v446, %v926
      %v1032 = vadd.f32 %v447, %v925
      %v1033 = vadd.f32 %v448, %v929
      %v1034 = vadd.f32 %v449, %v931
      %v1035 = vadd.f32 %v450, %v930
      %v1036 = vadd.f32 %v451, %v934
      %v1037 = vadd.f32 %v452, %v936
      %v1038 = vadd.f32 %v453, %v935
      %v1039 = vadd.f32 %v454, %v939
      %v1040 = vadd.f32 %v455, %v941
      %v1041 = vadd.f32 %v456, %v940
      %v1042 = vadd.f32 %v457, %v944
      %v1043 = vadd.f32 %v458, %v946
      %v1044 = vadd.f32 %v459, %v945
      %v1045 = vadd.f32 %v460, %v949
      %v1046 = vadd.f32 %v461, %v951
      %v1047 = vadd.f32 %v462, %v950
      %v1048 = vld [vmem:[%s255] sm:$0xc]
      %v1049 = vld [vmem:[%s255 + $0xc] sm:$0xc]
      %v1050 = vld [vmem:[%s255 + $0x18] sm:$0xc]
      %v1051 = vld [vmem:[%s255 + $0x24] sm:$0xc]
      %v1052 = vld [vmem:[%s255 + $0x30] sm:$0xc]
      %v1053 = vld [vmem:[%s255 + $0x3c] sm:$0xc]
      %v1054 = vld [vmem:[%s255 + $0x48] sm:$0xc]
      %v1055 = vld [vmem:[%s255 + $0x54] sm:$0xc]
      %v1056 = vld [vmem:[%s255 + $0x60] sm:$0xc]
      %v1057 = vld [vmem:[%s255 + $0x6c] sm:$0xc]
      %v1058 = vld [vmem:[%s255 + $0x78] sm:$0xc]
      %v1059 = vld [vmem:[%s255 + $0x84] sm:$0xc]
      %v1060 = vld [vmem:[%s255 + $0x90] sm:$0xc]
      %v1061 = vld [vmem:[%s255 + $0x9c] sm:$0xc]
      %v1062 = vld [vmem:[%s255 + $0xa8] sm:$0xc]
      %v1063 = vld [vmem:[%s255 + $0xb4] sm:$0xc]
      %v1064 = vunpack.c.l.bf16 %v1048
      %v1065 = vunpack.c.l.bf16 %v1049
      %v1066 = vunpack.c.l.bf16 %v1050
      %v1067 = vunpack.c.l.bf16 %v1051
      %v1068 = vunpack.c.l.bf16 %v1052
      %v1069 = vunpack.c.l.bf16 %v1053
      %v1070 = vunpack.c.l.bf16 %v1054
      %v1071 = vunpack.c.l.bf16 %v1055
      %v1072 = vunpack.c.l.bf16 %v1056
      %v1073 = vunpack.c.l.bf16 %v1057
      %v1074 = vunpack.c.l.bf16 %v1058
      %v1075 = vunpack.c.l.bf16 %v1059
      %v1076 = vunpack.c.l.bf16 %v1060
      %v1077 = vunpack.c.l.bf16 %v1061
      %v1078 = vunpack.c.l.bf16 %v1062
      %v1079 = vunpack.c.l.bf16 %v1063
      %v1080 = vlaneseq
      %v1081 = vshrl.u32 %v1080, 7
      %v1082 = vsub.s32 4, %v1081
      %v1083 = vrot.slane %v274, %v1082
      %v1084 = vmul.f32 %v1064, %v1083
      %v1085 = vmul.f32 %v312, %v1083
      %v1086 = vmul.f32 %v756, %v1083
      %v1087 = vmul.f32 %v1065, %v1083
      %v1088 = vmul.f32 %v314, %v1083
      %v1089 = vmul.f32 %v757, %v1083
      %v1090 = vmul.f32 %v1066, %v1083
      %v1091 = vmul.f32 %v316, %v1083
      %v1092 = vmul.f32 %v758, %v1083
      %v1093 = vmul.f32 %v1067, %v1083
      %v1094 = vmul.f32 %v318, %v1083
      %v1095 = vmul.f32 %v759, %v1083
      %v1096 = vmul.f32 %v1068, %v1083
      %v1097 = vmul.f32 %v320, %v1083
      %v1098 = vmul.f32 %v760, %v1083
      %v1099 = vmul.f32 %v1069, %v1083
      %v1100 = vmul.f32 %v322, %v1083
      %v1101 = vmul.f32 %v761, %v1083
      %v1102 = vmul.f32 %v1070, %v1083
      %v1103 = vmul.f32 %v324, %v1083
      %v1104 = vmul.f32 %v762, %v1083
      %v1105 = vmul.f32 %v1071, %v1083
      %v1106 = vmul.f32 %v326, %v1083
      %v1107 = vmul.f32 %v763, %v1083
      %v1108 = vmul.f32 %v1072, %v1083
      %v1109 = vmul.f32 %v328, %v1083
      %v1110 = vmul.f32 %v764, %v1083
      %v1111 = vmul.f32 %v1073, %v1083
      %v1112 = vmul.f32 %v330, %v1083
      %v1113 = vmul.f32 %v765, %v1083
      %v1114 = vmul.f32 %v1074, %v1083
      %v1115 = vmul.f32 %v332, %v1083
      %v1116 = vmul.f32 %v766, %v1083
      %v1117 = vmul.f32 %v1075, %v1083
      %v1118 = vmul.f32 %v334, %v1083
      %v1119 = vmul.f32 %v767, %v1083
      %v1120 = vmul.f32 %v1076, %v1083
      %v1121 = vmul.f32 %v336, %v1083
      %v1122 = vmul.f32 %v768, %v1083
      %v1123 = vmul.f32 %v1077, %v1083
      %v1124 = vmul.f32 %v338, %v1083
      %v1125 = vmul.f32 %v769, %v1083
      %v1126 = vmul.f32 %v1078, %v1083
      %v1127 = vmul.f32 %v340, %v1083
      %v1128 = vmul.f32 %v770, %v1083
      %v1129 = vmul.f32 %v1079, %v1083
      %v1130 = vmul.f32 %v342, %v1083
      %v1131 = vmul.f32 %v771, %v1083
      %vm1180 = vcmask 1043456
      %v1181 = vrot.slane %v1084, 4
      %v1182 = vrot.slane %v1085, 4
      %v1183 = vsel %vm1180, %v1181, %v1182
      %v1184 = vrot.slane %v1086, 4
      %v1185 = vsel %vm1180, %v1182, %v1184
      %v1186 = vrot.slane %v1087, 4
      %v1187 = vrot.slane %v1088, 4
      %v1188 = vsel %vm1180, %v1186, %v1187
      %v1189 = vrot.slane %v1089, 4
      %v1190 = vsel %vm1180, %v1187, %v1189
      %v1191 = vrot.slane %v1090, 4
      %v1192 = vrot.slane %v1091, 4
      %v1193 = vsel %vm1180, %v1191, %v1192
      %v1194 = vrot.slane %v1092, 4
      %v1195 = vsel %vm1180, %v1192, %v1194
      %v1196 = vrot.slane %v1093, 4
      %v1197 = vrot.slane %v1094, 4
      %v1198 = vsel %vm1180, %v1196, %v1197
      %v1199 = vrot.slane %v1095, 4
      %v1200 = vsel %vm1180, %v1197, %v1199
      %v1201 = vrot.slane %v1096, 4
      %v1202 = vrot.slane %v1097, 4
      %v1203 = vsel %vm1180, %v1201, %v1202
      %v1204 = vrot.slane %v1098, 4
      %v1205 = vsel %vm1180, %v1202, %v1204
      %v1206 = vrot.slane %v1099, 4
      %v1207 = vrot.slane %v1100, 4
      %v1208 = vsel %vm1180, %v1206, %v1207
      %v1209 = vrot.slane %v1101, 4
      %v1210 = vsel %vm1180, %v1207, %v1209
      %v1211 = vrot.slane %v1102, 4
      %v1212 = vrot.slane %v1103, 4
      %v1213 = vsel %vm1180, %v1211, %v1212
      %v1214 = vrot.slane %v1104, 4
      %v1215 = vsel %vm1180, %v1212, %v1214
      %v1216 = vrot.slane %v1105, 4
      %v1217 = vrot.slane %v1106, 4
      %v1218 = vsel %vm1180, %v1216, %v1217
      %v1219 = vrot.slane %v1107, 4
      %v1220 = vsel %vm1180, %v1217, %v1219
      %v1221 = vrot.slane %v1108, 4
      %v1222 = vrot.slane %v1109, 4
      %v1223 = vsel %vm1180, %v1221, %v1222
      %v1224 = vrot.slane %v1110, 4
      %v1225 = vsel %vm1180, %v1222, %v1224
      %v1226 = vrot.slane %v1111, 4
      %v1227 = vrot.slane %v1112, 4
      %v1228 = vsel %vm1180, %v1226, %v1227
      %v1229 = vrot.slane %v1113, 4
      %v1230 = vsel %vm1180, %v1227, %v1229
      %v1231 = vrot.slane %v1114, 4
      %v1232 = vrot.slane %v1115, 4
      %v1233 = vsel %vm1180, %v1231, %v1232
      %v1234 = vrot.slane %v1116, 4
      %v1235 = vsel %vm1180, %v1232, %v1234
      %v1236 = vrot.slane %v1117, 4
      %v1237 = vrot.slane %v1118, 4
      %v1238 = vsel %vm1180, %v1236, %v1237
      %v1239 = vrot.slane %v1119, 4
      %v1240 = vsel %vm1180, %v1237, %v1239
      %v1241 = vrot.slane %v1120, 4
      %v1242 = vrot.slane %v1121, 4
      %v1243 = vsel %vm1180, %v1241, %v1242
      %v1244 = vrot.slane %v1122, 4
      %v1245 = vsel %vm1180, %v1242, %v1244
      %v1246 = vrot.slane %v1123, 4
      %v1247 = vrot.slane %v1124, 4
      %v1248 = vsel %vm1180, %v1246, %v1247
      %v1249 = vrot.slane %v1125, 4
      %v1250 = vsel %vm1180, %v1247, %v1249
      %v1251 = vrot.slane %v1126, 4
      %v1252 = vrot.slane %v1127, 4
      %v1253 = vsel %vm1180, %v1251, %v1252
      %v1254 = vrot.slane %v1128, 4
      %v1255 = vsel %vm1180, %v1252, %v1254
      %v1256 = vrot.slane %v1129, 4
      %v1257 = vrot.slane %v1130, 4
      %v1258 = vsel %vm1180, %v1256, %v1257
      %v1259 = vrot.slane %v1131, 4
      %v1260 = vsel %vm1180, %v1257, %v1259
      %v1293 = vadd.f32 %v708, %v1183
      %v1294 = vadd.f32 %v709, %v1185
      %v1295 = vadd.f32 %v710, %v1188
      %v1296 = vadd.f32 %v711, %v1190
      %v1297 = vadd.f32 %v712, %v1193
      %v1298 = vadd.f32 %v713, %v1195
      %v1299 = vadd.f32 %v714, %v1198
      %v1300 = vadd.f32 %v715, %v1200
      %v1301 = vadd.f32 %v716, %v1203
      %v1302 = vadd.f32 %v717, %v1205
      %v1303 = vadd.f32 %v718, %v1208
      %v1304 = vadd.f32 %v719, %v1210
      %v1305 = vadd.f32 %v720, %v1213
      %v1306 = vadd.f32 %v721, %v1215
      %v1307 = vadd.f32 %v722, %v1218
      %v1308 = vadd.f32 %v723, %v1220
      %v1309 = vadd.f32 %v724, %v1223
      %v1310 = vadd.f32 %v725, %v1225
      %v1311 = vadd.f32 %v726, %v1228
      %v1312 = vadd.f32 %v727, %v1230
      %v1313 = vadd.f32 %v728, %v1233
      %v1314 = vadd.f32 %v729, %v1235
      %v1315 = vadd.f32 %v730, %v1238
      %v1316 = vadd.f32 %v731, %v1240
      %v1317 = vadd.f32 %v732, %v1243
      %v1318 = vadd.f32 %v733, %v1245
      %v1319 = vadd.f32 %v734, %v1248
      %v1320 = vadd.f32 %v735, %v1250
      %v1321 = vadd.f32 %v736, %v1253
      %v1322 = vadd.f32 %v737, %v1255
      %v1323 = vadd.f32 %v738, %v1258
      %v1324 = vadd.f32 %v739, %v1260
      %s1325 = scalar_lea.vmem %s255, 12
      %v1326 = vld [vmem:[%s1325] sm:$0xf]
      %v1327 = vld [vmem:[%s1325 + $0x4] sm:$0xf]
      %v1328 = vld [vmem:[%s1325 + $0xc] sm:$0xf]
      %v1329 = vld [vmem:[%s1325 + $0x10] sm:$0xf]
      %v1330 = vld [vmem:[%s1325 + $0x18] sm:$0xf]
      %v1331 = vld [vmem:[%s1325 + $0x1c] sm:$0xf]
      %v1332 = vld [vmem:[%s1325 + $0x24] sm:$0xf]
      %v1333 = vld [vmem:[%s1325 + $0x28] sm:$0xf]
      %v1334 = vld [vmem:[%s1325 + $0x30] sm:$0xf]
      %v1335 = vld [vmem:[%s1325 + $0x34] sm:$0xf]
      %v1336 = vld [vmem:[%s1325 + $0x3c] sm:$0xf]
      %v1337 = vld [vmem:[%s1325 + $0x40] sm:$0xf]
      %v1338 = vld [vmem:[%s1325 + $0x48] sm:$0xf]
      %v1339 = vld [vmem:[%s1325 + $0x4c] sm:$0xf]
      %v1340 = vld [vmem:[%s1325 + $0x54] sm:$0xf]
      %v1341 = vld [vmem:[%s1325 + $0x58] sm:$0xf]
      %v1342 = vld [vmem:[%s1325 + $0x60] sm:$0xf]
      %v1343 = vld [vmem:[%s1325 + $0x64] sm:$0xf]
      %v1344 = vld [vmem:[%s1325 + $0x6c] sm:$0xf]
      %v1345 = vld [vmem:[%s1325 + $0x70] sm:$0xf]
      %v1346 = vld [vmem:[%s1325 + $0x78] sm:$0xf]
      %v1347 = vld [vmem:[%s1325 + $0x7c] sm:$0xf]
      %v1348 = vld [vmem:[%s1325 + $0x84] sm:$0xf]
      %v1349 = vld [vmem:[%s1325 + $0x88] sm:$0xf]
      %v1350 = vld [vmem:[%s1325 + $0x90] sm:$0xf]
      %v1351 = vld [vmem:[%s1325 + $0x94] sm:$0xf]
      %v1352 = vld [vmem:[%s1325 + $0x9c] sm:$0xf]
      %v1353 = vld [vmem:[%s1325 + $0xa0] sm:$0xf]
      %v1354 = vld [vmem:[%s1325 + $0xa8] sm:$0xf]
      %v1355 = vld [vmem:[%s1325 + $0xac] sm:$0xf]
      %v1356 = vld [vmem:[%s1325 + $0xb4] sm:$0xf]
      %v1357 = vld [vmem:[%s1325 + $0xb8] sm:$0xf]
      %v1358 = vunpack.c.l.bf16 %v1326
      %v1359 = vunpack.c.l.bf16 %v1327
      %v1360 = vunpack.c.l.bf16 %v1328
      %v1361 = vunpack.c.l.bf16 %v1329
      %v1362 = vunpack.c.l.bf16 %v1330
      %v1363 = vunpack.c.l.bf16 %v1331
      %v1364 = vunpack.c.l.bf16 %v1332
      %v1365 = vunpack.c.l.bf16 %v1333
      %v1366 = vunpack.c.l.bf16 %v1334
      %v1367 = vunpack.c.l.bf16 %v1335
      %v1368 = vunpack.c.l.bf16 %v1336
      %v1369 = vunpack.c.l.bf16 %v1337
      %v1370 = vunpack.c.l.bf16 %v1338
      %v1371 = vunpack.c.l.bf16 %v1339
      %v1372 = vunpack.c.l.bf16 %v1340
      %v1373 = vunpack.c.l.bf16 %v1341
      %v1374 = vunpack.c.l.bf16 %v1342
      %v1375 = vunpack.c.l.bf16 %v1343
      %v1376 = vunpack.c.l.bf16 %v1344
      %v1377 = vunpack.c.l.bf16 %v1345
      %v1378 = vunpack.c.l.bf16 %v1346
      %v1379 = vunpack.c.l.bf16 %v1347
      %v1380 = vunpack.c.l.bf16 %v1348
      %v1381 = vunpack.c.l.bf16 %v1349
      %v1382 = vunpack.c.l.bf16 %v1350
      %v1383 = vunpack.c.l.bf16 %v1351
      %v1384 = vunpack.c.l.bf16 %v1352
      %v1385 = vunpack.c.l.bf16 %v1353
      %v1386 = vunpack.c.l.bf16 %v1354
      %v1387 = vunpack.c.l.bf16 %v1355
      %v1388 = vunpack.c.l.bf16 %v1356
      %v1389 = vunpack.c.l.bf16 %v1357
      %v1390 = vlaneseq
      %v1391 = vshrl.u32 %v1390, 7
      %v1392 = vsub.s32 0, %v1391
      %v1393 = vrot.slane %v275, %v1392
      %v1394 = vmul.f32 %v1358, %v1393
      %v1395 = vmul.f32 %v1359, %v1393
      %v1396 = vmul.f32 %v1360, %v1393
      %v1397 = vmul.f32 %v1361, %v1393
      %v1398 = vmul.f32 %v1362, %v1393
      %v1399 = vmul.f32 %v1363, %v1393
      %v1400 = vmul.f32 %v1364, %v1393
      %v1401 = vmul.f32 %v1365, %v1393
      %v1402 = vmul.f32 %v1366, %v1393
      %v1403 = vmul.f32 %v1367, %v1393
      %v1404 = vmul.f32 %v1368, %v1393
      %v1405 = vmul.f32 %v1369, %v1393
      %v1406 = vmul.f32 %v1370, %v1393
      %v1407 = vmul.f32 %v1371, %v1393
      %v1408 = vmul.f32 %v1372, %v1393
      %v1409 = vmul.f32 %v1373, %v1393
      %v1410 = vmul.f32 %v1374, %v1393
      %v1411 = vmul.f32 %v1375, %v1393
      %v1412 = vmul.f32 %v1376, %v1393
      %v1413 = vmul.f32 %v1377, %v1393
      %v1414 = vmul.f32 %v1378, %v1393
      %v1415 = vmul.f32 %v1379, %v1393
      %v1416 = vmul.f32 %v1380, %v1393
      %v1417 = vmul.f32 %v1381, %v1393
      %v1418 = vmul.f32 %v1382, %v1393
      %v1419 = vmul.f32 %v1383, %v1393
      %v1420 = vmul.f32 %v1384, %v1393
      %v1421 = vmul.f32 %v1385, %v1393
      %v1422 = vmul.f32 %v1386, %v1393
      %v1423 = vmul.f32 %v1387, %v1393
      %v1424 = vmul.f32 %v1388, %v1393
      %v1425 = vmul.f32 %v1389, %v1393
      %vm1458 = vcmask 1040384
      %v1459 = vrot.slane %v1394, 7
      %v1460 = vrot.slane %v1395, 7
      %v1461 = vsel %vm1458, %v1459, %v1460
      %v1462 = vrot.slane %v1396, 7
      %v1463 = vrot.slane %v1397, 7
      %v1464 = vsel %vm1458, %v1462, %v1463
      %v1465 = vrot.slane %v1398, 7
      %v1466 = vrot.slane %v1399, 7
      %v1467 = vsel %vm1458, %v1465, %v1466
      %v1468 = vrot.slane %v1400, 7
      %v1469 = vrot.slane %v1401, 7
      %v1470 = vsel %vm1458, %v1468, %v1469
      %v1471 = vrot.slane %v1402, 7
      %v1472 = vrot.slane %v1403, 7
      %v1473 = vsel %vm1458, %v1471, %v1472
      %v1474 = vrot.slane %v1404, 7
      %v1475 = vrot.slane %v1405, 7
      %v1476 = vsel %vm1458, %v1474, %v1475
      %v1477 = vrot.slane %v1406, 7
      %v1478 = vrot.slane %v1407, 7
      %v1479 = vsel %vm1458, %v1477, %v1478
      %v1480 = vrot.slane %v1408, 7
      %v1481 = vrot.slane %v1409, 7
      %v1482 = vsel %vm1458, %v1480, %v1481
      %v1483 = vrot.slane %v1410, 7
      %v1484 = vrot.slane %v1411, 7
      %v1485 = vsel %vm1458, %v1483, %v1484
      %v1486 = vrot.slane %v1412, 7
      %v1487 = vrot.slane %v1413, 7
      %v1488 = vsel %vm1458, %v1486, %v1487
      %v1489 = vrot.slane %v1414, 7
      %v1490 = vrot.slane %v1415, 7
      %v1491 = vsel %vm1458, %v1489, %v1490
      %v1492 = vrot.slane %v1416, 7
      %v1493 = vrot.slane %v1417, 7
      %v1494 = vsel %vm1458, %v1492, %v1493
      %v1495 = vrot.slane %v1418, 7
      %v1496 = vrot.slane %v1419, 7
      %v1497 = vsel %vm1458, %v1495, %v1496
      %v1498 = vrot.slane %v1420, 7
      %v1499 = vrot.slane %v1421, 7
      %v1500 = vsel %vm1458, %v1498, %v1499
      %v1501 = vrot.slane %v1422, 7
      %v1502 = vrot.slane %v1423, 7
      %v1503 = vsel %vm1458, %v1501, %v1502
      %v1504 = vrot.slane %v1424, 7
      %v1505 = vrot.slane %v1425, 7
      %v1506 = vsel %vm1458, %v1504, %v1505
      %v1555 = vadd.f32 %v1000, %v1459
      %v1556 = vadd.f32 %v1001, %v1461
      %v1557 = vadd.f32 %v1002, %v1460
      %v1558 = vadd.f32 %v1003, %v1462
      %v1559 = vadd.f32 %v1004, %v1464
      %v1560 = vadd.f32 %v1005, %v1463
      %v1561 = vadd.f32 %v1006, %v1465
      %v1562 = vadd.f32 %v1007, %v1467
      %v1563 = vadd.f32 %v1008, %v1466
      %v1564 = vadd.f32 %v1009, %v1468
      %v1565 = vadd.f32 %v1010, %v1470
      %v1566 = vadd.f32 %v1011, %v1469
      %v1567 = vadd.f32 %v1012, %v1471
      %v1568 = vadd.f32 %v1013, %v1473
      %v1569 = vadd.f32 %v1014, %v1472
      %v1570 = vadd.f32 %v1015, %v1474
      %v1571 = vadd.f32 %v1016, %v1476
      %v1572 = vadd.f32 %v1017, %v1475
      %v1573 = vadd.f32 %v1018, %v1477
      %v1574 = vadd.f32 %v1019, %v1479
      %v1575 = vadd.f32 %v1020, %v1478
      %v1576 = vadd.f32 %v1021, %v1480
      %v1577 = vadd.f32 %v1022, %v1482
      %v1578 = vadd.f32 %v1023, %v1481
      %v1579 = vadd.f32 %v1024, %v1483
      %v1580 = vadd.f32 %v1025, %v1485
      %v1581 = vadd.f32 %v1026, %v1484
      %v1582 = vadd.f32 %v1027, %v1486
      %v1583 = vadd.f32 %v1028, %v1488
      %v1584 = vadd.f32 %v1029, %v1487
      %v1585 = vadd.f32 %v1030, %v1489
      %v1586 = vadd.f32 %v1031, %v1491
      %v1587 = vadd.f32 %v1032, %v1490
      %v1588 = vadd.f32 %v1033, %v1492
      %v1589 = vadd.f32 %v1034, %v1494
      %v1590 = vadd.f32 %v1035, %v1493
      %v1591 = vadd.f32 %v1036, %v1495
      %v1592 = vadd.f32 %v1037, %v1497
      %v1593 = vadd.f32 %v1038, %v1496
      %v1594 = vadd.f32 %v1039, %v1498
      %v1595 = vadd.f32 %v1040, %v1500
      %v1596 = vadd.f32 %v1041, %v1499
      %v1597 = vadd.f32 %v1042, %v1501
      %v1598 = vadd.f32 %v1043, %v1503
      %v1599 = vadd.f32 %v1044, %v1502
      %v1600 = vadd.f32 %v1045, %v1504
      %v1601 = vadd.f32 %v1046, %v1506
      %v1602 = vadd.f32 %v1047, %v1505
      %v1603 = vld [vmem:[%s1325 + $0x8] sm:$0x1]
      %v1604 = vld [vmem:[%s1325 + $0x14] sm:$0x1]
      %v1605 = vld [vmem:[%s1325 + $0x20] sm:$0x1]
      %v1606 = vld [vmem:[%s1325 + $0x2c] sm:$0x1]
      %v1607 = vld [vmem:[%s1325 + $0x38] sm:$0x1]
      %v1608 = vld [vmem:[%s1325 + $0x44] sm:$0x1]
      %v1609 = vld [vmem:[%s1325 + $0x50] sm:$0x1]
      %v1610 = vld [vmem:[%s1325 + $0x5c] sm:$0x1]
      %v1611 = vld [vmem:[%s1325 + $0x68] sm:$0x1]
      %v1612 = vld [vmem:[%s1325 + $0x74] sm:$0x1]
      %v1613 = vld [vmem:[%s1325 + $0x80] sm:$0x1]
      %v1614 = vld [vmem:[%s1325 + $0x8c] sm:$0x1]
      %v1615 = vld [vmem:[%s1325 + $0x98] sm:$0x1]
      %v1616 = vld [vmem:[%s1325 + $0xa4] sm:$0x1]
      %v1617 = vld [vmem:[%s1325 + $0xb0] sm:$0x1]
      %v1618 = vld [vmem:[%s1325 + $0xbc] sm:$0x1]
      %v1619 = vunpack.c.l.bf16 %v1603
      %v1620 = vunpack.c.l.bf16 %v1604
      %v1621 = vunpack.c.l.bf16 %v1605
      %v1622 = vunpack.c.l.bf16 %v1606
      %v1623 = vunpack.c.l.bf16 %v1607
      %v1624 = vunpack.c.l.bf16 %v1608
      %v1625 = vunpack.c.l.bf16 %v1609
      %v1626 = vunpack.c.l.bf16 %v1610
      %v1627 = vunpack.c.l.bf16 %v1611
      %v1628 = vunpack.c.l.bf16 %v1612
      %v1629 = vunpack.c.l.bf16 %v1613
      %v1630 = vunpack.c.l.bf16 %v1614
      %v1631 = vunpack.c.l.bf16 %v1615
      %v1632 = vunpack.c.l.bf16 %v1616
      %v1633 = vunpack.c.l.bf16 %v1617
      %v1634 = vunpack.c.l.bf16 %v1618
      %v1635 = vlaneseq
      %v1636 = vshrl.u32 %v1635, 7
      %v1637 = vsub.s32 1, %v1636
      %v1638 = vrot.slane %v275, %v1637
      %v1639 = vmul.f32 %v1358, %v1638
      %v1640 = vmul.f32 %v1359, %v1638
      %v1641 = vmul.f32 %v1619, %v1638
      %v1642 = vmul.f32 %v1360, %v1638
      %v1643 = vmul.f32 %v1361, %v1638
      %v1644 = vmul.f32 %v1620, %v1638
      %v1645 = vmul.f32 %v1362, %v1638
      %v1646 = vmul.f32 %v1363, %v1638
      %v1647 = vmul.f32 %v1621, %v1638
      %v1648 = vmul.f32 %v1364, %v1638
      %v1649 = vmul.f32 %v1365, %v1638
      %v1650 = vmul.f32 %v1622, %v1638
      %v1651 = vmul.f32 %v1366, %v1638
      %v1652 = vmul.f32 %v1367, %v1638
      %v1653 = vmul.f32 %v1623, %v1638
      %v1654 = vmul.f32 %v1368, %v1638
      %v1655 = vmul.f32 %v1369, %v1638
      %v1656 = vmul.f32 %v1624, %v1638
      %v1657 = vmul.f32 %v1370, %v1638
      %v1658 = vmul.f32 %v1371, %v1638
      %v1659 = vmul.f32 %v1625, %v1638
      %v1660 = vmul.f32 %v1372, %v1638
      %v1661 = vmul.f32 %v1373, %v1638
      %v1662 = vmul.f32 %v1626, %v1638
      %v1663 = vmul.f32 %v1374, %v1638
      %v1664 = vmul.f32 %v1375, %v1638
      %v1665 = vmul.f32 %v1627, %v1638
      %v1666 = vmul.f32 %v1376, %v1638
      %v1667 = vmul.f32 %v1377, %v1638
      %v1668 = vmul.f32 %v1628, %v1638
      %v1669 = vmul.f32 %v1378, %v1638
      %v1670 = vmul.f32 %v1379, %v1638
      %v1671 = vmul.f32 %v1629, %v1638
      %v1672 = vmul.f32 %v1380, %v1638
      %v1673 = vmul.f32 %v1381, %v1638
      %v1674 = vmul.f32 %v1630, %v1638
      %v1675 = vmul.f32 %v1382, %v1638
      %v1676 = vmul.f32 %v1383, %v1638
      %v1677 = vmul.f32 %v1631, %v1638
      %v1678 = vmul.f32 %v1384, %v1638
      %v1679 = vmul.f32 %v1385, %v1638
      %v1680 = vmul.f32 %v1632, %v1638
      %v1681 = vmul.f32 %v1386, %v1638
      %v1682 = vmul.f32 %v1387, %v1638
      %v1683 = vmul.f32 %v1633, %v1638
      %v1684 = vmul.f32 %v1388, %v1638
      %v1685 = vmul.f32 %v1389, %v1638
      %v1686 = vmul.f32 %v1634, %v1638
      %vm1735 = vcmask 1046528
      %v1736 = vrot.slane %v1639, 1
      %v1737 = vrot.slane %v1640, 1
      %v1738 = vsel %vm1735, %v1736, %v1737
      %v1739 = vrot.slane %v1641, 1
      %v1740 = vsel %vm1735, %v1737, %v1739
      %v1741 = vrot.slane %v1642, 1
      %v1742 = vrot.slane %v1643, 1
      %v1743 = vsel %vm1735, %v1741, %v1742
      %v1744 = vrot.slane %v1644, 1
      %v1745 = vsel %vm1735, %v1742, %v1744
      %v1746 = vrot.slane %v1645, 1
      %v1747 = vrot.slane %v1646, 1
      %v1748 = vsel %vm1735, %v1746, %v1747
      %v1749 = vrot.slane %v1647, 1
      %v1750 = vsel %vm1735, %v1747, %v1749
      %v1751 = vrot.slane %v1648, 1
      %v1752 = vrot.slane %v1649, 1
      %v1753 = vsel %vm1735, %v1751, %v1752
      %v1754 = vrot.slane %v1650, 1
      %v1755 = vsel %vm1735, %v1752, %v1754
      %v1756 = vrot.slane %v1651, 1
      %v1757 = vrot.slane %v1652, 1
      %v1758 = vsel %vm1735, %v1756, %v1757
      %v1759 = vrot.slane %v1653, 1
      %v1760 = vsel %vm1735, %v1757, %v1759
      %v1761 = vrot.slane %v1654, 1
      %v1762 = vrot.slane %v1655, 1
      %v1763 = vsel %vm1735, %v1761, %v1762
      %v1764 = vrot.slane %v1656, 1
      %v1765 = vsel %vm1735, %v1762, %v1764
      %v1766 = vrot.slane %v1657, 1
      %v1767 = vrot.slane %v1658, 1
      %v1768 = vsel %vm1735, %v1766, %v1767
      %v1769 = vrot.slane %v1659, 1
      %v1770 = vsel %vm1735, %v1767, %v1769
      %v1771 = vrot.slane %v1660, 1
      %v1772 = vrot.slane %v1661, 1
      %v1773 = vsel %vm1735, %v1771, %v1772
      %v1774 = vrot.slane %v1662, 1
      %v1775 = vsel %vm1735, %v1772, %v1774
      %v1776 = vrot.slane %v1663, 1
      %v1777 = vrot.slane %v1664, 1
      %v1778 = vsel %vm1735, %v1776, %v1777
      %v1779 = vrot.slane %v1665, 1
      %v1780 = vsel %vm1735, %v1777, %v1779
      %v1781 = vrot.slane %v1666, 1
      %v1782 = vrot.slane %v1667, 1
      %v1783 = vsel %vm1735, %v1781, %v1782
      %v1784 = vrot.slane %v1668, 1
      %v1785 = vsel %vm1735, %v1782, %v1784
      %v1786 = vrot.slane %v1669, 1
      %v1787 = vrot.slane %v1670, 1
      %v1788 = vsel %vm1735, %v1786, %v1787
      %v1789 = vrot.slane %v1671, 1
      %v1790 = vsel %vm1735, %v1787, %v1789
      %v1791 = vrot.slane %v1672, 1
      %v1792 = vrot.slane %v1673, 1
      %v1793 = vsel %vm1735, %v1791, %v1792
      %v1794 = vrot.slane %v1674, 1
      %v1795 = vsel %vm1735, %v1792, %v1794
      %v1796 = vrot.slane %v1675, 1
      %v1797 = vrot.slane %v1676, 1
      %v1798 = vsel %vm1735, %v1796, %v1797
      %v1799 = vrot.slane %v1677, 1
      %v1800 = vsel %vm1735, %v1797, %v1799
      %v1801 = vrot.slane %v1678, 1
      %v1802 = vrot.slane %v1679, 1
      %v1803 = vsel %vm1735, %v1801, %v1802
      %v1804 = vrot.slane %v1680, 1
      %v1805 = vsel %vm1735, %v1802, %v1804
      %v1806 = vrot.slane %v1681, 1
      %v1807 = vrot.slane %v1682, 1
      %v1808 = vsel %vm1735, %v1806, %v1807
      %v1809 = vrot.slane %v1683, 1
      %v1810 = vsel %vm1735, %v1807, %v1809
      %v1811 = vrot.slane %v1684, 1
      %v1812 = vrot.slane %v1685, 1
      %v1813 = vsel %vm1735, %v1811, %v1812
      %v1814 = vrot.slane %v1686, 1
      %v1815 = vsel %vm1735, %v1812, %v1814
      %v1848 = vadd.f32 %v1293, %v1738
      %v1849 = vadd.f32 %v1294, %v1740
      %v1850 = vadd.f32 %v1295, %v1743
      %v1851 = vadd.f32 %v1296, %v1745
      %v1852 = vadd.f32 %v1297, %v1748
      %v1853 = vadd.f32 %v1298, %v1750
      %v1854 = vadd.f32 %v1299, %v1753
      %v1855 = vadd.f32 %v1300, %v1755
      %v1856 = vadd.f32 %v1301, %v1758
      %v1857 = vadd.f32 %v1302, %v1760
      %v1858 = vadd.f32 %v1303, %v1763
      %v1859 = vadd.f32 %v1304, %v1765
      %v1860 = vadd.f32 %v1305, %v1768
      %v1861 = vadd.f32 %v1306, %v1770
      %v1862 = vadd.f32 %v1307, %v1773
      %v1863 = vadd.f32 %v1308, %v1775
      %v1864 = vadd.f32 %v1309, %v1778
      %v1865 = vadd.f32 %v1310, %v1780
      %v1866 = vadd.f32 %v1311, %v1783
      %v1867 = vadd.f32 %v1312, %v1785
      %v1868 = vadd.f32 %v1313, %v1788
      %v1869 = vadd.f32 %v1314, %v1790
      %v1870 = vadd.f32 %v1315, %v1793
      %v1871 = vadd.f32 %v1316, %v1795
      %v1872 = vadd.f32 %v1317, %v1798
      %v1873 = vadd.f32 %v1318, %v1800
      %v1874 = vadd.f32 %v1319, %v1803
      %v1875 = vadd.f32 %v1320, %v1805
      %v1876 = vadd.f32 %v1321, %v1808
      %v1877 = vadd.f32 %v1322, %v1810
      %v1878 = vadd.f32 %v1323, %v1813
      %v1879 = vadd.f32 %v1324, %v1815
      %v1880 = vld [vmem:[%s1325] sm:$0xe]
      %v1881 = vld [vmem:[%s1325 + $0xc] sm:$0xe]
      %v1882 = vld [vmem:[%s1325 + $0x18] sm:$0xe]
      %v1883 = vld [vmem:[%s1325 + $0x24] sm:$0xe]
      %v1884 = vld [vmem:[%s1325 + $0x30] sm:$0xe]
      %v1885 = vld [vmem:[%s1325 + $0x3c] sm:$0xe]
      %v1886 = vld [vmem:[%s1325 + $0x48] sm:$0xe]
      %v1887 = vld [vmem:[%s1325 + $0x54] sm:$0xe]
      %v1888 = vld [vmem:[%s1325 + $0x60] sm:$0xe]
      %v1889 = vld [vmem:[%s1325 + $0x6c] sm:$0xe]
      %v1890 = vld [vmem:[%s1325 + $0x78] sm:$0xe]
      %v1891 = vld [vmem:[%s1325 + $0x84] sm:$0xe]
      %v1892 = vld [vmem:[%s1325 + $0x90] sm:$0xe]
      %v1893 = vld [vmem:[%s1325 + $0x9c] sm:$0xe]
      %v1894 = vld [vmem:[%s1325 + $0xa8] sm:$0xe]
      %v1895 = vld [vmem:[%s1325 + $0xb4] sm:$0xe]
      %v1896 = vunpack.c.l.bf16 %v1880
      %v1897 = vunpack.c.l.bf16 %v1881
      %v1898 = vunpack.c.l.bf16 %v1882
      %v1899 = vunpack.c.l.bf16 %v1883
      %v1900 = vunpack.c.l.bf16 %v1884
      %v1901 = vunpack.c.l.bf16 %v1885
      %v1902 = vunpack.c.l.bf16 %v1886
      %v1903 = vunpack.c.l.bf16 %v1887
      %v1904 = vunpack.c.l.bf16 %v1888
      %v1905 = vunpack.c.l.bf16 %v1889
      %v1906 = vunpack.c.l.bf16 %v1890
      %v1907 = vunpack.c.l.bf16 %v1891
      %v1908 = vunpack.c.l.bf16 %v1892
      %v1909 = vunpack.c.l.bf16 %v1893
      %v1910 = vunpack.c.l.bf16 %v1894
      %v1911 = vunpack.c.l.bf16 %v1895
      %v1912 = vlaneseq
      %v1913 = vshrl.u32 %v1912, 7
      %v1914 = vsub.s32 2, %v1913
      %v1915 = vrot.slane %v275, %v1914
      %v1916 = vmul.f32 %v1896, %v1915
      %v1917 = vmul.f32 %v1359, %v1915
      %v1918 = vmul.f32 %v1619, %v1915
      %v1919 = vmul.f32 %v1897, %v1915
      %v1920 = vmul.f32 %v1361, %v1915
      %v1921 = vmul.f32 %v1620, %v1915
      %v1922 = vmul.f32 %v1898, %v1915
      %v1923 = vmul.f32 %v1363, %v1915
      %v1924 = vmul.f32 %v1621, %v1915
      %v1925 = vmul.f32 %v1899, %v1915
      %v1926 = vmul.f32 %v1365, %v1915
      %v1927 = vmul.f32 %v1622, %v1915
      %v1928 = vmul.f32 %v1900, %v1915
      %v1929 = vmul.f32 %v1367, %v1915
      %v1930 = vmul.f32 %v1623, %v1915
      %v1931 = vmul.f32 %v1901, %v1915
      %v1932 = vmul.f32 %v1369, %v1915
      %v1933 = vmul.f32 %v1624, %v1915
      %v1934 = vmul.f32 %v1902, %v1915
      %v1935 = vmul.f32 %v1371, %v1915
      %v1936 = vmul.f32 %v1625, %v1915
      %v1937 = vmul.f32 %v1903, %v1915
      %v1938 = vmul.f32 %v1373, %v1915
      %v1939 = vmul.f32 %v1626, %v1915
      %v1940 = vmul.f32 %v1904, %v1915
      %v1941 = vmul.f32 %v1375, %v1915
      %v1942 = vmul.f32 %v1627, %v1915
      %v1943 = vmul.f32 %v1905, %v1915
      %v1944 = vmul.f32 %v1377, %v1915
      %v1945 = vmul.f32 %v1628, %v1915
      %v1946 = vmul.f32 %v1906, %v1915
      %v1947 = vmul.f32 %v1379, %v1915
      %v1948 = vmul.f32 %v1629, %v1915
      %v1949 = vmul.f32 %v1907, %v1915
      %v1950 = vmul.f32 %v1381, %v1915
      %v1951 = vmul.f32 %v1630, %v1915
      %v1952 = vmul.f32 %v1908, %v1915
      %v1953 = vmul.f32 %v1383, %v1915
      %v1954 = vmul.f32 %v1631, %v1915
      %v1955 = vmul.f32 %v1909, %v1915
      %v1956 = vmul.f32 %v1385, %v1915
      %v1957 = vmul.f32 %v1632, %v1915
      %v1958 = vmul.f32 %v1910, %v1915
      %v1959 = vmul.f32 %v1387, %v1915
      %v1960 = vmul.f32 %v1633, %v1915
      %v1961 = vmul.f32 %v1911, %v1915
      %v1962 = vmul.f32 %v1389, %v1915
      %v1963 = vmul.f32 %v1634, %v1915
      %v2012 = vrot.slane %v1916, 1
      %v2013 = vrot.slane %v1917, 1
      %v2014 = vsel %vm1735, %v2012, %v2013
      %v2015 = vrot.slane %v1918, 1
      %v2016 = vsel %vm1735, %v2013, %v2015
      %v2017 = vrot.slane %v1919, 1
      %v2018 = vrot.slane %v1920, 1
      %v2019 = vsel %vm1735, %v2017, %v2018
      %v2020 = vrot.slane %v1921, 1
      %v2021 = vsel %vm1735, %v2018, %v2020
      %v2022 = vrot.slane %v1922, 1
      %v2023 = vrot.slane %v1923, 1
      %v2024 = vsel %vm1735, %v2022, %v2023
      %v2025 = vrot.slane %v1924, 1
      %v2026 = vsel %vm1735, %v2023, %v2025
      %v2027 = vrot.slane %v1925, 1
      %v2028 = vrot.slane %v1926, 1
      %v2029 = vsel %vm1735, %v2027, %v2028
      %v2030 = vrot.slane %v1927, 1
      %v2031 = vsel %vm1735, %v2028, %v2030
      %v2032 = vrot.slane %v1928, 1
      %v2033 = vrot.slane %v1929, 1
      %v2034 = vsel %vm1735, %v2032, %v2033
      %v2035 = vrot.slane %v1930, 1
      %v2036 = vsel %vm1735, %v2033, %v2035
      %v2037 = vrot.slane %v1931, 1
      %v2038 = vrot.slane %v1932, 1
      %v2039 = vsel %vm1735, %v2037, %v2038
      %v2040 = vrot.slane %v1933, 1
      %v2041 = vsel %vm1735, %v2038, %v2040
      %v2042 = vrot.slane %v1934, 1
      %v2043 = vrot.slane %v1935, 1
      %v2044 = vsel %vm1735, %v2042, %v2043
      %v2045 = vrot.slane %v1936, 1
      %v2046 = vsel %vm1735, %v2043, %v2045
      %v2047 = vrot.slane %v1937, 1
      %v2048 = vrot.slane %v1938, 1
      %v2049 = vsel %vm1735, %v2047, %v2048
      %v2050 = vrot.slane %v1939, 1
      %v2051 = vsel %vm1735, %v2048, %v2050
      %v2052 = vrot.slane %v1940, 1
      %v2053 = vrot.slane %v1941, 1
      %v2054 = vsel %vm1735, %v2052, %v2053
      %v2055 = vrot.slane %v1942, 1
      %v2056 = vsel %vm1735, %v2053, %v2055
      %v2057 = vrot.slane %v1943, 1
      %v2058 = vrot.slane %v1944, 1
      %v2059 = vsel %vm1735, %v2057, %v2058
      %v2060 = vrot.slane %v1945, 1
      %v2061 = vsel %vm1735, %v2058, %v2060
      %v2062 = vrot.slane %v1946, 1
      %v2063 = vrot.slane %v1947, 1
      %v2064 = vsel %vm1735, %v2062, %v2063
      %v2065 = vrot.slane %v1948, 1
      %v2066 = vsel %vm1735, %v2063, %v2065
      %v2067 = vrot.slane %v1949, 1
      %v2068 = vrot.slane %v1950, 1
      %v2069 = vsel %vm1735, %v2067, %v2068
      %v2070 = vrot.slane %v1951, 1
      %v2071 = vsel %vm1735, %v2068, %v2070
      %v2072 = vrot.slane %v1952, 1
      %v2073 = vrot.slane %v1953, 1
      %v2074 = vsel %vm1735, %v2072, %v2073
      %v2075 = vrot.slane %v1954, 1
      %v2076 = vsel %vm1735, %v2073, %v2075
      %v2077 = vrot.slane %v1955, 1
      %v2078 = vrot.slane %v1956, 1
      %v2079 = vsel %vm1735, %v2077, %v2078
      %v2080 = vrot.slane %v1957, 1
      %v2081 = vsel %vm1735, %v2078, %v2080
      %v2082 = vrot.slane %v1958, 1
      %v2083 = vrot.slane %v1959, 1
      %v2084 = vsel %vm1735, %v2082, %v2083
      %v2085 = vrot.slane %v1960, 1
      %v2086 = vsel %vm1735, %v2083, %v2085
      %v2087 = vrot.slane %v1961, 1
      %v2088 = vrot.slane %v1962, 1
      %v2089 = vsel %vm1735, %v2087, %v2088
      %v2090 = vrot.slane %v1963, 1
      %v2091 = vsel %vm1735, %v2088, %v2090
      %v2140 = vadd.f32 %v1555, %v2014
      %v2141 = vadd.f32 %v1556, %v2016
      %v2142 = vadd.f32 %v1557, %v2015
      %v2143 = vadd.f32 %v1558, %v2019
      %v2144 = vadd.f32 %v1559, %v2021
      %v2145 = vadd.f32 %v1560, %v2020
      %v2146 = vadd.f32 %v1561, %v2024
      %v2147 = vadd.f32 %v1562, %v2026
      %v2148 = vadd.f32 %v1563, %v2025
      %v2149 = vadd.f32 %v1564, %v2029
      %v2150 = vadd.f32 %v1565, %v2031
      %v2151 = vadd.f32 %v1566, %v2030
      %v2152 = vadd.f32 %v1567, %v2034
      %v2153 = vadd.f32 %v1568, %v2036
      %v2154 = vadd.f32 %v1569, %v2035
      %v2155 = vadd.f32 %v1570, %v2039
      %v2156 = vadd.f32 %v1571, %v2041
      %v2157 = vadd.f32 %v1572, %v2040
      %v2158 = vadd.f32 %v1573, %v2044
      %v2159 = vadd.f32 %v1574, %v2046
      %v2160 = vadd.f32 %v1575, %v2045
      %v2161 = vadd.f32 %v1576, %v2049
      %v2162 = vadd.f32 %v1577, %v2051
      %v2163 = vadd.f32 %v1578, %v2050
      %v2164 = vadd.f32 %v1579, %v2054
      %v2165 = vadd.f32 %v1580, %v2056
      %v2166 = vadd.f32 %v1581, %v2055
      %v2167 = vadd.f32 %v1582, %v2059
      %v2168 = vadd.f32 %v1583, %v2061
      %v2169 = vadd.f32 %v1584, %v2060
      %v2170 = vadd.f32 %v1585, %v2064
      %v2171 = vadd.f32 %v1586, %v2066
      %v2172 = vadd.f32 %v1587, %v2065
      %v2173 = vadd.f32 %v1588, %v2069
      %v2174 = vadd.f32 %v1589, %v2071
      %v2175 = vadd.f32 %v1590, %v2070
      %v2176 = vadd.f32 %v1591, %v2074
      %v2177 = vadd.f32 %v1592, %v2076
      %v2178 = vadd.f32 %v1593, %v2075
      %v2179 = vadd.f32 %v1594, %v2079
      %v2180 = vadd.f32 %v1595, %v2081
      %v2181 = vadd.f32 %v1596, %v2080
      %v2182 = vadd.f32 %v1597, %v2084
      %v2183 = vadd.f32 %v1598, %v2086
      %v2184 = vadd.f32 %v1599, %v2085
      %v2185 = vadd.f32 %v1600, %v2089
      %v2186 = vadd.f32 %v1601, %v2091
      %v2187 = vadd.f32 %v1602, %v2090
      %v2188 = vld [vmem:[%s1325 + $0x8] sm:$0x3]
      %v2189 = vld [vmem:[%s1325 + $0x14] sm:$0x3]
      %v2190 = vld [vmem:[%s1325 + $0x20] sm:$0x3]
      %v2191 = vld [vmem:[%s1325 + $0x2c] sm:$0x3]
      %v2192 = vld [vmem:[%s1325 + $0x38] sm:$0x3]
      %v2193 = vld [vmem:[%s1325 + $0x44] sm:$0x3]
      %v2194 = vld [vmem:[%s1325 + $0x50] sm:$0x3]
      %v2195 = vld [vmem:[%s1325 + $0x5c] sm:$0x3]
      %v2196 = vld [vmem:[%s1325 + $0x68] sm:$0x3]
      %v2197 = vld [vmem:[%s1325 + $0x74] sm:$0x3]
      %v2198 = vld [vmem:[%s1325 + $0x80] sm:$0x3]
      %v2199 = vld [vmem:[%s1325 + $0x8c] sm:$0x3]
      %v2200 = vld [vmem:[%s1325 + $0x98] sm:$0x3]
      %v2201 = vld [vmem:[%s1325 + $0xa4] sm:$0x3]
      %v2202 = vld [vmem:[%s1325 + $0xb0] sm:$0x3]
      %v2203 = vld [vmem:[%s1325 + $0xbc] sm:$0x3]
      %v2204 = vunpack.c.l.bf16 %v2188
      %v2205 = vunpack.c.l.bf16 %v2189
      %v2206 = vunpack.c.l.bf16 %v2190
      %v2207 = vunpack.c.l.bf16 %v2191
      %v2208 = vunpack.c.l.bf16 %v2192
      %v2209 = vunpack.c.l.bf16 %v2193
      %v2210 = vunpack.c.l.bf16 %v2194
      %v2211 = vunpack.c.l.bf16 %v2195
      %v2212 = vunpack.c.l.bf16 %v2196
      %v2213 = vunpack.c.l.bf16 %v2197
      %v2214 = vunpack.c.l.bf16 %v2198
      %v2215 = vunpack.c.l.bf16 %v2199
      %v2216 = vunpack.c.l.bf16 %v2200
      %v2217 = vunpack.c.l.bf16 %v2201
      %v2218 = vunpack.c.l.bf16 %v2202
      %v2219 = vunpack.c.l.bf16 %v2203
      %v2220 = vlaneseq
      %v2221 = vshrl.u32 %v2220, 7
      %v2222 = vsub.s32 3, %v2221
      %v2223 = vrot.slane %v275, %v2222
      %v2224 = vmul.f32 %v1896, %v2223
      %v2225 = vmul.f32 %v1359, %v2223
      %v2226 = vmul.f32 %v2204, %v2223
      %v2227 = vmul.f32 %v1897, %v2223
      %v2228 = vmul.f32 %v1361, %v2223
      %v2229 = vmul.f32 %v2205, %v2223
      %v2230 = vmul.f32 %v1898, %v2223
      %v2231 = vmul.f32 %v1363, %v2223
      %v2232 = vmul.f32 %v2206, %v2223
      %v2233 = vmul.f32 %v1899, %v2223
      %v2234 = vmul.f32 %v1365, %v2223
      %v2235 = vmul.f32 %v2207, %v2223
      %v2236 = vmul.f32 %v1900, %v2223
      %v2237 = vmul.f32 %v1367, %v2223
      %v2238 = vmul.f32 %v2208, %v2223
      %v2239 = vmul.f32 %v1901, %v2223
      %v2240 = vmul.f32 %v1369, %v2223
      %v2241 = vmul.f32 %v2209, %v2223
      %v2242 = vmul.f32 %v1902, %v2223
      %v2243 = vmul.f32 %v1371, %v2223
      %v2244 = vmul.f32 %v2210, %v2223
      %v2245 = vmul.f32 %v1903, %v2223
      %v2246 = vmul.f32 %v1373, %v2223
      %v2247 = vmul.f32 %v2211, %v2223
      %v2248 = vmul.f32 %v1904, %v2223
      %v2249 = vmul.f32 %v1375, %v2223
      %v2250 = vmul.f32 %v2212, %v2223
      %v2251 = vmul.f32 %v1905, %v2223
      %v2252 = vmul.f32 %v1377, %v2223
      %v2253 = vmul.f32 %v2213, %v2223
      %v2254 = vmul.f32 %v1906, %v2223
      %v2255 = vmul.f32 %v1379, %v2223
      %v2256 = vmul.f32 %v2214, %v2223
      %v2257 = vmul.f32 %v1907, %v2223
      %v2258 = vmul.f32 %v1381, %v2223
      %v2259 = vmul.f32 %v2215, %v2223
      %v2260 = vmul.f32 %v1908, %v2223
      %v2261 = vmul.f32 %v1383, %v2223
      %v2262 = vmul.f32 %v2216, %v2223
      %v2263 = vmul.f32 %v1909, %v2223
      %v2264 = vmul.f32 %v1385, %v2223
      %v2265 = vmul.f32 %v2217, %v2223
      %v2266 = vmul.f32 %v1910, %v2223
      %v2267 = vmul.f32 %v1387, %v2223
      %v2268 = vmul.f32 %v2218, %v2223
      %v2269 = vmul.f32 %v1911, %v2223
      %v2270 = vmul.f32 %v1389, %v2223
      %v2271 = vmul.f32 %v2219, %v2223
      %vm2320 = vcmask 1044480
      %v2321 = vrot.slane %v2224, 3
      %v2322 = vrot.slane %v2225, 3
      %v2323 = vsel %vm2320, %v2321, %v2322
      %v2324 = vrot.slane %v2226, 3
      %v2325 = vsel %vm2320, %v2322, %v2324
      %v2326 = vrot.slane %v2227, 3
      %v2327 = vrot.slane %v2228, 3
      %v2328 = vsel %vm2320, %v2326, %v2327
      %v2329 = vrot.slane %v2229, 3
      %v2330 = vsel %vm2320, %v2327, %v2329
      %v2331 = vrot.slane %v2230, 3
      %v2332 = vrot.slane %v2231, 3
      %v2333 = vsel %vm2320, %v2331, %v2332
      %v2334 = vrot.slane %v2232, 3
      %v2335 = vsel %vm2320, %v2332, %v2334
      %v2336 = vrot.slane %v2233, 3
      %v2337 = vrot.slane %v2234, 3
      %v2338 = vsel %vm2320, %v2336, %v2337
      %v2339 = vrot.slane %v2235, 3
      %v2340 = vsel %vm2320, %v2337, %v2339
      %v2341 = vrot.slane %v2236, 3
      %v2342 = vrot.slane %v2237, 3
      %v2343 = vsel %vm2320, %v2341, %v2342
      %v2344 = vrot.slane %v2238, 3
      %v2345 = vsel %vm2320, %v2342, %v2344
      %v2346 = vrot.slane %v2239, 3
      %v2347 = vrot.slane %v2240, 3
      %v2348 = vsel %vm2320, %v2346, %v2347
      %v2349 = vrot.slane %v2241, 3
      %v2350 = vsel %vm2320, %v2347, %v2349
      %v2351 = vrot.slane %v2242, 3
      %v2352 = vrot.slane %v2243, 3
      %v2353 = vsel %vm2320, %v2351, %v2352
      %v2354 = vrot.slane %v2244, 3
      %v2355 = vsel %vm2320, %v2352, %v2354
      %v2356 = vrot.slane %v2245, 3
      %v2357 = vrot.slane %v2246, 3
      %v2358 = vsel %vm2320, %v2356, %v2357
      %v2359 = vrot.slane %v2247, 3
      %v2360 = vsel %vm2320, %v2357, %v2359
      %v2361 = vrot.slane %v2248, 3
      %v2362 = vrot.slane %v2249, 3
      %v2363 = vsel %vm2320, %v2361, %v2362
      %v2364 = vrot.slane %v2250, 3
      %v2365 = vsel %vm2320, %v2362, %v2364
      %v2366 = vrot.slane %v2251, 3
      %v2367 = vrot.slane %v2252, 3
      %v2368 = vsel %vm2320, %v2366, %v2367
      %v2369 = vrot.slane %v2253, 3
      %v2370 = vsel %vm2320, %v2367, %v2369
      %v2371 = vrot.slane %v2254, 3
      %v2372 = vrot.slane %v2255, 3
      %v2373 = vsel %vm2320, %v2371, %v2372
      %v2374 = vrot.slane %v2256, 3
      %v2375 = vsel %vm2320, %v2372, %v2374
      %v2376 = vrot.slane %v2257, 3
      %v2377 = vrot.slane %v2258, 3
      %v2378 = vsel %vm2320, %v2376, %v2377
      %v2379 = vrot.slane %v2259, 3
      %v2380 = vsel %vm2320, %v2377, %v2379
      %v2381 = vrot.slane %v2260, 3
      %v2382 = vrot.slane %v2261, 3
      %v2383 = vsel %vm2320, %v2381, %v2382
      %v2384 = vrot.slane %v2262, 3
      %v2385 = vsel %vm2320, %v2382, %v2384
      %v2386 = vrot.slane %v2263, 3
      %v2387 = vrot.slane %v2264, 3
      %v2388 = vsel %vm2320, %v2386, %v2387
      %v2389 = vrot.slane %v2265, 3
      %v2390 = vsel %vm2320, %v2387, %v2389
      %v2391 = vrot.slane %v2266, 3
      %v2392 = vrot.slane %v2267, 3
      %v2393 = vsel %vm2320, %v2391, %v2392
      %v2394 = vrot.slane %v2268, 3
      %v2395 = vsel %vm2320, %v2392, %v2394
      %v2396 = vrot.slane %v2269, 3
      %v2397 = vrot.slane %v2270, 3
      %v2398 = vsel %vm2320, %v2396, %v2397
      %v2399 = vrot.slane %v2271, 3
      %v2400 = vsel %vm2320, %v2397, %v2399
      %v2433 = vadd.f32 %v1848, %v2323
      %v2434 = vadd.f32 %v1849, %v2325
      %v2435 = vadd.f32 %v1850, %v2328
      %v2436 = vadd.f32 %v1851, %v2330
      %v2437 = vadd.f32 %v1852, %v2333
      %v2438 = vadd.f32 %v1853, %v2335
      %v2439 = vadd.f32 %v1854, %v2338
      %v2440 = vadd.f32 %v1855, %v2340
      %v2441 = vadd.f32 %v1856, %v2343
      %v2442 = vadd.f32 %v1857, %v2345
      %v2443 = vadd.f32 %v1858, %v2348
      %v2444 = vadd.f32 %v1859, %v2350
      %v2445 = vadd.f32 %v1860, %v2353
      %v2446 = vadd.f32 %v1861, %v2355
      %v2447 = vadd.f32 %v1862, %v2358
      %v2448 = vadd.f32 %v1863, %v2360
      %v2449 = vadd.f32 %v1864, %v2363
      %v2450 = vadd.f32 %v1865, %v2365
      %v2451 = vadd.f32 %v1866, %v2368
      %v2452 = vadd.f32 %v1867, %v2370
      %v2453 = vadd.f32 %v1868, %v2373
      %v2454 = vadd.f32 %v1869, %v2375
      %v2455 = vadd.f32 %v1870, %v2378
      %v2456 = vadd.f32 %v1871, %v2380
      %v2457 = vadd.f32 %v1872, %v2383
      %v2458 = vadd.f32 %v1873, %v2385
      %v2459 = vadd.f32 %v1874, %v2388
      %v2460 = vadd.f32 %v1875, %v2390
      %v2461 = vadd.f32 %v1876, %v2393
      %v2462 = vadd.f32 %v1877, %v2395
      %v2463 = vadd.f32 %v1878, %v2398
      %v2464 = vadd.f32 %v1879, %v2400
      %v2465 = vld [vmem:[%s1325] sm:$0xc]
      %v2466 = vld [vmem:[%s1325 + $0xc] sm:$0xc]
      %v2467 = vld [vmem:[%s1325 + $0x18] sm:$0xc]
      %v2468 = vld [vmem:[%s1325 + $0x24] sm:$0xc]
      %v2469 = vld [vmem:[%s1325 + $0x30] sm:$0xc]
      %v2470 = vld [vmem:[%s1325 + $0x3c] sm:$0xc]
      %v2471 = vld [vmem:[%s1325 + $0x48] sm:$0xc]
      %v2472 = vld [vmem:[%s1325 + $0x54] sm:$0xc]
      %v2473 = vld [vmem:[%s1325 + $0x60] sm:$0xc]
      %v2474 = vld [vmem:[%s1325 + $0x6c] sm:$0xc]
      %v2475 = vld [vmem:[%s1325 + $0x78] sm:$0xc]
      %v2476 = vld [vmem:[%s1325 + $0x84] sm:$0xc]
      %v2477 = vld [vmem:[%s1325 + $0x90] sm:$0xc]
      %v2478 = vld [vmem:[%s1325 + $0x9c] sm:$0xc]
      %v2479 = vld [vmem:[%s1325 + $0xa8] sm:$0xc]
      %v2480 = vld [vmem:[%s1325 + $0xb4] sm:$0xc]
      %v2481 = vunpack.c.l.bf16 %v2465
      %v2482 = vunpack.c.l.bf16 %v2466
      %v2483 = vunpack.c.l.bf16 %v2467
      %v2484 = vunpack.c.l.bf16 %v2468
      %v2485 = vunpack.c.l.bf16 %v2469
      %v2486 = vunpack.c.l.bf16 %v2470
      %v2487 = vunpack.c.l.bf16 %v2471
      %v2488 = vunpack.c.l.bf16 %v2472
      %v2489 = vunpack.c.l.bf16 %v2473
      %v2490 = vunpack.c.l.bf16 %v2474
      %v2491 = vunpack.c.l.bf16 %v2475
      %v2492 = vunpack.c.l.bf16 %v2476
      %v2493 = vunpack.c.l.bf16 %v2477
      %v2494 = vunpack.c.l.bf16 %v2478
      %v2495 = vunpack.c.l.bf16 %v2479
      %v2496 = vunpack.c.l.bf16 %v2480
      %v2497 = vlaneseq
      %v2498 = vshrl.u32 %v2497, 7
      %v2499 = vsub.s32 4, %v2498
      %v2500 = vrot.slane %v275, %v2499
      %v2501 = vmul.f32 %v2481, %v2500
      %v2502 = vmul.f32 %v1359, %v2500
      %v2503 = vmul.f32 %v2204, %v2500
      %v2504 = vmul.f32 %v2482, %v2500
      %v2505 = vmul.f32 %v1361, %v2500
      %v2506 = vmul.f32 %v2205, %v2500
      %v2507 = vmul.f32 %v2483, %v2500
      %v2508 = vmul.f32 %v1363, %v2500
      %v2509 = vmul.f32 %v2206, %v2500
      %v2510 = vmul.f32 %v2484, %v2500
      %v2511 = vmul.f32 %v1365, %v2500
      %v2512 = vmul.f32 %v2207, %v2500
      %v2513 = vmul.f32 %v2485, %v2500
      %v2514 = vmul.f32 %v1367, %v2500
      %v2515 = vmul.f32 %v2208, %v2500
      %v2516 = vmul.f32 %v2486, %v2500
      %v2517 = vmul.f32 %v1369, %v2500
      %v2518 = vmul.f32 %v2209, %v2500
      %v2519 = vmul.f32 %v2487, %v2500
      %v2520 = vmul.f32 %v1371, %v2500
      %v2521 = vmul.f32 %v2210, %v2500
      %v2522 = vmul.f32 %v2488, %v2500
      %v2523 = vmul.f32 %v1373, %v2500
      %v2524 = vmul.f32 %v2211, %v2500
      %v2525 = vmul.f32 %v2489, %v2500
      %v2526 = vmul.f32 %v1375, %v2500
      %v2527 = vmul.f32 %v2212, %v2500
      %v2528 = vmul.f32 %v2490, %v2500
      %v2529 = vmul.f32 %v1377, %v2500
      %v2530 = vmul.f32 %v2213, %v2500
      %v2531 = vmul.f32 %v2491, %v2500
      %v2532 = vmul.f32 %v1379, %v2500
      %v2533 = vmul.f32 %v2214, %v2500
      %v2534 = vmul.f32 %v2492, %v2500
      %v2535 = vmul.f32 %v1381, %v2500
      %v2536 = vmul.f32 %v2215, %v2500
      %v2537 = vmul.f32 %v2493, %v2500
      %v2538 = vmul.f32 %v1383, %v2500
      %v2539 = vmul.f32 %v2216, %v2500
      %v2540 = vmul.f32 %v2494, %v2500
      %v2541 = vmul.f32 %v1385, %v2500
      %v2542 = vmul.f32 %v2217, %v2500
      %v2543 = vmul.f32 %v2495, %v2500
      %v2544 = vmul.f32 %v1387, %v2500
      %v2545 = vmul.f32 %v2218, %v2500
      %v2546 = vmul.f32 %v2496, %v2500
      %v2547 = vmul.f32 %v1389, %v2500
      %v2548 = vmul.f32 %v2219, %v2500
      %v2597 = vrot.slane %v2501, 3
      %v2598 = vrot.slane %v2502, 3
      %v2599 = vsel %vm2320, %v2597, %v2598
      %v2600 = vrot.slane %v2503, 3
      %v2601 = vsel %vm2320, %v2598, %v2600
      %v2602 = vrot.slane %v2504, 3
      %v2603 = vrot.slane %v2505, 3
      %v2604 = vsel %vm2320, %v2602, %v2603
      %v2605 = vrot.slane %v2506, 3
      %v2606 = vsel %vm2320, %v2603, %v2605
      %v2607 = vrot.slane %v2507, 3
      %v2608 = vrot.slane %v2508, 3
      %v2609 = vsel %vm2320, %v2607, %v2608
      %v2610 = vrot.slane %v2509, 3
      %v2611 = vsel %vm2320, %v2608, %v2610
      %v2612 = vrot.slane %v2510, 3
      %v2613 = vrot.slane %v2511, 3
      %v2614 = vsel %vm2320, %v2612, %v2613
      %v2615 = vrot.slane %v2512, 3
      %v2616 = vsel %vm2320, %v2613, %v2615
      %v2617 = vrot.slane %v2513, 3
      %v2618 = vrot.slane %v2514, 3
      %v2619 = vsel %vm2320, %v2617, %v2618
      %v2620 = vrot.slane %v2515, 3
      %v2621 = vsel %vm2320, %v2618, %v2620
      %v2622 = vrot.slane %v2516, 3
      %v2623 = vrot.slane %v2517, 3
      %v2624 = vsel %vm2320, %v2622, %v2623
      %v2625 = vrot.slane %v2518, 3
      %v2626 = vsel %vm2320, %v2623, %v2625
      %v2627 = vrot.slane %v2519, 3
      %v2628 = vrot.slane %v2520, 3
      %v2629 = vsel %vm2320, %v2627, %v2628
      %v2630 = vrot.slane %v2521, 3
      %v2631 = vsel %vm2320, %v2628, %v2630
      %v2632 = vrot.slane %v2522, 3
      %v2633 = vrot.slane %v2523, 3
      %v2634 = vsel %vm2320, %v2632, %v2633
      %v2635 = vrot.slane %v2524, 3
      %v2636 = vsel %vm2320, %v2633, %v2635
      %v2637 = vrot.slane %v2525, 3
      %v2638 = vrot.slane %v2526, 3
      %v2639 = vsel %vm2320, %v2637, %v2638
      %v2640 = vrot.slane %v2527, 3
      %v2641 = vsel %vm2320, %v2638, %v2640
      %v2642 = vrot.slane %v2528, 3
      %v2643 = vrot.slane %v2529, 3
      %v2644 = vsel %vm2320, %v2642, %v2643
      %v2645 = vrot.slane %v2530, 3
      %v2646 = vsel %vm2320, %v2643, %v2645
      %v2647 = vrot.slane %v2531, 3
      %v2648 = vrot.slane %v2532, 3
      %v2649 = vsel %vm2320, %v2647, %v2648
      %v2650 = vrot.slane %v2533, 3
      %v2651 = vsel %vm2320, %v2648, %v2650
      %v2652 = vrot.slane %v2534, 3
      %v2653 = vrot.slane %v2535, 3
      %v2654 = vsel %vm2320, %v2652, %v2653
      %v2655 = vrot.slane %v2536, 3
      %v2656 = vsel %vm2320, %v2653, %v2655
      %v2657 = vrot.slane %v2537, 3
      %v2658 = vrot.slane %v2538, 3
      %v2659 = vsel %vm2320, %v2657, %v2658
      %v2660 = vrot.slane %v2539, 3
      %v2661 = vsel %vm2320, %v2658, %v2660
      %v2662 = vrot.slane %v2540, 3
      %v2663 = vrot.slane %v2541, 3
      %v2664 = vsel %vm2320, %v2662, %v2663
      %v2665 = vrot.slane %v2542, 3
      %v2666 = vsel %vm2320, %v2663, %v2665
      %v2667 = vrot.slane %v2543, 3
      %v2668 = vrot.slane %v2544, 3
      %v2669 = vsel %vm2320, %v2667, %v2668
      %v2670 = vrot.slane %v2545, 3
      %v2671 = vsel %vm2320, %v2668, %v2670
      %v2672 = vrot.slane %v2546, 3
      %v2673 = vrot.slane %v2547, 3
      %v2674 = vsel %vm2320, %v2672, %v2673
      %v2675 = vrot.slane %v2548, 3
      %v2676 = vsel %vm2320, %v2673, %v2675
      %v2725 = vadd.f32 %v2140, %v2599
      %v2726 = vadd.f32 %v2141, %v2601
      %v2727 = vadd.f32 %v2142, %v2600
      %v2728 = vadd.f32 %v2143, %v2604
      %v2729 = vadd.f32 %v2144, %v2606
      %v2730 = vadd.f32 %v2145, %v2605
      %v2731 = vadd.f32 %v2146, %v2609
      %v2732 = vadd.f32 %v2147, %v2611
      %v2733 = vadd.f32 %v2148, %v2610
      %v2734 = vadd.f32 %v2149, %v2614
      %v2735 = vadd.f32 %v2150, %v2616
      %v2736 = vadd.f32 %v2151, %v2615
      %v2737 = vadd.f32 %v2152, %v2619
      %v2738 = vadd.f32 %v2153, %v2621
      %v2739 = vadd.f32 %v2154, %v2620
      %v2740 = vadd.f32 %v2155, %v2624
      %v2741 = vadd.f32 %v2156, %v2626
      %v2742 = vadd.f32 %v2157, %v2625
      %v2743 = vadd.f32 %v2158, %v2629
      %v2744 = vadd.f32 %v2159, %v2631
      %v2745 = vadd.f32 %v2160, %v2630
      %v2746 = vadd.f32 %v2161, %v2634
      %v2747 = vadd.f32 %v2162, %v2636
      %v2748 = vadd.f32 %v2163, %v2635
      %v2749 = vadd.f32 %v2164, %v2639
      %v2750 = vadd.f32 %v2165, %v2641
      %v2751 = vadd.f32 %v2166, %v2640
      %v2752 = vadd.f32 %v2167, %v2644
      %v2753 = vadd.f32 %v2168, %v2646
      %v2754 = vadd.f32 %v2169, %v2645
      %v2755 = vadd.f32 %v2170, %v2649
      %v2756 = vadd.f32 %v2171, %v2651
      %v2757 = vadd.f32 %v2172, %v2650
      %v2758 = vadd.f32 %v2173, %v2654
      %v2759 = vadd.f32 %v2174, %v2656
      %v2760 = vadd.f32 %v2175, %v2655
      %v2761 = vadd.f32 %v2176, %v2659
      %v2762 = vadd.f32 %v2177, %v2661
      %v2763 = vadd.f32 %v2178, %v2660
      %v2764 = vadd.f32 %v2179, %v2664
      %v2765 = vadd.f32 %v2180, %v2666
      %v2766 = vadd.f32 %v2181, %v2665
      %v2767 = vadd.f32 %v2182, %v2669
      %v2768 = vadd.f32 %v2183, %v2671
      %v2769 = vadd.f32 %v2184, %v2670
      %v2770 = vadd.f32 %v2185, %v2674
      %v2771 = vadd.f32 %v2186, %v2676
      %v2772 = vadd.f32 %v2187, %v2675
      %s2773 = scalar_lea.vmem %s255, 24
      %v2774 = vld [vmem:[%s2773] sm:$0xf]
      %v2775 = vld [vmem:[%s2773 + $0x4] sm:$0xf]
      %v2776 = vld [vmem:[%s2773 + $0xc] sm:$0xf]
      %v2777 = vld [vmem:[%s2773 + $0x10] sm:$0xf]
      %v2778 = vld [vmem:[%s2773 + $0x18] sm:$0xf]
      %v2779 = vld [vmem:[%s2773 + $0x1c] sm:$0xf]
      %v2780 = vld [vmem:[%s2773 + $0x24] sm:$0xf]
      %v2781 = vld [vmem:[%s2773 + $0x28] sm:$0xf]
      %v2782 = vld [vmem:[%s2773 + $0x30] sm:$0xf]
      %v2783 = vld [vmem:[%s2773 + $0x34] sm:$0xf]
      %v2784 = vld [vmem:[%s2773 + $0x3c] sm:$0xf]
      %v2785 = vld [vmem:[%s2773 + $0x40] sm:$0xf]
      %v2786 = vld [vmem:[%s2773 + $0x48] sm:$0xf]
      %v2787 = vld [vmem:[%s2773 + $0x4c] sm:$0xf]
      %v2788 = vld [vmem:[%s2773 + $0x54] sm:$0xf]
      %v2789 = vld [vmem:[%s2773 + $0x58] sm:$0xf]
      %v2790 = vld [vmem:[%s2773 + $0x60] sm:$0xf]
      %v2791 = vld [vmem:[%s2773 + $0x64] sm:$0xf]
      %v2792 = vld [vmem:[%s2773 + $0x6c] sm:$0xf]
      %v2793 = vld [vmem:[%s2773 + $0x70] sm:$0xf]
      %v2794 = vld [vmem:[%s2773 + $0x78] sm:$0xf]
      %v2795 = vld [vmem:[%s2773 + $0x7c] sm:$0xf]
      %v2796 = vld [vmem:[%s2773 + $0x84] sm:$0xf]
      %v2797 = vld [vmem:[%s2773 + $0x88] sm:$0xf]
      %v2798 = vld [vmem:[%s2773 + $0x90] sm:$0xf]
      %v2799 = vld [vmem:[%s2773 + $0x94] sm:$0xf]
      %v2800 = vld [vmem:[%s2773 + $0x9c] sm:$0xf]
      %v2801 = vld [vmem:[%s2773 + $0xa0] sm:$0xf]
      %v2802 = vld [vmem:[%s2773 + $0xa8] sm:$0xf]
      %v2803 = vld [vmem:[%s2773 + $0xac] sm:$0xf]
      %v2804 = vld [vmem:[%s2773 + $0xb4] sm:$0xf]
      %v2805 = vld [vmem:[%s2773 + $0xb8] sm:$0xf]
      %v2806 = vunpack.c.l.bf16 %v2774
      %v2807 = vunpack.c.l.bf16 %v2775
      %v2808 = vunpack.c.l.bf16 %v2776
      %v2809 = vunpack.c.l.bf16 %v2777
      %v2810 = vunpack.c.l.bf16 %v2778
      %v2811 = vunpack.c.l.bf16 %v2779
      %v2812 = vunpack.c.l.bf16 %v2780
      %v2813 = vunpack.c.l.bf16 %v2781
      %v2814 = vunpack.c.l.bf16 %v2782
      %v2815 = vunpack.c.l.bf16 %v2783
      %v2816 = vunpack.c.l.bf16 %v2784
      %v2817 = vunpack.c.l.bf16 %v2785
      %v2818 = vunpack.c.l.bf16 %v2786
      %v2819 = vunpack.c.l.bf16 %v2787
      %v2820 = vunpack.c.l.bf16 %v2788
      %v2821 = vunpack.c.l.bf16 %v2789
      %v2822 = vunpack.c.l.bf16 %v2790
      %v2823 = vunpack.c.l.bf16 %v2791
      %v2824 = vunpack.c.l.bf16 %v2792
      %v2825 = vunpack.c.l.bf16 %v2793
      %v2826 = vunpack.c.l.bf16 %v2794
      %v2827 = vunpack.c.l.bf16 %v2795
      %v2828 = vunpack.c.l.bf16 %v2796
      %v2829 = vunpack.c.l.bf16 %v2797
      %v2830 = vunpack.c.l.bf16 %v2798
      %v2831 = vunpack.c.l.bf16 %v2799
      %v2832 = vunpack.c.l.bf16 %v2800
      %v2833 = vunpack.c.l.bf16 %v2801
      %v2834 = vunpack.c.l.bf16 %v2802
      %v2835 = vunpack.c.l.bf16 %v2803
      %v2836 = vunpack.c.l.bf16 %v2804
      %v2837 = vunpack.c.l.bf16 %v2805
      %v2838 = vlaneseq
      %v2839 = vshrl.u32 %v2838, 7
      %v2840 = vsub.s32 0, %v2839
      %v2841 = vrot.slane %v276, %v2840
      %v2842 = vmul.f32 %v2806, %v2841
      %v2843 = vmul.f32 %v2807, %v2841
      %v2844 = vmul.f32 %v2808, %v2841
      %v2845 = vmul.f32 %v2809, %v2841
      %v2846 = vmul.f32 %v2810, %v2841
      %v2847 = vmul.f32 %v2811, %v2841
      %v2848 = vmul.f32 %v2812, %v2841
      %v2849 = vmul.f32 %v2813, %v2841
      %v2850 = vmul.f32 %v2814, %v2841
      %v2851 = vmul.f32 %v2815, %v2841
      %v2852 = vmul.f32 %v2816, %v2841
      %v2853 = vmul.f32 %v2817, %v2841
      %v2854 = vmul.f32 %v2818, %v2841
      %v2855 = vmul.f32 %v2819, %v2841
      %v2856 = vmul.f32 %v2820, %v2841
      %v2857 = vmul.f32 %v2821, %v2841
      %v2858 = vmul.f32 %v2822, %v2841
      %v2859 = vmul.f32 %v2823, %v2841
      %v2860 = vmul.f32 %v2824, %v2841
      %v2861 = vmul.f32 %v2825, %v2841
      %v2862 = vmul.f32 %v2826, %v2841
      %v2863 = vmul.f32 %v2827, %v2841
      %v2864 = vmul.f32 %v2828, %v2841
      %v2865 = vmul.f32 %v2829, %v2841
      %v2866 = vmul.f32 %v2830, %v2841
      %v2867 = vmul.f32 %v2831, %v2841
      %v2868 = vmul.f32 %v2832, %v2841
      %v2869 = vmul.f32 %v2833, %v2841
      %v2870 = vmul.f32 %v2834, %v2841
      %v2871 = vmul.f32 %v2835, %v2841
      %v2872 = vmul.f32 %v2836, %v2841
      %v2873 = vmul.f32 %v2837, %v2841
      %v2874 = vadd.f32 %v2433, %v2842
      %v2875 = vadd.f32 %v2434, %v2843
      %v2876 = vadd.f32 %v2435, %v2844
      %v2877 = vadd.f32 %v2436, %v2845
      %v2878 = vadd.f32 %v2437, %v2846
      %v2879 = vadd.f32 %v2438, %v2847
      %v2880 = vadd.f32 %v2439, %v2848
      %v2881 = vadd.f32 %v2440, %v2849
      %v2882 = vadd.f32 %v2441, %v2850
      %v2883 = vadd.f32 %v2442, %v2851
      %v2884 = vadd.f32 %v2443, %v2852
      %v2885 = vadd.f32 %v2444, %v2853
      %v2886 = vadd.f32 %v2445, %v2854
      %v2887 = vadd.f32 %v2446, %v2855
      %v2888 = vadd.f32 %v2447, %v2856
      %v2889 = vadd.f32 %v2448, %v2857
      %v2890 = vadd.f32 %v2449, %v2858
      %v2891 = vadd.f32 %v2450, %v2859
      %v2892 = vadd.f32 %v2451, %v2860
      %v2893 = vadd.f32 %v2452, %v2861
      %v2894 = vadd.f32 %v2453, %v2862
      %v2895 = vadd.f32 %v2454, %v2863
      %v2896 = vadd.f32 %v2455, %v2864
      %v2897 = vadd.f32 %v2456, %v2865
      %v2898 = vadd.f32 %v2457, %v2866
      %v2899 = vadd.f32 %v2458, %v2867
      %v2900 = vadd.f32 %v2459, %v2868
      %v2901 = vadd.f32 %v2460, %v2869
      %v2902 = vadd.f32 %v2461, %v2870
      %v2903 = vadd.f32 %v2462, %v2871
      %v2904 = vadd.f32 %v2463, %v2872
      %v2905 = vadd.f32 %v2464, %v2873
      %v2906 = vld [vmem:[%s2773 + $0x8] sm:$0x1]
      %v2907 = vld [vmem:[%s2773 + $0x14] sm:$0x1]
      %v2908 = vld [vmem:[%s2773 + $0x20] sm:$0x1]
      %v2909 = vld [vmem:[%s2773 + $0x2c] sm:$0x1]
      %v2910 = vld [vmem:[%s2773 + $0x38] sm:$0x1]
      %v2911 = vld [vmem:[%s2773 + $0x44] sm:$0x1]
      %v2912 = vld [vmem:[%s2773 + $0x50] sm:$0x1]
      %v2913 = vld [vmem:[%s2773 + $0x5c] sm:$0x1]
      %v2914 = vld [vmem:[%s2773 + $0x68] sm:$0x1]
      %v2915 = vld [vmem:[%s2773 + $0x74] sm:$0x1]
      %v2916 = vld [vmem:[%s2773 + $0x80] sm:$0x1]
      %v2917 = vld [vmem:[%s2773 + $0x8c] sm:$0x1]
      %v2918 = vld [vmem:[%s2773 + $0x98] sm:$0x1]
      %v2919 = vld [vmem:[%s2773 + $0xa4] sm:$0x1]
      %v2920 = vld [vmem:[%s2773 + $0xb0] sm:$0x1]
      %v2921 = vld [vmem:[%s2773 + $0xbc] sm:$0x1]
      %v2922 = vunpack.c.l.bf16 %v2906
      %v2923 = vunpack.c.l.bf16 %v2907
      %v2924 = vunpack.c.l.bf16 %v2908
      %v2925 = vunpack.c.l.bf16 %v2909
      %v2926 = vunpack.c.l.bf16 %v2910
      %v2927 = vunpack.c.l.bf16 %v2911
      %v2928 = vunpack.c.l.bf16 %v2912
      %v2929 = vunpack.c.l.bf16 %v2913
      %v2930 = vunpack.c.l.bf16 %v2914
      %v2931 = vunpack.c.l.bf16 %v2915
      %v2932 = vunpack.c.l.bf16 %v2916
      %v2933 = vunpack.c.l.bf16 %v2917
      %v2934 = vunpack.c.l.bf16 %v2918
      %v2935 = vunpack.c.l.bf16 %v2919
      %v2936 = vunpack.c.l.bf16 %v2920
      %v2937 = vunpack.c.l.bf16 %v2921
      %v2938 = vlaneseq
      %v2939 = vshrl.u32 %v2938, 7
      %v2940 = vsub.s32 1, %v2939
      %v2941 = vrot.slane %v276, %v2940
      %v2942 = vmul.f32 %v2806, %v2941
      %v2943 = vmul.f32 %v2807, %v2941
      %v2944 = vmul.f32 %v2922, %v2941
      %v2945 = vmul.f32 %v2808, %v2941
      %v2946 = vmul.f32 %v2809, %v2941
      %v2947 = vmul.f32 %v2923, %v2941
      %v2948 = vmul.f32 %v2810, %v2941
      %v2949 = vmul.f32 %v2811, %v2941
      %v2950 = vmul.f32 %v2924, %v2941
      %v2951 = vmul.f32 %v2812, %v2941
      %v2952 = vmul.f32 %v2813, %v2941
      %v2953 = vmul.f32 %v2925, %v2941
      %v2954 = vmul.f32 %v2814, %v2941
      %v2955 = vmul.f32 %v2815, %v2941
      %v2956 = vmul.f32 %v2926, %v2941
      %v2957 = vmul.f32 %v2816, %v2941
      %v2958 = vmul.f32 %v2817, %v2941
      %v2959 = vmul.f32 %v2927, %v2941
      %v2960 = vmul.f32 %v2818, %v2941
      %v2961 = vmul.f32 %v2819, %v2941
      %v2962 = vmul.f32 %v2928, %v2941
      %v2963 = vmul.f32 %v2820, %v2941
      %v2964 = vmul.f32 %v2821, %v2941
      %v2965 = vmul.f32 %v2929, %v2941
      %v2966 = vmul.f32 %v2822, %v2941
      %v2967 = vmul.f32 %v2823, %v2941
      %v2968 = vmul.f32 %v2930, %v2941
      %v2969 = vmul.f32 %v2824, %v2941
      %v2970 = vmul.f32 %v2825, %v2941
      %v2971 = vmul.f32 %v2931, %v2941
      %v2972 = vmul.f32 %v2826, %v2941
      %v2973 = vmul.f32 %v2827, %v2941
      %v2974 = vmul.f32 %v2932, %v2941
      %v2975 = vmul.f32 %v2828, %v2941
      %v2976 = vmul.f32 %v2829, %v2941
      %v2977 = vmul.f32 %v2933, %v2941
      %v2978 = vmul.f32 %v2830, %v2941
      %v2979 = vmul.f32 %v2831, %v2941
      %v2980 = vmul.f32 %v2934, %v2941
      %v2981 = vmul.f32 %v2832, %v2941
      %v2982 = vmul.f32 %v2833, %v2941
      %v2983 = vmul.f32 %v2935, %v2941
      %v2984 = vmul.f32 %v2834, %v2941
      %v2985 = vmul.f32 %v2835, %v2941
      %v2986 = vmul.f32 %v2936, %v2941
      %v2987 = vmul.f32 %v2836, %v2941
      %v2988 = vmul.f32 %v2837, %v2941
      %v2989 = vmul.f32 %v2937, %v2941
      %v2990 = vadd.f32 %v2725, %v2942
      %v2991 = vadd.f32 %v2726, %v2943
      %v2992 = vadd.f32 %v2727, %v2944
      %v2993 = vadd.f32 %v2728, %v2945
      %v2994 = vadd.f32 %v2729, %v2946
      %v2995 = vadd.f32 %v2730, %v2947
      %v2996 = vadd.f32 %v2731, %v2948
      %v2997 = vadd.f32 %v2732, %v2949
      %v2998 = vadd.f32 %v2733, %v2950
      %v2999 = vadd.f32 %v2734, %v2951
      %v3000 = vadd.f32 %v2735, %v2952
      %v3001 = vadd.f32 %v2736, %v2953
      %v3002 = vadd.f32 %v2737, %v2954
      %v3003 = vadd.f32 %v2738, %v2955
      %v3004 = vadd.f32 %v2739, %v2956
      %v3005 = vadd.f32 %v2740, %v2957
      %v3006 = vadd.f32 %v2741, %v2958
      %v3007 = vadd.f32 %v2742, %v2959
      %v3008 = vadd.f32 %v2743, %v2960
      %v3009 = vadd.f32 %v2744, %v2961
      %v3010 = vadd.f32 %v2745, %v2962
      %v3011 = vadd.f32 %v2746, %v2963
      %v3012 = vadd.f32 %v2747, %v2964
      %v3013 = vadd.f32 %v2748, %v2965
      %v3014 = vadd.f32 %v2749, %v2966
      %v3015 = vadd.f32 %v2750, %v2967
      %v3016 = vadd.f32 %v2751, %v2968
      %v3017 = vadd.f32 %v2752, %v2969
      %v3018 = vadd.f32 %v2753, %v2970
      %v3019 = vadd.f32 %v2754, %v2971
      %v3020 = vadd.f32 %v2755, %v2972
      %v3021 = vadd.f32 %v2756, %v2973
      %v3022 = vadd.f32 %v2757, %v2974
      %v3023 = vadd.f32 %v2758, %v2975
      %v3024 = vadd.f32 %v2759, %v2976
      %v3025 = vadd.f32 %v2760, %v2977
      %v3026 = vadd.f32 %v2761, %v2978
      %v3027 = vadd.f32 %v2762, %v2979
      %v3028 = vadd.f32 %v2763, %v2980
      %v3029 = vadd.f32 %v2764, %v2981
      %v3030 = vadd.f32 %v2765, %v2982
      %v3031 = vadd.f32 %v2766, %v2983
      %v3032 = vadd.f32 %v2767, %v2984
      %v3033 = vadd.f32 %v2768, %v2985
      %v3034 = vadd.f32 %v2769, %v2986
      %v3035 = vadd.f32 %v2770, %v2987
      %v3036 = vadd.f32 %v2771, %v2988
      %v3037 = vadd.f32 %v2772, %v2989
      %v3038 = vld [vmem:[%s2773] sm:$0xe]
      %v3039 = vld [vmem:[%s2773 + $0xc] sm:$0xe]
      %v3040 = vld [vmem:[%s2773 + $0x18] sm:$0xe]
      %v3041 = vld [vmem:[%s2773 + $0x24] sm:$0xe]
      %v3042 = vld [vmem:[%s2773 + $0x30] sm:$0xe]
      %v3043 = vld [vmem:[%s2773 + $0x3c] sm:$0xe]
      %v3044 = vld [vmem:[%s2773 + $0x48] sm:$0xe]
      %v3045 = vld [vmem:[%s2773 + $0x54] sm:$0xe]
      %v3046 = vld [vmem:[%s2773 + $0x60] sm:$0xe]
      %v3047 = vld [vmem:[%s2773 + $0x6c] sm:$0xe]
      %v3048 = vld [vmem:[%s2773 + $0x78] sm:$0xe]
      %v3049 = vld [vmem:[%s2773 + $0x84] sm:$0xe]
      %v3050 = vld [vmem:[%s2773 + $0x90] sm:$0xe]
      %v3051 = vld [vmem:[%s2773 + $0x9c] sm:$0xe]
      %v3052 = vld [vmem:[%s2773 + $0xa8] sm:$0xe]
      %v3053 = vld [vmem:[%s2773 + $0xb4] sm:$0xe]
      %v3054 = vunpack.c.l.bf16 %v3038
      %v3055 = vunpack.c.l.bf16 %v3039
      %v3056 = vunpack.c.l.bf16 %v3040
      %v3057 = vunpack.c.l.bf16 %v3041
      %v3058 = vunpack.c.l.bf16 %v3042
      %v3059 = vunpack.c.l.bf16 %v3043
      %v3060 = vunpack.c.l.bf16 %v3044
      %v3061 = vunpack.c.l.bf16 %v3045
      %v3062 = vunpack.c.l.bf16 %v3046
      %v3063 = vunpack.c.l.bf16 %v3047
      %v3064 = vunpack.c.l.bf16 %v3048
      %v3065 = vunpack.c.l.bf16 %v3049
      %v3066 = vunpack.c.l.bf16 %v3050
      %v3067 = vunpack.c.l.bf16 %v3051
      %v3068 = vunpack.c.l.bf16 %v3052
      %v3069 = vunpack.c.l.bf16 %v3053
      %v3070 = vlaneseq
      %v3071 = vshrl.u32 %v3070, 7
      %v3072 = vsub.s32 2, %v3071
      %v3073 = vrot.slane %v276, %v3072
      %v3074 = vmul.f32 %v3054, %v3073
      %v3075 = vmul.f32 %v2807, %v3073
      %v3076 = vmul.f32 %v2922, %v3073
      %v3077 = vmul.f32 %v3055, %v3073
      %v3078 = vmul.f32 %v2809, %v3073
      %v3079 = vmul.f32 %v2923, %v3073
      %v3080 = vmul.f32 %v3056, %v3073
      %v3081 = vmul.f32 %v2811, %v3073
      %v3082 = vmul.f32 %v2924, %v3073
      %v3083 = vmul.f32 %v3057, %v3073
      %v3084 = vmul.f32 %v2813, %v3073
      %v3085 = vmul.f32 %v2925, %v3073
      %v3086 = vmul.f32 %v3058, %v3073
      %v3087 = vmul.f32 %v2815, %v3073
      %v3088 = vmul.f32 %v2926, %v3073
      %v3089 = vmul.f32 %v3059, %v3073
      %v3090 = vmul.f32 %v2817, %v3073
      %v3091 = vmul.f32 %v2927, %v3073
      %v3092 = vmul.f32 %v3060, %v3073
      %v3093 = vmul.f32 %v2819, %v3073
      %v3094 = vmul.f32 %v2928, %v3073
      %v3095 = vmul.f32 %v3061, %v3073
      %v3096 = vmul.f32 %v2821, %v3073
      %v3097 = vmul.f32 %v2929, %v3073
      %v3098 = vmul.f32 %v3062, %v3073
      %v3099 = vmul.f32 %v2823, %v3073
      %v3100 = vmul.f32 %v2930, %v3073
      %v3101 = vmul.f32 %v3063, %v3073
      %v3102 = vmul.f32 %v2825, %v3073
      %v3103 = vmul.f32 %v2931, %v3073
      %v3104 = vmul.f32 %v3064, %v3073
      %v3105 = vmul.f32 %v2827, %v3073
      %v3106 = vmul.f32 %v2932, %v3073
      %v3107 = vmul.f32 %v3065, %v3073
      %v3108 = vmul.f32 %v2829, %v3073
      %v3109 = vmul.f32 %v2933, %v3073
      %v3110 = vmul.f32 %v3066, %v3073
      %v3111 = vmul.f32 %v2831, %v3073
      %v3112 = vmul.f32 %v2934, %v3073
      %v3113 = vmul.f32 %v3067, %v3073
      %v3114 = vmul.f32 %v2833, %v3073
      %v3115 = vmul.f32 %v2935, %v3073
      %v3116 = vmul.f32 %v3068, %v3073
      %v3117 = vmul.f32 %v2835, %v3073
      %v3118 = vmul.f32 %v2936, %v3073
      %v3119 = vmul.f32 %v3069, %v3073
      %v3120 = vmul.f32 %v2837, %v3073
      %v3121 = vmul.f32 %v2937, %v3073
      %v3170 = vrot.slane %v3074, 2
      %v3171 = vrot.slane %v3075, 2
      %v3172 = vsel %vm595, %v3170, %v3171
      %v3173 = vrot.slane %v3076, 2
      %v3174 = vsel %vm595, %v3171, %v3173
      %v3175 = vrot.slane %v3077, 2
      %v3176 = vrot.slane %v3078, 2
      %v3177 = vsel %vm595, %v3175, %v3176
      %v3178 = vrot.slane %v3079, 2
      %v3179 = vsel %vm595, %v3176, %v3178
      %v3180 = vrot.slane %v3080, 2
      %v3181 = vrot.slane %v3081, 2
      %v3182 = vsel %vm595, %v3180, %v3181
      %v3183 = vrot.slane %v3082, 2
      %v3184 = vsel %vm595, %v3181, %v3183
      %v3185 = vrot.slane %v3083, 2
      %v3186 = vrot.slane %v3084, 2
      %v3187 = vsel %vm595, %v3185, %v3186
      %v3188 = vrot.slane %v3085, 2
      %v3189 = vsel %vm595, %v3186, %v3188
      %v3190 = vrot.slane %v3086, 2
      %v3191 = vrot.slane %v3087, 2
      %v3192 = vsel %vm595, %v3190, %v3191
      %v3193 = vrot.slane %v3088, 2
      %v3194 = vsel %vm595, %v3191, %v3193
      %v3195 = vrot.slane %v3089, 2
      %v3196 = vrot.slane %v3090, 2
      %v3197 = vsel %vm595, %v3195, %v3196
      %v3198 = vrot.slane %v3091, 2
      %v3199 = vsel %vm595, %v3196, %v3198
      %v3200 = vrot.slane %v3092, 2
      %v3201 = vrot.slane %v3093, 2
      %v3202 = vsel %vm595, %v3200, %v3201
      %v3203 = vrot.slane %v3094, 2
      %v3204 = vsel %vm595, %v3201, %v3203
      %v3205 = vrot.slane %v3095, 2
      %v3206 = vrot.slane %v3096, 2
      %v3207 = vsel %vm595, %v3205, %v3206
      %v3208 = vrot.slane %v3097, 2
      %v3209 = vsel %vm595, %v3206, %v3208
      %v3210 = vrot.slane %v3098, 2
      %v3211 = vrot.slane %v3099, 2
      %v3212 = vsel %vm595, %v3210, %v3211
      %v3213 = vrot.slane %v3100, 2
      %v3214 = vsel %vm595, %v3211, %v3213
      %v3215 = vrot.slane %v3101, 2
      %v3216 = vrot.slane %v3102, 2
      %v3217 = vsel %vm595, %v3215, %v3216
      %v3218 = vrot.slane %v3103, 2
      %v3219 = vsel %vm595, %v3216, %v3218
      %v3220 = vrot.slane %v3104, 2
      %v3221 = vrot.slane %v3105, 2
      %v3222 = vsel %vm595, %v3220, %v3221
      %v3223 = vrot.slane %v3106, 2
      %v3224 = vsel %vm595, %v3221, %v3223
      %v3225 = vrot.slane %v3107, 2
      %v3226 = vrot.slane %v3108, 2
      %v3227 = vsel %vm595, %v3225, %v3226
      %v3228 = vrot.slane %v3109, 2
      %v3229 = vsel %vm595, %v3226, %v3228
      %v3230 = vrot.slane %v3110, 2
      %v3231 = vrot.slane %v3111, 2
      %v3232 = vsel %vm595, %v3230, %v3231
      %v3233 = vrot.slane %v3112, 2
      %v3234 = vsel %vm595, %v3231, %v3233
      %v3235 = vrot.slane %v3113, 2
      %v3236 = vrot.slane %v3114, 2
      %v3237 = vsel %vm595, %v3235, %v3236
      %v3238 = vrot.slane %v3115, 2
      %v3239 = vsel %vm595, %v3236, %v3238
      %v3240 = vrot.slane %v3116, 2
      %v3241 = vrot.slane %v3117, 2
      %v3242 = vsel %vm595, %v3240, %v3241
      %v3243 = vrot.slane %v3118, 2
      %v3244 = vsel %vm595, %v3241, %v3243
      %v3245 = vrot.slane %v3119, 2
      %v3246 = vrot.slane %v3120, 2
      %v3247 = vsel %vm595, %v3245, %v3246
      %v3248 = vrot.slane %v3121, 2
      %v3249 = vsel %vm595, %v3246, %v3248
      %v3282 = vadd.f32 %v2874, %v3172
      %v3283 = vadd.f32 %v2875, %v3174
      %v3284 = vadd.f32 %v2876, %v3177
      %v3285 = vadd.f32 %v2877, %v3179
      %v3286 = vadd.f32 %v2878, %v3182
      %v3287 = vadd.f32 %v2879, %v3184
      %v3288 = vadd.f32 %v2880, %v3187
      %v3289 = vadd.f32 %v2881, %v3189
      %v3290 = vadd.f32 %v2882, %v3192
      %v3291 = vadd.f32 %v2883, %v3194
      %v3292 = vadd.f32 %v2884, %v3197
      %v3293 = vadd.f32 %v2885, %v3199
      %v3294 = vadd.f32 %v2886, %v3202
      %v3295 = vadd.f32 %v2887, %v3204
      %v3296 = vadd.f32 %v2888, %v3207
      %v3297 = vadd.f32 %v2889, %v3209
      %v3298 = vadd.f32 %v2890, %v3212
      %v3299 = vadd.f32 %v2891, %v3214
      %v3300 = vadd.f32 %v2892, %v3217
      %v3301 = vadd.f32 %v2893, %v3219
      %v3302 = vadd.f32 %v2894, %v3222
      %v3303 = vadd.f32 %v2895, %v3224
      %v3304 = vadd.f32 %v2896, %v3227
      %v3305 = vadd.f32 %v2897, %v3229
      %v3306 = vadd.f32 %v2898, %v3232
      %v3307 = vadd.f32 %v2899, %v3234
      %v3308 = vadd.f32 %v2900, %v3237
      %v3309 = vadd.f32 %v2901, %v3239
      %v3310 = vadd.f32 %v2902, %v3242
      %v3311 = vadd.f32 %v2903, %v3244
      %v3312 = vadd.f32 %v2904, %v3247
      %v3313 = vadd.f32 %v2905, %v3249
      %v3314 = vld [vmem:[%s2773 + $0x8] sm:$0x3]
      %v3315 = vld [vmem:[%s2773 + $0x14] sm:$0x3]
      %v3316 = vld [vmem:[%s2773 + $0x20] sm:$0x3]
      %v3317 = vld [vmem:[%s2773 + $0x2c] sm:$0x3]
      %v3318 = vld [vmem:[%s2773 + $0x38] sm:$0x3]
      %v3319 = vld [vmem:[%s2773 + $0x44] sm:$0x3]
      %v3320 = vld [vmem:[%s2773 + $0x50] sm:$0x3]
      %v3321 = vld [vmem:[%s2773 + $0x5c] sm:$0x3]
      %v3322 = vld [vmem:[%s2773 + $0x68] sm:$0x3]
      %v3323 = vld [vmem:[%s2773 + $0x74] sm:$0x3]
      %v3324 = vld [vmem:[%s2773 + $0x80] sm:$0x3]
      %v3325 = vld [vmem:[%s2773 + $0x8c] sm:$0x3]
      %v3326 = vld [vmem:[%s2773 + $0x98] sm:$0x3]
      %v3327 = vld [vmem:[%s2773 + $0xa4] sm:$0x3]
      %v3328 = vld [vmem:[%s2773 + $0xb0] sm:$0x3]
      %v3329 = vld [vmem:[%s2773 + $0xbc] sm:$0x3]
      %v3330 = vunpack.c.l.bf16 %v3314
      %v3331 = vunpack.c.l.bf16 %v3315
      %v3332 = vunpack.c.l.bf16 %v3316
      %v3333 = vunpack.c.l.bf16 %v3317
      %v3334 = vunpack.c.l.bf16 %v3318
      %v3335 = vunpack.c.l.bf16 %v3319
      %v3336 = vunpack.c.l.bf16 %v3320
      %v3337 = vunpack.c.l.bf16 %v3321
      %v3338 = vunpack.c.l.bf16 %v3322
      %v3339 = vunpack.c.l.bf16 %v3323
      %v3340 = vunpack.c.l.bf16 %v3324
      %v3341 = vunpack.c.l.bf16 %v3325
      %v3342 = vunpack.c.l.bf16 %v3326
      %v3343 = vunpack.c.l.bf16 %v3327
      %v3344 = vunpack.c.l.bf16 %v3328
      %v3345 = vunpack.c.l.bf16 %v3329
      %v3346 = vlaneseq
      %v3347 = vshrl.u32 %v3346, 7
      %v3348 = vsub.s32 3, %v3347
      %v3349 = vrot.slane %v276, %v3348
      %v3350 = vmul.f32 %v3054, %v3349
      %v3351 = vmul.f32 %v2807, %v3349
      %v3352 = vmul.f32 %v3330, %v3349
      %v3353 = vmul.f32 %v3055, %v3349
      %v3354 = vmul.f32 %v2809, %v3349
      %v3355 = vmul.f32 %v3331, %v3349
      %v3356 = vmul.f32 %v3056, %v3349
      %v3357 = vmul.f32 %v2811, %v3349
      %v3358 = vmul.f32 %v3332, %v3349
      %v3359 = vmul.f32 %v3057, %v3349
      %v3360 = vmul.f32 %v2813, %v3349
      %v3361 = vmul.f32 %v3333, %v3349
      %v3362 = vmul.f32 %v3058, %v3349
      %v3363 = vmul.f32 %v2815, %v3349
      %v3364 = vmul.f32 %v3334, %v3349
      %v3365 = vmul.f32 %v3059, %v3349
      %v3366 = vmul.f32 %v2817, %v3349
      %v3367 = vmul.f32 %v3335, %v3349
      %v3368 = vmul.f32 %v3060, %v3349
      %v3369 = vmul.f32 %v2819, %v3349
      %v3370 = vmul.f32 %v3336, %v3349
      %v3371 = vmul.f32 %v3061, %v3349
      %v3372 = vmul.f32 %v2821, %v3349
      %v3373 = vmul.f32 %v3337, %v3349
      %v3374 = vmul.f32 %v3062, %v3349
      %v3375 = vmul.f32 %v2823, %v3349
      %v3376 = vmul.f32 %v3338, %v3349
      %v3377 = vmul.f32 %v3063, %v3349
      %v3378 = vmul.f32 %v2825, %v3349
      %v3379 = vmul.f32 %v3339, %v3349
      %v3380 = vmul.f32 %v3064, %v3349
      %v3381 = vmul.f32 %v2827, %v3349
      %v3382 = vmul.f32 %v3340, %v3349
      %v3383 = vmul.f32 %v3065, %v3349
      %v3384 = vmul.f32 %v2829, %v3349
      %v3385 = vmul.f32 %v3341, %v3349
      %v3386 = vmul.f32 %v3066, %v3349
      %v3387 = vmul.f32 %v2831, %v3349
      %v3388 = vmul.f32 %v3342, %v3349
      %v3389 = vmul.f32 %v3067, %v3349
      %v3390 = vmul.f32 %v2833, %v3349
      %v3391 = vmul.f32 %v3343, %v3349
      %v3392 = vmul.f32 %v3068, %v3349
      %v3393 = vmul.f32 %v2835, %v3349
      %v3394 = vmul.f32 %v3344, %v3349
      %v3395 = vmul.f32 %v3069, %v3349
      %v3396 = vmul.f32 %v2837, %v3349
      %v3397 = vmul.f32 %v3345, %v3349
      %v3446 = vrot.slane %v3350, 2
      %v3447 = vrot.slane %v3351, 2
      %v3448 = vsel %vm595, %v3446, %v3447
      %v3449 = vrot.slane %v3352, 2
      %v3450 = vsel %vm595, %v3447, %v3449
      %v3451 = vrot.slane %v3353, 2
      %v3452 = vrot.slane %v3354, 2
      %v3453 = vsel %vm595, %v3451, %v3452
      %v3454 = vrot.slane %v3355, 2
      %v3455 = vsel %vm595, %v3452, %v3454
      %v3456 = vrot.slane %v3356, 2
      %v3457 = vrot.slane %v3357, 2
      %v3458 = vsel %vm595, %v3456, %v3457
      %v3459 = vrot.slane %v3358, 2
      %v3460 = vsel %vm595, %v3457, %v3459
      %v3461 = vrot.slane %v3359, 2
      %v3462 = vrot.slane %v3360, 2
      %v3463 = vsel %vm595, %v3461, %v3462
      %v3464 = vrot.slane %v3361, 2
      %v3465 = vsel %vm595, %v3462, %v3464
      %v3466 = vrot.slane %v3362, 2
      %v3467 = vrot.slane %v3363, 2
      %v3468 = vsel %vm595, %v3466, %v3467
      %v3469 = vrot.slane %v3364, 2
      %v3470 = vsel %vm595, %v3467, %v3469
      %v3471 = vrot.slane %v3365, 2
      %v3472 = vrot.slane %v3366, 2
      %v3473 = vsel %vm595, %v3471, %v3472
      %v3474 = vrot.slane %v3367, 2
      %v3475 = vsel %vm595, %v3472, %v3474
      %v3476 = vrot.slane %v3368, 2
      %v3477 = vrot.slane %v3369, 2
      %v3478 = vsel %vm595, %v3476, %v3477
      %v3479 = vrot.slane %v3370, 2
      %v3480 = vsel %vm595, %v3477, %v3479
      %v3481 = vrot.slane %v3371, 2
      %v3482 = vrot.slane %v3372, 2
      %v3483 = vsel %vm595, %v3481, %v3482
      %v3484 = vrot.slane %v3373, 2
      %v3485 = vsel %vm595, %v3482, %v3484
      %v3486 = vrot.slane %v3374, 2
      %v3487 = vrot.slane %v3375, 2
      %v3488 = vsel %vm595, %v3486, %v3487
      %v3489 = vrot.slane %v3376, 2
      %v3490 = vsel %vm595, %v3487, %v3489
      %v3491 = vrot.slane %v3377, 2
      %v3492 = vrot.slane %v3378, 2
      %v3493 = vsel %vm595, %v3491, %v3492
      %v3494 = vrot.slane %v3379, 2
      %v3495 = vsel %vm595, %v3492, %v3494
      %v3496 = vrot.slane %v3380, 2
      %v3497 = vrot.slane %v3381, 2
      %v3498 = vsel %vm595, %v3496, %v3497
      %v3499 = vrot.slane %v3382, 2
      %v3500 = vsel %vm595, %v3497, %v3499
      %v3501 = vrot.slane %v3383, 2
      %v3502 = vrot.slane %v3384, 2
      %v3503 = vsel %vm595, %v3501, %v3502
      %v3504 = vrot.slane %v3385, 2
      %v3505 = vsel %vm595, %v3502, %v3504
      %v3506 = vrot.slane %v3386, 2
      %v3507 = vrot.slane %v3387, 2
      %v3508 = vsel %vm595, %v3506, %v3507
      %v3509 = vrot.slane %v3388, 2
      %v3510 = vsel %vm595, %v3507, %v3509
      %v3511 = vrot.slane %v3389, 2
      %v3512 = vrot.slane %v3390, 2
      %v3513 = vsel %vm595, %v3511, %v3512
      %v3514 = vrot.slane %v3391, 2
      %v3515 = vsel %vm595, %v3512, %v3514
      %v3516 = vrot.slane %v3392, 2
      %v3517 = vrot.slane %v3393, 2
      %v3518 = vsel %vm595, %v3516, %v3517
      %v3519 = vrot.slane %v3394, 2
      %v3520 = vsel %vm595, %v3517, %v3519
      %v3521 = vrot.slane %v3395, 2
      %v3522 = vrot.slane %v3396, 2
      %v3523 = vsel %vm595, %v3521, %v3522
      %v3524 = vrot.slane %v3397, 2
      %v3525 = vsel %vm595, %v3522, %v3524
      %v3574 = vadd.f32 %v2990, %v3448
      %v3575 = vadd.f32 %v2991, %v3450
      %v3576 = vadd.f32 %v2992, %v3449
      %v3577 = vadd.f32 %v2993, %v3453
      %v3578 = vadd.f32 %v2994, %v3455
      %v3579 = vadd.f32 %v2995, %v3454
      %v3580 = vadd.f32 %v2996, %v3458
      %v3581 = vadd.f32 %v2997, %v3460
      %v3582 = vadd.f32 %v2998, %v3459
      %v3583 = vadd.f32 %v2999, %v3463
      %v3584 = vadd.f32 %v3000, %v3465
      %v3585 = vadd.f32 %v3001, %v3464
      %v3586 = vadd.f32 %v3002, %v3468
      %v3587 = vadd.f32 %v3003, %v3470
      %v3588 = vadd.f32 %v3004, %v3469
      %v3589 = vadd.f32 %v3005, %v3473
      %v3590 = vadd.f32 %v3006, %v3475
      %v3591 = vadd.f32 %v3007, %v3474
      %v3592 = vadd.f32 %v3008, %v3478
      %v3593 = vadd.f32 %v3009, %v3480
      %v3594 = vadd.f32 %v3010, %v3479
      %v3595 = vadd.f32 %v3011, %v3483
      %v3596 = vadd.f32 %v3012, %v3485
      %v3597 = vadd.f32 %v3013, %v3484
      %v3598 = vadd.f32 %v3014, %v3488
      %v3599 = vadd.f32 %v3015, %v3490
      %v3600 = vadd.f32 %v3016, %v3489
      %v3601 = vadd.f32 %v3017, %v3493
      %v3602 = vadd.f32 %v3018, %v3495
      %v3603 = vadd.f32 %v3019, %v3494
      %v3604 = vadd.f32 %v3020, %v3498
      %v3605 = vadd.f32 %v3021, %v3500
      %v3606 = vadd.f32 %v3022, %v3499
      %v3607 = vadd.f32 %v3023, %v3503
      %v3608 = vadd.f32 %v3024, %v3505
      %v3609 = vadd.f32 %v3025, %v3504
      %v3610 = vadd.f32 %v3026, %v3508
      %v3611 = vadd.f32 %v3027, %v3510
      %v3612 = vadd.f32 %v3028, %v3509
      %v3613 = vadd.f32 %v3029, %v3513
      %v3614 = vadd.f32 %v3030, %v3515
      %v3615 = vadd.f32 %v3031, %v3514
      %v3616 = vadd.f32 %v3032, %v3518
      %v3617 = vadd.f32 %v3033, %v3520
      %v3618 = vadd.f32 %v3034, %v3519
      %v3619 = vadd.f32 %v3035, %v3523
      %v3620 = vadd.f32 %v3036, %v3525
      %v3621 = vadd.f32 %v3037, %v3524
      %v3622 = vld [vmem:[%s2773] sm:$0xc]
      %v3623 = vld [vmem:[%s2773 + $0xc] sm:$0xc]
      %v3624 = vld [vmem:[%s2773 + $0x18] sm:$0xc]
      %v3625 = vld [vmem:[%s2773 + $0x24] sm:$0xc]
      %v3626 = vld [vmem:[%s2773 + $0x30] sm:$0xc]
      %v3627 = vld [vmem:[%s2773 + $0x3c] sm:$0xc]
      %v3628 = vld [vmem:[%s2773 + $0x48] sm:$0xc]
      %v3629 = vld [vmem:[%s2773 + $0x54] sm:$0xc]
      %v3630 = vld [vmem:[%s2773 + $0x60] sm:$0xc]
      %v3631 = vld [vmem:[%s2773 + $0x6c] sm:$0xc]
      %v3632 = vld [vmem:[%s2773 + $0x78] sm:$0xc]
      %v3633 = vld [vmem:[%s2773 + $0x84] sm:$0xc]
      %v3634 = vld [vmem:[%s2773 + $0x90] sm:$0xc]
      %v3635 = vld [vmem:[%s2773 + $0x9c] sm:$0xc]
      %v3636 = vld [vmem:[%s2773 + $0xa8] sm:$0xc]
      %v3637 = vld [vmem:[%s2773 + $0xb4] sm:$0xc]
      %v3638 = vunpack.c.l.bf16 %v3622
      %v3639 = vunpack.c.l.bf16 %v3623
      %v3640 = vunpack.c.l.bf16 %v3624
      %v3641 = vunpack.c.l.bf16 %v3625
      %v3642 = vunpack.c.l.bf16 %v3626
      %v3643 = vunpack.c.l.bf16 %v3627
      %v3644 = vunpack.c.l.bf16 %v3628
      %v3645 = vunpack.c.l.bf16 %v3629
      %v3646 = vunpack.c.l.bf16 %v3630
      %v3647 = vunpack.c.l.bf16 %v3631
      %v3648 = vunpack.c.l.bf16 %v3632
      %v3649 = vunpack.c.l.bf16 %v3633
      %v3650 = vunpack.c.l.bf16 %v3634
      %v3651 = vunpack.c.l.bf16 %v3635
      %v3652 = vunpack.c.l.bf16 %v3636
      %v3653 = vunpack.c.l.bf16 %v3637
      %v3654 = vlaneseq
      %v3655 = vshrl.u32 %v3654, 7
      %v3656 = vsub.s32 4, %v3655
      %v3657 = vrot.slane %v276, %v3656
      %v3658 = vmul.f32 %v3638, %v3657
      %v3659 = vmul.f32 %v2807, %v3657
      %v3660 = vmul.f32 %v3330, %v3657
      %v3661 = vmul.f32 %v3639, %v3657
      %v3662 = vmul.f32 %v2809, %v3657
      %v3663 = vmul.f32 %v3331, %v3657
      %v3664 = vmul.f32 %v3640, %v3657
      %v3665 = vmul.f32 %v2811, %v3657
      %v3666 = vmul.f32 %v3332, %v3657
      %v3667 = vmul.f32 %v3641, %v3657
      %v3668 = vmul.f32 %v2813, %v3657
      %v3669 = vmul.f32 %v3333, %v3657
      %v3670 = vmul.f32 %v3642, %v3657
      %v3671 = vmul.f32 %v2815, %v3657
      %v3672 = vmul.f32 %v3334, %v3657
      %v3673 = vmul.f32 %v3643, %v3657
      %v3674 = vmul.f32 %v2817, %v3657
      %v3675 = vmul.f32 %v3335, %v3657
      %v3676 = vmul.f32 %v3644, %v3657
      %v3677 = vmul.f32 %v2819, %v3657
      %v3678 = vmul.f32 %v3336, %v3657
      %v3679 = vmul.f32 %v3645, %v3657
      %v3680 = vmul.f32 %v2821, %v3657
      %v3681 = vmul.f32 %v3337, %v3657
      %v3682 = vmul.f32 %v3646, %v3657
      %v3683 = vmul.f32 %v2823, %v3657
      %v3684 = vmul.f32 %v3338, %v3657
      %v3685 = vmul.f32 %v3647, %v3657
      %v3686 = vmul.f32 %v2825, %v3657
      %v3687 = vmul.f32 %v3339, %v3657
      %v3688 = vmul.f32 %v3648, %v3657
      %v3689 = vmul.f32 %v2827, %v3657
      %v3690 = vmul.f32 %v3340, %v3657
      %v3691 = vmul.f32 %v3649, %v3657
      %v3692 = vmul.f32 %v2829, %v3657
      %v3693 = vmul.f32 %v3341, %v3657
      %v3694 = vmul.f32 %v3650, %v3657
      %v3695 = vmul.f32 %v2831, %v3657
      %v3696 = vmul.f32 %v3342, %v3657
      %v3697 = vmul.f32 %v3651, %v3657
      %v3698 = vmul.f32 %v2833, %v3657
      %v3699 = vmul.f32 %v3343, %v3657
      %v3700 = vmul.f32 %v3652, %v3657
      %v3701 = vmul.f32 %v2835, %v3657
      %v3702 = vmul.f32 %v3344, %v3657
      %v3703 = vmul.f32 %v3653, %v3657
      %v3704 = vmul.f32 %v2837, %v3657
      %v3705 = vmul.f32 %v3345, %v3657
      %v3754 = vrot.slane %v3658, 4
      %v3755 = vrot.slane %v3659, 4
      %v3756 = vsel %vm1180, %v3754, %v3755
      %v3757 = vrot.slane %v3660, 4
      %v3758 = vsel %vm1180, %v3755, %v3757
      %v3759 = vrot.slane %v3661, 4
      %v3760 = vrot.slane %v3662, 4
      %v3761 = vsel %vm1180, %v3759, %v3760
      %v3762 = vrot.slane %v3663, 4
      %v3763 = vsel %vm1180, %v3760, %v3762
      %v3764 = vrot.slane %v3664, 4
      %v3765 = vrot.slane %v3665, 4
      %v3766 = vsel %vm1180, %v3764, %v3765
      %v3767 = vrot.slane %v3666, 4
      %v3768 = vsel %vm1180, %v3765, %v3767
      %v3769 = vrot.slane %v3667, 4
      %v3770 = vrot.slane %v3668, 4
      %v3771 = vsel %vm1180, %v3769, %v3770
      %v3772 = vrot.slane %v3669, 4
      %v3773 = vsel %vm1180, %v3770, %v3772
      %v3774 = vrot.slane %v3670, 4
      %v3775 = vrot.slane %v3671, 4
      %v3776 = vsel %vm1180, %v3774, %v3775
      %v3777 = vrot.slane %v3672, 4
      %v3778 = vsel %vm1180, %v3775, %v3777
      %v3779 = vrot.slane %v3673, 4
      %v3780 = vrot.slane %v3674, 4
      %v3781 = vsel %vm1180, %v3779, %v3780
      %v3782 = vrot.slane %v3675, 4
      %v3783 = vsel %vm1180, %v3780, %v3782
      %v3784 = vrot.slane %v3676, 4
      %v3785 = vrot.slane %v3677, 4
      %v3786 = vsel %vm1180, %v3784, %v3785
      %v3787 = vrot.slane %v3678, 4
      %v3788 = vsel %vm1180, %v3785, %v3787
      %v3789 = vrot.slane %v3679, 4
      %v3790 = vrot.slane %v3680, 4
      %v3791 = vsel %vm1180, %v3789, %v3790
      %v3792 = vrot.slane %v3681, 4
      %v3793 = vsel %vm1180, %v3790, %v3792
      %v3794 = vrot.slane %v3682, 4
      %v3795 = vrot.slane %v3683, 4
      %v3796 = vsel %vm1180, %v3794, %v3795
      %v3797 = vrot.slane %v3684, 4
      %v3798 = vsel %vm1180, %v3795, %v3797
      %v3799 = vrot.slane %v3685, 4
      %v3800 = vrot.slane %v3686, 4
      %v3801 = vsel %vm1180, %v3799, %v3800
      %v3802 = vrot.slane %v3687, 4
      %v3803 = vsel %vm1180, %v3800, %v3802
      %v3804 = vrot.slane %v3688, 4
      %v3805 = vrot.slane %v3689, 4
      %v3806 = vsel %vm1180, %v3804, %v3805
      %v3807 = vrot.slane %v3690, 4
      %v3808 = vsel %vm1180, %v3805, %v3807
      %v3809 = vrot.slane %v3691, 4
      %v3810 = vrot.slane %v3692, 4
      %v3811 = vsel %vm1180, %v3809, %v3810
      %v3812 = vrot.slane %v3693, 4
      %v3813 = vsel %vm1180, %v3810, %v3812
      %v3814 = vrot.slane %v3694, 4
      %v3815 = vrot.slane %v3695, 4
      %v3816 = vsel %vm1180, %v3814, %v3815
      %v3817 = vrot.slane %v3696, 4
      %v3818 = vsel %vm1180, %v3815, %v3817
      %v3819 = vrot.slane %v3697, 4
      %v3820 = vrot.slane %v3698, 4
      %v3821 = vsel %vm1180, %v3819, %v3820
      %v3822 = vrot.slane %v3699, 4
      %v3823 = vsel %vm1180, %v3820, %v3822
      %v3824 = vrot.slane %v3700, 4
      %v3825 = vrot.slane %v3701, 4
      %v3826 = vsel %vm1180, %v3824, %v3825
      %v3827 = vrot.slane %v3702, 4
      %v3828 = vsel %vm1180, %v3825, %v3827
      %v3829 = vrot.slane %v3703, 4
      %v3830 = vrot.slane %v3704, 4
      %v3831 = vsel %vm1180, %v3829, %v3830
      %v3832 = vrot.slane %v3705, 4
      %v3833 = vsel %vm1180, %v3830, %v3832
      %v3866 = vadd.f32 %v3282, %v3756
      %v3867 = vadd.f32 %v3283, %v3758
      %v3868 = vadd.f32 %v3284, %v3761
      %v3869 = vadd.f32 %v3285, %v3763
      %v3870 = vadd.f32 %v3286, %v3766
      %v3871 = vadd.f32 %v3287, %v3768
      %v3872 = vadd.f32 %v3288, %v3771
      %v3873 = vadd.f32 %v3289, %v3773
      %v3874 = vadd.f32 %v3290, %v3776
      %v3875 = vadd.f32 %v3291, %v3778
      %v3876 = vadd.f32 %v3292, %v3781
      %v3877 = vadd.f32 %v3293, %v3783
      %v3878 = vadd.f32 %v3294, %v3786
      %v3879 = vadd.f32 %v3295, %v3788
      %v3880 = vadd.f32 %v3296, %v3791
      %v3881 = vadd.f32 %v3297, %v3793
      %v3882 = vadd.f32 %v3298, %v3796
      %v3883 = vadd.f32 %v3299, %v3798
      %v3884 = vadd.f32 %v3300, %v3801
      %v3885 = vadd.f32 %v3301, %v3803
      %v3886 = vadd.f32 %v3302, %v3806
      %v3887 = vadd.f32 %v3303, %v3808
      %v3888 = vadd.f32 %v3304, %v3811
      %v3889 = vadd.f32 %v3305, %v3813
      %v3890 = vadd.f32 %v3306, %v3816
      %v3891 = vadd.f32 %v3307, %v3818
      %v3892 = vadd.f32 %v3308, %v3821
      %v3893 = vadd.f32 %v3309, %v3823
      %v3894 = vadd.f32 %v3310, %v3826
      %v3895 = vadd.f32 %v3311, %v3828
      %v3896 = vadd.f32 %v3312, %v3831
      %v3897 = vadd.f32 %v3313, %v3833
      %s3898 = scalar_lea.vmem %s255, 36
      %v3899 = vld [vmem:[%s3898] sm:$0xf]
      %v3900 = vld [vmem:[%s3898 + $0x4] sm:$0xf]
      %v3901 = vld [vmem:[%s3898 + $0xc] sm:$0xf]
      %v3902 = vld [vmem:[%s3898 + $0x10] sm:$0xf]
      %v3903 = vld [vmem:[%s3898 + $0x18] sm:$0xf]
      %v3904 = vld [vmem:[%s3898 + $0x1c] sm:$0xf]
      %v3905 = vld [vmem:[%s3898 + $0x24] sm:$0xf]
      %v3906 = vld [vmem:[%s3898 + $0x28] sm:$0xf]
      %v3907 = vld [vmem:[%s3898 + $0x30] sm:$0xf]
      %v3908 = vld [vmem:[%s3898 + $0x34] sm:$0xf]
      %v3909 = vld [vmem:[%s3898 + $0x3c] sm:$0xf]
      %v3910 = vld [vmem:[%s3898 + $0x40] sm:$0xf]
      %v3911 = vld [vmem:[%s3898 + $0x48] sm:$0xf]
      %v3912 = vld [vmem:[%s3898 + $0x4c] sm:$0xf]
      %v3913 = vld [vmem:[%s3898 + $0x54] sm:$0xf]
      %v3914 = vld [vmem:[%s3898 + $0x58] sm:$0xf]
      %v3915 = vld [vmem:[%s3898 + $0x60] sm:$0xf]
      %v3916 = vld [vmem:[%s3898 + $0x64] sm:$0xf]
      %v3917 = vld [vmem:[%s3898 + $0x6c] sm:$0xf]
      %v3918 = vld [vmem:[%s3898 + $0x70] sm:$0xf]
      %v3919 = vld [vmem:[%s3898 + $0x78] sm:$0xf]
      %v3920 = vld [vmem:[%s3898 + $0x7c] sm:$0xf]
      %v3921 = vld [vmem:[%s3898 + $0x84] sm:$0xf]
      %v3922 = vld [vmem:[%s3898 + $0x88] sm:$0xf]
      %v3923 = vld [vmem:[%s3898 + $0x90] sm:$0xf]
      %v3924 = vld [vmem:[%s3898 + $0x94] sm:$0xf]
      %v3925 = vld [vmem:[%s3898 + $0x9c] sm:$0xf]
      %v3926 = vld [vmem:[%s3898 + $0xa0] sm:$0xf]
      %v3927 = vld [vmem:[%s3898 + $0xa8] sm:$0xf]
      %v3928 = vld [vmem:[%s3898 + $0xac] sm:$0xf]
      %v3929 = vld [vmem:[%s3898 + $0xb4] sm:$0xf]
      %v3930 = vld [vmem:[%s3898 + $0xb8] sm:$0xf]
      %v3931 = vunpack.c.l.bf16 %v3899
      %v3932 = vunpack.c.l.bf16 %v3900
      %v3933 = vunpack.c.l.bf16 %v3901
      %v3934 = vunpack.c.l.bf16 %v3902
      %v3935 = vunpack.c.l.bf16 %v3903
      %v3936 = vunpack.c.l.bf16 %v3904
      %v3937 = vunpack.c.l.bf16 %v3905
      %v3938 = vunpack.c.l.bf16 %v3906
      %v3939 = vunpack.c.l.bf16 %v3907
      %v3940 = vunpack.c.l.bf16 %v3908
      %v3941 = vunpack.c.l.bf16 %v3909
      %v3942 = vunpack.c.l.bf16 %v3910
      %v3943 = vunpack.c.l.bf16 %v3911
      %v3944 = vunpack.c.l.bf16 %v3912
      %v3945 = vunpack.c.l.bf16 %v3913
      %v3946 = vunpack.c.l.bf16 %v3914
      %v3947 = vunpack.c.l.bf16 %v3915
      %v3948 = vunpack.c.l.bf16 %v3916
      %v3949 = vunpack.c.l.bf16 %v3917
      %v3950 = vunpack.c.l.bf16 %v3918
      %v3951 = vunpack.c.l.bf16 %v3919
      %v3952 = vunpack.c.l.bf16 %v3920
      %v3953 = vunpack.c.l.bf16 %v3921
      %v3954 = vunpack.c.l.bf16 %v3922
      %v3955 = vunpack.c.l.bf16 %v3923
      %v3956 = vunpack.c.l.bf16 %v3924
      %v3957 = vunpack.c.l.bf16 %v3925
      %v3958 = vunpack.c.l.bf16 %v3926
      %v3959 = vunpack.c.l.bf16 %v3927
      %v3960 = vunpack.c.l.bf16 %v3928
      %v3961 = vunpack.c.l.bf16 %v3929
      %v3962 = vunpack.c.l.bf16 %v3930
      %v3963 = vlaneseq
      %v3964 = vshrl.u32 %v3963, 7
      %v3965 = vsub.s32 0, %v3964
      %v3966 = vrot.slane %v277, %v3965
      %v3967 = vmul.f32 %v3931, %v3966
      %v3968 = vmul.f32 %v3932, %v3966
      %v3969 = vmul.f32 %v3933, %v3966
      %v3970 = vmul.f32 %v3934, %v3966
      %v3971 = vmul.f32 %v3935, %v3966
      %v3972 = vmul.f32 %v3936, %v3966
      %v3973 = vmul.f32 %v3937, %v3966
      %v3974 = vmul.f32 %v3938, %v3966
      %v3975 = vmul.f32 %v3939, %v3966
      %v3976 = vmul.f32 %v3940, %v3966
      %v3977 = vmul.f32 %v3941, %v3966
      %v3978 = vmul.f32 %v3942, %v3966
      %v3979 = vmul.f32 %v3943, %v3966
      %v3980 = vmul.f32 %v3944, %v3966
      %v3981 = vmul.f32 %v3945, %v3966
      %v3982 = vmul.f32 %v3946, %v3966
      %v3983 = vmul.f32 %v3947, %v3966
      %v3984 = vmul.f32 %v3948, %v3966
      %v3985 = vmul.f32 %v3949, %v3966
      %v3986 = vmul.f32 %v3950, %v3966
      %v3987 = vmul.f32 %v3951, %v3966
      %v3988 = vmul.f32 %v3952, %v3966
      %v3989 = vmul.f32 %v3953, %v3966
      %v3990 = vmul.f32 %v3954, %v3966
      %v3991 = vmul.f32 %v3955, %v3966
      %v3992 = vmul.f32 %v3956, %v3966
      %v3993 = vmul.f32 %v3957, %v3966
      %v3994 = vmul.f32 %v3958, %v3966
      %v3995 = vmul.f32 %v3959, %v3966
      %v3996 = vmul.f32 %v3960, %v3966
      %v3997 = vmul.f32 %v3961, %v3966
      %v3998 = vmul.f32 %v3962, %v3966
      %v4031 = vrot.slane %v3967, 7
      %v4032 = vrot.slane %v3968, 7
      %v4033 = vsel %vm1458, %v4031, %v4032
      %v4034 = vrot.slane %v3969, 7
      %v4035 = vrot.slane %v3970, 7
      %v4036 = vsel %vm1458, %v4034, %v4035
      %v4037 = vrot.slane %v3971, 7
      %v4038 = vrot.slane %v3972, 7
      %v4039 = vsel %vm1458, %v4037, %v4038
      %v4040 = vrot.slane %v3973, 7
      %v4041 = vrot.slane %v3974, 7
      %v4042 = vsel %vm1458, %v4040, %v4041
      %v4043 = vrot.slane %v3975, 7
      %v4044 = vrot.slane %v3976, 7
      %v4045 = vsel %vm1458, %v4043, %v4044
      %v4046 = vrot.slane %v3977, 7
      %v4047 = vrot.slane %v3978, 7
      %v4048 = vsel %vm1458, %v4046, %v4047
      %v4049 = vrot.slane %v3979, 7
      %v4050 = vrot.slane %v3980, 7
      %v4051 = vsel %vm1458, %v4049, %v4050
      %v4052 = vrot.slane %v3981, 7
      %v4053 = vrot.slane %v3982, 7
      %v4054 = vsel %vm1458, %v4052, %v4053
      %v4055 = vrot.slane %v3983, 7
      %v4056 = vrot.slane %v3984, 7
      %v4057 = vsel %vm1458, %v4055, %v4056
      %v4058 = vrot.slane %v3985, 7
      %v4059 = vrot.slane %v3986, 7
      %v4060 = vsel %vm1458, %v4058, %v4059
      %v4061 = vrot.slane %v3987, 7
      %v4062 = vrot.slane %v3988, 7
      %v4063 = vsel %vm1458, %v4061, %v4062
      %v4064 = vrot.slane %v3989, 7
      %v4065 = vrot.slane %v3990, 7
      %v4066 = vsel %vm1458, %v4064, %v4065
      %v4067 = vrot.slane %v3991, 7
      %v4068 = vrot.slane %v3992, 7
      %v4069 = vsel %vm1458, %v4067, %v4068
      %v4070 = vrot.slane %v3993, 7
      %v4071 = vrot.slane %v3994, 7
      %v4072 = vsel %vm1458, %v4070, %v4071
      %v4073 = vrot.slane %v3995, 7
      %v4074 = vrot.slane %v3996, 7
      %v4075 = vsel %vm1458, %v4073, %v4074
      %v4076 = vrot.slane %v3997, 7
      %v4077 = vrot.slane %v3998, 7
      %v4078 = vsel %vm1458, %v4076, %v4077
      %v4127 = vadd.f32 %v3574, %v4031
      %v4128 = vadd.f32 %v3575, %v4033
      %v4129 = vadd.f32 %v3576, %v4032
      %v4130 = vadd.f32 %v3577, %v4034
      %v4131 = vadd.f32 %v3578, %v4036
      %v4132 = vadd.f32 %v3579, %v4035
      %v4133 = vadd.f32 %v3580, %v4037
      %v4134 = vadd.f32 %v3581, %v4039
      %v4135 = vadd.f32 %v3582, %v4038
      %v4136 = vadd.f32 %v3583, %v4040
      %v4137 = vadd.f32 %v3584, %v4042
      %v4138 = vadd.f32 %v3585, %v4041
      %v4139 = vadd.f32 %v3586, %v4043
      %v4140 = vadd.f32 %v3587, %v4045
      %v4141 = vadd.f32 %v3588, %v4044
      %v4142 = vadd.f32 %v3589, %v4046
      %v4143 = vadd.f32 %v3590, %v4048
      %v4144 = vadd.f32 %v3591, %v4047
      %v4145 = vadd.f32 %v3592, %v4049
      %v4146 = vadd.f32 %v3593, %v4051
      %v4147 = vadd.f32 %v3594, %v4050
      %v4148 = vadd.f32 %v3595, %v4052
      %v4149 = vadd.f32 %v3596, %v4054
      %v4150 = vadd.f32 %v3597, %v4053
      %v4151 = vadd.f32 %v3598, %v4055
      %v4152 = vadd.f32 %v3599, %v4057
      %v4153 = vadd.f32 %v3600, %v4056
      %v4154 = vadd.f32 %v3601, %v4058
      %v4155 = vadd.f32 %v3602, %v4060
      %v4156 = vadd.f32 %v3603, %v4059
      %v4157 = vadd.f32 %v3604, %v4061
      %v4158 = vadd.f32 %v3605, %v4063
      %v4159 = vadd.f32 %v3606, %v4062
      %v4160 = vadd.f32 %v3607, %v4064
      %v4161 = vadd.f32 %v3608, %v4066
      %v4162 = vadd.f32 %v3609, %v4065
      %v4163 = vadd.f32 %v3610, %v4067
      %v4164 = vadd.f32 %v3611, %v4069
      %v4165 = vadd.f32 %v3612, %v4068
      %v4166 = vadd.f32 %v3613, %v4070
      %v4167 = vadd.f32 %v3614, %v4072
      %v4168 = vadd.f32 %v3615, %v4071
      %v4169 = vadd.f32 %v3616, %v4073
      %v4170 = vadd.f32 %v3617, %v4075
      %v4171 = vadd.f32 %v3618, %v4074
      %v4172 = vadd.f32 %v3619, %v4076
      %v4173 = vadd.f32 %v3620, %v4078
      %v4174 = vadd.f32 %v3621, %v4077
      %v4175 = vld [vmem:[%s3898 + $0x8] sm:$0x1]
      %v4176 = vld [vmem:[%s3898 + $0x14] sm:$0x1]
      %v4177 = vld [vmem:[%s3898 + $0x20] sm:$0x1]
      %v4178 = vld [vmem:[%s3898 + $0x2c] sm:$0x1]
      %v4179 = vld [vmem:[%s3898 + $0x38] sm:$0x1]
      %v4180 = vld [vmem:[%s3898 + $0x44] sm:$0x1]
      %v4181 = vld [vmem:[%s3898 + $0x50] sm:$0x1]
      %v4182 = vld [vmem:[%s3898 + $0x5c] sm:$0x1]
      %v4183 = vld [vmem:[%s3898 + $0x68] sm:$0x1]
      %v4184 = vld [vmem:[%s3898 + $0x74] sm:$0x1]
      %v4185 = vld [vmem:[%s3898 + $0x80] sm:$0x1]
      %v4186 = vld [vmem:[%s3898 + $0x8c] sm:$0x1]
      %v4187 = vld [vmem:[%s3898 + $0x98] sm:$0x1]
      %v4188 = vld [vmem:[%s3898 + $0xa4] sm:$0x1]
      %v4189 = vld [vmem:[%s3898 + $0xb0] sm:$0x1]
      %v4190 = vld [vmem:[%s3898 + $0xbc] sm:$0x1]
      %v4191 = vunpack.c.l.bf16 %v4175
      %v4192 = vunpack.c.l.bf16 %v4176
      %v4193 = vunpack.c.l.bf16 %v4177
      %v4194 = vunpack.c.l.bf16 %v4178
      %v4195 = vunpack.c.l.bf16 %v4179
      %v4196 = vunpack.c.l.bf16 %v4180
      %v4197 = vunpack.c.l.bf16 %v4181
      %v4198 = vunpack.c.l.bf16 %v4182
      %v4199 = vunpack.c.l.bf16 %v4183
      %v4200 = vunpack.c.l.bf16 %v4184
      %v4201 = vunpack.c.l.bf16 %v4185
      %v4202 = vunpack.c.l.bf16 %v4186
      %v4203 = vunpack.c.l.bf16 %v4187
      %v4204 = vunpack.c.l.bf16 %v4188
      %v4205 = vunpack.c.l.bf16 %v4189
      %v4206 = vunpack.c.l.bf16 %v4190
      %v4207 = vlaneseq
      %v4208 = vshrl.u32 %v4207, 7
      %v4209 = vsub.s32 1, %v4208
      %v4210 = vrot.slane %v277, %v4209
      %v4211 = vmul.f32 %v3931, %v4210
      %v4212 = vmul.f32 %v3932, %v4210
      %v4213 = vmul.f32 %v4191, %v4210
      %v4214 = vmul.f32 %v3933, %v4210
      %v4215 = vmul.f32 %v3934, %v4210
      %v4216 = vmul.f32 %v4192, %v4210
      %v4217 = vmul.f32 %v3935, %v4210
      %v4218 = vmul.f32 %v3936, %v4210
      %v4219 = vmul.f32 %v4193, %v4210
      %v4220 = vmul.f32 %v3937, %v4210
      %v4221 = vmul.f32 %v3938, %v4210
      %v4222 = vmul.f32 %v4194, %v4210
      %v4223 = vmul.f32 %v3939, %v4210
      %v4224 = vmul.f32 %v3940, %v4210
      %v4225 = vmul.f32 %v4195, %v4210
      %v4226 = vmul.f32 %v3941, %v4210
      %v4227 = vmul.f32 %v3942, %v4210
      %v4228 = vmul.f32 %v4196, %v4210
      %v4229 = vmul.f32 %v3943, %v4210
      %v4230 = vmul.f32 %v3944, %v4210
      %v4231 = vmul.f32 %v4197, %v4210
      %v4232 = vmul.f32 %v3945, %v4210
      %v4233 = vmul.f32 %v3946, %v4210
      %v4234 = vmul.f32 %v4198, %v4210
      %v4235 = vmul.f32 %v3947, %v4210
      %v4236 = vmul.f32 %v3948, %v4210
      %v4237 = vmul.f32 %v4199, %v4210
      %v4238 = vmul.f32 %v3949, %v4210
      %v4239 = vmul.f32 %v3950, %v4210
      %v4240 = vmul.f32 %v4200, %v4210
      %v4241 = vmul.f32 %v3951, %v4210
      %v4242 = vmul.f32 %v3952, %v4210
      %v4243 = vmul.f32 %v4201, %v4210
      %v4244 = vmul.f32 %v3953, %v4210
      %v4245 = vmul.f32 %v3954, %v4210
      %v4246 = vmul.f32 %v4202, %v4210
      %v4247 = vmul.f32 %v3955, %v4210
      %v4248 = vmul.f32 %v3956, %v4210
      %v4249 = vmul.f32 %v4203, %v4210
      %v4250 = vmul.f32 %v3957, %v4210
      %v4251 = vmul.f32 %v3958, %v4210
      %v4252 = vmul.f32 %v4204, %v4210
      %v4253 = vmul.f32 %v3959, %v4210
      %v4254 = vmul.f32 %v3960, %v4210
      %v4255 = vmul.f32 %v4205, %v4210
      %v4256 = vmul.f32 %v3961, %v4210
      %v4257 = vmul.f32 %v3962, %v4210
      %v4258 = vmul.f32 %v4206, %v4210
      %v4307 = vrot.slane %v4211, 1
      %v4308 = vrot.slane %v4212, 1
      %v4309 = vsel %vm1735, %v4307, %v4308
      %v4310 = vrot.slane %v4213, 1
      %v4311 = vsel %vm1735, %v4308, %v4310
      %v4312 = vrot.slane %v4214, 1
      %v4313 = vrot.slane %v4215, 1
      %v4314 = vsel %vm1735, %v4312, %v4313
      %v4315 = vrot.slane %v4216, 1
      %v4316 = vsel %vm1735, %v4313, %v4315
      %v4317 = vrot.slane %v4217, 1
      %v4318 = vrot.slane %v4218, 1
      %v4319 = vsel %vm1735, %v4317, %v4318
      %v4320 = vrot.slane %v4219, 1
      %v4321 = vsel %vm1735, %v4318, %v4320
      %v4322 = vrot.slane %v4220, 1
      %v4323 = vrot.slane %v4221, 1
      %v4324 = vsel %vm1735, %v4322, %v4323
      %v4325 = vrot.slane %v4222, 1
      %v4326 = vsel %vm1735, %v4323, %v4325
      %v4327 = vrot.slane %v4223, 1
      %v4328 = vrot.slane %v4224, 1
      %v4329 = vsel %vm1735, %v4327, %v4328
      %v4330 = vrot.slane %v4225, 1
      %v4331 = vsel %vm1735, %v4328, %v4330
      %v4332 = vrot.slane %v4226, 1
      %v4333 = vrot.slane %v4227, 1
      %v4334 = vsel %vm1735, %v4332, %v4333
      %v4335 = vrot.slane %v4228, 1
      %v4336 = vsel %vm1735, %v4333, %v4335
      %v4337 = vrot.slane %v4229, 1
      %v4338 = vrot.slane %v4230, 1
      %v4339 = vsel %vm1735, %v4337, %v4338
      %v4340 = vrot.slane %v4231, 1
      %v4341 = vsel %vm1735, %v4338, %v4340
      %v4342 = vrot.slane %v4232, 1
      %v4343 = vrot.slane %v4233, 1
      %v4344 = vsel %vm1735, %v4342, %v4343
      %v4345 = vrot.slane %v4234, 1
      %v4346 = vsel %vm1735, %v4343, %v4345
      %v4347 = vrot.slane %v4235, 1
      %v4348 = vrot.slane %v4236, 1
      %v4349 = vsel %vm1735, %v4347, %v4348
      %v4350 = vrot.slane %v4237, 1
      %v4351 = vsel %vm1735, %v4348, %v4350
      %v4352 = vrot.slane %v4238, 1
      %v4353 = vrot.slane %v4239, 1
      %v4354 = vsel %vm1735, %v4352, %v4353
      %v4355 = vrot.slane %v4240, 1
      %v4356 = vsel %vm1735, %v4353, %v4355
      %v4357 = vrot.slane %v4241, 1
      %v4358 = vrot.slane %v4242, 1
      %v4359 = vsel %vm1735, %v4357, %v4358
      %v4360 = vrot.slane %v4243, 1
      %v4361 = vsel %vm1735, %v4358, %v4360
      %v4362 = vrot.slane %v4244, 1
      %v4363 = vrot.slane %v4245, 1
      %v4364 = vsel %vm1735, %v4362, %v4363
      %v4365 = vrot.slane %v4246, 1
      %v4366 = vsel %vm1735, %v4363, %v4365
      %v4367 = vrot.slane %v4247, 1
      %v4368 = vrot.slane %v4248, 1
      %v4369 = vsel %vm1735, %v4367, %v4368
      %v4370 = vrot.slane %v4249, 1
      %v4371 = vsel %vm1735, %v4368, %v4370
      %v4372 = vrot.slane %v4250, 1
      %v4373 = vrot.slane %v4251, 1
      %v4374 = vsel %vm1735, %v4372, %v4373
      %v4375 = vrot.slane %v4252, 1
      %v4376 = vsel %vm1735, %v4373, %v4375
      %v4377 = vrot.slane %v4253, 1
      %v4378 = vrot.slane %v4254, 1
      %v4379 = vsel %vm1735, %v4377, %v4378
      %v4380 = vrot.slane %v4255, 1
      %v4381 = vsel %vm1735, %v4378, %v4380
      %v4382 = vrot.slane %v4256, 1
      %v4383 = vrot.slane %v4257, 1
      %v4384 = vsel %vm1735, %v4382, %v4383
      %v4385 = vrot.slane %v4258, 1
      %v4386 = vsel %vm1735, %v4383, %v4385
      %v4419 = vadd.f32 %v3866, %v4309
      %v4420 = vadd.f32 %v3867, %v4311
      %v4421 = vadd.f32 %v3868, %v4314
      %v4422 = vadd.f32 %v3869, %v4316
      %v4423 = vadd.f32 %v3870, %v4319
      %v4424 = vadd.f32 %v3871, %v4321
      %v4425 = vadd.f32 %v3872, %v4324
      %v4426 = vadd.f32 %v3873, %v4326
      %v4427 = vadd.f32 %v3874, %v4329
      %v4428 = vadd.f32 %v3875, %v4331
      %v4429 = vadd.f32 %v3876, %v4334
      %v4430 = vadd.f32 %v3877, %v4336
      %v4431 = vadd.f32 %v3878, %v4339
      %v4432 = vadd.f32 %v3879, %v4341
      %v4433 = vadd.f32 %v3880, %v4344
      %v4434 = vadd.f32 %v3881, %v4346
      %v4435 = vadd.f32 %v3882, %v4349
      %v4436 = vadd.f32 %v3883, %v4351
      %v4437 = vadd.f32 %v3884, %v4354
      %v4438 = vadd.f32 %v3885, %v4356
      %v4439 = vadd.f32 %v3886, %v4359
      %v4440 = vadd.f32 %v3887, %v4361
      %v4441 = vadd.f32 %v3888, %v4364
      %v4442 = vadd.f32 %v3889, %v4366
      %v4443 = vadd.f32 %v3890, %v4369
      %v4444 = vadd.f32 %v3891, %v4371
      %v4445 = vadd.f32 %v3892, %v4374
      %v4446 = vadd.f32 %v3893, %v4376
      %v4447 = vadd.f32 %v3894, %v4379
      %v4448 = vadd.f32 %v3895, %v4381
      %v4449 = vadd.f32 %v3896, %v4384
      %v4450 = vadd.f32 %v3897, %v4386
      %v4451 = vld [vmem:[%s3898] sm:$0xe]
      %v4452 = vld [vmem:[%s3898 + $0xc] sm:$0xe]
      %v4453 = vld [vmem:[%s3898 + $0x18] sm:$0xe]
      %v4454 = vld [vmem:[%s3898 + $0x24] sm:$0xe]
      %v4455 = vld [vmem:[%s3898 + $0x30] sm:$0xe]
      %v4456 = vld [vmem:[%s3898 + $0x3c] sm:$0xe]
      %v4457 = vld [vmem:[%s3898 + $0x48] sm:$0xe]
      %v4458 = vld [vmem:[%s3898 + $0x54] sm:$0xe]
      %v4459 = vld [vmem:[%s3898 + $0x60] sm:$0xe]
      %v4460 = vld [vmem:[%s3898 + $0x6c] sm:$0xe]
      %v4461 = vld [vmem:[%s3898 + $0x78] sm:$0xe]
      %v4462 = vld [vmem:[%s3898 + $0x84] sm:$0xe]
      %v4463 = vld [vmem:[%s3898 + $0x90] sm:$0xe]
      %v4464 = vld [vmem:[%s3898 + $0x9c] sm:$0xe]
      %v4465 = vld [vmem:[%s3898 + $0xa8] sm:$0xe]
      %v4466 = vld [vmem:[%s3898 + $0xb4] sm:$0xe]
      %v4467 = vunpack.c.l.bf16 %v4451
      %v4468 = vunpack.c.l.bf16 %v4452
      %v4469 = vunpack.c.l.bf16 %v4453
      %v4470 = vunpack.c.l.bf16 %v4454
      %v4471 = vunpack.c.l.bf16 %v4455
      %v4472 = vunpack.c.l.bf16 %v4456
      %v4473 = vunpack.c.l.bf16 %v4457
      %v4474 = vunpack.c.l.bf16 %v4458
      %v4475 = vunpack.c.l.bf16 %v4459
      %v4476 = vunpack.c.l.bf16 %v4460
      %v4477 = vunpack.c.l.bf16 %v4461
      %v4478 = vunpack.c.l.bf16 %v4462
      %v4479 = vunpack.c.l.bf16 %v4463
      %v4480 = vunpack.c.l.bf16 %v4464
      %v4481 = vunpack.c.l.bf16 %v4465
      %v4482 = vunpack.c.l.bf16 %v4466
      %v4483 = vlaneseq
      %v4484 = vshrl.u32 %v4483, 7
      %v4485 = vsub.s32 2, %v4484
      %v4486 = vrot.slane %v277, %v4485
      %v4487 = vmul.f32 %v4467, %v4486
      %v4488 = vmul.f32 %v3932, %v4486
      %v4489 = vmul.f32 %v4191, %v4486
      %v4490 = vmul.f32 %v4468, %v4486
      %v4491 = vmul.f32 %v3934, %v4486
      %v4492 = vmul.f32 %v4192, %v4486
      %v4493 = vmul.f32 %v4469, %v4486
      %v4494 = vmul.f32 %v3936, %v4486
      %v4495 = vmul.f32 %v4193, %v4486
      %v4496 = vmul.f32 %v4470, %v4486
      %v4497 = vmul.f32 %v3938, %v4486
      %v4498 = vmul.f32 %v4194, %v4486
      %v4499 = vmul.f32 %v4471, %v4486
      %v4500 = vmul.f32 %v3940, %v4486
      %v4501 = vmul.f32 %v4195, %v4486
      %v4502 = vmul.f32 %v4472, %v4486
      %v4503 = vmul.f32 %v3942, %v4486
      %v4504 = vmul.f32 %v4196, %v4486
      %v4505 = vmul.f32 %v4473, %v4486
      %v4506 = vmul.f32 %v3944, %v4486
      %v4507 = vmul.f32 %v4197, %v4486
      %v4508 = vmul.f32 %v4474, %v4486
      %v4509 = vmul.f32 %v3946, %v4486
      %v4510 = vmul.f32 %v4198, %v4486
      %v4511 = vmul.f32 %v4475, %v4486
      %v4512 = vmul.f32 %v3948, %v4486
      %v4513 = vmul.f32 %v4199, %v4486
      %v4514 = vmul.f32 %v4476, %v4486
      %v4515 = vmul.f32 %v3950, %v4486
      %v4516 = vmul.f32 %v4200, %v4486
      %v4517 = vmul.f32 %v4477, %v4486
      %v4518 = vmul.f32 %v3952, %v4486
      %v4519 = vmul.f32 %v4201, %v4486
      %v4520 = vmul.f32 %v4478, %v4486
      %v4521 = vmul.f32 %v3954, %v4486
      %v4522 = vmul.f32 %v4202, %v4486
      %v4523 = vmul.f32 %v4479, %v4486
      %v4524 = vmul.f32 %v3956, %v4486
      %v4525 = vmul.f32 %v4203, %v4486
      %v4526 = vmul.f32 %v4480, %v4486
      %v4527 = vmul.f32 %v3958, %v4486
      %v4528 = vmul.f32 %v4204, %v4486
      %v4529 = vmul.f32 %v4481, %v4486
      %v4530 = vmul.f32 %v3960, %v4486
      %v4531 = vmul.f32 %v4205, %v4486
      %v4532 = vmul.f32 %v4482, %v4486
      %v4533 = vmul.f32 %v3962, %v4486
      %v4534 = vmul.f32 %v4206, %v4486
      %v4583 = vrot.slane %v4487, 1
      %v4584 = vrot.slane %v4488, 1
      %v4585 = vsel %vm1735, %v4583, %v4584
      %v4586 = vrot.slane %v4489, 1
      %v4587 = vsel %vm1735, %v4584, %v4586
      %v4588 = vrot.slane %v4490, 1
      %v4589 = vrot.slane %v4491, 1
      %v4590 = vsel %vm1735, %v4588, %v4589
      %v4591 = vrot.slane %v4492, 1
      %v4592 = vsel %vm1735, %v4589, %v4591
      %v4593 = vrot.slane %v4493, 1
      %v4594 = vrot.slane %v4494, 1
      %v4595 = vsel %vm1735, %v4593, %v4594
      %v4596 = vrot.slane %v4495, 1
      %v4597 = vsel %vm1735, %v4594, %v4596
      %v4598 = vrot.slane %v4496, 1
      %v4599 = vrot.slane %v4497, 1
      %v4600 = vsel %vm1735, %v4598, %v4599
      %v4601 = vrot.slane %v4498, 1
      %v4602 = vsel %vm1735, %v4599, %v4601
      %v4603 = vrot.slane %v4499, 1
      %v4604 = vrot.slane %v4500, 1
      %v4605 = vsel %vm1735, %v4603, %v4604
      %v4606 = vrot.slane %v4501, 1
      %v4607 = vsel %vm1735, %v4604, %v4606
      %v4608 = vrot.slane %v4502, 1
      %v4609 = vrot.slane %v4503, 1
      %v4610 = vsel %vm1735, %v4608, %v4609
      %v4611 = vrot.slane %v4504, 1
      %v4612 = vsel %vm1735, %v4609, %v4611
      %v4613 = vrot.slane %v4505, 1
      %v4614 = vrot.slane %v4506, 1
      %v4615 = vsel %vm1735, %v4613, %v4614
      %v4616 = vrot.slane %v4507, 1
      %v4617 = vsel %vm1735, %v4614, %v4616
      %v4618 = vrot.slane %v4508, 1
      %v4619 = vrot.slane %v4509, 1
      %v4620 = vsel %vm1735, %v4618, %v4619
      %v4621 = vrot.slane %v4510, 1
      %v4622 = vsel %vm1735, %v4619, %v4621
      %v4623 = vrot.slane %v4511, 1
      %v4624 = vrot.slane %v4512, 1
      %v4625 = vsel %vm1735, %v4623, %v4624
      %v4626 = vrot.slane %v4513, 1
      %v4627 = vsel %vm1735, %v4624, %v4626
      %v4628 = vrot.slane %v4514, 1
      %v4629 = vrot.slane %v4515, 1
      %v4630 = vsel %vm1735, %v4628, %v4629
      %v4631 = vrot.slane %v4516, 1
      %v4632 = vsel %vm1735, %v4629, %v4631
      %v4633 = vrot.slane %v4517, 1
      %v4634 = vrot.slane %v4518, 1
      %v4635 = vsel %vm1735, %v4633, %v4634
      %v4636 = vrot.slane %v4519, 1
      %v4637 = vsel %vm1735, %v4634, %v4636
      %v4638 = vrot.slane %v4520, 1
      %v4639 = vrot.slane %v4521, 1
      %v4640 = vsel %vm1735, %v4638, %v4639
      %v4641 = vrot.slane %v4522, 1
      %v4642 = vsel %vm1735, %v4639, %v4641
      %v4643 = vrot.slane %v4523, 1
      %v4644 = vrot.slane %v4524, 1
      %v4645 = vsel %vm1735, %v4643, %v4644
      %v4646 = vrot.slane %v4525, 1
      %v4647 = vsel %vm1735, %v4644, %v4646
      %v4648 = vrot.slane %v4526, 1
      %v4649 = vrot.slane %v4527, 1
      %v4650 = vsel %vm1735, %v4648, %v4649
      %v4651 = vrot.slane %v4528, 1
      %v4652 = vsel %vm1735, %v4649, %v4651
      %v4653 = vrot.slane %v4529, 1
      %v4654 = vrot.slane %v4530, 1
      %v4655 = vsel %vm1735, %v4653, %v4654
      %v4656 = vrot.slane %v4531, 1
      %v4657 = vsel %vm1735, %v4654, %v4656
      %v4658 = vrot.slane %v4532, 1
      %v4659 = vrot.slane %v4533, 1
      %v4660 = vsel %vm1735, %v4658, %v4659
      %v4661 = vrot.slane %v4534, 1
      %v4662 = vsel %vm1735, %v4659, %v4661
      %v4711 = vadd.f32 %v4127, %v4585
      %v4712 = vadd.f32 %v4128, %v4587
      %v4713 = vadd.f32 %v4129, %v4586
      %v4714 = vadd.f32 %v4130, %v4590
      %v4715 = vadd.f32 %v4131, %v4592
      %v4716 = vadd.f32 %v4132, %v4591
      %v4717 = vadd.f32 %v4133, %v4595
      %v4718 = vadd.f32 %v4134, %v4597
      %v4719 = vadd.f32 %v4135, %v4596
      %v4720 = vadd.f32 %v4136, %v4600
      %v4721 = vadd.f32 %v4137, %v4602
      %v4722 = vadd.f32 %v4138, %v4601
      %v4723 = vadd.f32 %v4139, %v4605
      %v4724 = vadd.f32 %v4140, %v4607
      %v4725 = vadd.f32 %v4141, %v4606
      %v4726 = vadd.f32 %v4142, %v4610
      %v4727 = vadd.f32 %v4143, %v4612
      %v4728 = vadd.f32 %v4144, %v4611
      %v4729 = vadd.f32 %v4145, %v4615
      %v4730 = vadd.f32 %v4146, %v4617
      %v4731 = vadd.f32 %v4147, %v4616
      %v4732 = vadd.f32 %v4148, %v4620
      %v4733 = vadd.f32 %v4149, %v4622
      %v4734 = vadd.f32 %v4150, %v4621
      %v4735 = vadd.f32 %v4151, %v4625
      %v4736 = vadd.f32 %v4152, %v4627
      %v4737 = vadd.f32 %v4153, %v4626
      %v4738 = vadd.f32 %v4154, %v4630
      %v4739 = vadd.f32 %v4155, %v4632
      %v4740 = vadd.f32 %v4156, %v4631
      %v4741 = vadd.f32 %v4157, %v4635
      %v4742 = vadd.f32 %v4158, %v4637
      %v4743 = vadd.f32 %v4159, %v4636
      %v4744 = vadd.f32 %v4160, %v4640
      %v4745 = vadd.f32 %v4161, %v4642
      %v4746 = vadd.f32 %v4162, %v4641
      %v4747 = vadd.f32 %v4163, %v4645
      %v4748 = vadd.f32 %v4164, %v4647
      %v4749 = vadd.f32 %v4165, %v4646
      %v4750 = vadd.f32 %v4166, %v4650
      %v4751 = vadd.f32 %v4167, %v4652
      %v4752 = vadd.f32 %v4168, %v4651
      %v4753 = vadd.f32 %v4169, %v4655
      %v4754 = vadd.f32 %v4170, %v4657
      %v4755 = vadd.f32 %v4171, %v4656
      %v4756 = vadd.f32 %v4172, %v4660
      %v4757 = vadd.f32 %v4173, %v4662
      %v4758 = vadd.f32 %v4174, %v4661
      %v4759 = vld [vmem:[%s3898 + $0x8] sm:$0x3]
      %v4760 = vld [vmem:[%s3898 + $0x14] sm:$0x3]
      %v4761 = vld [vmem:[%s3898 + $0x20] sm:$0x3]
      %v4762 = vld [vmem:[%s3898 + $0x2c] sm:$0x3]
      %v4763 = vld [vmem:[%s3898 + $0x38] sm:$0x3]
      %v4764 = vld [vmem:[%s3898 + $0x44] sm:$0x3]
      %v4765 = vld [vmem:[%s3898 + $0x50] sm:$0x3]
      %v4766 = vld [vmem:[%s3898 + $0x5c] sm:$0x3]
      %v4767 = vld [vmem:[%s3898 + $0x68] sm:$0x3]
      %v4768 = vld [vmem:[%s3898 + $0x74] sm:$0x3]
      %v4769 = vld [vmem:[%s3898 + $0x80] sm:$0x3]
      %v4770 = vld [vmem:[%s3898 + $0x8c] sm:$0x3]
      %v4771 = vld [vmem:[%s3898 + $0x98] sm:$0x3]
      %v4772 = vld [vmem:[%s3898 + $0xa4] sm:$0x3]
      %v4773 = vld [vmem:[%s3898 + $0xb0] sm:$0x3]
      %v4774 = vld [vmem:[%s3898 + $0xbc] sm:$0x3]
      %v4775 = vunpack.c.l.bf16 %v4759
      %v4776 = vunpack.c.l.bf16 %v4760
      %v4777 = vunpack.c.l.bf16 %v4761
      %v4778 = vunpack.c.l.bf16 %v4762
      %v4779 = vunpack.c.l.bf16 %v4763
      %v4780 = vunpack.c.l.bf16 %v4764
      %v4781 = vunpack.c.l.bf16 %v4765
      %v4782 = vunpack.c.l.bf16 %v4766
      %v4783 = vunpack.c.l.bf16 %v4767
      %v4784 = vunpack.c.l.bf16 %v4768
      %v4785 = vunpack.c.l.bf16 %v4769
      %v4786 = vunpack.c.l.bf16 %v4770
      %v4787 = vunpack.c.l.bf16 %v4771
      %v4788 = vunpack.c.l.bf16 %v4772
      %v4789 = vunpack.c.l.bf16 %v4773
      %v4790 = vunpack.c.l.bf16 %v4774
      %v4791 = vlaneseq
      %v4792 = vshrl.u32 %v4791, 7
      %v4793 = vsub.s32 3, %v4792
      %v4794 = vrot.slane %v277, %v4793
      %v4795 = vmul.f32 %v4467, %v4794
      %v4796 = vmul.f32 %v3932, %v4794
      %v4797 = vmul.f32 %v4775, %v4794
      %v4798 = vmul.f32 %v4468, %v4794
      %v4799 = vmul.f32 %v3934, %v4794
      %v4800 = vmul.f32 %v4776, %v4794
      %v4801 = vmul.f32 %v4469, %v4794
      %v4802 = vmul.f32 %v3936, %v4794
      %v4803 = vmul.f32 %v4777, %v4794
      %v4804 = vmul.f32 %v4470, %v4794
      %v4805 = vmul.f32 %v3938, %v4794
      %v4806 = vmul.f32 %v4778, %v4794
      %v4807 = vmul.f32 %v4471, %v4794
      %v4808 = vmul.f32 %v3940, %v4794
      %v4809 = vmul.f32 %v4779, %v4794
      %v4810 = vmul.f32 %v4472, %v4794
      %v4811 = vmul.f32 %v3942, %v4794
      %v4812 = vmul.f32 %v4780, %v4794
      %v4813 = vmul.f32 %v4473, %v4794
      %v4814 = vmul.f32 %v3944, %v4794
      %v4815 = vmul.f32 %v4781, %v4794
      %v4816 = vmul.f32 %v4474, %v4794
      %v4817 = vmul.f32 %v3946, %v4794
      %v4818 = vmul.f32 %v4782, %v4794
      %v4819 = vmul.f32 %v4475, %v4794
      %v4820 = vmul.f32 %v3948, %v4794
      %v4821 = vmul.f32 %v4783, %v4794
      %v4822 = vmul.f32 %v4476, %v4794
      %v4823 = vmul.f32 %v3950, %v4794
      %v4824 = vmul.f32 %v4784, %v4794
      %v4825 = vmul.f32 %v4477, %v4794
      %v4826 = vmul.f32 %v3952, %v4794
      %v4827 = vmul.f32 %v4785, %v4794
      %v4828 = vmul.f32 %v4478, %v4794
      %v4829 = vmul.f32 %v3954, %v4794
      %v4830 = vmul.f32 %v4786, %v4794
      %v4831 = vmul.f32 %v4479, %v4794
      %v4832 = vmul.f32 %v3956, %v4794
      %v4833 = vmul.f32 %v4787, %v4794
      %v4834 = vmul.f32 %v4480, %v4794
      %v4835 = vmul.f32 %v3958, %v4794
      %v4836 = vmul.f32 %v4788, %v4794
      %v4837 = vmul.f32 %v4481, %v4794
      %v4838 = vmul.f32 %v3960, %v4794
      %v4839 = vmul.f32 %v4789, %v4794
      %v4840 = vmul.f32 %v4482, %v4794
      %v4841 = vmul.f32 %v3962, %v4794
      %v4842 = vmul.f32 %v4790, %v4794
      %v4891 = vrot.slane %v4795, 3
      %v4892 = vrot.slane %v4796, 3
      %v4893 = vsel %vm2320, %v4891, %v4892
      %v4894 = vrot.slane %v4797, 3
      %v4895 = vsel %vm2320, %v4892, %v4894
      %v4896 = vrot.slane %v4798, 3
      %v4897 = vrot.slane %v4799, 3
      %v4898 = vsel %vm2320, %v4896, %v4897
      %v4899 = vrot.slane %v4800, 3
      %v4900 = vsel %vm2320, %v4897, %v4899
      %v4901 = vrot.slane %v4801, 3
      %v4902 = vrot.slane %v4802, 3
      %v4903 = vsel %vm2320, %v4901, %v4902
      %v4904 = vrot.slane %v4803, 3
      %v4905 = vsel %vm2320, %v4902, %v4904
      %v4906 = vrot.slane %v4804, 3
      %v4907 = vrot.slane %v4805, 3
      %v4908 = vsel %vm2320, %v4906, %v4907
      %v4909 = vrot.slane %v4806, 3
      %v4910 = vsel %vm2320, %v4907, %v4909
      %v4911 = vrot.slane %v4807, 3
      %v4912 = vrot.slane %v4808, 3
      %v4913 = vsel %vm2320, %v4911, %v4912
      %v4914 = vrot.slane %v4809, 3
      %v4915 = vsel %vm2320, %v4912, %v4914
      %v4916 = vrot.slane %v4810, 3
      %v4917 = vrot.slane %v4811, 3
      %v4918 = vsel %vm2320, %v4916, %v4917
      %v4919 = vrot.slane %v4812, 3
      %v4920 = vsel %vm2320, %v4917, %v4919
      %v4921 = vrot.slane %v4813, 3
      %v4922 = vrot.slane %v4814, 3
      %v4923 = vsel %vm2320, %v4921, %v4922
      %v4924 = vrot.slane %v4815, 3
      %v4925 = vsel %vm2320, %v4922, %v4924
      %v4926 = vrot.slane %v4816, 3
      %v4927 = vrot.slane %v4817, 3
      %v4928 = vsel %vm2320, %v4926, %v4927
      %v4929 = vrot.slane %v4818, 3
      %v4930 = vsel %vm2320, %v4927, %v4929
      %v4931 = vrot.slane %v4819, 3
      %v4932 = vrot.slane %v4820, 3
      %v4933 = vsel %vm2320, %v4931, %v4932
      %v4934 = vrot.slane %v4821, 3
      %v4935 = vsel %vm2320, %v4932, %v4934
      %v4936 = vrot.slane %v4822, 3
      %v4937 = vrot.slane %v4823, 3
      %v4938 = vsel %vm2320, %v4936, %v4937
      %v4939 = vrot.slane %v4824, 3
      %v4940 = vsel %vm2320, %v4937, %v4939
      %v4941 = vrot.slane %v4825, 3
      %v4942 = vrot.slane %v4826, 3
      %v4943 = vsel %vm2320, %v4941, %v4942
      %v4944 = vrot.slane %v4827, 3
      %v4945 = vsel %vm2320, %v4942, %v4944
      %v4946 = vrot.slane %v4828, 3
      %v4947 = vrot.slane %v4829, 3
      %v4948 = vsel %vm2320, %v4946, %v4947
      %v4949 = vrot.slane %v4830, 3
      %v4950 = vsel %vm2320, %v4947, %v4949
      %v4951 = vrot.slane %v4831, 3
      %v4952 = vrot.slane %v4832, 3
      %v4953 = vsel %vm2320, %v4951, %v4952
      %v4954 = vrot.slane %v4833, 3
      %v4955 = vsel %vm2320, %v4952, %v4954
      %v4956 = vrot.slane %v4834, 3
      %v4957 = vrot.slane %v4835, 3
      %v4958 = vsel %vm2320, %v4956, %v4957
      %v4959 = vrot.slane %v4836, 3
      %v4960 = vsel %vm2320, %v4957, %v4959
      %v4961 = vrot.slane %v4837, 3
      %v4962 = vrot.slane %v4838, 3
      %v4963 = vsel %vm2320, %v4961, %v4962
      %v4964 = vrot.slane %v4839, 3
      %v4965 = vsel %vm2320, %v4962, %v4964
      %v4966 = vrot.slane %v4840, 3
      %v4967 = vrot.slane %v4841, 3
      %v4968 = vsel %vm2320, %v4966, %v4967
      %v4969 = vrot.slane %v4842, 3
      %v4970 = vsel %vm2320, %v4967, %v4969
      %v5003 = vadd.f32 %v4419, %v4893
      %v5004 = vadd.f32 %v4420, %v4895
      %v5005 = vadd.f32 %v4421, %v4898
      %v5006 = vadd.f32 %v4422, %v4900
      %v5007 = vadd.f32 %v4423, %v4903
      %v5008 = vadd.f32 %v4424, %v4905
      %v5009 = vadd.f32 %v4425, %v4908
      %v5010 = vadd.f32 %v4426, %v4910
      %v5011 = vadd.f32 %v4427, %v4913
      %v5012 = vadd.f32 %v4428, %v4915
      %v5013 = vadd.f32 %v4429, %v4918
      %v5014 = vadd.f32 %v4430, %v4920
      %v5015 = vadd.f32 %v4431, %v4923
      %v5016 = vadd.f32 %v4432, %v4925
      %v5017 = vadd.f32 %v4433, %v4928
      %v5018 = vadd.f32 %v4434, %v4930
      %v5019 = vadd.f32 %v4435, %v4933
      %v5020 = vadd.f32 %v4436, %v4935
      %v5021 = vadd.f32 %v4437, %v4938
      %v5022 = vadd.f32 %v4438, %v4940
      %v5023 = vadd.f32 %v4439, %v4943
      %v5024 = vadd.f32 %v4440, %v4945
      %v5025 = vadd.f32 %v4441, %v4948
      %v5026 = vadd.f32 %v4442, %v4950
      %v5027 = vadd.f32 %v4443, %v4953
      %v5028 = vadd.f32 %v4444, %v4955
      %v5029 = vadd.f32 %v4445, %v4958
      %v5030 = vadd.f32 %v4446, %v4960
      %v5031 = vadd.f32 %v4447, %v4963
      %v5032 = vadd.f32 %v4448, %v4965
      %v5033 = vadd.f32 %v4449, %v4968
      %v5034 = vadd.f32 %v4450, %v4970
      %v5035 = vld [vmem:[%s3898] sm:$0xc]
      %v5036 = vld [vmem:[%s3898 + $0xc] sm:$0xc]
      %v5037 = vld [vmem:[%s3898 + $0x18] sm:$0xc]
      %v5038 = vld [vmem:[%s3898 + $0x24] sm:$0xc]
      %v5039 = vld [vmem:[%s3898 + $0x30] sm:$0xc]
      %v5040 = vld [vmem:[%s3898 + $0x3c] sm:$0xc]
      %v5041 = vld [vmem:[%s3898 + $0x48] sm:$0xc]
      %v5042 = vld [vmem:[%s3898 + $0x54] sm:$0xc]
      %v5043 = vld [vmem:[%s3898 + $0x60] sm:$0xc]
      %v5044 = vld [vmem:[%s3898 + $0x6c] sm:$0xc]
      %v5045 = vld [vmem:[%s3898 + $0x78] sm:$0xc]
      %v5046 = vld [vmem:[%s3898 + $0x84] sm:$0xc]
      %v5047 = vld [vmem:[%s3898 + $0x90] sm:$0xc]
      %v5048 = vld [vmem:[%s3898 + $0x9c] sm:$0xc]
      %v5049 = vld [vmem:[%s3898 + $0xa8] sm:$0xc]
      %v5050 = vld [vmem:[%s3898 + $0xb4] sm:$0xc]
      %v5051 = vunpack.c.l.bf16 %v5035
      %v5052 = vunpack.c.l.bf16 %v5036
      %v5053 = vunpack.c.l.bf16 %v5037
      %v5054 = vunpack.c.l.bf16 %v5038
      %v5055 = vunpack.c.l.bf16 %v5039
      %v5056 = vunpack.c.l.bf16 %v5040
      %v5057 = vunpack.c.l.bf16 %v5041
      %v5058 = vunpack.c.l.bf16 %v5042
      %v5059 = vunpack.c.l.bf16 %v5043
      %v5060 = vunpack.c.l.bf16 %v5044
      %v5061 = vunpack.c.l.bf16 %v5045
      %v5062 = vunpack.c.l.bf16 %v5046
      %v5063 = vunpack.c.l.bf16 %v5047
      %v5064 = vunpack.c.l.bf16 %v5048
      %v5065 = vunpack.c.l.bf16 %v5049
      %v5066 = vunpack.c.l.bf16 %v5050
      %v5067 = vlaneseq
      %v5068 = vshrl.u32 %v5067, 7
      %v5069 = vsub.s32 4, %v5068
      %v5070 = vrot.slane %v277, %v5069
      %v5071 = vmul.f32 %v5051, %v5070
      %v5072 = vmul.f32 %v3932, %v5070
      %v5073 = vmul.f32 %v4775, %v5070
      %v5074 = vmul.f32 %v5052, %v5070
      %v5075 = vmul.f32 %v3934, %v5070
      %v5076 = vmul.f32 %v4776, %v5070
      %v5077 = vmul.f32 %v5053, %v5070
      %v5078 = vmul.f32 %v3936, %v5070
      %v5079 = vmul.f32 %v4777, %v5070
      %v5080 = vmul.f32 %v5054, %v5070
      %v5081 = vmul.f32 %v3938, %v5070
      %v5082 = vmul.f32 %v4778, %v5070
      %v5083 = vmul.f32 %v5055, %v5070
      %v5084 = vmul.f32 %v3940, %v5070
      %v5085 = vmul.f32 %v4779, %v5070
      %v5086 = vmul.f32 %v5056, %v5070
      %v5087 = vmul.f32 %v3942, %v5070
      %v5088 = vmul.f32 %v4780, %v5070
      %v5089 = vmul.f32 %v5057, %v5070
      %v5090 = vmul.f32 %v3944, %v5070
      %v5091 = vmul.f32 %v4781, %v5070
      %v5092 = vmul.f32 %v5058, %v5070
      %v5093 = vmul.f32 %v3946, %v5070
      %v5094 = vmul.f32 %v4782, %v5070
      %v5095 = vmul.f32 %v5059, %v5070
      %v5096 = vmul.f32 %v3948, %v5070
      %v5097 = vmul.f32 %v4783, %v5070
      %v5098 = vmul.f32 %v5060, %v5070
      %v5099 = vmul.f32 %v3950, %v5070
      %v5100 = vmul.f32 %v4784, %v5070
      %v5101 = vmul.f32 %v5061, %v5070
      %v5102 = vmul.f32 %v3952, %v5070
      %v5103 = vmul.f32 %v4785, %v5070
      %v5104 = vmul.f32 %v5062, %v5070
      %v5105 = vmul.f32 %v3954, %v5070
      %v5106 = vmul.f32 %v4786, %v5070
      %v5107 = vmul.f32 %v5063, %v5070
      %v5108 = vmul.f32 %v3956, %v5070
      %v5109 = vmul.f32 %v4787, %v5070
      %v5110 = vmul.f32 %v5064, %v5070
      %v5111 = vmul.f32 %v3958, %v5070
      %v5112 = vmul.f32 %v4788, %v5070
      %v5113 = vmul.f32 %v5065, %v5070
      %v5114 = vmul.f32 %v3960, %v5070
      %v5115 = vmul.f32 %v4789, %v5070
      %v5116 = vmul.f32 %v5066, %v5070
      %v5117 = vmul.f32 %v3962, %v5070
      %v5118 = vmul.f32 %v4790, %v5070
      %v5167 = vrot.slane %v5071, 3
      %v5168 = vrot.slane %v5072, 3
      %v5169 = vsel %vm2320, %v5167, %v5168
      %v5170 = vrot.slane %v5073, 3
      %v5171 = vsel %vm2320, %v5168, %v5170
      %v5172 = vrot.slane %v5074, 3
      %v5173 = vrot.slane %v5075, 3
      %v5174 = vsel %vm2320, %v5172, %v5173
      %v5175 = vrot.slane %v5076, 3
      %v5176 = vsel %vm2320, %v5173, %v5175
      %v5177 = vrot.slane %v5077, 3
      %v5178 = vrot.slane %v5078, 3
      %v5179 = vsel %vm2320, %v5177, %v5178
      %v5180 = vrot.slane %v5079, 3
      %v5181 = vsel %vm2320, %v5178, %v5180
      %v5182 = vrot.slane %v5080, 3
      %v5183 = vrot.slane %v5081, 3
      %v5184 = vsel %vm2320, %v5182, %v5183
      %v5185 = vrot.slane %v5082, 3
      %v5186 = vsel %vm2320, %v5183, %v5185
      %v5187 = vrot.slane %v5083, 3
      %v5188 = vrot.slane %v5084, 3
      %v5189 = vsel %vm2320, %v5187, %v5188
      %v5190 = vrot.slane %v5085, 3
      %v5191 = vsel %vm2320, %v5188, %v5190
      %v5192 = vrot.slane %v5086, 3
      %v5193 = vrot.slane %v5087, 3
      %v5194 = vsel %vm2320, %v5192, %v5193
      %v5195 = vrot.slane %v5088, 3
      %v5196 = vsel %vm2320, %v5193, %v5195
      %v5197 = vrot.slane %v5089, 3
      %v5198 = vrot.slane %v5090, 3
      %v5199 = vsel %vm2320, %v5197, %v5198
      %v5200 = vrot.slane %v5091, 3
      %v5201 = vsel %vm2320, %v5198, %v5200
      %v5202 = vrot.slane %v5092, 3
      %v5203 = vrot.slane %v5093, 3
      %v5204 = vsel %vm2320, %v5202, %v5203
      %v5205 = vrot.slane %v5094, 3
      %v5206 = vsel %vm2320, %v5203, %v5205
      %v5207 = vrot.slane %v5095, 3
      %v5208 = vrot.slane %v5096, 3
      %v5209 = vsel %vm2320, %v5207, %v5208
      %v5210 = vrot.slane %v5097, 3
      %v5211 = vsel %vm2320, %v5208, %v5210
      %v5212 = vrot.slane %v5098, 3
      %v5213 = vrot.slane %v5099, 3
      %v5214 = vsel %vm2320, %v5212, %v5213
      %v5215 = vrot.slane %v5100, 3
      %v5216 = vsel %vm2320, %v5213, %v5215
      %v5217 = vrot.slane %v5101, 3
      %v5218 = vrot.slane %v5102, 3
      %v5219 = vsel %vm2320, %v5217, %v5218
      %v5220 = vrot.slane %v5103, 3
      %v5221 = vsel %vm2320, %v5218, %v5220
      %v5222 = vrot.slane %v5104, 3
      %v5223 = vrot.slane %v5105, 3
      %v5224 = vsel %vm2320, %v5222, %v5223
      %v5225 = vrot.slane %v5106, 3
      %v5226 = vsel %vm2320, %v5223, %v5225
      %v5227 = vrot.slane %v5107, 3
      %v5228 = vrot.slane %v5108, 3
      %v5229 = vsel %vm2320, %v5227, %v5228
      %v5230 = vrot.slane %v5109, 3
      %v5231 = vsel %vm2320, %v5228, %v5230
      %v5232 = vrot.slane %v5110, 3
      %v5233 = vrot.slane %v5111, 3
      %v5234 = vsel %vm2320, %v5232, %v5233
      %v5235 = vrot.slane %v5112, 3
      %v5236 = vsel %vm2320, %v5233, %v5235
      %v5237 = vrot.slane %v5113, 3
      %v5238 = vrot.slane %v5114, 3
      %v5239 = vsel %vm2320, %v5237, %v5238
      %v5240 = vrot.slane %v5115, 3
      %v5241 = vsel %vm2320, %v5238, %v5240
      %v5242 = vrot.slane %v5116, 3
      %v5243 = vrot.slane %v5117, 3
      %v5244 = vsel %vm2320, %v5242, %v5243
      %v5245 = vrot.slane %v5118, 3
      %v5246 = vsel %vm2320, %v5243, %v5245
      %v5295 = vadd.f32 %v4711, %v5169
      %v5296 = vadd.f32 %v4712, %v5171
      %v5297 = vadd.f32 %v4713, %v5170
      %v5298 = vadd.f32 %v4714, %v5174
      %v5299 = vadd.f32 %v4715, %v5176
      %v5300 = vadd.f32 %v4716, %v5175
      %v5301 = vadd.f32 %v4717, %v5179
      %v5302 = vadd.f32 %v4718, %v5181
      %v5303 = vadd.f32 %v4719, %v5180
      %v5304 = vadd.f32 %v4720, %v5184
      %v5305 = vadd.f32 %v4721, %v5186
      %v5306 = vadd.f32 %v4722, %v5185
      %v5307 = vadd.f32 %v4723, %v5189
      %v5308 = vadd.f32 %v4724, %v5191
      %v5309 = vadd.f32 %v4725, %v5190
      %v5310 = vadd.f32 %v4726, %v5194
      %v5311 = vadd.f32 %v4727, %v5196
      %v5312 = vadd.f32 %v4728, %v5195
      %v5313 = vadd.f32 %v4729, %v5199
      %v5314 = vadd.f32 %v4730, %v5201
      %v5315 = vadd.f32 %v4731, %v5200
      %v5316 = vadd.f32 %v4732, %v5204
      %v5317 = vadd.f32 %v4733, %v5206
      %v5318 = vadd.f32 %v4734, %v5205
      %v5319 = vadd.f32 %v4735, %v5209
      %v5320 = vadd.f32 %v4736, %v5211
      %v5321 = vadd.f32 %v4737, %v5210
      %v5322 = vadd.f32 %v4738, %v5214
      %v5323 = vadd.f32 %v4739, %v5216
      %v5324 = vadd.f32 %v4740, %v5215
      %v5325 = vadd.f32 %v4741, %v5219
      %v5326 = vadd.f32 %v4742, %v5221
      %v5327 = vadd.f32 %v4743, %v5220
      %v5328 = vadd.f32 %v4744, %v5224
      %v5329 = vadd.f32 %v4745, %v5226
      %v5330 = vadd.f32 %v4746, %v5225
      %v5331 = vadd.f32 %v4747, %v5229
      %v5332 = vadd.f32 %v4748, %v5231
      %v5333 = vadd.f32 %v4749, %v5230
      %v5334 = vadd.f32 %v4750, %v5234
      %v5335 = vadd.f32 %v4751, %v5236
      %v5336 = vadd.f32 %v4752, %v5235
      %v5337 = vadd.f32 %v4753, %v5239
      %v5338 = vadd.f32 %v4754, %v5241
      %v5339 = vadd.f32 %v4755, %v5240
      %v5340 = vadd.f32 %v4756, %v5244
      %v5341 = vadd.f32 %v4757, %v5246
      %v5342 = vadd.f32 %v4758, %v5245
      %s5343 = scalar_lea.vmem %s255, 48
      %v5344 = vld [vmem:[%s5343] sm:$0xf]
      %v5345 = vld [vmem:[%s5343 + $0x4] sm:$0xf]
      %v5346 = vld [vmem:[%s5343 + $0xc] sm:$0xf]
      %v5347 = vld [vmem:[%s5343 + $0x10] sm:$0xf]
      %v5348 = vld [vmem:[%s5343 + $0x18] sm:$0xf]
      %v5349 = vld [vmem:[%s5343 + $0x1c] sm:$0xf]
      %v5350 = vld [vmem:[%s5343 + $0x24] sm:$0xf]
      %v5351 = vld [vmem:[%s5343 + $0x28] sm:$0xf]
      %v5352 = vld [vmem:[%s5343 + $0x30] sm:$0xf]
      %v5353 = vld [vmem:[%s5343 + $0x34] sm:$0xf]
      %v5354 = vld [vmem:[%s5343 + $0x3c] sm:$0xf]
      %v5355 = vld [vmem:[%s5343 + $0x40] sm:$0xf]
      %v5356 = vld [vmem:[%s5343 + $0x48] sm:$0xf]
      %v5357 = vld [vmem:[%s5343 + $0x4c] sm:$0xf]
      %v5358 = vld [vmem:[%s5343 + $0x54] sm:$0xf]
      %v5359 = vld [vmem:[%s5343 + $0x58] sm:$0xf]
      %v5360 = vld [vmem:[%s5343 + $0x60] sm:$0xf]
      %v5361 = vld [vmem:[%s5343 + $0x64] sm:$0xf]
      %v5362 = vld [vmem:[%s5343 + $0x6c] sm:$0xf]
      %v5363 = vld [vmem:[%s5343 + $0x70] sm:$0xf]
      %v5364 = vld [vmem:[%s5343 + $0x78] sm:$0xf]
      %v5365 = vld [vmem:[%s5343 + $0x7c] sm:$0xf]
      %v5366 = vld [vmem:[%s5343 + $0x84] sm:$0xf]
      %v5367 = vld [vmem:[%s5343 + $0x88] sm:$0xf]
      %v5368 = vld [vmem:[%s5343 + $0x90] sm:$0xf]
      %v5369 = vld [vmem:[%s5343 + $0x94] sm:$0xf]
      %v5370 = vld [vmem:[%s5343 + $0x9c] sm:$0xf]
      %v5371 = vld [vmem:[%s5343 + $0xa0] sm:$0xf]
      %v5372 = vld [vmem:[%s5343 + $0xa8] sm:$0xf]
      %v5373 = vld [vmem:[%s5343 + $0xac] sm:$0xf]
      %v5374 = vld [vmem:[%s5343 + $0xb4] sm:$0xf]
      %v5375 = vld [vmem:[%s5343 + $0xb8] sm:$0xf]
      %v5376 = vunpack.c.l.bf16 %v5344
      %v5377 = vunpack.c.l.bf16 %v5345
      %v5378 = vunpack.c.l.bf16 %v5346
      %v5379 = vunpack.c.l.bf16 %v5347
      %v5380 = vunpack.c.l.bf16 %v5348
      %v5381 = vunpack.c.l.bf16 %v5349
      %v5382 = vunpack.c.l.bf16 %v5350
      %v5383 = vunpack.c.l.bf16 %v5351
      %v5384 = vunpack.c.l.bf16 %v5352
      %v5385 = vunpack.c.l.bf16 %v5353
      %v5386 = vunpack.c.l.bf16 %v5354
      %v5387 = vunpack.c.l.bf16 %v5355
      %v5388 = vunpack.c.l.bf16 %v5356
      %v5389 = vunpack.c.l.bf16 %v5357
      %v5390 = vunpack.c.l.bf16 %v5358
      %v5391 = vunpack.c.l.bf16 %v5359
      %v5392 = vunpack.c.l.bf16 %v5360
      %v5393 = vunpack.c.l.bf16 %v5361
      %v5394 = vunpack.c.l.bf16 %v5362
      %v5395 = vunpack.c.l.bf16 %v5363
      %v5396 = vunpack.c.l.bf16 %v5364
      %v5397 = vunpack.c.l.bf16 %v5365
      %v5398 = vunpack.c.l.bf16 %v5366
      %v5399 = vunpack.c.l.bf16 %v5367
      %v5400 = vunpack.c.l.bf16 %v5368
      %v5401 = vunpack.c.l.bf16 %v5369
      %v5402 = vunpack.c.l.bf16 %v5370
      %v5403 = vunpack.c.l.bf16 %v5371
      %v5404 = vunpack.c.l.bf16 %v5372
      %v5405 = vunpack.c.l.bf16 %v5373
      %v5406 = vunpack.c.l.bf16 %v5374
      %v5407 = vunpack.c.l.bf16 %v5375
      %v5408 = vlaneseq
      %v5409 = vshrl.u32 %v5408, 7
      %v5410 = vsub.s32 0, %v5409
      %v5411 = vrot.slane %v278, %v5410
      %v5412 = vmul.f32 %v5376, %v5411
      %v5413 = vmul.f32 %v5377, %v5411
      %v5414 = vmul.f32 %v5378, %v5411
      %v5415 = vmul.f32 %v5379, %v5411
      %v5416 = vmul.f32 %v5380, %v5411
      %v5417 = vmul.f32 %v5381, %v5411
      %v5418 = vmul.f32 %v5382, %v5411
      %v5419 = vmul.f32 %v5383, %v5411
      %v5420 = vmul.f32 %v5384, %v5411
      %v5421 = vmul.f32 %v5385, %v5411
      %v5422 = vmul.f32 %v5386, %v5411
      %v5423 = vmul.f32 %v5387, %v5411
      %v5424 = vmul.f32 %v5388, %v5411
      %v5425 = vmul.f32 %v5389, %v5411
      %v5426 = vmul.f32 %v5390, %v5411
      %v5427 = vmul.f32 %v5391, %v5411
      %v5428 = vmul.f32 %v5392, %v5411
      %v5429 = vmul.f32 %v5393, %v5411
      %v5430 = vmul.f32 %v5394, %v5411
      %v5431 = vmul.f32 %v5395, %v5411
      %v5432 = vmul.f32 %v5396, %v5411
      %v5433 = vmul.f32 %v5397, %v5411
      %v5434 = vmul.f32 %v5398, %v5411
      %v5435 = vmul.f32 %v5399, %v5411
      %v5436 = vmul.f32 %v5400, %v5411
      %v5437 = vmul.f32 %v5401, %v5411
      %v5438 = vmul.f32 %v5402, %v5411
      %v5439 = vmul.f32 %v5403, %v5411
      %v5440 = vmul.f32 %v5404, %v5411
      %v5441 = vmul.f32 %v5405, %v5411
      %v5442 = vmul.f32 %v5406, %v5411
      %v5443 = vmul.f32 %v5407, %v5411
      %v5444 = vadd.f32 %v5003, %v5412
      %v5445 = vadd.f32 %v5004, %v5413
      %v5446 = vadd.f32 %v5005, %v5414
      %v5447 = vadd.f32 %v5006, %v5415
      %v5448 = vadd.f32 %v5007, %v5416
      %v5449 = vadd.f32 %v5008, %v5417
      %v5450 = vadd.f32 %v5009, %v5418
      %v5451 = vadd.f32 %v5010, %v5419
      %v5452 = vadd.f32 %v5011, %v5420
      %v5453 = vadd.f32 %v5012, %v5421
      %v5454 = vadd.f32 %v5013, %v5422
      %v5455 = vadd.f32 %v5014, %v5423
      %v5456 = vadd.f32 %v5015, %v5424
      %v5457 = vadd.f32 %v5016, %v5425
      %v5458 = vadd.f32 %v5017, %v5426
      %v5459 = vadd.f32 %v5018, %v5427
      %v5460 = vadd.f32 %v5019, %v5428
      %v5461 = vadd.f32 %v5020, %v5429
      %v5462 = vadd.f32 %v5021, %v5430
      %v5463 = vadd.f32 %v5022, %v5431
      %v5464 = vadd.f32 %v5023, %v5432
      %v5465 = vadd.f32 %v5024, %v5433
      %v5466 = vadd.f32 %v5025, %v5434
      %v5467 = vadd.f32 %v5026, %v5435
      %v5468 = vadd.f32 %v5027, %v5436
      %v5469 = vadd.f32 %v5028, %v5437
      %v5470 = vadd.f32 %v5029, %v5438
      %v5471 = vadd.f32 %v5030, %v5439
      %v5472 = vadd.f32 %v5031, %v5440
      %v5473 = vadd.f32 %v5032, %v5441
      %v5474 = vadd.f32 %v5033, %v5442
      %v5475 = vadd.f32 %v5034, %v5443
      %v5476 = vld [vmem:[%s5343 + $0x8] sm:$0x1]
      %v5477 = vld [vmem:[%s5343 + $0x14] sm:$0x1]
      %v5478 = vld [vmem:[%s5343 + $0x20] sm:$0x1]
      %v5479 = vld [vmem:[%s5343 + $0x2c] sm:$0x1]
      %v5480 = vld [vmem:[%s5343 + $0x38] sm:$0x1]
      %v5481 = vld [vmem:[%s5343 + $0x44] sm:$0x1]
      %v5482 = vld [vmem:[%s5343 + $0x50] sm:$0x1]
      %v5483 = vld [vmem:[%s5343 + $0x5c] sm:$0x1]
      %v5484 = vld [vmem:[%s5343 + $0x68] sm:$0x1]
      %v5485 = vld [vmem:[%s5343 + $0x74] sm:$0x1]
      %v5486 = vld [vmem:[%s5343 + $0x80] sm:$0x1]
      %v5487 = vld [vmem:[%s5343 + $0x8c] sm:$0x1]
      %v5488 = vld [vmem:[%s5343 + $0x98] sm:$0x1]
      %v5489 = vld [vmem:[%s5343 + $0xa4] sm:$0x1]
      %v5490 = vld [vmem:[%s5343 + $0xb0] sm:$0x1]
      %v5491 = vld [vmem:[%s5343 + $0xbc] sm:$0x1]
      %v5492 = vunpack.c.l.bf16 %v5476
      %v5493 = vunpack.c.l.bf16 %v5477
      %v5494 = vunpack.c.l.bf16 %v5478
      %v5495 = vunpack.c.l.bf16 %v5479
      %v5496 = vunpack.c.l.bf16 %v5480
      %v5497 = vunpack.c.l.bf16 %v5481
      %v5498 = vunpack.c.l.bf16 %v5482
      %v5499 = vunpack.c.l.bf16 %v5483
      %v5500 = vunpack.c.l.bf16 %v5484
      %v5501 = vunpack.c.l.bf16 %v5485
      %v5502 = vunpack.c.l.bf16 %v5486
      %v5503 = vunpack.c.l.bf16 %v5487
      %v5504 = vunpack.c.l.bf16 %v5488
      %v5505 = vunpack.c.l.bf16 %v5489
      %v5506 = vunpack.c.l.bf16 %v5490
      %v5507 = vunpack.c.l.bf16 %v5491
      %v5508 = vlaneseq
      %v5509 = vshrl.u32 %v5508, 7
      %v5510 = vsub.s32 1, %v5509
      %v5511 = vrot.slane %v278, %v5510
      %v5512 = vmul.f32 %v5376, %v5511
      %v5513 = vmul.f32 %v5377, %v5511
      %v5514 = vmul.f32 %v5492, %v5511
      %v5515 = vmul.f32 %v5378, %v5511
      %v5516 = vmul.f32 %v5379, %v5511
      %v5517 = vmul.f32 %v5493, %v5511
      %v5518 = vmul.f32 %v5380, %v5511
      %v5519 = vmul.f32 %v5381, %v5511
      %v5520 = vmul.f32 %v5494, %v5511
      %v5521 = vmul.f32 %v5382, %v5511
      %v5522 = vmul.f32 %v5383, %v5511
      %v5523 = vmul.f32 %v5495, %v5511
      %v5524 = vmul.f32 %v5384, %v5511
      %v5525 = vmul.f32 %v5385, %v5511
      %v5526 = vmul.f32 %v5496, %v5511
      %v5527 = vmul.f32 %v5386, %v5511
      %v5528 = vmul.f32 %v5387, %v5511
      %v5529 = vmul.f32 %v5497, %v5511
      %v5530 = vmul.f32 %v5388, %v5511
      %v5531 = vmul.f32 %v5389, %v5511
      %v5532 = vmul.f32 %v5498, %v5511
      %v5533 = vmul.f32 %v5390, %v5511
      %v5534 = vmul.f32 %v5391, %v5511
      %v5535 = vmul.f32 %v5499, %v5511
      %v5536 = vmul.f32 %v5392, %v5511
      %v5537 = vmul.f32 %v5393, %v5511
      %v5538 = vmul.f32 %v5500, %v5511
      %v5539 = vmul.f32 %v5394, %v5511
      %v5540 = vmul.f32 %v5395, %v5511
      %v5541 = vmul.f32 %v5501, %v5511
      %v5542 = vmul.f32 %v5396, %v5511
      %v5543 = vmul.f32 %v5397, %v5511
      %v5544 = vmul.f32 %v5502, %v5511
      %v5545 = vmul.f32 %v5398, %v5511
      %v5546 = vmul.f32 %v5399, %v5511
      %v5547 = vmul.f32 %v5503, %v5511
      %v5548 = vmul.f32 %v5400, %v5511
      %v5549 = vmul.f32 %v5401, %v5511
      %v5550 = vmul.f32 %v5504, %v5511
      %v5551 = vmul.f32 %v5402, %v5511
      %v5552 = vmul.f32 %v5403, %v5511
      %v5553 = vmul.f32 %v5505, %v5511
      %v5554 = vmul.f32 %v5404, %v5511
      %v5555 = vmul.f32 %v5405, %v5511
      %v5556 = vmul.f32 %v5506, %v5511
      %v5557 = vmul.f32 %v5406, %v5511
      %v5558 = vmul.f32 %v5407, %v5511
      %v5559 = vmul.f32 %v5507, %v5511
      %v5560 = vadd.f32 %v5295, %v5512
      %v5561 = vadd.f32 %v5296, %v5513
      %v5562 = vadd.f32 %v5297, %v5514
      %v5563 = vadd.f32 %v5298, %v5515
      %v5564 = vadd.f32 %v5299, %v5516
      %v5565 = vadd.f32 %v5300, %v5517
      %v5566 = vadd.f32 %v5301, %v5518
      %v5567 = vadd.f32 %v5302, %v5519
      %v5568 = vadd.f32 %v5303, %v5520
      %v5569 = vadd.f32 %v5304, %v5521
      %v5570 = vadd.f32 %v5305, %v5522
      %v5571 = vadd.f32 %v5306, %v5523
      %v5572 = vadd.f32 %v5307, %v5524
      %v5573 = vadd.f32 %v5308, %v5525
      %v5574 = vadd.f32 %v5309, %v5526
      %v5575 = vadd.f32 %v5310, %v5527
      %v5576 = vadd.f32 %v5311, %v5528
      %v5577 = vadd.f32 %v5312, %v5529
      %v5578 = vadd.f32 %v5313, %v5530
      %v5579 = vadd.f32 %v5314, %v5531
      %v5580 = vadd.f32 %v5315, %v5532
      %v5581 = vadd.f32 %v5316, %v5533
      %v5582 = vadd.f32 %v5317, %v5534
      %v5583 = vadd.f32 %v5318, %v5535
      %v5584 = vadd.f32 %v5319, %v5536
      %v5585 = vadd.f32 %v5320, %v5537
      %v5586 = vadd.f32 %v5321, %v5538
      %v5587 = vadd.f32 %v5322, %v5539
      %v5588 = vadd.f32 %v5323, %v5540
      %v5589 = vadd.f32 %v5324, %v5541
      %v5590 = vadd.f32 %v5325, %v5542
      %v5591 = vadd.f32 %v5326, %v5543
      %v5592 = vadd.f32 %v5327, %v5544
      %v5593 = vadd.f32 %v5328, %v5545
      %v5594 = vadd.f32 %v5329, %v5546
      %v5595 = vadd.f32 %v5330, %v5547
      %v5596 = vadd.f32 %v5331, %v5548
      %v5597 = vadd.f32 %v5332, %v5549
      %v5598 = vadd.f32 %v5333, %v5550
      %v5599 = vadd.f32 %v5334, %v5551
      %v5600 = vadd.f32 %v5335, %v5552
      %v5601 = vadd.f32 %v5336, %v5553
      %v5602 = vadd.f32 %v5337, %v5554
      %v5603 = vadd.f32 %v5338, %v5555
      %v5604 = vadd.f32 %v5339, %v5556
      %v5605 = vadd.f32 %v5340, %v5557
      %v5606 = vadd.f32 %v5341, %v5558
      %v5607 = vadd.f32 %v5342, %v5559
      %v5608 = vld [vmem:[%s5343] sm:$0xe]
      %v5609 = vld [vmem:[%s5343 + $0xc] sm:$0xe]
      %v5610 = vld [vmem:[%s5343 + $0x18] sm:$0xe]
      %v5611 = vld [vmem:[%s5343 + $0x24] sm:$0xe]
      %v5612 = vld [vmem:[%s5343 + $0x30] sm:$0xe]
      %v5613 = vld [vmem:[%s5343 + $0x3c] sm:$0xe]
      %v5614 = vld [vmem:[%s5343 + $0x48] sm:$0xe]
      %v5615 = vld [vmem:[%s5343 + $0x54] sm:$0xe]
      %v5616 = vld [vmem:[%s5343 + $0x60] sm:$0xe]
      %v5617 = vld [vmem:[%s5343 + $0x6c] sm:$0xe]
      %v5618 = vld [vmem:[%s5343 + $0x78] sm:$0xe]
      %v5619 = vld [vmem:[%s5343 + $0x84] sm:$0xe]
      %v5620 = vld [vmem:[%s5343 + $0x90] sm:$0xe]
      %v5621 = vld [vmem:[%s5343 + $0x9c] sm:$0xe]
      %v5622 = vld [vmem:[%s5343 + $0xa8] sm:$0xe]
      %v5623 = vld [vmem:[%s5343 + $0xb4] sm:$0xe]
      %v5624 = vunpack.c.l.bf16 %v5608
      %v5625 = vunpack.c.l.bf16 %v5609
      %v5626 = vunpack.c.l.bf16 %v5610
      %v5627 = vunpack.c.l.bf16 %v5611
      %v5628 = vunpack.c.l.bf16 %v5612
      %v5629 = vunpack.c.l.bf16 %v5613
      %v5630 = vunpack.c.l.bf16 %v5614
      %v5631 = vunpack.c.l.bf16 %v5615
      %v5632 = vunpack.c.l.bf16 %v5616
      %v5633 = vunpack.c.l.bf16 %v5617
      %v5634 = vunpack.c.l.bf16 %v5618
      %v5635 = vunpack.c.l.bf16 %v5619
      %v5636 = vunpack.c.l.bf16 %v5620
      %v5637 = vunpack.c.l.bf16 %v5621
      %v5638 = vunpack.c.l.bf16 %v5622
      %v5639 = vunpack.c.l.bf16 %v5623
      %v5640 = vlaneseq
      %v5641 = vshrl.u32 %v5640, 7
      %v5642 = vsub.s32 2, %v5641
      %v5643 = vrot.slane %v278, %v5642
      %v5644 = vmul.f32 %v5624, %v5643
      %v5645 = vmul.f32 %v5377, %v5643
      %v5646 = vmul.f32 %v5492, %v5643
      %v5647 = vmul.f32 %v5625, %v5643
      %v5648 = vmul.f32 %v5379, %v5643
      %v5649 = vmul.f32 %v5493, %v5643
      %v5650 = vmul.f32 %v5626, %v5643
      %v5651 = vmul.f32 %v5381, %v5643
      %v5652 = vmul.f32 %v5494, %v5643
      %v5653 = vmul.f32 %v5627, %v5643
      %v5654 = vmul.f32 %v5383, %v5643
      %v5655 = vmul.f32 %v5495, %v5643
      %v5656 = vmul.f32 %v5628, %v5643
      %v5657 = vmul.f32 %v5385, %v5643
      %v5658 = vmul.f32 %v5496, %v5643
      %v5659 = vmul.f32 %v5629, %v5643
      %v5660 = vmul.f32 %v5387, %v5643
      %v5661 = vmul.f32 %v5497, %v5643
      %v5662 = vmul.f32 %v5630, %v5643
      %v5663 = vmul.f32 %v5389, %v5643
      %v5664 = vmul.f32 %v5498, %v5643
      %v5665 = vmul.f32 %v5631, %v5643
      %v5666 = vmul.f32 %v5391, %v5643
      %v5667 = vmul.f32 %v5499, %v5643
      %v5668 = vmul.f32 %v5632, %v5643
      %v5669 = vmul.f32 %v5393, %v5643
      %v5670 = vmul.f32 %v5500, %v5643
      %v5671 = vmul.f32 %v5633, %v5643
      %v5672 = vmul.f32 %v5395, %v5643
      %v5673 = vmul.f32 %v5501, %v5643
      %v5674 = vmul.f32 %v5634, %v5643
      %v5675 = vmul.f32 %v5397, %v5643
      %v5676 = vmul.f32 %v5502, %v5643
      %v5677 = vmul.f32 %v5635, %v5643
      %v5678 = vmul.f32 %v5399, %v5643
      %v5679 = vmul.f32 %v5503, %v5643
      %v5680 = vmul.f32 %v5636, %v5643
      %v5681 = vmul.f32 %v5401, %v5643
      %v5682 = vmul.f32 %v5504, %v5643
      %v5683 = vmul.f32 %v5637, %v5643
      %v5684 = vmul.f32 %v5403, %v5643
      %v5685 = vmul.f32 %v5505, %v5643
      %v5686 = vmul.f32 %v5638, %v5643
      %v5687 = vmul.f32 %v5405, %v5643
      %v5688 = vmul.f32 %v5506, %v5643
      %v5689 = vmul.f32 %v5639, %v5643
      %v5690 = vmul.f32 %v5407, %v5643
      %v5691 = vmul.f32 %v5507, %v5643
      %v5740 = vrot.slane %v5644, 2
      %v5741 = vrot.slane %v5645, 2
      %v5742 = vsel %vm595, %v5740, %v5741
      %v5743 = vrot.slane %v5646, 2
      %v5744 = vsel %vm595, %v5741, %v5743
      %v5745 = vrot.slane %v5647, 2
      %v5746 = vrot.slane %v5648, 2
      %v5747 = vsel %vm595, %v5745, %v5746
      %v5748 = vrot.slane %v5649, 2
      %v5749 = vsel %vm595, %v5746, %v5748
      %v5750 = vrot.slane %v5650, 2
      %v5751 = vrot.slane %v5651, 2
      %v5752 = vsel %vm595, %v5750, %v5751
      %v5753 = vrot.slane %v5652, 2
      %v5754 = vsel %vm595, %v5751, %v5753
      %v5755 = vrot.slane %v5653, 2
      %v5756 = vrot.slane %v5654, 2
      %v5757 = vsel %vm595, %v5755, %v5756
      %v5758 = vrot.slane %v5655, 2
      %v5759 = vsel %vm595, %v5756, %v5758
      %v5760 = vrot.slane %v5656, 2
      %v5761 = vrot.slane %v5657, 2
      %v5762 = vsel %vm595, %v5760, %v5761
      %v5763 = vrot.slane %v5658, 2
      %v5764 = vsel %vm595, %v5761, %v5763
      %v5765 = vrot.slane %v5659, 2
      %v5766 = vrot.slane %v5660, 2
      %v5767 = vsel %vm595, %v5765, %v5766
      %v5768 = vrot.slane %v5661, 2
      %v5769 = vsel %vm595, %v5766, %v5768
      %v5770 = vrot.slane %v5662, 2
      %v5771 = vrot.slane %v5663, 2
      %v5772 = vsel %vm595, %v5770, %v5771
      %v5773 = vrot.slane %v5664, 2
      %v5774 = vsel %vm595, %v5771, %v5773
      %v5775 = vrot.slane %v5665, 2
      %v5776 = vrot.slane %v5666, 2
      %v5777 = vsel %vm595, %v5775, %v5776
      %v5778 = vrot.slane %v5667, 2
      %v5779 = vsel %vm595, %v5776, %v5778
      %v5780 = vrot.slane %v5668, 2
      %v5781 = vrot.slane %v5669, 2
      %v5782 = vsel %vm595, %v5780, %v5781
      %v5783 = vrot.slane %v5670, 2
      %v5784 = vsel %vm595, %v5781, %v5783
      %v5785 = vrot.slane %v5671, 2
      %v5786 = vrot.slane %v5672, 2
      %v5787 = vsel %vm595, %v5785, %v5786
      %v5788 = vrot.slane %v5673, 2
      %v5789 = vsel %vm595, %v5786, %v5788
      %v5790 = vrot.slane %v5674, 2
      %v5791 = vrot.slane %v5675, 2
      %v5792 = vsel %vm595, %v5790, %v5791
      %v5793 = vrot.slane %v5676, 2
      %v5794 = vsel %vm595, %v5791, %v5793
      %v5795 = vrot.slane %v5677, 2
      %v5796 = vrot.slane %v5678, 2
      %v5797 = vsel %vm595, %v5795, %v5796
      %v5798 = vrot.slane %v5679, 2
      %v5799 = vsel %vm595, %v5796, %v5798
      %v5800 = vrot.slane %v5680, 2
      %v5801 = vrot.slane %v5681, 2
      %v5802 = vsel %vm595, %v5800, %v5801
      %v5803 = vrot.slane %v5682, 2
      %v5804 = vsel %vm595, %v5801, %v5803
      %v5805 = vrot.slane %v5683, 2
      %v5806 = vrot.slane %v5684, 2
      %v5807 = vsel %vm595, %v5805, %v5806
      %v5808 = vrot.slane %v5685, 2
      %v5809 = vsel %vm595, %v5806, %v5808
      %v5810 = vrot.slane %v5686, 2
      %v5811 = vrot.slane %v5687, 2
      %v5812 = vsel %vm595, %v5810, %v5811
      %v5813 = vrot.slane %v5688, 2
      %v5814 = vsel %vm595, %v5811, %v5813
      %v5815 = vrot.slane %v5689, 2
      %v5816 = vrot.slane %v5690, 2
      %v5817 = vsel %vm595, %v5815, %v5816
      %v5818 = vrot.slane %v5691, 2
      %v5819 = vsel %vm595, %v5816, %v5818
      %v5852 = vadd.f32 %v5444, %v5742
      %v5853 = vadd.f32 %v5445, %v5744
      %v5854 = vadd.f32 %v5446, %v5747
      %v5855 = vadd.f32 %v5447, %v5749
      %v5856 = vadd.f32 %v5448, %v5752
      %v5857 = vadd.f32 %v5449, %v5754
      %v5858 = vadd.f32 %v5450, %v5757
      %v5859 = vadd.f32 %v5451, %v5759
      %v5860 = vadd.f32 %v5452, %v5762
      %v5861 = vadd.f32 %v5453, %v5764
      %v5862 = vadd.f32 %v5454, %v5767
      %v5863 = vadd.f32 %v5455, %v5769
      %v5864 = vadd.f32 %v5456, %v5772
      %v5865 = vadd.f32 %v5457, %v5774
      %v5866 = vadd.f32 %v5458, %v5777
      %v5867 = vadd.f32 %v5459, %v5779
      %v5868 = vadd.f32 %v5460, %v5782
      %v5869 = vadd.f32 %v5461, %v5784
      %v5870 = vadd.f32 %v5462, %v5787
      %v5871 = vadd.f32 %v5463, %v5789
      %v5872 = vadd.f32 %v5464, %v5792
      %v5873 = vadd.f32 %v5465, %v5794
      %v5874 = vadd.f32 %v5466, %v5797
      %v5875 = vadd.f32 %v5467, %v5799
      %v5876 = vadd.f32 %v5468, %v5802
      %v5877 = vadd.f32 %v5469, %v5804
      %v5878 = vadd.f32 %v5470, %v5807
      %v5879 = vadd.f32 %v5471, %v5809
      %v5880 = vadd.f32 %v5472, %v5812
      %v5881 = vadd.f32 %v5473, %v5814
      %v5882 = vadd.f32 %v5474, %v5817
      %v5883 = vadd.f32 %v5475, %v5819
      %v5884 = vld [vmem:[%s5343 + $0x8] sm:$0x3]
      %v5885 = vld [vmem:[%s5343 + $0x14] sm:$0x3]
      %v5886 = vld [vmem:[%s5343 + $0x20] sm:$0x3]
      %v5887 = vld [vmem:[%s5343 + $0x2c] sm:$0x3]
      %v5888 = vld [vmem:[%s5343 + $0x38] sm:$0x3]
      %v5889 = vld [vmem:[%s5343 + $0x44] sm:$0x3]
      %v5890 = vld [vmem:[%s5343 + $0x50] sm:$0x3]
      %v5891 = vld [vmem:[%s5343 + $0x5c] sm:$0x3]
      %v5892 = vld [vmem:[%s5343 + $0x68] sm:$0x3]
      %v5893 = vld [vmem:[%s5343 + $0x74] sm:$0x3]
      %v5894 = vld [vmem:[%s5343 + $0x80] sm:$0x3]
      %v5895 = vld [vmem:[%s5343 + $0x8c] sm:$0x3]
      %v5896 = vld [vmem:[%s5343 + $0x98] sm:$0x3]
      %v5897 = vld [vmem:[%s5343 + $0xa4] sm:$0x3]
      %v5898 = vld [vmem:[%s5343 + $0xb0] sm:$0x3]
      %v5899 = vld [vmem:[%s5343 + $0xbc] sm:$0x3]
      %v5900 = vunpack.c.l.bf16 %v5884
      %v5901 = vunpack.c.l.bf16 %v5885
      %v5902 = vunpack.c.l.bf16 %v5886
      %v5903 = vunpack.c.l.bf16 %v5887
      %v5904 = vunpack.c.l.bf16 %v5888
      %v5905 = vunpack.c.l.bf16 %v5889
      %v5906 = vunpack.c.l.bf16 %v5890
      %v5907 = vunpack.c.l.bf16 %v5891
      %v5908 = vunpack.c.l.bf16 %v5892
      %v5909 = vunpack.c.l.bf16 %v5893
      %v5910 = vunpack.c.l.bf16 %v5894
      %v5911 = vunpack.c.l.bf16 %v5895
      %v5912 = vunpack.c.l.bf16 %v5896
      %v5913 = vunpack.c.l.bf16 %v5897
      %v5914 = vunpack.c.l.bf16 %v5898
      %v5915 = vunpack.c.l.bf16 %v5899
      %v5916 = vlaneseq
      %v5917 = vshrl.u32 %v5916, 7
      %v5918 = vsub.s32 3, %v5917
      %v5919 = vrot.slane %v278, %v5918
      %v5920 = vmul.f32 %v5624, %v5919
      %v5921 = vmul.f32 %v5377, %v5919
      %v5922 = vmul.f32 %v5900, %v5919
      %v5923 = vmul.f32 %v5625, %v5919
      %v5924 = vmul.f32 %v5379, %v5919
      %v5925 = vmul.f32 %v5901, %v5919
      %v5926 = vmul.f32 %v5626, %v5919
      %v5927 = vmul.f32 %v5381, %v5919
      %v5928 = vmul.f32 %v5902, %v5919
      %v5929 = vmul.f32 %v5627, %v5919
      %v5930 = vmul.f32 %v5383, %v5919
      %v5931 = vmul.f32 %v5903, %v5919
      %v5932 = vmul.f32 %v5628, %v5919
      %v5933 = vmul.f32 %v5385, %v5919
      %v5934 = vmul.f32 %v5904, %v5919
      %v5935 = vmul.f32 %v5629, %v5919
      %v5936 = vmul.f32 %v5387, %v5919
      %v5937 = vmul.f32 %v5905, %v5919
      %v5938 = vmul.f32 %v5630, %v5919
      %v5939 = vmul.f32 %v5389, %v5919
      %v5940 = vmul.f32 %v5906, %v5919
      %v5941 = vmul.f32 %v5631, %v5919
      %v5942 = vmul.f32 %v5391, %v5919
      %v5943 = vmul.f32 %v5907, %v5919
      %v5944 = vmul.f32 %v5632, %v5919
      %v5945 = vmul.f32 %v5393, %v5919
      %v5946 = vmul.f32 %v5908, %v5919
      %v5947 = vmul.f32 %v5633, %v5919
      %v5948 = vmul.f32 %v5395, %v5919
      %v5949 = vmul.f32 %v5909, %v5919
      %v5950 = vmul.f32 %v5634, %v5919
      %v5951 = vmul.f32 %v5397, %v5919
      %v5952 = vmul.f32 %v5910, %v5919
      %v5953 = vmul.f32 %v5635, %v5919
      %v5954 = vmul.f32 %v5399, %v5919
      %v5955 = vmul.f32 %v5911, %v5919
      %v5956 = vmul.f32 %v5636, %v5919
      %v5957 = vmul.f32 %v5401, %v5919
      %v5958 = vmul.f32 %v5912, %v5919
      %v5959 = vmul.f32 %v5637, %v5919
      %v5960 = vmul.f32 %v5403, %v5919
      %v5961 = vmul.f32 %v5913, %v5919
      %v5962 = vmul.f32 %v5638, %v5919
      %v5963 = vmul.f32 %v5405, %v5919
      %v5964 = vmul.f32 %v5914, %v5919
      %v5965 = vmul.f32 %v5639, %v5919
      %v5966 = vmul.f32 %v5407, %v5919
      %v5967 = vmul.f32 %v5915, %v5919
      %v6016 = vrot.slane %v5920, 2
      %v6017 = vrot.slane %v5921, 2
      %v6018 = vsel %vm595, %v6016, %v6017
      %v6019 = vrot.slane %v5922, 2
      %v6020 = vsel %vm595, %v6017, %v6019
      %v6021 = vrot.slane %v5923, 2
      %v6022 = vrot.slane %v5924, 2
      %v6023 = vsel %vm595, %v6021, %v6022
      %v6024 = vrot.slane %v5925, 2
      %v6025 = vsel %vm595, %v6022, %v6024
      %v6026 = vrot.slane %v5926, 2
      %v6027 = vrot.slane %v5927, 2
      %v6028 = vsel %vm595, %v6026, %v6027
      %v6029 = vrot.slane %v5928, 2
      %v6030 = vsel %vm595, %v6027, %v6029
      %v6031 = vrot.slane %v5929, 2
      %v6032 = vrot.slane %v5930, 2
      %v6033 = vsel %vm595, %v6031, %v6032
      %v6034 = vrot.slane %v5931, 2
      %v6035 = vsel %vm595, %v6032, %v6034
      %v6036 = vrot.slane %v5932, 2
      %v6037 = vrot.slane %v5933, 2
      %v6038 = vsel %vm595, %v6036, %v6037
      %v6039 = vrot.slane %v5934, 2
      %v6040 = vsel %vm595, %v6037, %v6039
      %v6041 = vrot.slane %v5935, 2
      %v6042 = vrot.slane %v5936, 2
      %v6043 = vsel %vm595, %v6041, %v6042
      %v6044 = vrot.slane %v5937, 2
      %v6045 = vsel %vm595, %v6042, %v6044
      %v6046 = vrot.slane %v5938, 2
      %v6047 = vrot.slane %v5939, 2
      %v6048 = vsel %vm595, %v6046, %v6047
      %v6049 = vrot.slane %v5940, 2
      %v6050 = vsel %vm595, %v6047, %v6049
      %v6051 = vrot.slane %v5941, 2
      %v6052 = vrot.slane %v5942, 2
      %v6053 = vsel %vm595, %v6051, %v6052
      %v6054 = vrot.slane %v5943, 2
      %v6055 = vsel %vm595, %v6052, %v6054
      %v6056 = vrot.slane %v5944, 2
      %v6057 = vrot.slane %v5945, 2
      %v6058 = vsel %vm595, %v6056, %v6057
      %v6059 = vrot.slane %v5946, 2
      %v6060 = vsel %vm595, %v6057, %v6059
      %v6061 = vrot.slane %v5947, 2
      %v6062 = vrot.slane %v5948, 2
      %v6063 = vsel %vm595, %v6061, %v6062
      %v6064 = vrot.slane %v5949, 2
      %v6065 = vsel %vm595, %v6062, %v6064
      %v6066 = vrot.slane %v5950, 2
      %v6067 = vrot.slane %v5951, 2
      %v6068 = vsel %vm595, %v6066, %v6067
      %v6069 = vrot.slane %v5952, 2
      %v6070 = vsel %vm595, %v6067, %v6069
      %v6071 = vrot.slane %v5953, 2
      %v6072 = vrot.slane %v5954, 2
      %v6073 = vsel %vm595, %v6071, %v6072
      %v6074 = vrot.slane %v5955, 2
      %v6075 = vsel %vm595, %v6072, %v6074
      %v6076 = vrot.slane %v5956, 2
      %v6077 = vrot.slane %v5957, 2
      %v6078 = vsel %vm595, %v6076, %v6077
      %v6079 = vrot.slane %v5958, 2
      %v6080 = vsel %vm595, %v6077, %v6079
      %v6081 = vrot.slane %v5959, 2
      %v6082 = vrot.slane %v5960, 2
      %v6083 = vsel %vm595, %v6081, %v6082
      %v6084 = vrot.slane %v5961, 2
      %v6085 = vsel %vm595, %v6082, %v6084
      %v6086 = vrot.slane %v5962, 2
      %v6087 = vrot.slane %v5963, 2
      %v6088 = vsel %vm595, %v6086, %v6087
      %v6089 = vrot.slane %v5964, 2
      %v6090 = vsel %vm595, %v6087, %v6089
      %v6091 = vrot.slane %v5965, 2
      %v6092 = vrot.slane %v5966, 2
      %v6093 = vsel %vm595, %v6091, %v6092
      %v6094 = vrot.slane %v5967, 2
      %v6095 = vsel %vm595, %v6092, %v6094
      %v6144 = vadd.f32 %v5560, %v6018
      %v6145 = vadd.f32 %v5561, %v6020
      %v6146 = vadd.f32 %v5562, %v6019
      %v6147 = vadd.f32 %v5563, %v6023
      %v6148 = vadd.f32 %v5564, %v6025
      %v6149 = vadd.f32 %v5565, %v6024
      %v6150 = vadd.f32 %v5566, %v6028
      %v6151 = vadd.f32 %v5567, %v6030
      %v6152 = vadd.f32 %v5568, %v6029
      %v6153 = vadd.f32 %v5569, %v6033
      %v6154 = vadd.f32 %v5570, %v6035
      %v6155 = vadd.f32 %v5571, %v6034
      %v6156 = vadd.f32 %v5572, %v6038
      %v6157 = vadd.f32 %v5573, %v6040
      %v6158 = vadd.f32 %v5574, %v6039
      %v6159 = vadd.f32 %v5575, %v6043
      %v6160 = vadd.f32 %v5576, %v6045
      %v6161 = vadd.f32 %v5577, %v6044
      %v6162 = vadd.f32 %v5578, %v6048
      %v6163 = vadd.f32 %v5579, %v6050
      %v6164 = vadd.f32 %v5580, %v6049
      %v6165 = vadd.f32 %v5581, %v6053
      %v6166 = vadd.f32 %v5582, %v6055
      %v6167 = vadd.f32 %v5583, %v6054
      %v6168 = vadd.f32 %v5584, %v6058
      %v6169 = vadd.f32 %v5585, %v6060
      %v6170 = vadd.f32 %v5586, %v6059
      %v6171 = vadd.f32 %v5587, %v6063
      %v6172 = vadd.f32 %v5588, %v6065
      %v6173 = vadd.f32 %v5589, %v6064
      %v6174 = vadd.f32 %v5590, %v6068
      %v6175 = vadd.f32 %v5591, %v6070
      %v6176 = vadd.f32 %v5592, %v6069
      %v6177 = vadd.f32 %v5593, %v6073
      %v6178 = vadd.f32 %v5594, %v6075
      %v6179 = vadd.f32 %v5595, %v6074
      %v6180 = vadd.f32 %v5596, %v6078
      %v6181 = vadd.f32 %v5597, %v6080
      %v6182 = vadd.f32 %v5598, %v6079
      %v6183 = vadd.f32 %v5599, %v6083
      %v6184 = vadd.f32 %v5600, %v6085
      %v6185 = vadd.f32 %v5601, %v6084
      %v6186 = vadd.f32 %v5602, %v6088
      %v6187 = vadd.f32 %v5603, %v6090
      %v6188 = vadd.f32 %v5604, %v6089
      %v6189 = vadd.f32 %v5605, %v6093
      %v6190 = vadd.f32 %v5606, %v6095
      %v6191 = vadd.f32 %v5607, %v6094
      %v6192 = vld [vmem:[%s5343] sm:$0xc]
      %v6193 = vld [vmem:[%s5343 + $0xc] sm:$0xc]
      %v6194 = vld [vmem:[%s5343 + $0x18] sm:$0xc]
      %v6195 = vld [vmem:[%s5343 + $0x24] sm:$0xc]
      %v6196 = vld [vmem:[%s5343 + $0x30] sm:$0xc]
      %v6197 = vld [vmem:[%s5343 + $0x3c] sm:$0xc]
      %v6198 = vld [vmem:[%s5343 + $0x48] sm:$0xc]
      %v6199 = vld [vmem:[%s5343 + $0x54] sm:$0xc]
      %v6200 = vld [vmem:[%s5343 + $0x60] sm:$0xc]
      %v6201 = vld [vmem:[%s5343 + $0x6c] sm:$0xc]
      %v6202 = vld [vmem:[%s5343 + $0x78] sm:$0xc]
      %v6203 = vld [vmem:[%s5343 + $0x84] sm:$0xc]
      %v6204 = vld [vmem:[%s5343 + $0x90] sm:$0xc]
      %v6205 = vld [vmem:[%s5343 + $0x9c] sm:$0xc]
      %v6206 = vld [vmem:[%s5343 + $0xa8] sm:$0xc]
      %v6207 = vld [vmem:[%s5343 + $0xb4] sm:$0xc]
      %v6208 = vunpack.c.l.bf16 %v6192
      %v6209 = vunpack.c.l.bf16 %v6193
      %v6210 = vunpack.c.l.bf16 %v6194
      %v6211 = vunpack.c.l.bf16 %v6195
      %v6212 = vunpack.c.l.bf16 %v6196
      %v6213 = vunpack.c.l.bf16 %v6197
      %v6214 = vunpack.c.l.bf16 %v6198
      %v6215 = vunpack.c.l.bf16 %v6199
      %v6216 = vunpack.c.l.bf16 %v6200
      %v6217 = vunpack.c.l.bf16 %v6201
      %v6218 = vunpack.c.l.bf16 %v6202
      %v6219 = vunpack.c.l.bf16 %v6203
      %v6220 = vunpack.c.l.bf16 %v6204
      %v6221 = vunpack.c.l.bf16 %v6205
      %v6222 = vunpack.c.l.bf16 %v6206
      %v6223 = vunpack.c.l.bf16 %v6207
      %v6224 = vlaneseq
      %v6225 = vshrl.u32 %v6224, 7
      %v6226 = vsub.s32 4, %v6225
      %v6227 = vrot.slane %v278, %v6226
      %v6228 = vmul.f32 %v6208, %v6227
      %v6229 = vmul.f32 %v5377, %v6227
      %v6230 = vmul.f32 %v5900, %v6227
      %v6231 = vmul.f32 %v6209, %v6227
      %v6232 = vmul.f32 %v5379, %v6227
      %v6233 = vmul.f32 %v5901, %v6227
      %v6234 = vmul.f32 %v6210, %v6227
      %v6235 = vmul.f32 %v5381, %v6227
      %v6236 = vmul.f32 %v5902, %v6227
      %v6237 = vmul.f32 %v6211, %v6227
      %v6238 = vmul.f32 %v5383, %v6227
      %v6239 = vmul.f32 %v5903, %v6227
      %v6240 = vmul.f32 %v6212, %v6227
      %v6241 = vmul.f32 %v5385, %v6227
      %v6242 = vmul.f32 %v5904, %v6227
      %v6243 = vmul.f32 %v6213, %v6227
      %v6244 = vmul.f32 %v5387, %v6227
      %v6245 = vmul.f32 %v5905, %v6227
      %v6246 = vmul.f32 %v6214, %v6227
      %v6247 = vmul.f32 %v5389, %v6227
      %v6248 = vmul.f32 %v5906, %v6227
      %v6249 = vmul.f32 %v6215, %v6227
      %v6250 = vmul.f32 %v5391, %v6227
      %v6251 = vmul.f32 %v5907, %v6227
      %v6252 = vmul.f32 %v6216, %v6227
      %v6253 = vmul.f32 %v5393, %v6227
      %v6254 = vmul.f32 %v5908, %v6227
      %v6255 = vmul.f32 %v6217, %v6227
      %v6256 = vmul.f32 %v5395, %v6227
      %v6257 = vmul.f32 %v5909, %v6227
      %v6258 = vmul.f32 %v6218, %v6227
      %v6259 = vmul.f32 %v5397, %v6227
      %v6260 = vmul.f32 %v5910, %v6227
      %v6261 = vmul.f32 %v6219, %v6227
      %v6262 = vmul.f32 %v5399, %v6227
      %v6263 = vmul.f32 %v5911, %v6227
      %v6264 = vmul.f32 %v6220, %v6227
      %v6265 = vmul.f32 %v5401, %v6227
      %v6266 = vmul.f32 %v5912, %v6227
      %v6267 = vmul.f32 %v6221, %v6227
      %v6268 = vmul.f32 %v5403, %v6227
      %v6269 = vmul.f32 %v5913, %v6227
      %v6270 = vmul.f32 %v6222, %v6227
      %v6271 = vmul.f32 %v5405, %v6227
      %v6272 = vmul.f32 %v5914, %v6227
      %v6273 = vmul.f32 %v6223, %v6227
      %v6274 = vmul.f32 %v5407, %v6227
      %v6275 = vmul.f32 %v5915, %v6227
      %v6324 = vrot.slane %v6228, 4
      %v6325 = vrot.slane %v6229, 4
      %v6326 = vsel %vm1180, %v6324, %v6325
      %v6327 = vrot.slane %v6230, 4
      %v6328 = vsel %vm1180, %v6325, %v6327
      %v6329 = vrot.slane %v6231, 4
      %v6330 = vrot.slane %v6232, 4
      %v6331 = vsel %vm1180, %v6329, %v6330
      %v6332 = vrot.slane %v6233, 4
      %v6333 = vsel %vm1180, %v6330, %v6332
      %v6334 = vrot.slane %v6234, 4
      %v6335 = vrot.slane %v6235, 4
      %v6336 = vsel %vm1180, %v6334, %v6335
      %v6337 = vrot.slane %v6236, 4
      %v6338 = vsel %vm1180, %v6335, %v6337
      %v6339 = vrot.slane %v6237, 4
      %v6340 = vrot.slane %v6238, 4
      %v6341 = vsel %vm1180, %v6339, %v6340
      %v6342 = vrot.slane %v6239, 4
      %v6343 = vsel %vm1180, %v6340, %v6342
      %v6344 = vrot.slane %v6240, 4
      %v6345 = vrot.slane %v6241, 4
      %v6346 = vsel %vm1180, %v6344, %v6345
      %v6347 = vrot.slane %v6242, 4
      %v6348 = vsel %vm1180, %v6345, %v6347
      %v6349 = vrot.slane %v6243, 4
      %v6350 = vrot.slane %v6244, 4
      %v6351 = vsel %vm1180, %v6349, %v6350
      %v6352 = vrot.slane %v6245, 4
      %v6353 = vsel %vm1180, %v6350, %v6352
      %v6354 = vrot.slane %v6246, 4
      %v6355 = vrot.slane %v6247, 4
      %v6356 = vsel %vm1180, %v6354, %v6355
      %v6357 = vrot.slane %v6248, 4
      %v6358 = vsel %vm1180, %v6355, %v6357
      %v6359 = vrot.slane %v6249, 4
      %v6360 = vrot.slane %v6250, 4
      %v6361 = vsel %vm1180, %v6359, %v6360
      %v6362 = vrot.slane %v6251, 4
      %v6363 = vsel %vm1180, %v6360, %v6362
      %v6364 = vrot.slane %v6252, 4
      %v6365 = vrot.slane %v6253, 4
      %v6366 = vsel %vm1180, %v6364, %v6365
      %v6367 = vrot.slane %v6254, 4
      %v6368 = vsel %vm1180, %v6365, %v6367
      %v6369 = vrot.slane %v6255, 4
      %v6370 = vrot.slane %v6256, 4
      %v6371 = vsel %vm1180, %v6369, %v6370
      %v6372 = vrot.slane %v6257, 4
      %v6373 = vsel %vm1180, %v6370, %v6372
      %v6374 = vrot.slane %v6258, 4
      %v6375 = vrot.slane %v6259, 4
      %v6376 = vsel %vm1180, %v6374, %v6375
      %v6377 = vrot.slane %v6260, 4
      %v6378 = vsel %vm1180, %v6375, %v6377
      %v6379 = vrot.slane %v6261, 4
      %v6380 = vrot.slane %v6262, 4
      %v6381 = vsel %vm1180, %v6379, %v6380
      %v6382 = vrot.slane %v6263, 4
      %v6383 = vsel %vm1180, %v6380, %v6382
      %v6384 = vrot.slane %v6264, 4
      %v6385 = vrot.slane %v6265, 4
      %v6386 = vsel %vm1180, %v6384, %v6385
      %v6387 = vrot.slane %v6266, 4
      %v6388 = vsel %vm1180, %v6385, %v6387
      %v6389 = vrot.slane %v6267, 4
      %v6390 = vrot.slane %v6268, 4
      %v6391 = vsel %vm1180, %v6389, %v6390
      %v6392 = vrot.slane %v6269, 4
      %v6393 = vsel %vm1180, %v6390, %v6392
      %v6394 = vrot.slane %v6270, 4
      %v6395 = vrot.slane %v6271, 4
      %v6396 = vsel %vm1180, %v6394, %v6395
      %v6397 = vrot.slane %v6272, 4
      %v6398 = vsel %vm1180, %v6395, %v6397
      %v6399 = vrot.slane %v6273, 4
      %v6400 = vrot.slane %v6274, 4
      %v6401 = vsel %vm1180, %v6399, %v6400
      %v6402 = vrot.slane %v6275, 4
      %v6403 = vsel %vm1180, %v6400, %v6402
      %v6436 = vadd.f32 %v5852, %v6326
      %v6437 = vadd.f32 %v5853, %v6328
      %v6438 = vadd.f32 %v5854, %v6331
      %v6439 = vadd.f32 %v5855, %v6333
      %v6440 = vadd.f32 %v5856, %v6336
      %v6441 = vadd.f32 %v5857, %v6338
      %v6442 = vadd.f32 %v5858, %v6341
      %v6443 = vadd.f32 %v5859, %v6343
      %v6444 = vadd.f32 %v5860, %v6346
      %v6445 = vadd.f32 %v5861, %v6348
      %v6446 = vadd.f32 %v5862, %v6351
      %v6447 = vadd.f32 %v5863, %v6353
      %v6448 = vadd.f32 %v5864, %v6356
      %v6449 = vadd.f32 %v5865, %v6358
      %v6450 = vadd.f32 %v5866, %v6361
      %v6451 = vadd.f32 %v5867, %v6363
      %v6452 = vadd.f32 %v5868, %v6366
      %v6453 = vadd.f32 %v5869, %v6368
      %v6454 = vadd.f32 %v5870, %v6371
      %v6455 = vadd.f32 %v5871, %v6373
      %v6456 = vadd.f32 %v5872, %v6376
      %v6457 = vadd.f32 %v5873, %v6378
      %v6458 = vadd.f32 %v5874, %v6381
      %v6459 = vadd.f32 %v5875, %v6383
      %v6460 = vadd.f32 %v5876, %v6386
      %v6461 = vadd.f32 %v5877, %v6388
      %v6462 = vadd.f32 %v5878, %v6391
      %v6463 = vadd.f32 %v5879, %v6393
      %v6464 = vadd.f32 %v5880, %v6396
      %v6465 = vadd.f32 %v5881, %v6398
      %v6466 = vadd.f32 %v5882, %v6401
      %v6467 = vadd.f32 %v5883, %v6403
      %v6516 = vrot.slane %v6144, 1
      %v6517 = vrot.slane %v6145, 1
      %v6518 = vsel %vm1735, %v6516, %v6517
      %v6519 = vrot.slane %v6146, 1
      %v6520 = vsel %vm1735, %v6517, %v6519
      %v6521 = vrot.slane %v6147, 1
      %v6522 = vrot.slane %v6148, 1
      %v6523 = vsel %vm1735, %v6521, %v6522
      %v6524 = vrot.slane %v6149, 1
      %v6525 = vsel %vm1735, %v6522, %v6524
      %v6526 = vrot.slane %v6150, 1
      %v6527 = vrot.slane %v6151, 1
      %v6528 = vsel %vm1735, %v6526, %v6527
      %v6529 = vrot.slane %v6152, 1
      %v6530 = vsel %vm1735, %v6527, %v6529
      %v6531 = vrot.slane %v6153, 1
      %v6532 = vrot.slane %v6154, 1
      %v6533 = vsel %vm1735, %v6531, %v6532
      %v6534 = vrot.slane %v6155, 1
      %v6535 = vsel %vm1735, %v6532, %v6534
      %v6536 = vrot.slane %v6156, 1
      %v6537 = vrot.slane %v6157, 1
      %v6538 = vsel %vm1735, %v6536, %v6537
      %v6539 = vrot.slane %v6158, 1
      %v6540 = vsel %vm1735, %v6537, %v6539
      %v6541 = vrot.slane %v6159, 1
      %v6542 = vrot.slane %v6160, 1
      %v6543 = vsel %vm1735, %v6541, %v6542
      %v6544 = vrot.slane %v6161, 1
      %v6545 = vsel %vm1735, %v6542, %v6544
      %v6546 = vrot.slane %v6162, 1
      %v6547 = vrot.slane %v6163, 1
      %v6548 = vsel %vm1735, %v6546, %v6547
      %v6549 = vrot.slane %v6164, 1
      %v6550 = vsel %vm1735, %v6547, %v6549
      %v6551 = vrot.slane %v6165, 1
      %v6552 = vrot.slane %v6166, 1
      %v6553 = vsel %vm1735, %v6551, %v6552
      %v6554 = vrot.slane %v6167, 1
      %v6555 = vsel %vm1735, %v6552, %v6554
      %v6556 = vrot.slane %v6168, 1
      %v6557 = vrot.slane %v6169, 1
      %v6558 = vsel %vm1735, %v6556, %v6557
      %v6559 = vrot.slane %v6170, 1
      %v6560 = vsel %vm1735, %v6557, %v6559
      %v6561 = vrot.slane %v6171, 1
      %v6562 = vrot.slane %v6172, 1
      %v6563 = vsel %vm1735, %v6561, %v6562
      %v6564 = vrot.slane %v6173, 1
      %v6565 = vsel %vm1735, %v6562, %v6564
      %v6566 = vrot.slane %v6174, 1
      %v6567 = vrot.slane %v6175, 1
      %v6568 = vsel %vm1735, %v6566, %v6567
      %v6569 = vrot.slane %v6176, 1
      %v6570 = vsel %vm1735, %v6567, %v6569
      %v6571 = vrot.slane %v6177, 1
      %v6572 = vrot.slane %v6178, 1
      %v6573 = vsel %vm1735, %v6571, %v6572
      %v6574 = vrot.slane %v6179, 1
      %v6575 = vsel %vm1735, %v6572, %v6574
      %v6576 = vrot.slane %v6180, 1
      %v6577 = vrot.slane %v6181, 1
      %v6578 = vsel %vm1735, %v6576, %v6577
      %v6579 = vrot.slane %v6182, 1
      %v6580 = vsel %vm1735, %v6577, %v6579
      %v6581 = vrot.slane %v6183, 1
      %v6582 = vrot.slane %v6184, 1
      %v6583 = vsel %vm1735, %v6581, %v6582
      %v6584 = vrot.slane %v6185, 1
      %v6585 = vsel %vm1735, %v6582, %v6584
      %v6586 = vrot.slane %v6186, 1
      %v6587 = vrot.slane %v6187, 1
      %v6588 = vsel %vm1735, %v6586, %v6587
      %v6589 = vrot.slane %v6188, 1
      %v6590 = vsel %vm1735, %v6587, %v6589
      %v6591 = vrot.slane %v6189, 1
      %v6592 = vrot.slane %v6190, 1
      %v6593 = vsel %vm1735, %v6591, %v6592
      %v6594 = vrot.slane %v6191, 1
      %v6595 = vsel %vm1735, %v6592, %v6594
      %v6628 = vadd.f32 %v6436, %v6518
      %v6629 = vadd.f32 %v6437, %v6520
      %v6630 = vadd.f32 %v6438, %v6523
      %v6631 = vadd.f32 %v6439, %v6525
      %v6632 = vadd.f32 %v6440, %v6528
      %v6633 = vadd.f32 %v6441, %v6530
      %v6634 = vadd.f32 %v6442, %v6533
      %v6635 = vadd.f32 %v6443, %v6535
      %v6636 = vadd.f32 %v6444, %v6538
      %v6637 = vadd.f32 %v6445, %v6540
      %v6638 = vadd.f32 %v6446, %v6543
      %v6639 = vadd.f32 %v6447, %v6545
      %v6640 = vadd.f32 %v6448, %v6548
      %v6641 = vadd.f32 %v6449, %v6550
      %v6642 = vadd.f32 %v6450, %v6553
      %v6643 = vadd.f32 %v6451, %v6555
      %v6644 = vadd.f32 %v6452, %v6558
      %v6645 = vadd.f32 %v6453, %v6560
      %v6646 = vadd.f32 %v6454, %v6563
      %v6647 = vadd.f32 %v6455, %v6565
      %v6648 = vadd.f32 %v6456, %v6568
      %v6649 = vadd.f32 %v6457, %v6570
      %v6650 = vadd.f32 %v6458, %v6573
      %v6651 = vadd.f32 %v6459, %v6575
      %v6652 = vadd.f32 %v6460, %v6578
      %v6653 = vadd.f32 %v6461, %v6580
      %v6654 = vadd.f32 %v6462, %v6583
      %v6655 = vadd.f32 %v6463, %v6585
      %v6656 = vadd.f32 %v6464, %v6588
      %v6657 = vadd.f32 %v6465, %v6590
      %v6658 = vadd.f32 %v6466, %v6593
      %v6659 = vadd.f32 %v6467, %v6595
      %v6660 = vld [vmem:[%s262] sm:$0x1]
      %v6662 = vlaneseq
      %v6663 = vshrl.u32 %v6662, 7
      %v6664 = vsub.s32 0, %v6663
      %v6665 = vrot.slane %v6660, %v6664
      %v6667 = vmul.f32 %v6628, %v6665
      %v6668 = vmul.f32 %v6629, %v6665
      %v6669 = vmul.f32 %v6630, %v6665
      %v6670 = vmul.f32 %v6631, %v6665
      %v6671 = vmul.f32 %v6632, %v6665
      %v6672 = vmul.f32 %v6633, %v6665
      %v6673 = vmul.f32 %v6634, %v6665
      %v6674 = vmul.f32 %v6635, %v6665
      %v6675 = vmul.f32 %v6636, %v6665
      %v6676 = vmul.f32 %v6637, %v6665
      %v6677 = vmul.f32 %v6638, %v6665
      %v6678 = vmul.f32 %v6639, %v6665
      %v6679 = vmul.f32 %v6640, %v6665
      %v6680 = vmul.f32 %v6641, %v6665
      %v6681 = vmul.f32 %v6642, %v6665
      %v6682 = vmul.f32 %v6643, %v6665
      %v6683 = vmul.f32 %v6644, %v6665
      %v6684 = vmul.f32 %v6645, %v6665
      %v6685 = vmul.f32 %v6646, %v6665
      %v6686 = vmul.f32 %v6647, %v6665
      %v6687 = vmul.f32 %v6648, %v6665
      %v6688 = vmul.f32 %v6649, %v6665
      %v6689 = vmul.f32 %v6650, %v6665
      %v6690 = vmul.f32 %v6651, %v6665
      %v6691 = vmul.f32 %v6652, %v6665
      %v6692 = vmul.f32 %v6653, %v6665
      %v6693 = vmul.f32 %v6654, %v6665
      %v6694 = vmul.f32 %v6655, %v6665
      %v6695 = vmul.f32 %v6656, %v6665
      %v6696 = vmul.f32 %v6657, %v6665
      %v6697 = vmul.f32 %v6658, %v6665
      %v6698 = vmul.f32 %v6659, %v6665
      %v6699 = vld [vmem:[%s265] sm:$0x1]
      %v6701 = vlaneseq
      %v6702 = vshrl.u32 %v6701, 7
      %v6703 = vsub.s32 0, %v6702
      %v6704 = vrot.slane %v6699, %v6703
      %v6706 = vadd.f32 %v6667, %v6704
      %v6707 = vadd.f32 %v6668, %v6704
      %v6708 = vadd.f32 %v6669, %v6704
      %v6709 = vadd.f32 %v6670, %v6704
      %v6710 = vadd.f32 %v6671, %v6704
      %v6711 = vadd.f32 %v6672, %v6704
      %v6712 = vadd.f32 %v6673, %v6704
      %v6713 = vadd.f32 %v6674, %v6704
      %v6714 = vadd.f32 %v6675, %v6704
      %v6715 = vadd.f32 %v6676, %v6704
      %v6716 = vadd.f32 %v6677, %v6704
      %v6717 = vadd.f32 %v6678, %v6704
      %v6718 = vadd.f32 %v6679, %v6704
      %v6719 = vadd.f32 %v6680, %v6704
      %v6720 = vadd.f32 %v6681, %v6704
      %v6721 = vadd.f32 %v6682, %v6704
      %v6722 = vadd.f32 %v6683, %v6704
      %v6723 = vadd.f32 %v6684, %v6704
      %v6724 = vadd.f32 %v6685, %v6704
      %v6725 = vadd.f32 %v6686, %v6704
      %v6726 = vadd.f32 %v6687, %v6704
      %v6727 = vadd.f32 %v6688, %v6704
      %v6728 = vadd.f32 %v6689, %v6704
      %v6729 = vadd.f32 %v6690, %v6704
      %v6730 = vadd.f32 %v6691, %v6704
      %v6731 = vadd.f32 %v6692, %v6704
      %v6732 = vadd.f32 %v6693, %v6704
      %v6733 = vadd.f32 %v6694, %v6704
      %v6734 = vadd.f32 %v6695, %v6704
      %v6735 = vadd.f32 %v6696, %v6704
      %v6736 = vadd.f32 %v6697, %v6704
      %v6737 = vadd.f32 %v6698, %v6704
      %v6738 = vmin.f32 %v6706, 20.0
      %v6739 = vmin.f32 %v6707, 20.0
      %v6740 = vmin.f32 %v6708, 20.0
      %v6741 = vmin.f32 %v6709, 20.0
      %v6742 = vmin.f32 %v6710, 20.0
      %v6743 = vmin.f32 %v6711, 20.0
      %v6744 = vmin.f32 %v6712, 20.0
      %v6745 = vmin.f32 %v6713, 20.0
      %v6746 = vmin.f32 %v6714, 20.0
      %v6747 = vmin.f32 %v6715, 20.0
      %v6748 = vmin.f32 %v6716, 20.0
      %v6749 = vmin.f32 %v6717, 20.0
      %v6750 = vmin.f32 %v6718, 20.0
      %v6751 = vmin.f32 %v6719, 20.0
      %v6752 = vmin.f32 %v6720, 20.0
      %v6753 = vmin.f32 %v6721, 20.0
      %v6754 = vmin.f32 %v6722, 20.0
      %v6755 = vmin.f32 %v6723, 20.0
      %v6756 = vmin.f32 %v6724, 20.0
      %v6757 = vmin.f32 %v6725, 20.0
      %v6758 = vmin.f32 %v6726, 20.0
      %v6759 = vmin.f32 %v6727, 20.0
      %v6760 = vmin.f32 %v6728, 20.0
      %v6761 = vmin.f32 %v6729, 20.0
      %v6762 = vmin.f32 %v6730, 20.0
      %v6763 = vmin.f32 %v6731, 20.0
      %v6764 = vmin.f32 %v6732, 20.0
      %v6765 = vmin.f32 %v6733, 20.0
      %v6766 = vmin.f32 %v6734, 20.0
      %v6767 = vmin.f32 %v6735, 20.0
      %v6768 = vmin.f32 %v6736, 20.0
      %v6769 = vmin.f32 %v6737, 20.0
      %v6770 = vmul.f32 %v6738, 1.442695
      %v6771 = vpow.pop %v6770
      %v6772 = vmul.f32 %v6739, 1.442695
      %v6773 = vpow.pop %v6772
      %v6774 = vmul.f32 %v6740, 1.442695
      %v6775 = vpow.pop %v6774
      %v6776 = vmul.f32 %v6741, 1.442695
      %v6777 = vpow.pop %v6776
      %v6778 = vmul.f32 %v6742, 1.442695
      %v6779 = vpow.pop %v6778
      %v6780 = vmul.f32 %v6743, 1.442695
      %v6781 = vpow.pop %v6780
      %v6782 = vmul.f32 %v6744, 1.442695
      %v6783 = vpow.pop %v6782
      %v6784 = vmul.f32 %v6745, 1.442695
      %v6785 = vpow.pop %v6784
      %v6786 = vmul.f32 %v6746, 1.442695
      %v6787 = vpow.pop %v6786
      %v6788 = vmul.f32 %v6747, 1.442695
      %v6789 = vpow.pop %v6788
      %v6790 = vmul.f32 %v6748, 1.442695
      %v6791 = vpow.pop %v6790
      %v6792 = vmul.f32 %v6749, 1.442695
      %v6793 = vpow.pop %v6792
      %v6794 = vmul.f32 %v6750, 1.442695
      %v6795 = vpow.pop %v6794
      %v6796 = vmul.f32 %v6751, 1.442695
      %v6797 = vpow.pop %v6796
      %v6798 = vmul.f32 %v6752, 1.442695
      %v6799 = vpow.pop %v6798
      %v6800 = vmul.f32 %v6753, 1.442695
      %v6801 = vpow.pop %v6800
      %v6802 = vmul.f32 %v6754, 1.442695
      %v6803 = vpow.pop %v6802
      %v6804 = vmul.f32 %v6755, 1.442695
      %v6805 = vpow.pop %v6804
      %v6806 = vmul.f32 %v6756, 1.442695
      %v6807 = vpow.pop %v6806
      %v6808 = vmul.f32 %v6757, 1.442695
      %v6809 = vpow.pop %v6808
      %v6810 = vmul.f32 %v6758, 1.442695
      %v6811 = vpow.pop %v6810
      %v6812 = vmul.f32 %v6759, 1.442695
      %v6813 = vpow.pop %v6812
      %v6814 = vmul.f32 %v6760, 1.442695
      %v6815 = vpow.pop %v6814
      %v6816 = vmul.f32 %v6761, 1.442695
      %v6817 = vpow.pop %v6816
      %v6818 = vmul.f32 %v6762, 1.442695
      %v6819 = vpow.pop %v6818
      %v6820 = vmul.f32 %v6763, 1.442695
      %v6821 = vpow.pop %v6820
      %v6822 = vmul.f32 %v6764, 1.442695
      %v6823 = vpow.pop %v6822
      %v6824 = vmul.f32 %v6765, 1.442695
      %v6825 = vpow.pop %v6824
      %v6826 = vmul.f32 %v6766, 1.442695
      %v6827 = vpow.pop %v6826
      %v6828 = vmul.f32 %v6767, 1.442695
      %v6829 = vpow.pop %v6828
      %v6830 = vmul.f32 %v6768, 1.442695
      %v6831 = vpow.pop %v6830
      %v6832 = vmul.f32 %v6769, 1.442695
      %v6833 = vpow.pop %v6832
      %v6834 = vadd.f32 %v6771, 1.0
      %v6835 = vadd.f32 %v6773, 1.0
      %v6836 = vadd.f32 %v6775, 1.0
      %v6837 = vadd.f32 %v6777, 1.0
      %v6838 = vadd.f32 %v6779, 1.0
      %v6839 = vadd.f32 %v6781, 1.0
      %v6840 = vadd.f32 %v6783, 1.0
      %v6841 = vadd.f32 %v6785, 1.0
      %v6842 = vadd.f32 %v6787, 1.0
      %v6843 = vadd.f32 %v6789, 1.0
      %v6844 = vadd.f32 %v6791, 1.0
      %v6845 = vadd.f32 %v6793, 1.0
      %v6846 = vadd.f32 %v6795, 1.0
      %v6847 = vadd.f32 %v6797, 1.0
      %v6848 = vadd.f32 %v6799, 1.0
      %v6849 = vadd.f32 %v6801, 1.0
      %v6850 = vadd.f32 %v6803, 1.0
      %v6851 = vadd.f32 %v6805, 1.0
      %v6852 = vadd.f32 %v6807, 1.0
      %v6853 = vadd.f32 %v6809, 1.0
      %v6854 = vadd.f32 %v6811, 1.0
      %v6855 = vadd.f32 %v6813, 1.0
      %v6856 = vadd.f32 %v6815, 1.0
      %v6857 = vadd.f32 %v6817, 1.0
      %v6858 = vadd.f32 %v6819, 1.0
      %v6859 = vadd.f32 %v6821, 1.0
      %v6860 = vadd.f32 %v6823, 1.0
      %v6861 = vadd.f32 %v6825, 1.0
      %v6862 = vadd.f32 %v6827, 1.0
      %v6863 = vadd.f32 %v6829, 1.0
      %v6864 = vadd.f32 %v6831, 1.0
      %v6865 = vadd.f32 %v6833, 1.0
      %v6866 = vmul.f32 %v6834, %v6834
      %v6867 = vmul.f32 %v6835, %v6835
      %v6868 = vmul.f32 %v6836, %v6836
      %v6869 = vmul.f32 %v6837, %v6837
      %v6870 = vmul.f32 %v6838, %v6838
      %v6871 = vmul.f32 %v6839, %v6839
      %v6872 = vmul.f32 %v6840, %v6840
      %v6873 = vmul.f32 %v6841, %v6841
      %v6874 = vmul.f32 %v6842, %v6842
      %v6875 = vmul.f32 %v6843, %v6843
      %v6876 = vmul.f32 %v6844, %v6844
      %v6877 = vmul.f32 %v6845, %v6845
      %v6878 = vmul.f32 %v6846, %v6846
      %v6879 = vmul.f32 %v6847, %v6847
      %v6880 = vmul.f32 %v6848, %v6848
      %v6881 = vmul.f32 %v6849, %v6849
      %v6882 = vmul.f32 %v6850, %v6850
      %v6883 = vmul.f32 %v6851, %v6851
      %v6884 = vmul.f32 %v6852, %v6852
      %v6885 = vmul.f32 %v6853, %v6853
      %v6886 = vmul.f32 %v6854, %v6854
      %v6887 = vmul.f32 %v6855, %v6855
      %v6888 = vmul.f32 %v6856, %v6856
      %v6889 = vmul.f32 %v6857, %v6857
      %v6890 = vmul.f32 %v6858, %v6858
      %v6891 = vmul.f32 %v6859, %v6859
      %v6892 = vmul.f32 %v6860, %v6860
      %v6893 = vmul.f32 %v6861, %v6861
      %v6894 = vmul.f32 %v6862, %v6862
      %v6895 = vmul.f32 %v6863, %v6863
      %v6896 = vmul.f32 %v6864, %v6864
      %v6897 = vmul.f32 %v6865, %v6865
      %v6898 = vsub.f32 %v6866, 1.0
      %v6899 = vsub.f32 %v6867, 1.0
      %v6900 = vsub.f32 %v6868, 1.0
      %v6901 = vsub.f32 %v6869, 1.0
      %v6902 = vsub.f32 %v6870, 1.0
      %v6903 = vsub.f32 %v6871, 1.0
      %v6904 = vsub.f32 %v6872, 1.0
      %v6905 = vsub.f32 %v6873, 1.0
      %v6906 = vsub.f32 %v6874, 1.0
      %v6907 = vsub.f32 %v6875, 1.0
      %v6908 = vsub.f32 %v6876, 1.0
      %v6909 = vsub.f32 %v6877, 1.0
      %v6910 = vsub.f32 %v6878, 1.0
      %v6911 = vsub.f32 %v6879, 1.0
      %v6912 = vsub.f32 %v6880, 1.0
      %v6913 = vsub.f32 %v6881, 1.0
      %v6914 = vsub.f32 %v6882, 1.0
      %v6915 = vsub.f32 %v6883, 1.0
      %v6916 = vsub.f32 %v6884, 1.0
      %v6917 = vsub.f32 %v6885, 1.0
      %v6918 = vsub.f32 %v6886, 1.0
      %v6919 = vsub.f32 %v6887, 1.0
      %v6920 = vsub.f32 %v6888, 1.0
      %v6921 = vsub.f32 %v6889, 1.0
      %v6922 = vsub.f32 %v6890, 1.0
      %v6923 = vsub.f32 %v6891, 1.0
      %v6924 = vsub.f32 %v6892, 1.0
      %v6925 = vsub.f32 %v6893, 1.0
      %v6926 = vsub.f32 %v6894, 1.0
      %v6927 = vsub.f32 %v6895, 1.0
      %v6928 = vsub.f32 %v6896, 1.0
      %v6929 = vsub.f32 %v6897, 1.0
      %v6930 = vmul.f32 %v6706, %v6898
      %v6931 = vmul.f32 %v6707, %v6899
      %v6932 = vmul.f32 %v6708, %v6900
      %v6933 = vmul.f32 %v6709, %v6901
      %v6934 = vmul.f32 %v6710, %v6902
      %v6935 = vmul.f32 %v6711, %v6903
      %v6936 = vmul.f32 %v6712, %v6904
      %v6937 = vmul.f32 %v6713, %v6905
      %v6938 = vmul.f32 %v6714, %v6906
      %v6939 = vmul.f32 %v6715, %v6907
      %v6940 = vmul.f32 %v6716, %v6908
      %v6941 = vmul.f32 %v6717, %v6909
      %v6942 = vmul.f32 %v6718, %v6910
      %v6943 = vmul.f32 %v6719, %v6911
      %v6944 = vmul.f32 %v6720, %v6912
      %v6945 = vmul.f32 %v6721, %v6913
      %v6946 = vmul.f32 %v6722, %v6914
      %v6947 = vmul.f32 %v6723, %v6915
      %v6948 = vmul.f32 %v6724, %v6916
      %v6949 = vmul.f32 %v6725, %v6917
      %v6950 = vmul.f32 %v6726, %v6918
      %v6951 = vmul.f32 %v6727, %v6919
      %v6952 = vmul.f32 %v6728, %v6920
      %v6953 = vmul.f32 %v6729, %v6921
      %v6954 = vmul.f32 %v6730, %v6922
      %v6955 = vmul.f32 %v6731, %v6923
      %v6956 = vmul.f32 %v6732, %v6924
      %v6957 = vmul.f32 %v6733, %v6925
      %v6958 = vmul.f32 %v6734, %v6926
      %v6959 = vmul.f32 %v6735, %v6927
      %v6960 = vmul.f32 %v6736, %v6928
      %v6961 = vmul.f32 %v6737, %v6929
      %v6962 = vadd.f32 %v6866, 1.0
      %v6963 = vadd.f32 %v6867, 1.0
      %v6964 = vadd.f32 %v6868, 1.0
      %v6965 = vadd.f32 %v6869, 1.0
      %v6966 = vadd.f32 %v6870, 1.0
      %v6967 = vadd.f32 %v6871, 1.0
      %v6968 = vadd.f32 %v6872, 1.0
      %v6969 = vadd.f32 %v6873, 1.0
      %v6970 = vadd.f32 %v6874, 1.0
      %v6971 = vadd.f32 %v6875, 1.0
      %v6972 = vadd.f32 %v6876, 1.0
      %v6973 = vadd.f32 %v6877, 1.0
      %v6974 = vadd.f32 %v6878, 1.0
      %v6975 = vadd.f32 %v6879, 1.0
      %v6976 = vadd.f32 %v6880, 1.0
      %v6977 = vadd.f32 %v6881, 1.0
      %v6978 = vadd.f32 %v6882, 1.0
      %v6979 = vadd.f32 %v6883, 1.0
      %v6980 = vadd.f32 %v6884, 1.0
      %v6981 = vadd.f32 %v6885, 1.0
      %v6982 = vadd.f32 %v6886, 1.0
      %v6983 = vadd.f32 %v6887, 1.0
      %v6984 = vadd.f32 %v6888, 1.0
      %v6985 = vadd.f32 %v6889, 1.0
      %v6986 = vadd.f32 %v6890, 1.0
      %v6987 = vadd.f32 %v6891, 1.0
      %v6988 = vadd.f32 %v6892, 1.0
      %v6989 = vadd.f32 %v6893, 1.0
      %v6990 = vadd.f32 %v6894, 1.0
      %v6991 = vadd.f32 %v6895, 1.0
      %v6992 = vadd.f32 %v6896, 1.0
      %v6993 = vadd.f32 %v6897, 1.0
      %v6994 = vrcp.pop %v6962
      %v6995 = vrcp.pop %v6963
      %v6996 = vrcp.pop %v6964
      %v6997 = vrcp.pop %v6965
      %v6998 = vrcp.pop %v6966
      %v6999 = vrcp.pop %v6967
      %v7000 = vrcp.pop %v6968
      %v7001 = vrcp.pop %v6969
      %v7002 = vrcp.pop %v6970
      %v7003 = vrcp.pop %v6971
      %v7004 = vrcp.pop %v6972
      %v7005 = vrcp.pop %v6973
      %v7006 = vrcp.pop %v6974
      %v7007 = vrcp.pop %v6975
      %v7008 = vrcp.pop %v6976
      %v7009 = vrcp.pop %v6977
      %v7010 = vrcp.pop %v6978
      %v7011 = vrcp.pop %v6979
      %v7012 = vrcp.pop %v6980
      %v7013 = vrcp.pop %v6981
      %v7014 = vrcp.pop %v6982
      %v7015 = vrcp.pop %v6983
      %v7016 = vrcp.pop %v6984
      %v7017 = vrcp.pop %v6985
      %v7018 = vrcp.pop %v6986
      %v7019 = vrcp.pop %v6987
      %v7020 = vrcp.pop %v6988
      %v7021 = vrcp.pop %v6989
      %v7022 = vrcp.pop %v6990
      %v7023 = vrcp.pop %v6991
      %v7024 = vrcp.pop %v6992
      %v7025 = vrcp.pop %v6993
      %v7026 = vmul.f32 %v6930, %v6994
      %v7027 = vmul.f32 %v6931, %v6995
      %v7028 = vmul.f32 %v6932, %v6996
      %v7029 = vmul.f32 %v6933, %v6997
      %v7030 = vmul.f32 %v6934, %v6998
      %v7031 = vmul.f32 %v6935, %v6999
      %v7032 = vmul.f32 %v6936, %v7000
      %v7033 = vmul.f32 %v6937, %v7001
      %v7034 = vmul.f32 %v6938, %v7002
      %v7035 = vmul.f32 %v6939, %v7003
      %v7036 = vmul.f32 %v6940, %v7004
      %v7037 = vmul.f32 %v6941, %v7005
      %v7038 = vmul.f32 %v6942, %v7006
      %v7039 = vmul.f32 %v6943, %v7007
      %v7040 = vmul.f32 %v6944, %v7008
      %v7041 = vmul.f32 %v6945, %v7009
      %v7042 = vmul.f32 %v6946, %v7010
      %v7043 = vmul.f32 %v6947, %v7011
      %v7044 = vmul.f32 %v6948, %v7012
      %v7045 = vmul.f32 %v6949, %v7013
      %v7046 = vmul.f32 %v6950, %v7014
      %v7047 = vmul.f32 %v6951, %v7015
      %v7048 = vmul.f32 %v6952, %v7016
      %v7049 = vmul.f32 %v6953, %v7017
      %v7050 = vmul.f32 %v6954, %v7018
      %v7051 = vmul.f32 %v6955, %v7019
      %v7052 = vmul.f32 %v6956, %v7020
      %v7053 = vmul.f32 %v6957, %v7021
      %v7054 = vmul.f32 %v6958, %v7022
      %v7055 = vmul.f32 %v6959, %v7023
      %v7056 = vmul.f32 %v6960, %v7024
      %v7057 = vmul.f32 %v6961, %v7025
      %v7058 = vpack.c.bf16 %v7027, %v7026
      %v7059 = vpack.c.bf16 %v7029, %v7028
      %v7060 = vpack.c.bf16 %v7031, %v7030
      %v7061 = vpack.c.bf16 %v7033, %v7032
      %v7062 = vpack.c.bf16 %v7035, %v7034
      %v7063 = vpack.c.bf16 %v7037, %v7036
      %v7064 = vpack.c.bf16 %v7039, %v7038
      %v7065 = vpack.c.bf16 %v7041, %v7040
      %v7066 = vpack.c.bf16 %v7043, %v7042
      %v7067 = vpack.c.bf16 %v7045, %v7044
      %v7068 = vpack.c.bf16 %v7047, %v7046
      %v7069 = vpack.c.bf16 %v7049, %v7048
      %v7070 = vpack.c.bf16 %v7051, %v7050
      %v7071 = vpack.c.bf16 %v7053, %v7052
      %v7072 = vpack.c.bf16 %v7055, %v7054
      %v7073 = vpack.c.bf16 %v7057, %v7056
      %v7090 = vunpack.c.l.b16 %v7058
      %v7091 = vunpack.c.h.b16 %v7058
      %v7092 = vunpack.c.l.b16 %v7059
      %v7093 = vunpack.c.h.b16 %v7059
      %v7094 = vunpack.c.l.b16 %v7060
      %v7095 = vunpack.c.h.b16 %v7060
      %v7096 = vunpack.c.l.b16 %v7061
      %v7097 = vunpack.c.h.b16 %v7061
      %v7098 = vunpack.c.l.b16 %v7062
      %v7099 = vunpack.c.h.b16 %v7062
      %v7100 = vunpack.c.l.b16 %v7063
      %v7101 = vunpack.c.h.b16 %v7063
      %v7102 = vunpack.c.l.b16 %v7064
      %v7103 = vunpack.c.h.b16 %v7064
      %v7104 = vunpack.c.l.b16 %v7065
      %v7105 = vunpack.c.h.b16 %v7065
      %v7106 = vunpack.c.l.b16 %v7066
      %v7107 = vunpack.c.h.b16 %v7066
      %v7108 = vunpack.c.l.b16 %v7067
      %v7109 = vunpack.c.h.b16 %v7067
      %v7110 = vunpack.c.l.b16 %v7068
      %v7111 = vunpack.c.h.b16 %v7068
      %v7112 = vunpack.c.l.b16 %v7069
      %v7113 = vunpack.c.h.b16 %v7069
      %v7114 = vunpack.c.l.b16 %v7070
      %v7115 = vunpack.c.h.b16 %v7070
      %v7116 = vunpack.c.l.b16 %v7071
      %v7117 = vunpack.c.h.b16 %v7071
      %v7118 = vunpack.c.l.b16 %v7072
      %v7119 = vunpack.c.h.b16 %v7072
      %v7120 = vunpack.c.l.b16 %v7073
      %v7121 = vunpack.c.h.b16 %v7073
      %v7122 = vpack.c.b16 %v7090, %v7090
      %v7123 = vpack.c.b16 %v7091, %v7091
      %v7124 = vpack.c.b16 %v7092, %v7092
      %v7125 = vpack.c.b16 %v7093, %v7093
      %v7126 = vpack.c.b16 %v7094, %v7094
      %v7127 = vpack.c.b16 %v7095, %v7095
      %v7128 = vpack.c.b16 %v7096, %v7096
      %v7129 = vpack.c.b16 %v7097, %v7097
      %v7130 = vpack.c.b16 %v7098, %v7098
      %v7131 = vpack.c.b16 %v7099, %v7099
      %v7132 = vpack.c.b16 %v7100, %v7100
      %v7133 = vpack.c.b16 %v7101, %v7101
      %v7134 = vpack.c.b16 %v7102, %v7102
      %v7135 = vpack.c.b16 %v7103, %v7103
      %v7136 = vpack.c.b16 %v7104, %v7104
      %v7137 = vpack.c.b16 %v7105, %v7105
      %v7138 = vpack.c.b16 %v7106, %v7106
      %v7139 = vpack.c.b16 %v7107, %v7107
      %v7140 = vpack.c.b16 %v7108, %v7108
      %v7141 = vpack.c.b16 %v7109, %v7109
      %v7142 = vpack.c.b16 %v7110, %v7110
      %v7143 = vpack.c.b16 %v7111, %v7111
      %v7144 = vpack.c.b16 %v7112, %v7112
      %v7145 = vpack.c.b16 %v7113, %v7113
      %v7146 = vpack.c.b16 %v7114, %v7114
      %v7147 = vpack.c.b16 %v7115, %v7115
      %v7148 = vpack.c.b16 %v7116, %v7116
      %v7149 = vpack.c.b16 %v7117, %v7117
      %v7150 = vpack.c.b16 %v7118, %v7118
      %v7151 = vpack.c.b16 %v7119, %v7119
      %v7152 = vpack.c.b16 %v7120, %v7120
      %v7153 = vpack.c.b16 %v7121, %v7121
      %7186 = vst [vmem:[%s273] sm:$0xf] %v7122
      %7187 = vst [vmem:[%s273 + $0x4] sm:$0xf] %v7123
      %7188 = vst [vmem:[%s273 + $0x8] sm:$0xf] %v7124
      %7189 = vst [vmem:[%s273 + $0xc] sm:$0xf] %v7125
      %7190 = vst [vmem:[%s273 + $0x10] sm:$0xf] %v7126
      %7191 = vst [vmem:[%s273 + $0x14] sm:$0xf] %v7127
      %7192 = vst [vmem:[%s273 + $0x18] sm:$0xf] %v7128
      %7193 = vst [vmem:[%s273 + $0x1c] sm:$0xf] %v7129
      %7194 = vst [vmem:[%s273 + $0x20] sm:$0xf] %v7130
      %7195 = vst [vmem:[%s273 + $0x24] sm:$0xf] %v7131
      %7196 = vst [vmem:[%s273 + $0x28] sm:$0xf] %v7132
      %7197 = vst [vmem:[%s273 + $0x2c] sm:$0xf] %v7133
      %7198 = vst [vmem:[%s273 + $0x30] sm:$0xf] %v7134
      %7199 = vst [vmem:[%s273 + $0x34] sm:$0xf] %v7135
      %7200 = vst [vmem:[%s273 + $0x38] sm:$0xf] %v7136
      %7201 = vst [vmem:[%s273 + $0x3c] sm:$0xf] %v7137
      %7202 = vst [vmem:[%s273 + $0x40] sm:$0xf] %v7138
      %7203 = vst [vmem:[%s273 + $0x44] sm:$0xf] %v7139
      %7204 = vst [vmem:[%s273 + $0x48] sm:$0xf] %v7140
      %7205 = vst [vmem:[%s273 + $0x4c] sm:$0xf] %v7141
      %7206 = vst [vmem:[%s273 + $0x50] sm:$0xf] %v7142
      %7207 = vst [vmem:[%s273 + $0x54] sm:$0xf] %v7143
      %7208 = vst [vmem:[%s273 + $0x58] sm:$0xf] %v7144
      %7209 = vst [vmem:[%s273 + $0x5c] sm:$0xf] %v7145
      %7210 = vst [vmem:[%s273 + $0x60] sm:$0xf] %v7146
      %7211 = vst [vmem:[%s273 + $0x64] sm:$0xf] %v7147
      %7212 = vst [vmem:[%s273 + $0x68] sm:$0xf] %v7148
      %7213 = vst [vmem:[%s273 + $0x6c] sm:$0xf] %v7149
      %7214 = vst [vmem:[%s273 + $0x70] sm:$0xf] %v7150
      %7215 = vst [vmem:[%s273 + $0x74] sm:$0xf] %v7151
      %7216 = vst [vmem:[%s273 + $0x78] sm:$0xf] %v7152
      %7217 = vst [vmem:[%s273 + $0x7c] sm:$0xf] %v7153
      %p7218 = scmp.lt.s32.totalorder %s19, 1
      %s7219 = scalar_select %p7218, %s19, 1
      %p7220 = scmp.lt.s32.totalorder %s20, 0
      %s7221 = scalar_select %p7220, %s20, 0
      %s7222 = smul.addr %s7219, 32
      %s7223 = sadd.s32 %s7221, %s7222
      %s7224 = smul.addr %s7223, 4
      %s7225 = scalar_lea.vmem %s4, %s7224
      // Predicated region
      $region37: #{_lambda_.4} parent=35 // pred_check
        %p7226 = pneg %p153
      $region38: #{_lambda_.4} parent=35 // pred_check_branch
        %7228 = sbr.rel (%p7226) target = $region40
      $region39: #{_lambda_.4} parent=35 // pred_region
        _
      $region40: #{_lambda_.4} parent=35 // pred_fallthru
        _
    $region36: #{_lambda_.4} parent=5 // pred_fallthru
      _
    %p7229 = scmp.le.s32.totalorder 2, %s10
    // Predicated region
    $region41: #{_lambda_.4} parent=5 // pred_check
      %p7230 = pneg %p7229
    $region42: #{_lambda_.4} parent=5 // pred_check_branch
      %7232 = sbr.rel (%p7230) target = $region44
    $region43: #{_lambda_.4} parent=5 // pred_region
      %s7233 = ssub.s32 %s10, 2
      // Predicated region
      $region45: #{_lambda_.4} parent=43 // pred_check
        %p7234 = pneg %p159
      $region46: #{_lambda_.4} parent=43 // pred_check_branch
        %7236 = sbr.rel (%p7234) target = $region48
      $region47: #{_lambda_.4} parent=43 // pred_region
        %p7237 = scmp.lt.s32.totalorder %s21, 1
        %s7238 = scalar_select %p7237, %s21, 1
        %p7239 = scmp.lt.s32.totalorder %s22, 0
        %s7240 = scalar_select %p7239, %s22, 0
        %s7241 = smul.addr %s7238, 32
        %s7242 = sadd.s32 %s7240, %s7241
        %s7243 = smul.addr %s7242, 4
        %s7244 = scalar_lea.vmem %s4, %s7243
      $region48: #{_lambda_.4} parent=43 // pred_fallthru
        _
    $region44: #{_lambda_.4} parent=5 // pred_fallthru
      _
  $region6: #{_lambda_.4} parent=0 // loop_footer
    %s14 = sadd.s32 1, %s10
  $region7: #{_lambda_.4} parent=0 // loop_footer_branch
    %9 = sbr.rel target = $region3
  $region8: #{_lambda_.4} parent=0 // loop_exit
    _

</llo_original>
